<compile_context>
chip_gen: v6e
topology: v6e:2x2x1
jax: 0.10.0
libtpu: 0.0.40
codegen_flags: <defaults>
</compile_context>

<pallas_src>
import functools

import jax
import jax.numpy as jnp
from jax.experimental import pallas as pl
from jax.experimental.pallas import tpu as pltpu


# ----------------------------------------------------------------------------
# Pallas kernels
# ----------------------------------------------------------------------------
def _matmul_fused_kernel(*refs, activation):
    """Tiled matmul (grid = (M tiles, K tiles), K last) with fused epilogue.

    activation:
      None       -> plain matmul
      "leaky"    -> LeakyReLU(0.2)
      "bn_leaky" -> train-mode BatchNorm over rows (batch stats) + LeakyReLU(0.2)
                    (requires the M axis untiled so the full reduction is resident)
    """
    if activation == "bn_leaky":
        a_ref, b_ref, g_ref, bt_ref, o_ref = refs
    else:
        a_ref, b_ref, o_ref = refs

    k = pl.program_id(1)

    @pl.when(k == 0)
    def _():
        o_ref[...] = jnp.zeros_like(o_ref)

    # bf16 x bf16 -> f32 accumulate straight into the resident output block.
    o_ref[...] += jnp.dot(a_ref[...], b_ref[...],
                          preferred_element_type=jnp.float32)

    @pl.when(k == pl.num_programs(1) - 1)
    def _():
        y = o_ref[...]
        if activation == "bn_leaky":
            m = y.shape[0]
            mean = jnp.sum(y, axis=0, keepdims=True) * (1.0 / m)
            meansq = jnp.sum(y * y, axis=0, keepdims=True) * (1.0 / m)
            var = jnp.maximum(meansq - mean * mean, 0.0)   # guard cancellation
            inv = jax.lax.rsqrt(var + 1e-5)
            y = (y - mean) * inv * g_ref[...] + bt_ref[...]
            y = jnp.where(y > 0, y, 0.2 * y)
        elif activation == "leaky":
            y = jnp.where(y > 0, y, 0.2 * y)
        o_ref[...] = y


def matmul_fused(a, b, *, activation=None, gamma=None, beta=None,
                 tm_max=512, tk_max=1024):
    """a: (M, K), b: (K, Cout) -> (M, Cout) f32 with fused epilogue."""
    M, K = a.shape
    K2, Cout = b.shape
    assert K == K2

    # bf16 operands for the MXU; accumulation stays f32.
    a = a.astype(jnp.bfloat16)
    b = b.astype(jnp.bfloat16)

    tk = min(tk_max, K)
    if K % tk:
        tk = K
    if activation == "bn_leaky":
        tm = M                      # batch stats need the full M block resident
    else:
        tm = min(tm_max, M)
        if M % tm:
            tm = M

    kernel = functools.partial(_matmul_fused_kernel, activation=activation)

    in_specs = [
        pl.BlockSpec((tm, tk), lambda i, k: (i, k)),
        pl.BlockSpec((tk, Cout), lambda i, k: (k, 0)),
    ]
    args = [a, b]
    if activation == "bn_leaky":
        in_specs += [
            pl.BlockSpec((1, Cout), lambda i, k: (0, 0)),
            pl.BlockSpec((1, Cout), lambda i, k: (0, 0)),
        ]
        args += [gamma.reshape(1, Cout).astype(jnp.float32),
                 beta.reshape(1, Cout).astype(jnp.float32)]

    return pl.pallas_call(
        kernel,
        out_shape=jax.ShapeDtypeStruct((M, Cout), jnp.float32),
        grid_spec=pltpu.PrefetchScalarGridSpec(
            num_scalar_prefetch=0,
            grid=(M // tm, K // tk),
            in_specs=in_specs,
            out_specs=pl.BlockSpec((tm, Cout), lambda i, k: (i, 0)),
        ),
        compiler_params=pltpu.CompilerParams(
            dimension_semantics=("parallel", "arbitrary")),
    )(*args)


def _final_kernel(a_ref, w_ref, o_ref):
    """Final 4x4 valid conv (Cout=1) as a row-wise dot + sigmoid (VPU/XLU)."""
    s = jnp.sum(a_ref[...] * w_ref[...], axis=-1, keepdims=True)
    o_ref[...] = jax.nn.sigmoid(s)


def final_layer(x_flat, w_row):
    """x_flat: (N, K) f32, w_row: (1, K) f32 -> (N, 1) f32 with fused sigmoid."""
    M, K = x_flat.shape
    return pl.pallas_call(
        _final_kernel,
        out_shape=jax.ShapeDtypeStruct((M, 1), jnp.float32),
        grid=(1,),
        in_specs=[
            pl.BlockSpec((M, K), lambda i: (0, 0)),
            pl.BlockSpec((1, K), lambda i: (0, 0)),
        ],
        out_specs=pl.BlockSpec((M, 1), lambda i: (0, 0)),
    )(x_flat, w_row)


# ----------------------------------------------------------------------------
# Plain-JAX glue: NHWC im2col (lane-dense, no transposes between layers)
# ----------------------------------------------------------------------------
def _im2col_nhwc(x, k, stride, pad):
    """x: (N, H, W, C) -> patches (N*Ho*Wo, k*k*C), K-order = (kh, kw, Cin)."""
    N, H, W, C = x.shape
    xp = jnp.pad(x, ((0, 0), (pad, pad), (pad, pad), (0, 0)))
    Ho = (H + 2 * pad - k) // stride + 1
    Wo = (W + 2 * pad - k) // stride + 1
    cols = []
    for kh in range(k):
        for kw in range(k):
            cols.append(xp[:, kh:kh + stride * Ho:stride,
                           kw:kw + stride * Wo:stride, :])   # (N, Ho, Wo, C)
    patches = jnp.stack(cols, axis=3)                         # (N, Ho, Wo, k*k, C)
    patches = patches.reshape(N * Ho * Wo, k * k * C)
    return patches, (N, Ho, Wo)


def _weight_matrix(w):
    """PyTorch (Cout, Cin, kh, kw) -> (kh*kw*Cin, Cout), matching patch K-order."""
    Cout, Cin, kh, kw = w.shape
    return jnp.transpose(w, (2, 3, 1, 0)).reshape(kh * kw * Cin, Cout)


def _conv_layer(x_nhwc, w, stride, pad, *, activation=None, gamma=None, beta=None):
    Cout, Cin, kh, kw = w.shape
    patches, (N, Ho, Wo) = _im2col_nhwc(x_nhwc, kh, stride, pad)
    wm = _weight_matrix(w)
    out = matmul_fused(patches, wm, activation=activation, gamma=gamma, beta=beta)
    return out.reshape(N, Ho, Wo, Cout)


# ----------------------------------------------------------------------------
# Discriminator forward (train-mode BN, as a fresh nn.Module would use)
# ----------------------------------------------------------------------------
def discriminator_forward(x, p):
    x = jnp.transpose(x, (0, 2, 3, 1))               # NCHW -> NHWC, once
    # Conv(3->64, 4, 2, 1) + LeakyReLU(0.2)
    x = _conv_layer(x, p["w1"], 2, 1, activation="leaky")
    # Conv(64->128) + BN + LeakyReLU  (BN fused into matmul epilogue)
    x = _conv_layer(x, p["w2"], 2, 1, activation="bn_leaky",
                    gamma=p["g2"], beta=p["b2"])
    # Conv(128->256) + BN + LeakyReLU
    x = _conv_layer(x, p["w3"], 2, 1, activation="bn_leaky",
                    gamma=p["g3"], beta=p["b3"])
    # Conv(256->512) + BN + LeakyReLU
    x = _conv_layer(x, p["w4"], 2, 1, activation="bn_leaky",
                    gamma=p["g4"], beta=p["b4"])
    # Conv(512->1, 4, 1, 0) + Sigmoid — 4x4 valid conv == per-sample dot product.
    N = x.shape[0]
    x_flat = x.reshape(N, -1)                        # (N, 4*4*512) in (kh, kw, Cin)
    w_row = _weight_matrix(p["w5"]).reshape(1, -1)   # (1, 4*4*512)
    out = final_layer(x_flat, w_row)                 # (N, 1)
    # output.view(-1, 1).squeeze(1)
    return out.reshape(-1)


def make_params(key):
    ks = jax.random.split(key, 9)
    f32 = jnp.float32
    return {
        "w1": 0.02 * jax.random.normal(ks[0], (64, 3, 4, 4), f32),
        "w2": 0.02 * jax.random.normal(ks[1], (128, 64, 4, 4), f32),
        "w3": 0.02 * jax.random.normal(ks[2], (256, 128, 4, 4), f32),
        "w4": 0.02 * jax.random.normal(ks[3], (512, 256, 4, 4), f32),
        "w5": 0.02 * jax.random.normal(ks[4], (1, 512, 4, 4), f32),
        "g2": 1.0 + 0.02 * jax.random.normal(ks[5], (128,), f32),
        "g3": 1.0 + 0.02 * jax.random.normal(ks[6], (256,), f32),
        "g4": 1.0 + 0.02 * jax.random.normal(ks[7], (512,), f32),
        "b2": jnp.zeros((128,), f32),
        "b3": jnp.zeros((256,), f32),
        "b4": jnp.zeros((512,), f32),
    }


if __name__ == "__main__":
    key = jax.random.PRNGKey(0)
    kx, kp = jax.random.split(key)
    N = 2
    # DCGAN discriminator architecture requires 64x64 spatial input
    # (final 4x4 valid conv consumes the 4x4 feature map).
    x = jax.random.normal(kx, (N, 3, 64, 64), jnp.float32)
    params = make_params(kp)

    fwd = jax.jit(discriminator_forward)
    out = jax.block_until_ready(fwd(x, params))

    assert out.shape == (N,), out.shape
    assert bool(jnp.all(jnp.isfinite(out)))
    assert bool(jnp.all((out >= 0.0) & (out <= 1.0)))  # sigmoid range
    print("KERNEL_OK")
</pallas_src>

<mosaic_0001>
module attributes {stable_mosaic.version = 11 : i64} {
  func.func @_matmul_fused_kernel(%arg0: i32, %arg1: i32, %arg2: memref<512x48xbf16, #tpu.memory_space<vmem>>, %arg3: memref<48x64xbf16, #tpu.memory_space<vmem>>, %arg4: memref<512x64xf32, #tpu.memory_space<vmem>>) attributes {dimension_semantics = [#tpu.dimension_semantics<parallel>, #tpu.dimension_semantics<arbitrary>], iteration_bounds = array<i64: 4, 1>, scalar_prefetch = 0 : i64, scratch_operands = 0 : i64, tpu.core_type = #tpu.core_type<tc>, window_params = [{transform_indices = @transform_0, window_bounds = array<i64: 512, 48>}, {transform_indices = @transform_1, window_bounds = array<i64: 48, 64>}, {transform_indices = @transform_2, window_bounds = array<i64: 512, 64>}]} {
    %c0_i32 = arith.constant 0 : i32
    %0 = arith.cmpi eq, %arg1, %c0_i32 : i32
    %1 = arith.extui %0 : i1 to i32
    %c0_i32_0 = arith.constant 0 : i32
    %2 = arith.cmpi ne, %1, %c0_i32_0 : i32
    scf.if %2 {
      %cst_10 = arith.constant 0.000000e+00 : f32
      %12 = vector.broadcast %cst_10 : f32 to vector<512x64xf32>
      %c0_11 = arith.constant 0 : index
      %c0_12 = arith.constant 0 : index
      %13 = vector.load %arg4[%c0_11, %c0_12] : memref<512x64xf32, #tpu.memory_space<vmem>>, vector<512x64xf32>
      tpu.vector_store %arg4[%c0_11, %c0_12], %12 {strides = array<i32>} : memref<512x64xf32, #tpu.memory_space<vmem>>, vector<512x64xf32>,
    } else {
    }
    %c0 = arith.constant 0 : index
    %c0_1 = arith.constant 0 : index
    %3 = vector.load %arg4[%c0, %c0_1] : memref<512x64xf32, #tpu.memory_space<vmem>>, vector<512x64xf32>
    %c0_2 = arith.constant 0 : index
    %c0_3 = arith.constant 0 : index
    %4 = vector.load %arg2[%c0_2, %c0_3] : memref<512x48xbf16, #tpu.memory_space<vmem>>, vector<512x48xbf16>
    %c0_4 = arith.constant 0 : index
    %c0_5 = arith.constant 0 : index
    %5 = vector.load %arg3[%c0_4, %c0_5] : memref<48x64xbf16, #tpu.memory_space<vmem>>, vector<48x64xbf16>
    %cst = arith.constant dense<0.000000e+00> : vector<512x64xf32>
    %6 = tpu.matmul %4, %5, %cst {dimension_numbers = #tpu.dot_dimension_numbers<[1], [0], [0], [1], [0, 0, 1, 1], [], []>} : vector<512x48xbf16>, vector<48x64xbf16>, vector<512x64xf32> -> vector<512x64xf32>
    %7 = arith.addf %3, %6 : vector<512x64xf32>
    %c0_6 = arith.constant 0 : index
    %c0_7 = arith.constant 0 : index
    %8 = vector.load %arg4[%c0_6, %c0_7] : memref<512x64xf32, #tpu.memory_space<vmem>>, vector<512x64xf32>
    tpu.vector_store %arg4[%c0_6, %c0_7], %7 {strides = array<i32>} : memref<512x64xf32, #tpu.memory_space<vmem>>, vector<512x64xf32>,
    %c0_i32_8 = arith.constant 0 : i32
    %9 = arith.cmpi eq, %arg1, %c0_i32_8 : i32
    %10 = arith.extui %9 : i1 to i32
    %c0_i32_9 = arith.constant 0 : i32
    %11 = arith.cmpi ne, %10, %c0_i32_9 : i32
    scf.if %11 {
      %c0_10 = arith.constant 0 : index
      %c0_11 = arith.constant 0 : index
      %12 = vector.load %arg4[%c0_10, %c0_11] : memref<512x64xf32, #tpu.memory_space<vmem>>, vector<512x64xf32>
      %cst_12 = arith.constant 0.000000e+00 : f32
      %13 = vector.broadcast %cst_12 : f32 to vector<512x64xf32>
      %14 = arith.cmpf ogt, %12, %13 : vector<512x64xf32>
      %cst_13 = arith.constant 2.000000e-01 : f32
      %15 = vector.broadcast %cst_13 : f32 to vector<512x64xf32>
      %16 = arith.mulf %15, %12 : vector<512x64xf32>
      %17 = arith.select %14, %12, %16 : vector<512x64xi1>, vector<512x64xf32>
      %c0_14 = arith.constant 0 : index
      %c0_15 = arith.constant 0 : index
      %18 = vector.load %arg4[%c0_14, %c0_15] : memref<512x64xf32, #tpu.memory_space<vmem>>, vector<512x64xf32>
      tpu.vector_store %arg4[%c0_14, %c0_15], %17 {strides = array<i32>} : memref<512x64xf32, #tpu.memory_space<vmem>>, vector<512x64xf32>,
    } else {
    }
    return
  }
  func.func @transform_0(%arg0: i32, %arg1: i32) -> (i32, i32) {
    %c0_i32 = arith.constant 0 : i32
    return %arg0, %arg1 : i32, i32
  }
  func.func @transform_1(%arg0: i32, %arg1: i32) -> (i32, i32) {
    %c0_i32 = arith.constant 0 : i32
    %c0_i32_0 = arith.constant 0 : i32
    return %arg1, %c0_i32 : i32, i32
  }
  func.func @transform_2(%arg0: i32, %arg1: i32) -> (i32, i32) {
    %c0_i32 = arith.constant 0 : i32
    %c0_i32_0 = arith.constant 0 : i32
    return %arg0, %c0_i32 : i32, i32
  }
}

module attributes {stable_mosaic.version = 11 : i64} {
  func.func @_matmul_fused_kernel(%arg0: i32, %arg1: i32, %arg2: memref<512x1024xbf16, #tpu.memory_space<vmem>>, %arg3: memref<1024x128xbf16, #tpu.memory_space<vmem>>, %arg4: memref<1x128xf32, #tpu.memory_space<vmem>>, %arg5: memref<1x128xf32, #tpu.memory_space<vmem>>, %arg6: memref<512x128xf32, #tpu.memory_space<vmem>>) attributes {dimension_semantics = [#tpu.dimension_semantics<parallel>, #tpu.dimension_semantics<arbitrary>], iteration_bounds = array<i64: 1, 1>, scalar_prefetch = 0 : i64, scratch_operands = 0 : i64, tpu.core_type = #tpu.core_type<tc>, window_params = [{transform_indices = @transform_0, window_bounds = array<i64: 512, 1024>}, {transform_indices = @transform_1, window_bounds = array<i64: 1024, 128>}, {pipeline_mode = #tpu.pipeline_mode<synchronous>, transform_indices = @transform_2, window_bounds = array<i64: 1, 128>}, {pipeline_mode = #tpu.pipeline_mode<synchronous>, transform_indices = @transform_3, window_bounds = array<i64: 1, 128>}, {transform_indices = @transform_4, window_bounds = array<i64: 512, 128>}]} {
    %c0_i32 = arith.constant 0 : i32
    %0 = arith.cmpi eq, %arg1, %c0_i32 : i32
    %1 = arith.extui %0 : i1 to i32
    %c0_i32_0 = arith.constant 0 : i32
    %2 = arith.cmpi ne, %1, %c0_i32_0 : i32
    scf.if %2 {
      %cst_10 = arith.constant 0.000000e+00 : f32
      %12 = vector.broadcast %cst_10 : f32 to vector<512x128xf32>
      %c0_11 = arith.constant 0 : index
      %c0_12 = arith.constant 0 : index
      %13 = vector.load %arg6[%c0_11, %c0_12] : memref<512x128xf32, #tpu.memory_space<vmem>>, vector<512x128xf32>
      tpu.vector_store %arg6[%c0_11, %c0_12], %12 {strides = array<i32>} : memref<512x128xf32, #tpu.memory_space<vmem>>, vector<512x128xf32>,
    } else {
    }
    %c0 = arith.constant 0 : index
    %c0_1 = arith.constant 0 : index
    %3 = vector.load %arg6[%c0, %c0_1] : memref<512x128xf32, #tpu.memory_space<vmem>>, vector<512x128xf32>
    %c0_2 = arith.constant 0 : index
    %c0_3 = arith.constant 0 : index
    %4 = vector.load %arg2[%c0_2, %c0_3] : memref<512x1024xbf16, #tpu.memory_space<vmem>>, vector<512x1024xbf16>
    %c0_4 = arith.constant 0 : index
    %c0_5 = arith.constant 0 : index
    %5 = vector.load %arg3[%c0_4, %c0_5] : memref<1024x128xbf16, #tpu.memory_space<vmem>>, vector<1024x128xbf16>
    %cst = arith.constant dense<0.000000e+00> : vector<512x128xf32>
    %6 = tpu.matmul %4, %5, %cst {dimension_numbers = #tpu.dot_dimension_numbers<[1], [0], [0], [1], [0, 0, 1, 1], [], []>} : vector<512x1024xbf16>, vector<1024x128xbf16>, vector<512x128xf32> -> vector<512x128xf32>
    %7 = arith.addf %3, %6 : vector<512x128xf32>
    %c0_6 = arith.constant 0 : index
    %c0_7 = arith.constant 0 : index
    %8 = vector.load %arg6[%c0_6, %c0_7] : memref<512x128xf32, #tpu.memory_space<vmem>>, vector<512x128xf32>
    tpu.vector_store %arg6[%c0_6, %c0_7], %7 {strides = array<i32>} : memref<512x128xf32, #tpu.memory_space<vmem>>, vector<512x128xf32>,
    %c0_i32_8 = arith.constant 0 : i32
    %9 = arith.cmpi eq, %arg1, %c0_i32_8 : i32
    %10 = arith.extui %9 : i1 to i32
    %c0_i32_9 = arith.constant 0 : i32
    %11 = arith.cmpi ne, %10, %c0_i32_9 : i32
    scf.if %11 {
      %c0_10 = arith.constant 0 : index
      %c0_11 = arith.constant 0 : index
      %12 = vector.load %arg6[%c0_10, %c0_11] : memref<512x128xf32, #tpu.memory_space<vmem>>, vector<512x128xf32>
      %cst_12 = arith.constant dense<0.000000e+00> : vector<128xf32>
      %13 = vector.multi_reduction <add>, %12, %cst_12 [0] : vector<512x128xf32> to vector<128xf32>
      %14 = vector.shape_cast %13 : vector<128xf32> to vector<1x128xf32>
      %cst_13 = arith.constant 0.001953125 : f32
      %15 = vector.broadcast %cst_13 : f32 to vector<1x128xf32>
      %16 = arith.mulf %14, %15 : vector<1x128xf32>
      %17 = arith.mulf %12, %12 : vector<512x128xf32>
      %cst_14 = arith.constant dense<0.000000e+00> : vector<128xf32>
      %18 = vector.multi_reduction <add>, %17, %cst_14 [0] : vector<512x128xf32> to vector<128xf32>
      %19 = vector.shape_cast %18 : vector<128xf32> to vector<1x128xf32>
      %cst_15 = arith.constant 0.001953125 : f32
      %20 = vector.broadcast %cst_15 : f32 to vector<1x128xf32>
      %21 = arith.mulf %19, %20 : vector<1x128xf32>
      %22 = arith.mulf %16, %16 : vector<1x128xf32>
      %23 = arith.subf %21, %22 : vector<1x128xf32>
      %cst_16 = arith.constant 0.000000e+00 : f32
      %24 = vector.broadcast %cst_16 : f32 to vector<1x128xf32>
      %25 = arith.maximumf %23, %24 : vector<1x128xf32>
      %cst_17 = arith.constant 9.99999974E-6 : f32
      %26 = vector.broadcast %cst_17 : f32 to vector<1x128xf32>
      %27 = arith.addf %25, %26 : vector<1x128xf32>
      %28 = math.rsqrt %27 : vector<1x128xf32>
      %29 = vector.broadcast %16 : vector<1x128xf32> to vector<512x128xf32>
      %30 = arith.subf %12, %29 : vector<512x128xf32>
      %31 = vector.broadcast %28 : vector<1x128xf32> to vector<512x128xf32>
      %32 = arith.mulf %30, %31 : vector<512x128xf32>
      %c0_18 = arith.constant 0 : index
      %c0_19 = arith.constant 0 : index
      %33 = vector.load %arg4[%c0_18, %c0_19] : memref<1x128xf32, #tpu.memory_space<vmem>>, vector<1x128xf32>
      %34 = vector.broadcast %33 : vector<1x128xf32> to vector<512x128xf32>
      %35 = arith.mulf %32, %34 : vector<512x128xf32>
      %c0_20 = arith.constant 0 : index
      %c0_21 = arith.constant 0 : index
      %36 = vector.load %arg5[%c0_20, %c0_21] : memref<1x128xf32, #tpu.memory_space<vmem>>, vector<1x128xf32>
      %37 = vector.broadcast %36 : vector<1x128xf32> to vector<512x128xf32>
      %38 = arith.addf %35, %37 : vector<512x128xf32>
      %cst_22 = arith.constant 0.000000e+00 : f32
      %39 = vector.broadcast %cst_22 : f32 to vector<512x128xf32>
      %40 = arith.cmpf ogt, %38, %39 : vector<512x128xf32>
      %cst_23 = arith.constant 2.000000e-01 : f32
      %41 = vector.broadcast %cst_23 : f32 to vector<512x128xf32>
      %42 = arith.mulf %41, %38 : vector<512x128xf32>
      %43 = arith.select %40, %38, %42 : vector<512x128xi1>, vector<512x128xf32>
      %c0_24 = arith.constant 0 : index
      %c0_25 = arith.constant 0 : index
      %44 = vector.load %arg6[%c0_24, %c0_25] : memref<512x128xf32, #tpu.memory_space<vmem>>, vector<512x128xf32>
      tpu.vector_store %arg6[%c0_24, %c0_25], %43 {strides = array<i32>} : memref<512x128xf32, #tpu.memory_space<vmem>>, vector<512x128xf32>,
    } else {
    }
    return
  }
  func.func @transform_0(%arg0: i32, %arg1: i32) -> (i32, i32) {
    %c0_i32 = arith.constant 0 : i32
    return %arg0, %arg1 : i32, i32
  }
  func.func @transform_1(%arg0: i32, %arg1: i32) -> (i32, i32) {
    %c0_i32 = arith.constant 0 : i32
    %c0_i32_0 = arith.constant 0 : i32
    return %arg1, %c0_i32 : i32, i32
  }
  func.func @transform_2(%arg0: i32, %arg1: i32) -> (i32, i32) {
    %c0_i32 = arith.constant 0 : i32
    %c0_i32_0 = arith.constant 0 : i32
    %c0_i32_1 = arith.constant 0 : i32
    return %c0_i32, %c0_i32_0 : i32, i32
  }
  func.func @transform_3(%arg0: i32, %arg1: i32) -> (i32, i32) {
    %c0_i32 = arith.constant 0 : i32
    %c0_i32_0 = arith.constant 0 : i32
    %c0_i32_1 = arith.constant 0 : i32
    return %c0_i32, %c0_i32_0 : i32, i32
  }
  func.func @transform_4(%arg0: i32, %arg1: i32) -> (i32, i32) {
    %c0_i32 = arith.constant 0 : i32
    %c0_i32_0 = arith.constant 0 : i32
    return %arg0, %c0_i32 : i32, i32
  }
}

module attributes {stable_mosaic.version = 11 : i64} {
  func.func @_matmul_fused_kernel(%arg0: i32, %arg1: i32, %arg2: memref<128x1024xbf16, #tpu.memory_space<vmem>>, %arg3: memref<1024x256xbf16, #tpu.memory_space<vmem>>, %arg4: memref<1x256xf32, #tpu.memory_space<vmem>>, %arg5: memref<1x256xf32, #tpu.memory_space<vmem>>, %arg6: memref<128x256xf32, #tpu.memory_space<vmem>>) attributes {dimension_semantics = [#tpu.dimension_semantics<parallel>, #tpu.dimension_semantics<arbitrary>], iteration_bounds = array<i64: 1, 2>, scalar_prefetch = 0 : i64, scratch_operands = 0 : i64, tpu.core_type = #tpu.core_type<tc>, window_params = [{transform_indices = @transform_0, window_bounds = array<i64: 128, 1024>}, {transform_indices = @transform_1, window_bounds = array<i64: 1024, 256>}, {pipeline_mode = #tpu.pipeline_mode<synchronous>, transform_indices = @transform_2, window_bounds = array<i64: 1, 256>}, {pipeline_mode = #tpu.pipeline_mode<synchronous>, transform_indices = @transform_3, window_bounds = array<i64: 1, 256>}, {transform_indices = @transform_4, window_bounds = array<i64: 128, 256>}]} {
    %c0_i32 = arith.constant 0 : i32
    %0 = arith.cmpi eq, %arg1, %c0_i32 : i32
    %1 = arith.extui %0 : i1 to i32
    %c0_i32_0 = arith.constant 0 : i32
    %2 = arith.cmpi ne, %1, %c0_i32_0 : i32
    scf.if %2 {
      %cst_9 = arith.constant 0.000000e+00 : f32
      %12 = vector.broadcast %cst_9 : f32 to vector<128x256xf32>
      %c0_10 = arith.constant 0 : index
      %c0_11 = arith.constant 0 : index
      %13 = vector.load %arg6[%c0_10, %c0_11] : memref<128x256xf32, #tpu.memory_space<vmem>>, vector<128x256xf32>
      tpu.vector_store %arg6[%c0_10, %c0_11], %12 {strides = array<i32>} : memref<128x256xf32, #tpu.memory_space<vmem>>, vector<128x256xf32>,
    } else {
    }
    %c0 = arith.constant 0 : index
    %c0_1 = arith.constant 0 : index
    %3 = vector.load %arg6[%c0, %c0_1] : memref<128x256xf32, #tpu.memory_space<vmem>>, vector<128x256xf32>
    %c0_2 = arith.constant 0 : index
    %c0_3 = arith.constant 0 : index
    %4 = vector.load %arg2[%c0_2, %c0_3] : memref<128x1024xbf16, #tpu.memory_space<vmem>>, vector<128x1024xbf16>
    %c0_4 = arith.constant 0 : index
    %c0_5 = arith.constant 0 : index
    %5 = vector.load %arg3[%c0_4, %c0_5] : memref<1024x256xbf16, #tpu.memory_space<vmem>>, vector<1024x256xbf16>
    %cst = arith.constant dense<0.000000e+00> : vector<128x256xf32>
    %6 = tpu.matmul %4, %5, %cst {dimension_numbers = #tpu.dot_dimension_numbers<[1], [0], [0], [1], [0, 0, 1, 1], [], []>} : vector<128x1024xbf16>, vector<1024x256xbf16>, vector<128x256xf32> -> vector<128x256xf32>
    %7 = arith.addf %3, %6 : vector<128x256xf32>
    %c0_6 = arith.constant 0 : index
    %c0_7 = arith.constant 0 : index
    %8 = vector.load %arg6[%c0_6, %c0_7] : memref<128x256xf32, #tpu.memory_space<vmem>>, vector<128x256xf32>
    tpu.vector_store %arg6[%c0_6, %c0_7], %7 {strides = array<i32>} : memref<128x256xf32, #tpu.memory_space<vmem>>, vector<128x256xf32>,
    %c1_i32 = arith.constant 1 : i32
    %9 = arith.cmpi eq, %arg1, %c1_i32 : i32
    %10 = arith.extui %9 : i1 to i32
    %c0_i32_8 = arith.constant 0 : i32
    %11 = arith.cmpi ne, %10, %c0_i32_8 : i32
    scf.if %11 {
      %c0_9 = arith.constant 0 : index
      %c0_10 = arith.constant 0 : index
      %12 = vector.load %arg6[%c0_9, %c0_10] : memref<128x256xf32, #tpu.memory_space<vmem>>, vector<128x256xf32>
      %cst_11 = arith.constant dense<0.000000e+00> : vector<256xf32>
      %13 = vector.multi_reduction <add>, %12, %cst_11 [0] : vector<128x256xf32> to vector<256xf32>
      %14 = vector.shape_cast %13 : vector<256xf32> to vector<1x256xf32>
      %cst_12 = arith.constant 7.812500e-03 : f32
      %15 = vector.broadcast %cst_12 : f32 to vector<1x256xf32>
      %16 = arith.mulf %14, %15 : vector<1x256xf32>
      %17 = arith.mulf %12, %12 : vector<128x256xf32>
      %cst_13 = arith.constant dense<0.000000e+00> : vector<256xf32>
      %18 = vector.multi_reduction <add>, %17, %cst_13 [0] : vector<128x256xf32> to vector<256xf32>
      %19 = vector.shape_cast %18 : vector<256xf32> to vector<1x256xf32>
      %cst_14 = arith.constant 7.812500e-03 : f32
      %20 = vector.broadcast %cst_14 : f32 to vector<1x256xf32>
      %21 = arith.mulf %19, %20 : vector<1x256xf32>
      %22 = arith.mulf %16, %16 : vector<1x256xf32>
      %23 = arith.subf %21, %22 : vector<1x256xf32>
      %cst_15 = arith.constant 0.000000e+00 : f32
      %24 = vector.broadcast %cst_15 : f32 to vector<1x256xf32>
      %25 = arith.maximumf %23, %24 : vector<1x256xf32>
      %cst_16 = arith.constant 9.99999974E-6 : f32
      %26 = vector.broadcast %cst_16 : f32 to vector<1x256xf32>
      %27 = arith.addf %25, %26 : vector<1x256xf32>
      %28 = math.rsqrt %27 : vector<1x256xf32>
      %29 = vector.broadcast %16 : vector<1x256xf32> to vector<128x256xf32>
      %30 = arith.subf %12, %29 : vector<128x256xf32>
      %31 = vector.broadcast %28 : vector<1x256xf32> to vector<128x256xf32>
      %32 = arith.mulf %30, %31 : vector<128x256xf32>
      %c0_17 = arith.constant 0 : index
      %c0_18 = arith.constant 0 : index
      %33 = vector.load %arg4[%c0_17, %c0_18] : memref<1x256xf32, #tpu.memory_space<vmem>>, vector<1x256xf32>
      %34 = vector.broadcast %33 : vector<1x256xf32> to vector<128x256xf32>
      %35 = arith.mulf %32, %34 : vector<128x256xf32>
      %c0_19 = arith.constant 0 : index
      %c0_20 = arith.constant 0 : index
      %36 = vector.load %arg5[%c0_19, %c0_20] : memref<1x256xf32, #tpu.memory_space<vmem>>, vector<1x256xf32>
      %37 = vector.broadcast %36 : vector<1x256xf32> to vector<128x256xf32>
      %38 = arith.addf %35, %37 : vector<128x256xf32>
      %cst_21 = arith.constant 0.000000e+00 : f32
      %39 = vector.broadcast %cst_21 : f32 to vector<128x256xf32>
      %40 = arith.cmpf ogt, %38, %39 : vector<128x256xf32>
      %cst_22 = arith.constant 2.000000e-01 : f32
      %41 = vector.broadcast %cst_22 : f32 to vector<128x256xf32>
      %42 = arith.mulf %41, %38 : vector<128x256xf32>
      %43 = arith.select %40, %38, %42 : vector<128x256xi1>, vector<128x256xf32>
      %c0_23 = arith.constant 0 : index
      %c0_24 = arith.constant 0 : index
      %44 = vector.load %arg6[%c0_23, %c0_24] : memref<128x256xf32, #tpu.memory_space<vmem>>, vector<128x256xf32>
      tpu.vector_store %arg6[%c0_23, %c0_24], %43 {strides = array<i32>} : memref<128x256xf32, #tpu.memory_space<vmem>>, vector<128x256xf32>,
    } else {
    }
    return
  }
  func.func @transform_0(%arg0: i32, %arg1: i32) -> (i32, i32) {
    %c0_i32 = arith.constant 0 : i32
    return %arg0, %arg1 : i32, i32
  }
  func.func @transform_1(%arg0: i32, %arg1: i32) -> (i32, i32) {
    %c0_i32 = arith.constant 0 : i32
    %c0_i32_0 = arith.constant 0 : i32
    return %arg1, %c0_i32 : i32, i32
  }
  func.func @transform_2(%arg0: i32, %arg1: i32) -> (i32, i32) {
    %c0_i32 = arith.constant 0 : i32
    %c0_i32_0 = arith.constant 0 : i32
    %c0_i32_1 = arith.constant 0 : i32
    return %c0_i32, %c0_i32_0 : i32, i32
  }
  func.func @transform_3(%arg0: i32, %arg1: i32) -> (i32, i32) {
    %c0_i32 = arith.constant 0 : i32
    %c0_i32_0 = arith.constant 0 : i32
    %c0_i32_1 = arith.constant 0 : i32
    return %c0_i32, %c0_i32_0 : i32, i32
  }
  func.func @transform_4(%arg0: i32, %arg1: i32) -> (i32, i32) {
    %c0_i32 = arith.constant 0 : i32
    %c0_i32_0 = arith.constant 0 : i32
    return %arg0, %c0_i32 : i32, i32
  }
}

module attributes {stable_mosaic.version = 11 : i64} {
  func.func @_matmul_fused_kernel(%arg0: i32, %arg1: i32, %arg2: memref<32x1024xbf16, #tpu.memory_space<vmem>>, %arg3: memref<1024x512xbf16, #tpu.memory_space<vmem>>, %arg4: memref<1x512xf32, #tpu.memory_space<vmem>>, %arg5: memref<1x512xf32, #tpu.memory_space<vmem>>, %arg6: memref<32x512xf32, #tpu.memory_space<vmem>>) attributes {dimension_semantics = [#tpu.dimension_semantics<parallel>, #tpu.dimension_semantics<arbitrary>], iteration_bounds = array<i64: 1, 4>, scalar_prefetch = 0 : i64, scratch_operands = 0 : i64, tpu.core_type = #tpu.core_type<tc>, window_params = [{transform_indices = @transform_0, window_bounds = array<i64: 32, 1024>}, {transform_indices = @transform_1, window_bounds = array<i64: 1024, 512>}, {pipeline_mode = #tpu.pipeline_mode<synchronous>, transform_indices = @transform_2, window_bounds = array<i64: 1, 512>}, {pipeline_mode = #tpu.pipeline_mode<synchronous>, transform_indices = @transform_3, window_bounds = array<i64: 1, 512>}, {transform_indices = @transform_4, window_bounds = array<i64: 32, 512>}]} {
    %c0_i32 = arith.constant 0 : i32
    %0 = arith.cmpi eq, %arg1, %c0_i32 : i32
    %1 = arith.extui %0 : i1 to i32
    %c0_i32_0 = arith.constant 0 : i32
    %2 = arith.cmpi ne, %1, %c0_i32_0 : i32
    scf.if %2 {
      %cst_9 = arith.constant 0.000000e+00 : f32
      %12 = vector.broadcast %cst_9 : f32 to vector<32x512xf32>
      %c0_10 = arith.constant 0 : index
      %c0_11 = arith.constant 0 : index
      %13 = vector.load %arg6[%c0_10, %c0_11] : memref<32x512xf32, #tpu.memory_space<vmem>>, vector<32x512xf32>
      tpu.vector_store %arg6[%c0_10, %c0_11], %12 {strides = array<i32>} : memref<32x512xf32, #tpu.memory_space<vmem>>, vector<32x512xf32>,
    } else {
    }
    %c0 = arith.constant 0 : index
    %c0_1 = arith.constant 0 : index
    %3 = vector.load %arg6[%c0, %c0_1] : memref<32x512xf32, #tpu.memory_space<vmem>>, vector<32x512xf32>
    %c0_2 = arith.constant 0 : index
    %c0_3 = arith.constant 0 : index
    %4 = vector.load %arg2[%c0_2, %c0_3] : memref<32x1024xbf16, #tpu.memory_space<vmem>>, vector<32x1024xbf16>
    %c0_4 = arith.constant 0 : index
    %c0_5 = arith.constant 0 : index
    %5 = vector.load %arg3[%c0_4, %c0_5] : memref<1024x512xbf16, #tpu.memory_space<vmem>>, vector<1024x512xbf16>
    %cst = arith.constant dense<0.000000e+00> : vector<32x512xf32>
    %6 = tpu.matmul %4, %5, %cst {dimension_numbers = #tpu.dot_dimension_numbers<[1], [0], [0], [1], [0, 0, 1, 1], [], []>} : vector<32x1024xbf16>, vector<1024x512xbf16>, vector<32x512xf32> -> vector<32x512xf32>
    %7 = arith.addf %3, %6 : vector<32x512xf32>
    %c0_6 = arith.constant 0 : index
    %c0_7 = arith.constant 0 : index
    %8 = vector.load %arg6[%c0_6, %c0_7] : memref<32x512xf32, #tpu.memory_space<vmem>>, vector<32x512xf32>
    tpu.vector_store %arg6[%c0_6, %c0_7], %7 {strides = array<i32>} : memref<32x512xf32, #tpu.memory_space<vmem>>, vector<32x512xf32>,
    %c3_i32 = arith.constant 3 : i32
    %9 = arith.cmpi eq, %arg1, %c3_i32 : i32
    %10 = arith.extui %9 : i1 to i32
    %c0_i32_8 = arith.constant 0 : i32
    %11 = arith.cmpi ne, %10, %c0_i32_8 : i32
    scf.if %11 {
      %c0_9 = arith.constant 0 : index
      %c0_10 = arith.constant 0 : index
      %12 = vector.load %arg6[%c0_9, %c0_10] : memref<32x512xf32, #tpu.memory_space<vmem>>, vector<32x512xf32>
      %cst_11 = arith.constant dense<0.000000e+00> : vector<512xf32>
      %13 = vector.multi_reduction <add>, %12, %cst_11 [0] : vector<32x512xf32> to vector<512xf32>
      %14 = vector.shape_cast %13 : vector<512xf32> to vector<1x512xf32>
      %cst_12 = arith.constant 3.125000e-02 : f32
      %15 = vector.broadcast %cst_12 : f32 to vector<1x512xf32>
      %16 = arith.mulf %14, %15 : vector<1x512xf32>
      %17 = arith.mulf %12, %12 : vector<32x512xf32>
      %cst_13 = arith.constant dense<0.000000e+00> : vector<512xf32>
      %18 = vector.multi_reduction <add>, %17, %cst_13 [0] : vector<32x512xf32> to vector<512xf32>
      %19 = vector.shape_cast %18 : vector<512xf32> to vector<1x512xf32>
      %cst_14 = arith.constant 3.125000e-02 : f32
      %20 = vector.broadcast %cst_14 : f32 to vector<1x512xf32>
      %21 = arith.mulf %19, %20 : vector<1x512xf32>
      %22 = arith.mulf %16, %16 : vector<1x512xf32>
      %23 = arith.subf %21, %22 : vector<1x512xf32>
      %cst_15 = arith.constant 0.000000e+00 : f32
      %24 = vector.broadcast %cst_15 : f32 to vector<1x512xf32>
      %25 = arith.maximumf %23, %24 : vector<1x512xf32>
      %cst_16 = arith.constant 9.99999974E-6 : f32
      %26 = vector.broadcast %cst_16 : f32 to vector<1x512xf32>
      %27 = arith.addf %25, %26 : vector<1x512xf32>
      %28 = math.rsqrt %27 : vector<1x512xf32>
      %29 = vector.broadcast %16 : vector<1x512xf32> to vector<32x512xf32>
      %30 = arith.subf %12, %29 : vector<32x512xf32>
      %31 = vector.broadcast %28 : vector<1x512xf32> to vector<32x512xf32>
      %32 = arith.mulf %30, %31 : vector<32x512xf32>
      %c0_17 = arith.constant 0 : index
      %c0_18 = arith.constant 0 : index
      %33 = vector.load %arg4[%c0_17, %c0_18] : memref<1x512xf32, #tpu.memory_space<vmem>>, vector<1x512xf32>
      %34 = vector.broadcast %33 : vector<1x512xf32> to vector<32x512xf32>
      %35 = arith.mulf %32, %34 : vector<32x512xf32>
      %c0_19 = arith.constant 0 : index
      %c0_20 = arith.constant 0 : index
      %36 = vector.load %arg5[%c0_19, %c0_20] : memref<1x512xf32, #tpu.memory_space<vmem>>, vector<1x512xf32>
      %37 = vector.broadcast %36 : vector<1x512xf32> to vector<32x512xf32>
      %38 = arith.addf %35, %37 : vector<32x512xf32>
      %cst_21 = arith.constant 0.000000e+00 : f32
      %39 = vector.broadcast %cst_21 : f32 to vector<32x512xf32>
      %40 = arith.cmpf ogt, %38, %39 : vector<32x512xf32>
      %cst_22 = arith.constant 2.000000e-01 : f32
      %41 = vector.broadcast %cst_22 : f32 to vector<32x512xf32>
      %42 = arith.mulf %41, %38 : vector<32x512xf32>
      %43 = arith.select %40, %38, %42 : vector<32x512xi1>, vector<32x512xf32>
      %c0_23 = arith.constant 0 : index
      %c0_24 = arith.constant 0 : index
      %44 = vector.load %arg6[%c0_23, %c0_24] : memref<32x512xf32, #tpu.memory_space<vmem>>, vector<32x512xf32>
      tpu.vector_store %arg6[%c0_23, %c0_24], %43 {strides = array<i32>} : memref<32x512xf32, #tpu.memory_space<vmem>>, vector<32x512xf32>,
    } else {
    }
    return
  }
  func.func @transform_0(%arg0: i32, %arg1: i32) -> (i32, i32) {
    %c0_i32 = arith.constant 0 : i32
    return %arg0, %arg1 : i32, i32
  }
  func.func @transform_1(%arg0: i32, %arg1: i32) -> (i32, i32) {
    %c0_i32 = arith.constant 0 : i32
    %c0_i32_0 = arith.constant 0 : i32
    return %arg1, %c0_i32 : i32, i32
  }
  func.func @transform_2(%arg0: i32, %arg1: i32) -> (i32, i32) {
    %c0_i32 = arith.constant 0 : i32
    %c0_i32_0 = arith.constant 0 : i32
    %c0_i32_1 = arith.constant 0 : i32
    return %c0_i32, %c0_i32_0 : i32, i32
  }
  func.func @transform_3(%arg0: i32, %arg1: i32) -> (i32, i32) {
    %c0_i32 = arith.constant 0 : i32
    %c0_i32_0 = arith.constant 0 : i32
    %c0_i32_1 = arith.constant 0 : i32
    return %c0_i32, %c0_i32_0 : i32, i32
  }
  func.func @transform_4(%arg0: i32, %arg1: i32) -> (i32, i32) {
    %c0_i32 = arith.constant 0 : i32
    %c0_i32_0 = arith.constant 0 : i32
    return %arg0, %c0_i32 : i32, i32
  }
}

module attributes {stable_mosaic.version = 11 : i64} {
  func.func @_final_kernel(%arg0: i32, %arg1: memref<2x8192xf32, #tpu.memory_space<vmem>>, %arg2: memref<1x8192xf32, #tpu.memory_space<vmem>>, %arg3: memref<2x1xf32, #tpu.memory_space<vmem>>) attributes {dimension_semantics = [#tpu.dimension_semantics<arbitrary>], iteration_bounds = array<i64: 1>, scalar_prefetch = 0 : i64, scratch_operands = 0 : i64, tpu.core_type = #tpu.core_type<tc>, window_params = [{pipeline_mode = #tpu.pipeline_mode<synchronous>, transform_indices = @transform_0, window_bounds = array<i64: 2, 8192>}, {pipeline_mode = #tpu.pipeline_mode<synchronous>, transform_indices = @transform_1, window_bounds = array<i64: 1, 8192>}, {pipeline_mode = #tpu.pipeline_mode<synchronous>, transform_indices = @transform_2, window_bounds = array<i64: 2, 1>}]} {
    %c0 = arith.constant 0 : index
    %c0_0 = arith.constant 0 : index
    %0 = vector.load %arg1[%c0, %c0_0] : memref<2x8192xf32, #tpu.memory_space<vmem>>, vector<2x8192xf32>
    %c0_1 = arith.constant 0 : index
    %c0_2 = arith.constant 0 : index
    %1 = vector.load %arg2[%c0_1, %c0_2] : memref<1x8192xf32, #tpu.memory_space<vmem>>, vector<1x8192xf32>
    %2 = vector.broadcast %1 : vector<1x8192xf32> to vector<2x8192xf32>
    %3 = arith.mulf %0, %2 : vector<2x8192xf32>
    %cst = arith.constant dense<0.000000e+00> : vector<2xf32>
    %4 = vector.multi_reduction <add>, %3, %cst [1] : vector<2x8192xf32> to vector<2xf32>
    %5 = vector.shape_cast %4 : vector<2xf32> to vector<2x1xf32>
    %6 = arith.negf %5 : vector<2x1xf32>
    %7 = math.exp %6 : vector<2x1xf32>
    %cst_3 = arith.constant 1.000000e+00 : f32
    %8 = vector.broadcast %cst_3 : f32 to vector<2x1xf32>
    %9 = arith.addf %8, %7 : vector<2x1xf32>
    %10 = arith.divf %8, %9 : vector<2x1xf32>
    %c0_4 = arith.constant 0 : index
    %c0_5 = arith.constant 0 : index
    %11 = vector.load %arg3[%c0_4, %c0_5] : memref<2x1xf32, #tpu.memory_space<vmem>>, vector<2x1xf32>
    tpu.vector_store %arg3[%c0_4, %c0_5], %10 {strides = array<i32>} : memref<2x1xf32, #tpu.memory_space<vmem>>, vector<2x1xf32>,
    return
  }
  func.func @transform_0(%arg0: i32) -> (i32, i32) {
    %c0_i32 = arith.constant 0 : i32
    %c0_i32_0 = arith.constant 0 : i32
    %c0_i32_1 = arith.constant 0 : i32
    return %c0_i32, %c0_i32_0 : i32, i32
  }
  func.func @transform_1(%arg0: i32) -> (i32, i32) {
    %c0_i32 = arith.constant 0 : i32
    %c0_i32_0 = arith.constant 0 : i32
    %c0_i32_1 = arith.constant 0 : i32
    return %c0_i32, %c0_i32_0 : i32, i32
  }
  func.func @transform_2(%arg0: i32) -> (i32, i32) {
    %c0_i32 = arith.constant 0 : i32
    %c0_i32_0 = arith.constant 0 : i32
    %c0_i32_1 = arith.constant 0 : i32
    return %c0_i32, %c0_i32_0 : i32, i32
  }
}

</mosaic_0001>

<llo_original>
// kernel: discriminator_forward.5
$region0: #{discriminator_forward.5}
  #allocation0 [shape = 'u32[]', space=smem, size = 0x4, offset = 0x4, fixed_abs, tag = 'smem constant byte address 0x4 - core index']
  #allocation1 [shape = 'u32[144,128]{1,0:T(1,128)}', space=vmem, size = 0x12000, scoped, tag = 'internal scratch']
  %s0 = inlined_call_operand.vmem [shape: bf16[2048,48], index: 0, kind: input, shape index: {}]
  %s1 = inlined_call_operand.vmem [shape: bf16[48,64], index: 1, kind: input, shape index: {}]
  %s2 = inlined_call_operand.vmem [shape: f32[2048,64], index: 2, kind: output, shape index: {}]
  %s3 = sld [smem:[#allocation0]]
  $region49: #{discriminator_forward.5} parent=0
    _
  %s5 = ssub.s32 1, %s3
  %s6 = scalar_select 0, %s5, %s3
  loop: start=0, step=1, limit=6
  $region2: #{discriminator_forward.5} parent=0 // loop_pre_header
    _
  $region3: #{discriminator_forward.5} parent=0 // loop_header
    %s8 = sphi 0, %s12
    %p9 = scmp.ge.s32.totalorder %s8, 6
    %s15 = sphi 0, %s27
    %s16 = sphi 0, %s23
    %s17 = sphi 0, %s15
    %s18 = sphi 0, %s16
    %s19 = sphi 0, %s17
    %s20 = sphi 0, %s18
    %s32 = sphi 0, %s34
    %s35 = sphi 0, %s32
    %s36 = sphi 0, %s35
    %s52 = sphi 0, %s36
    %s58 = sphi 0, %s60
    %s61 = sphi 0, %s58
    %s62 = sphi 0, %s61
    %s78 = sphi 0, %s62
    %s84 = sphi 0, %s86
    %s87 = sphi 0, %s84
    %s88 = sphi 0, %s87
    %s104 = sphi 0, %s88
  $region4: #{discriminator_forward.5} parent=0 // loop_header_branch
    %11 = sbr.rel (%p9) target = $region8
  $region5: #{discriminator_forward.5} parent=0 // loop_body
    %s13 = ssub.s32 %s8, 1
    %s14 = ssub.s32 %s8, 2
    %s21 = sadd.s32 1, %s16
    %p22 = scmp.ge.s32.totalorder %s21, 1
    %s23 = scalar_select %p22, 0, %s21
    %s24 = sadd.s32 1, %s15
    %s25 = scalar_select %p22, %s24, %s15
    %p26 = scmp.ge.s32.totalorder %s25, 4
    %s27 = scalar_select %p26, 0, %s25
    %s28 = ssub.s32 %s15, %s27
    %s29 = ssub.s32 %s16, %s23
    %s30 = sor.u32 %s28, %s29
    %p31 = scmp.eq.s32.totalorder %s30, 0
    %s33 = sadd.s32 %s32, 1
    %s34 = scalar_select %p31, %s32, %s33
    %p37 = pneg %p31
    %p38 = scmp.eq.s32.totalorder %s8, 3
    %p39 = por %p37, %p38
    %p40 = scmp.ne.s32.totalorder %s32, %s35
    %p41 = scmp.eq.s32.totalorder %s8, 0
    %p42 = por %p40, %p41
    %p43 = scmp.ne.s32.totalorder %s32, %s35
    %p44 = scmp.eq.s32.totalorder %s13, 3
    %p45 = por %p43, %p44
    %p46 = scmp.ne.s32.totalorder %s35, %s36
    %p47 = scmp.eq.s32.totalorder %s13, 0
    %p48 = por %p46, %p47
    %p49 = scmp.ne.s32.totalorder %s35, %s36
    %p50 = scmp.eq.s32.totalorder %s14, 3
    %p51 = por %p49, %p50
    %p53 = scmp.ne.s32.totalorder %s36, %s52
    %p54 = scmp.eq.s32.totalorder %s14, 0
    %p55 = por %p53, %p54
    %s56 = ssub.s32 %s16, %s23
    %p57 = scmp.eq.s32.totalorder %s56, 0
    %s59 = sadd.s32 %s58, 1
    %s60 = scalar_select %p57, %s58, %s59
    %p63 = pneg %p57
    %p64 = scmp.eq.s32.totalorder %s8, 3
    %p65 = por %p63, %p64
    %p66 = scmp.ne.s32.totalorder %s58, %s61
    %p67 = scmp.eq.s32.totalorder %s8, 0
    %p68 = por %p66, %p67
    %p69 = scmp.ne.s32.totalorder %s58, %s61
    %p70 = scmp.eq.s32.totalorder %s13, 3
    %p71 = por %p69, %p70
    %p72 = scmp.ne.s32.totalorder %s61, %s62
    %p73 = scmp.eq.s32.totalorder %s13, 0
    %p74 = por %p72, %p73
    %p75 = scmp.ne.s32.totalorder %s61, %s62
    %p76 = scmp.eq.s32.totalorder %s14, 3
    %p77 = por %p75, %p76
    %p79 = scmp.ne.s32.totalorder %s62, %s78
    %p80 = scmp.eq.s32.totalorder %s14, 0
    %p81 = por %p79, %p80
    %s82 = ssub.s32 %s15, %s27
    %p83 = scmp.eq.s32.totalorder %s82, 0
    %s85 = sadd.s32 %s84, 1
    %s86 = scalar_select %p83, %s84, %s85
    %p89 = pneg %p83
    %p90 = scmp.eq.s32.totalorder %s8, 3
    %p91 = por %p89, %p90
    %p92 = scmp.ne.s32.totalorder %s84, %s87
    %p93 = scmp.eq.s32.totalorder %s8, 0
    %p94 = por %p92, %p93
    %p95 = scmp.ne.s32.totalorder %s84, %s87
    %p96 = scmp.eq.s32.totalorder %s13, 3
    %p97 = por %p95, %p96
    %p98 = scmp.ne.s32.totalorder %s87, %s88
    %p99 = scmp.eq.s32.totalorder %s13, 0
    %p100 = por %p98, %p99
    %p101 = scmp.ne.s32.totalorder %s87, %s88
    %p102 = scmp.eq.s32.totalorder %s14, 3
    %p103 = por %p101, %p102
    %p105 = scmp.ne.s32.totalorder %s88, %s104
    %p106 = scmp.eq.s32.totalorder %s14, 0
    %p107 = por %p105, %p106
    %p108 = scmp.le.s32.totalorder 1, %s8
    %p109 = scmp.lt.s32.totalorder %s8, 5
    %p110 = pnand %p108, %p109
    %p111 = pneg %p110
    // Predicated region
    $region9: #{discriminator_forward.5} parent=5 // pred_check
      _
    $region10: #{discriminator_forward.5} parent=5 // pred_check_branch
      %113 = sbr.rel (%p110) target = $region12
    $region11: #{discriminator_forward.5} parent=5 // pred_region
      %s114 = ssub.s32 %s8, 1
      // Predicated region
      $region13: #{discriminator_forward.5} parent=11 // pred_check
        %p115 = pneg %p74
      $region14: #{discriminator_forward.5} parent=11 // pred_check_branch
        %117 = sbr.rel (%p115) target = $region16
      $region15: #{discriminator_forward.5} parent=11 // pred_region
        %s118 = smul.u32 6, %s18
        %p119 = scmp.lt.s32.totalorder %s118, 5
        %s120 = scalar_select %p119, %s118, 5
        %s121 = smul.addr %s120, 4
        %s122 = scalar_lea.vmem %s1, %s121
        %s123 = smul.u32 6, %s18
      $region16: #{discriminator_forward.5} parent=11 // pred_fallthru
        _
    $region12: #{discriminator_forward.5} parent=5 // pred_fallthru
      _
    %p124 = scmp.lt.s32.totalorder %s8, 4
    // Predicated region
    $region17: #{discriminator_forward.5} parent=5 // pred_check
      %p125 = pneg %p124
    $region18: #{discriminator_forward.5} parent=5 // pred_check_branch
      %127 = sbr.rel (%p125) target = $region20
    $region19: #{discriminator_forward.5} parent=5 // pred_region
      // Predicated region
      $region21: #{discriminator_forward.5} parent=19 // pred_check
        %p128 = pneg %p42
      $region22: #{discriminator_forward.5} parent=19 // pred_check_branch
        %130 = sbr.rel (%p128) target = $region24
      $region23: #{discriminator_forward.5} parent=19 // pred_region
        %s131 = smul.u32 64, %s15
        %p132 = scmp.lt.s32.totalorder %s131, 255
        %s133 = scalar_select %p132, %s131, 255
        %p134 = scmp.lt.s32.totalorder %s16, 0
        %s135 = scalar_select %p134, %s16, 0
        %s136 = sadd.s32 %s135, %s133
        %s137 = smul.addr %s136, 4
        %s138 = scalar_lea.vmem %s0, %s137
        %s139 = smul.u32 64, %s15
      $region24: #{discriminator_forward.5} parent=19 // pred_fallthru
        _
    $region20: #{discriminator_forward.5} parent=5 // pred_fallthru
      _
    %p140 = scmp.le.s32.totalorder 1, %s8
    %p141 = scmp.lt.s32.totalorder %s8, 5
    %p142 = pnand %p140, %p141
    %p143 = pneg %p142
    // Predicated region
    $region25: #{discriminator_forward.5} parent=5 // pred_check
      _
    $region26: #{discriminator_forward.5} parent=5 // pred_check_branch
      %145 = sbr.rel (%p142) target = $region28
    $region27: #{discriminator_forward.5} parent=5 // pred_region
      %s146 = ssub.s32 %s8, 1
      %s147 = smul.u32 64, %s17
      %p148 = scmp.lt.s32.totalorder %s147, 255
      %s149 = scalar_select %p148, %s147, 255
      %p150 = scmp.lt.s32.totalorder %s18, 0
      %s151 = scalar_select %p150, %s18, 0
      %s152 = sadd.s32 %s151, %s149
      %s153 = smul.addr %s152, 4
      %s154 = scalar_lea.vmem %s0, %s153
      %p155 = pneg %p48
      %p156 = pneg %p45
      %s157 = smul.u32 6, %s18
      %p158 = scmp.lt.s32.totalorder %s157, 5
      %s159 = scalar_select %p158, %s157, 5
      %s160 = smul.addr %s159, 4
      %s161 = scalar_lea.vmem %s1, %s160
      %p162 = pneg %p74
      %p163 = pneg %p71
      %p164 = pneg %p100
      %p165 = pneg %p97
      %s166 = smul.u32 64, %s17
      %p167 = scmp.lt.s32.totalorder %s166, 255
      %s168 = scalar_select %p167, %s166, 255
      %s169 = smul.addr %s168, 8
      %s170 = scalar_lea.vmem %s2, %s169
      %s171 = smul.u32 64, %s17
      %p172 = scmp.lt.s32.totalorder %s171, 255
      %s173 = scalar_select %p172, %s171, 255
      %p174 = scmp.lt.s32.totalorder %s18, 0
      %s175 = scalar_select %p174, %s18, 0
      %s176 = sadd.s32 %s175, %s173
      %s177 = smul.addr %s176, 4
      %s178 = scalar_lea.vmem %s0, %s177
      %s179 = smul.u32 64, %s17
      %s180 = smul.u32 6, %s18
      %p181 = scmp.lt.s32.totalorder %s180, 5
      %s182 = scalar_select %p181, %s180, 5
      %s183 = smul.addr %s182, 4
      %s184 = scalar_lea.vmem %s1, %s183
      %s185 = smul.u32 6, %s18
      %s186 = smul.u32 64, %s17
      %p187 = scmp.lt.s32.totalorder %s186, 255
      %s188 = scalar_select %p187, %s186, 255
      %s189 = smul.addr %s188, 8
      %s190 = scalar_lea.vmem %s2, %s189
      %s191 = smul.u32 64, %s17
      %p193 = scmp.eq.s32.totalorder %s18, 0
      // Predicated region
      $region29: #{discriminator_forward.5} parent=27 // pred_check
        %p194 = pneg %p193
      $region30: #{discriminator_forward.5} parent=27 // pred_check_branch
        %196 = sbr.rel (%p194) target = $region32
      $region31: #{discriminator_forward.5} parent=27 // pred_region
        %vm197 = vcmask 523264
        %198 = vst.msk [vmem:[%s190] sm:$0xff] %vm197, 0.0
        %199 = vst.msk [vmem:[%s190 + $0x8] sm:$0xff] %vm197, 0.0
        %200 = vst.msk [vmem:[%s190 + $0x10] sm:$0xff] %vm197, 0.0
        %201 = vst.msk [vmem:[%s190 + $0x18] sm:$0xff] %vm197, 0.0
        %202 = vst.msk [vmem:[%s190 + $0x20] sm:$0xff] %vm197, 0.0
        %203 = vst.msk [vmem:[%s190 + $0x28] sm:$0xff] %vm197, 0.0
        %204 = vst.msk [vmem:[%s190 + $0x30] sm:$0xff] %vm197, 0.0
        %205 = vst.msk [vmem:[%s190 + $0x38] sm:$0xff] %vm197, 0.0
        %206 = vst.msk [vmem:[%s190 + $0x40] sm:$0xff] %vm197, 0.0
        %207 = vst.msk [vmem:[%s190 + $0x48] sm:$0xff] %vm197, 0.0
        %208 = vst.msk [vmem:[%s190 + $0x50] sm:$0xff] %vm197, 0.0
        %209 = vst.msk [vmem:[%s190 + $0x58] sm:$0xff] %vm197, 0.0
        %210 = vst.msk [vmem:[%s190 + $0x60] sm:$0xff] %vm197, 0.0
        %211 = vst.msk [vmem:[%s190 + $0x68] sm:$0xff] %vm197, 0.0
        %212 = vst.msk [vmem:[%s190 + $0x70] sm:$0xff] %vm197, 0.0
        %213 = vst.msk [vmem:[%s190 + $0x78] sm:$0xff] %vm197, 0.0
        %214 = vst.msk [vmem:[%s190 + $0x80] sm:$0xff] %vm197, 0.0
        %215 = vst.msk [vmem:[%s190 + $0x88] sm:$0xff] %vm197, 0.0
        %216 = vst.msk [vmem:[%s190 + $0x90] sm:$0xff] %vm197, 0.0
        %217 = vst.msk [vmem:[%s190 + $0x98] sm:$0xff] %vm197, 0.0
        %218 = vst.msk [vmem:[%s190 + $0xa0] sm:$0xff] %vm197, 0.0
        %219 = vst.msk [vmem:[%s190 + $0xa8] sm:$0xff] %vm197, 0.0
        %220 = vst.msk [vmem:[%s190 + $0xb0] sm:$0xff] %vm197, 0.0
        %221 = vst.msk [vmem:[%s190 + $0xb8] sm:$0xff] %vm197, 0.0
        %222 = vst.msk [vmem:[%s190 + $0xc0] sm:$0xff] %vm197, 0.0
        %223 = vst.msk [vmem:[%s190 + $0xc8] sm:$0xff] %vm197, 0.0
        %224 = vst.msk [vmem:[%s190 + $0xd0] sm:$0xff] %vm197, 0.0
        %225 = vst.msk [vmem:[%s190 + $0xd8] sm:$0xff] %vm197, 0.0
        %226 = vst.msk [vmem:[%s190 + $0xe0] sm:$0xff] %vm197, 0.0
        %227 = vst.msk [vmem:[%s190 + $0xe8] sm:$0xff] %vm197, 0.0
        %228 = vst.msk [vmem:[%s190 + $0xf0] sm:$0xff] %vm197, 0.0
        %229 = vst.msk [vmem:[%s190 + $0xf8] sm:$0xff] %vm197, 0.0
        %230 = vst.msk [vmem:[%s190 + $0x100] sm:$0xff] %vm197, 0.0
        %231 = vst.msk [vmem:[%s190 + $0x108] sm:$0xff] %vm197, 0.0
        %232 = vst.msk [vmem:[%s190 + $0x110] sm:$0xff] %vm197, 0.0
        %233 = vst.msk [vmem:[%s190 + $0x118] sm:$0xff] %vm197, 0.0
        %234 = vst.msk [vmem:[%s190 + $0x120] sm:$0xff] %vm197, 0.0
        %235 = vst.msk [vmem:[%s190 + $0x128] sm:$0xff] %vm197, 0.0
        %236 = vst.msk [vmem:[%s190 + $0x130] sm:$0xff] %vm197, 0.0
        %237 = vst.msk [vmem:[%s190 + $0x138] sm:$0xff] %vm197, 0.0
        %238 = vst.msk [vmem:[%s190 + $0x140] sm:$0xff] %vm197, 0.0
        %239 = vst.msk [vmem:[%s190 + $0x148] sm:$0xff] %vm197, 0.0
        %240 = vst.msk [vmem:[%s190 + $0x150] sm:$0xff] %vm197, 0.0
        %241 = vst.msk [vmem:[%s190 + $0x158] sm:$0xff] %vm197, 0.0
        %242 = vst.msk [vmem:[%s190 + $0x160] sm:$0xff] %vm197, 0.0
        %243 = vst.msk [vmem:[%s190 + $0x168] sm:$0xff] %vm197, 0.0
        %244 = vst.msk [vmem:[%s190 + $0x170] sm:$0xff] %vm197, 0.0
        %245 = vst.msk [vmem:[%s190 + $0x178] sm:$0xff] %vm197, 0.0
        %246 = vst.msk [vmem:[%s190 + $0x180] sm:$0xff] %vm197, 0.0
        %247 = vst.msk [vmem:[%s190 + $0x188] sm:$0xff] %vm197, 0.0
        %248 = vst.msk [vmem:[%s190 + $0x190] sm:$0xff] %vm197, 0.0
        %249 = vst.msk [vmem:[%s190 + $0x198] sm:$0xff] %vm197, 0.0
        %250 = vst.msk [vmem:[%s190 + $0x1a0] sm:$0xff] %vm197, 0.0
        %251 = vst.msk [vmem:[%s190 + $0x1a8] sm:$0xff] %vm197, 0.0
        %252 = vst.msk [vmem:[%s190 + $0x1b0] sm:$0xff] %vm197, 0.0
        %253 = vst.msk [vmem:[%s190 + $0x1b8] sm:$0xff] %vm197, 0.0
        %254 = vst.msk [vmem:[%s190 + $0x1c0] sm:$0xff] %vm197, 0.0
        %255 = vst.msk [vmem:[%s190 + $0x1c8] sm:$0xff] %vm197, 0.0
        %256 = vst.msk [vmem:[%s190 + $0x1d0] sm:$0xff] %vm197, 0.0
        %257 = vst.msk [vmem:[%s190 + $0x1d8] sm:$0xff] %vm197, 0.0
        %258 = vst.msk [vmem:[%s190 + $0x1e0] sm:$0xff] %vm197, 0.0
        %259 = vst.msk [vmem:[%s190 + $0x1e8] sm:$0xff] %vm197, 0.0
        %260 = vst.msk [vmem:[%s190 + $0x1f0] sm:$0xff] %vm197, 0.0
        %261 = vst.msk [vmem:[%s190 + $0x1f8] sm:$0xff] %vm197, 0.0
      $region32: #{discriminator_forward.5} parent=27 // pred_fallthru
        _
      %v262 = vld [vmem:[%s190] sm:$0xff]
      %v263 = vld [vmem:[%s190 + $0x8] sm:$0xff]
      %v264 = vld [vmem:[%s190 + $0x10] sm:$0xff]
      %v265 = vld [vmem:[%s190 + $0x18] sm:$0xff]
      %v266 = vld [vmem:[%s190 + $0x20] sm:$0xff]
      %v267 = vld [vmem:[%s190 + $0x28] sm:$0xff]
      %v268 = vld [vmem:[%s190 + $0x30] sm:$0xff]
      %v269 = vld [vmem:[%s190 + $0x38] sm:$0xff]
      %v270 = vld [vmem:[%s190 + $0x40] sm:$0xff]
      %v271 = vld [vmem:[%s190 + $0x48] sm:$0xff]
      %v272 = vld [vmem:[%s190 + $0x50] sm:$0xff]
      %v273 = vld [vmem:[%s190 + $0x58] sm:$0xff]
      %v274 = vld [vmem:[%s190 + $0x60] sm:$0xff]
      %v275 = vld [vmem:[%s190 + $0x68] sm:$0xff]
      %v276 = vld [vmem:[%s190 + $0x70] sm:$0xff]
      %v277 = vld [vmem:[%s190 + $0x78] sm:$0xff]
      %v278 = vld [vmem:[%s190 + $0x80] sm:$0xff]
      %v279 = vld [vmem:[%s190 + $0x88] sm:$0xff]
      %v280 = vld [vmem:[%s190 + $0x90] sm:$0xff]
      %v281 = vld [vmem:[%s190 + $0x98] sm:$0xff]
      %v282 = vld [vmem:[%s190 + $0xa0] sm:$0xff]
      %v283 = vld [vmem:[%s190 + $0xa8] sm:$0xff]
      %v284 = vld [vmem:[%s190 + $0xb0] sm:$0xff]
      %v285 = vld [vmem:[%s190 + $0xb8] sm:$0xff]
      %v286 = vld [vmem:[%s190 + $0xc0] sm:$0xff]
      %v287 = vld [vmem:[%s190 + $0xc8] sm:$0xff]
      %v288 = vld [vmem:[%s190 + $0xd0] sm:$0xff]
      %v289 = vld [vmem:[%s190 + $0xd8] sm:$0xff]
      %v290 = vld [vmem:[%s190 + $0xe0] sm:$0xff]
      %v291 = vld [vmem:[%s190 + $0xe8] sm:$0xff]
      %v292 = vld [vmem:[%s190 + $0xf0] sm:$0xff]
      %v293 = vld [vmem:[%s190 + $0xf8] sm:$0xff]
      %v294 = vld [vmem:[%s190 + $0x100] sm:$0xff]
      %v295 = vld [vmem:[%s190 + $0x108] sm:$0xff]
      %v296 = vld [vmem:[%s190 + $0x110] sm:$0xff]
      %v297 = vld [vmem:[%s190 + $0x118] sm:$0xff]
      %v298 = vld [vmem:[%s190 + $0x120] sm:$0xff]
      %v299 = vld [vmem:[%s190 + $0x128] sm:$0xff]
      %v300 = vld [vmem:[%s190 + $0x130] sm:$0xff]
      %v301 = vld [vmem:[%s190 + $0x138] sm:$0xff]
      %v302 = vld [vmem:[%s190 + $0x140] sm:$0xff]
      %v303 = vld [vmem:[%s190 + $0x148] sm:$0xff]
      %v304 = vld [vmem:[%s190 + $0x150] sm:$0xff]
      %v305 = vld [vmem:[%s190 + $0x158] sm:$0xff]
      %v306 = vld [vmem:[%s190 + $0x160] sm:$0xff]
      %v307 = vld [vmem:[%s190 + $0x168] sm:$0xff]
      %v308 = vld [vmem:[%s190 + $0x170] sm:$0xff]
      %v309 = vld [vmem:[%s190 + $0x178] sm:$0xff]
      %v310 = vld [vmem:[%s190 + $0x180] sm:$0xff]
      %v311 = vld [vmem:[%s190 + $0x188] sm:$0xff]
      %v312 = vld [vmem:[%s190 + $0x190] sm:$0xff]
      %v313 = vld [vmem:[%s190 + $0x198] sm:$0xff]
      %v314 = vld [vmem:[%s190 + $0x1a0] sm:$0xff]
      %v315 = vld [vmem:[%s190 + $0x1a8] sm:$0xff]
      %v316 = vld [vmem:[%s190 + $0x1b0] sm:$0xff]
      %v317 = vld [vmem:[%s190 + $0x1b8] sm:$0xff]
      %v318 = vld [vmem:[%s190 + $0x1c0] sm:$0xff]
      %v319 = vld [vmem:[%s190 + $0x1c8] sm:$0xff]
      %v320 = vld [vmem:[%s190 + $0x1d0] sm:$0xff]
      %v321 = vld [vmem:[%s190 + $0x1d8] sm:$0xff]
      %v322 = vld [vmem:[%s190 + $0x1e0] sm:$0xff]
      %v323 = vld [vmem:[%s190 + $0x1e8] sm:$0xff]
      %v324 = vld [vmem:[%s190 + $0x1f0] sm:$0xff]
      %v325 = vld [vmem:[%s190 + $0x1f8] sm:$0xff]
      %v326 = vld [vmem:[%s178] sm:$0xf]
      %v327 = vld [vmem:[%s178 + $0x4] sm:$0xf]
      %v328 = vld [vmem:[%s178 + $0x8] sm:$0xf]
      %v329 = vld [vmem:[%s178 + $0xc] sm:$0xf]
      %v330 = vld [vmem:[%s178 + $0x10] sm:$0xf]
      %v331 = vld [vmem:[%s178 + $0x14] sm:$0xf]
      %v332 = vld [vmem:[%s178 + $0x18] sm:$0xf]
      %v333 = vld [vmem:[%s178 + $0x1c] sm:$0xf]
      %v334 = vld [vmem:[%s178 + $0x20] sm:$0xf]
      %v335 = vld [vmem:[%s178 + $0x24] sm:$0xf]
      %v336 = vld [vmem:[%s178 + $0x28] sm:$0xf]
      %v337 = vld [vmem:[%s178 + $0x2c] sm:$0xf]
      %v338 = vld [vmem:[%s178 + $0x30] sm:$0xf]
      %v339 = vld [vmem:[%s178 + $0x34] sm:$0xf]
      %v340 = vld [vmem:[%s178 + $0x38] sm:$0xf]
      %v341 = vld [vmem:[%s178 + $0x3c] sm:$0xf]
      %v342 = vld [vmem:[%s178 + $0x40] sm:$0xf]
      %v343 = vld [vmem:[%s178 + $0x44] sm:$0xf]
      %v344 = vld [vmem:[%s178 + $0x48] sm:$0xf]
      %v345 = vld [vmem:[%s178 + $0x4c] sm:$0xf]
      %v346 = vld [vmem:[%s178 + $0x50] sm:$0xf]
      %v347 = vld [vmem:[%s178 + $0x54] sm:$0xf]
      %v348 = vld [vmem:[%s178 + $0x58] sm:$0xf]
      %v349 = vld [vmem:[%s178 + $0x5c] sm:$0xf]
      %v350 = vld [vmem:[%s178 + $0x60] sm:$0xf]
      %v351 = vld [vmem:[%s178 + $0x64] sm:$0xf]
      %v352 = vld [vmem:[%s178 + $0x68] sm:$0xf]
      %v353 = vld [vmem:[%s178 + $0x6c] sm:$0xf]
      %v354 = vld [vmem:[%s178 + $0x70] sm:$0xf]
      %v355 = vld [vmem:[%s178 + $0x74] sm:$0xf]
      %v356 = vld [vmem:[%s178 + $0x78] sm:$0xf]
      %v357 = vld [vmem:[%s178 + $0x7c] sm:$0xf]
      %v358 = vld [vmem:[%s178 + $0x80] sm:$0xf]
      %v359 = vld [vmem:[%s178 + $0x84] sm:$0xf]
      %v360 = vld [vmem:[%s178 + $0x88] sm:$0xf]
      %v361 = vld [vmem:[%s178 + $0x8c] sm:$0xf]
      %v362 = vld [vmem:[%s178 + $0x90] sm:$0xf]
      %v363 = vld [vmem:[%s178 + $0x94] sm:$0xf]
      %v364 = vld [vmem:[%s178 + $0x98] sm:$0xf]
      %v365 = vld [vmem:[%s178 + $0x9c] sm:$0xf]
      %v366 = vld [vmem:[%s178 + $0xa0] sm:$0xf]
      %v367 = vld [vmem:[%s178 + $0xa4] sm:$0xf]
      %v368 = vld [vmem:[%s178 + $0xa8] sm:$0xf]
      %v369 = vld [vmem:[%s178 + $0xac] sm:$0xf]
      %v370 = vld [vmem:[%s178 + $0xb0] sm:$0xf]
      %v371 = vld [vmem:[%s178 + $0xb4] sm:$0xf]
      %v372 = vld [vmem:[%s178 + $0xb8] sm:$0xf]
      %v373 = vld [vmem:[%s178 + $0xbc] sm:$0xf]
      %v374 = vld [vmem:[%s178 + $0xc0] sm:$0xf]
      %v375 = vld [vmem:[%s178 + $0xc4] sm:$0xf]
      %v376 = vld [vmem:[%s178 + $0xc8] sm:$0xf]
      %v377 = vld [vmem:[%s178 + $0xcc] sm:$0xf]
      %v378 = vld [vmem:[%s178 + $0xd0] sm:$0xf]
      %v379 = vld [vmem:[%s178 + $0xd4] sm:$0xf]
      %v380 = vld [vmem:[%s178 + $0xd8] sm:$0xf]
      %v381 = vld [vmem:[%s178 + $0xdc] sm:$0xf]
      %v382 = vld [vmem:[%s178 + $0xe0] sm:$0xf]
      %v383 = vld [vmem:[%s178 + $0xe4] sm:$0xf]
      %v384 = vld [vmem:[%s178 + $0xe8] sm:$0xf]
      %v385 = vld [vmem:[%s178 + $0xec] sm:$0xf]
      %v386 = vld [vmem:[%s178 + $0xf0] sm:$0xf]
      %v387 = vld [vmem:[%s178 + $0xf4] sm:$0xf]
      %v388 = vld [vmem:[%s178 + $0xf8] sm:$0xf]
      %v389 = vld [vmem:[%s178 + $0xfc] sm:$0xf]
      %v390 = vld [vmem:[%s184] sm:$0xf]
      %v391 = vld [vmem:[%s184 + $0x4] sm:$0xf]
      %v392 = vld [vmem:[%s184 + $0x8] sm:$0xf]
      %v393 = vld [vmem:[%s184 + $0xc] sm:$0xf]
      %v394 = vld [vmem:[%s184 + $0x10] sm:$0xf]
      %v395 = vld [vmem:[%s184 + $0x14] sm:$0xf]
      %v460 = vunpack.c.l.b16 %v326
      %v461 = vunpack.c.l.b16 %v327
      %v462 = vunpack.c.l.b16 %v328
      %v463 = vunpack.c.l.b16 %v329
      %v464 = vunpack.c.l.b16 %v330
      %v465 = vunpack.c.l.b16 %v331
      %v466 = vunpack.c.l.b16 %v332
      %v467 = vunpack.c.l.b16 %v333
      %v468 = vunpack.c.l.b16 %v334
      %v469 = vunpack.c.l.b16 %v335
      %v470 = vunpack.c.l.b16 %v336
      %v471 = vunpack.c.l.b16 %v337
      %v472 = vunpack.c.l.b16 %v338
      %v473 = vunpack.c.l.b16 %v339
      %v474 = vunpack.c.l.b16 %v340
      %v475 = vunpack.c.l.b16 %v341
      %v476 = vunpack.c.l.b16 %v342
      %v477 = vunpack.c.l.b16 %v343
      %v478 = vunpack.c.l.b16 %v344
      %v479 = vunpack.c.l.b16 %v345
      %v480 = vunpack.c.l.b16 %v346
      %v481 = vunpack.c.l.b16 %v347
      %v482 = vunpack.c.l.b16 %v348
      %v483 = vunpack.c.l.b16 %v349
      %v484 = vunpack.c.l.b16 %v350
      %v485 = vunpack.c.l.b16 %v351
      %v486 = vunpack.c.l.b16 %v352
      %v487 = vunpack.c.l.b16 %v353
      %v488 = vunpack.c.l.b16 %v354
      %v489 = vunpack.c.l.b16 %v355
      %v490 = vunpack.c.l.b16 %v356
      %v491 = vunpack.c.l.b16 %v357
      %v492 = vunpack.c.l.b16 %v358
      %v493 = vunpack.c.l.b16 %v359
      %v494 = vunpack.c.l.b16 %v360
      %v495 = vunpack.c.l.b16 %v361
      %v496 = vunpack.c.l.b16 %v362
      %v497 = vunpack.c.l.b16 %v363
      %v498 = vunpack.c.l.b16 %v364
      %v499 = vunpack.c.l.b16 %v365
      %v500 = vunpack.c.l.b16 %v366
      %v501 = vunpack.c.l.b16 %v367
      %v502 = vunpack.c.l.b16 %v368
      %v503 = vunpack.c.l.b16 %v369
      %v504 = vunpack.c.l.b16 %v370
      %v505 = vunpack.c.l.b16 %v371
      %v506 = vunpack.c.l.b16 %v372
      %v507 = vunpack.c.l.b16 %v373
      %v508 = vunpack.c.l.b16 %v374
      %v509 = vunpack.c.l.b16 %v375
      %v510 = vunpack.c.l.b16 %v376
      %v511 = vunpack.c.l.b16 %v377
      %v512 = vunpack.c.l.b16 %v378
      %v513 = vunpack.c.l.b16 %v379
      %v514 = vunpack.c.l.b16 %v380
      %v515 = vunpack.c.l.b16 %v381
      %v516 = vunpack.c.l.b16 %v382
      %v517 = vunpack.c.l.b16 %v383
      %v518 = vunpack.c.l.b16 %v384
      %v519 = vunpack.c.l.b16 %v385
      %v520 = vunpack.c.l.b16 %v386
      %v521 = vunpack.c.l.b16 %v387
      %v522 = vunpack.c.l.b16 %v388
      %v523 = vunpack.c.l.b16 %v389
      %v524 = vpack.c.b16 %v461, %v460
      %v525 = vpack.c.b16 %v463, %v462
      %v526 = vpack.c.b16 %v465, %v464
      %v527 = vpack.c.b16 %v467, %v466
      %v528 = vpack.c.b16 %v469, %v468
      %v529 = vpack.c.b16 %v471, %v470
      %v530 = vpack.c.b16 %v473, %v472
      %v531 = vpack.c.b16 %v475, %v474
      %v532 = vpack.c.b16 %v477, %v476
      %v533 = vpack.c.b16 %v479, %v478
      %v534 = vpack.c.b16 %v481, %v480
      %v535 = vpack.c.b16 %v483, %v482
      %v536 = vpack.c.b16 %v485, %v484
      %v537 = vpack.c.b16 %v487, %v486
      %v538 = vpack.c.b16 %v489, %v488
      %v539 = vpack.c.b16 %v491, %v490
      %v540 = vpack.c.b16 %v493, %v492
      %v541 = vpack.c.b16 %v495, %v494
      %v542 = vpack.c.b16 %v497, %v496
      %v543 = vpack.c.b16 %v499, %v498
      %v544 = vpack.c.b16 %v501, %v500
      %v545 = vpack.c.b16 %v503, %v502
      %v546 = vpack.c.b16 %v505, %v504
      %v547 = vpack.c.b16 %v507, %v506
      %v548 = vpack.c.b16 %v509, %v508
      %v549 = vpack.c.b16 %v511, %v510
      %v550 = vpack.c.b16 %v513, %v512
      %v551 = vpack.c.b16 %v515, %v514
      %v552 = vpack.c.b16 %v517, %v516
      %v553 = vpack.c.b16 %v519, %v518
      %v554 = vpack.c.b16 %v521, %v520
      %v555 = vpack.c.b16 %v523, %v522
      %v562 = vunpack.c.l.b16 %v390
      %v563 = vunpack.c.l.b16 %v391
      %v564 = vunpack.c.l.b16 %v392
      %v565 = vunpack.c.l.b16 %v393
      %v566 = vunpack.c.l.b16 %v394
      %v567 = vunpack.c.l.b16 %v395
      %v568 = vpack.c.b16 %v563, %v562
      %v569 = vpack.c.b16 %v565, %v564
      %v570 = vpack.c.b16 %v567, %v566
      %vm574 = vcmask 392192
      %v576 = vsel %vm574, %v524, 0
      %v579 = vsel %vm574, %v525, 0
      %v582 = vsel %vm574, %v526, 0
      %v585 = vsel %vm574, %v527, 0
      %v588 = vsel %vm574, %v528, 0
      %v591 = vsel %vm574, %v529, 0
      %v594 = vsel %vm574, %v530, 0
      %v597 = vsel %vm574, %v531, 0
      %v600 = vsel %vm574, %v532, 0
      %v603 = vsel %vm574, %v533, 0
      %v606 = vsel %vm574, %v534, 0
      %v609 = vsel %vm574, %v535, 0
      %v612 = vsel %vm574, %v536, 0
      %v615 = vsel %vm574, %v537, 0
      %v618 = vsel %vm574, %v538, 0
      %v621 = vsel %vm574, %v539, 0
      %v624 = vsel %vm574, %v540, 0
      %v627 = vsel %vm574, %v541, 0
      %v630 = vsel %vm574, %v542, 0
      %v633 = vsel %vm574, %v543, 0
      %v636 = vsel %vm574, %v544, 0
      %v639 = vsel %vm574, %v545, 0
      %v642 = vsel %vm574, %v546, 0
      %v645 = vsel %vm574, %v547, 0
      %v648 = vsel %vm574, %v548, 0
      %v651 = vsel %vm574, %v549, 0
      %v654 = vsel %vm574, %v550, 0
      %v657 = vsel %vm574, %v551, 0
      %v660 = vsel %vm574, %v552, 0
      %v663 = vsel %vm574, %v553, 0
      %v666 = vsel %vm574, %v554, 0
      %v669 = vsel %vm574, %v555, 0
      %671 = vmatprep.subr.bf16.mxu0 0
      %672 = vmatpush1.bf16.msra.mxu0 0
      %673 = vmatprep.subr.bf16.mxu0 0
      %674 = vmatpush1.bf16.msra.mxu0 0
      %675 = vmatprep.subr.bf16.mxu0 0
      %676 = vmatpush1.bf16.msra.mxu0 0
      %677 = vmatprep.subr.bf16.mxu0 0
      %678 = vmatpush1.bf16.msra.mxu0 0
      %679 = vmatprep.subr.bf16.mxu0 0
      %680 = vmatpush1.bf16.msra.mxu0 0
      %681 = vmatprep.subr.bf16.mxu0 0
      %682 = vmatpush1.bf16.msra.mxu0 %v570
      %683 = vmatprep.subr.bf16.mxu0 0
      %684 = vmatpush1.bf16.msra.mxu0 %v569
      %685 = vmatprep.subr.bf16.mxu0 0
      %686 = vmatpush1.bf16.msra.mxu0 %v568
      %687 = vmatprep.subr.bf16.mxu0 0
      %688 = vmatpush2.bf16.msra.mxu0 0
      %689 = vmatprep.subr.bf16.mxu0 0
      %690 = vmatpush2.bf16.msra.mxu0 0
      %691 = vmatprep.subr.bf16.mxu0 0
      %692 = vmatpush2.bf16.msra.mxu0 0
      %693 = vmatprep.subr.bf16.mxu0 0
      %694 = vmatpush2.bf16.msra.mxu0 0
      %695 = vmatprep.subr.bf16.mxu0 0
      %696 = vmatpush2.bf16.msra.mxu0 0
      %697 = vmatprep.subr.bf16.mxu0 0
      %698 = vmatpush2.bf16.msra.mxu0 0
      %699 = vmatprep.subr.bf16.mxu0 0
      %700 = vmatpush2.bf16.msra.mxu0 0
      %701 = vmatprep.subr.bf16.mxu0 0
      %702 = vmatpush2.bf16.msra.mxu0 0
      %703 = vmatprep.mubr.bf16.mxu0 0
      %704 = vmatmul.mubr.bf16.gmra.mxu0 %v576
      %v705 = vpop.f32.mrf.mxu0
      %v706 = vadd.f32 0.0, %v705
      %v707 = vpop.f32.mrf.mxu0
      %v708 = vpop.f32.mrf.mxu0
      %v709 = vadd.f32 0.0, %v708
      %v710 = vpop.f32.mrf.mxu0
      %711 = vmatprep.mubr.bf16.mxu0 0
      %712 = vmatmul.mubr.bf16.gmra.mxu0 %v579
      %v713 = vpop.f32.mrf.mxu0
      %v714 = vadd.f32 0.0, %v713
      %v715 = vpop.f32.mrf.mxu0
      %v716 = vpop.f32.mrf.mxu0
      %v717 = vadd.f32 0.0, %v716
      %v718 = vpop.f32.mrf.mxu0
      %719 = vmatprep.mubr.bf16.mxu0 0
      %720 = vmatmul.mubr.bf16.gmra.mxu0 %v582
      %v721 = vpop.f32.mrf.mxu0
      %v722 = vadd.f32 0.0, %v721
      %v723 = vpop.f32.mrf.mxu0
      %v724 = vpop.f32.mrf.mxu0
      %v725 = vadd.f32 0.0, %v724
      %v726 = vpop.f32.mrf.mxu0
      %727 = vmatprep.mubr.bf16.mxu0 0
      %728 = vmatmul.mubr.bf16.gmra.mxu0 %v585
      %v729 = vpop.f32.mrf.mxu0
      %v730 = vadd.f32 0.0, %v729
      %v731 = vpop.f32.mrf.mxu0
      %v732 = vpop.f32.mrf.mxu0
      %v733 = vadd.f32 0.0, %v732
      %v734 = vpop.f32.mrf.mxu0
      %735 = vmatprep.mubr.bf16.mxu0 0
      %736 = vmatmul.mubr.bf16.gmra.mxu0 %v588
      %v737 = vpop.f32.mrf.mxu0
      %v738 = vadd.f32 0.0, %v737
      %v739 = vpop.f32.mrf.mxu0
      %v740 = vpop.f32.mrf.mxu0
      %v741 = vadd.f32 0.0, %v740
      %v742 = vpop.f32.mrf.mxu0
      %743 = vmatprep.mubr.bf16.mxu0 0
      %744 = vmatmul.mubr.bf16.gmra.mxu0 %v591
      %v745 = vpop.f32.mrf.mxu0
      %v746 = vadd.f32 0.0, %v745
      %v747 = vpop.f32.mrf.mxu0
      %v748 = vpop.f32.mrf.mxu0
      %v749 = vadd.f32 0.0, %v748
      %v750 = vpop.f32.mrf.mxu0
      %751 = vmatprep.mubr.bf16.mxu0 0
      %752 = vmatmul.mubr.bf16.gmra.mxu0 %v594
      %v753 = vpop.f32.mrf.mxu0
      %v754 = vadd.f32 0.0, %v753
      %v755 = vpop.f32.mrf.mxu0
      %v756 = vpop.f32.mrf.mxu0
      %v757 = vadd.f32 0.0, %v756
      %v758 = vpop.f32.mrf.mxu0
      %759 = vmatprep.mubr.bf16.mxu0 0
      %760 = vmatmul.mubr.bf16.gmra.mxu0 %v597
      %v761 = vpop.f32.mrf.mxu0
      %v762 = vadd.f32 0.0, %v761
      %v763 = vpop.f32.mrf.mxu0
      %v764 = vpop.f32.mrf.mxu0
      %v765 = vadd.f32 0.0, %v764
      %v766 = vpop.f32.mrf.mxu0
      %767 = vmatprep.mubr.bf16.mxu0 0
      %768 = vmatmul.mubr.bf16.gmra.mxu0 %v600
      %v769 = vpop.f32.mrf.mxu0
      %v770 = vadd.f32 0.0, %v769
      %v771 = vpop.f32.mrf.mxu0
      %v772 = vpop.f32.mrf.mxu0
      %v773 = vadd.f32 0.0, %v772
      %v774 = vpop.f32.mrf.mxu0
      %775 = vmatprep.mubr.bf16.mxu0 0
      %776 = vmatmul.mubr.bf16.gmra.mxu0 %v603
      %v777 = vpop.f32.mrf.mxu0
      %v778 = vadd.f32 0.0, %v777
      %v779 = vpop.f32.mrf.mxu0
      %v780 = vpop.f32.mrf.mxu0
      %v781 = vadd.f32 0.0, %v780
      %v782 = vpop.f32.mrf.mxu0
      %783 = vmatprep.mubr.bf16.mxu0 0
      %784 = vmatmul.mubr.bf16.gmra.mxu0 %v606
      %v785 = vpop.f32.mrf.mxu0
      %v786 = vadd.f32 0.0, %v785
      %v787 = vpop.f32.mrf.mxu0
      %v788 = vpop.f32.mrf.mxu0
      %v789 = vadd.f32 0.0, %v788
      %v790 = vpop.f32.mrf.mxu0
      %791 = vmatprep.mubr.bf16.mxu0 0
      %792 = vmatmul.mubr.bf16.gmra.mxu0 %v609
      %v793 = vpop.f32.mrf.mxu0
      %v794 = vadd.f32 0.0, %v793
      %v795 = vpop.f32.mrf.mxu0
      %v796 = vpop.f32.mrf.mxu0
      %v797 = vadd.f32 0.0, %v796
      %v798 = vpop.f32.mrf.mxu0
      %799 = vmatprep.mubr.bf16.mxu0 0
      %800 = vmatmul.mubr.bf16.gmra.mxu0 %v612
      %v801 = vpop.f32.mrf.mxu0
      %v802 = vadd.f32 0.0, %v801
      %v803 = vpop.f32.mrf.mxu0
      %v804 = vpop.f32.mrf.mxu0
      %v805 = vadd.f32 0.0, %v804
      %v806 = vpop.f32.mrf.mxu0
      %807 = vmatprep.mubr.bf16.mxu0 0
      %808 = vmatmul.mubr.bf16.gmra.mxu0 %v615
      %v809 = vpop.f32.mrf.mxu0
      %v810 = vadd.f32 0.0, %v809
      %v811 = vpop.f32.mrf.mxu0
      %v812 = vpop.f32.mrf.mxu0
      %v813 = vadd.f32 0.0, %v812
      %v814 = vpop.f32.mrf.mxu0
      %815 = vmatprep.mubr.bf16.mxu0 0
      %816 = vmatmul.mubr.bf16.gmra.mxu0 %v618
      %v817 = vpop.f32.mrf.mxu0
      %v818 = vadd.f32 0.0, %v817
      %v819 = vpop.f32.mrf.mxu0
      %v820 = vpop.f32.mrf.mxu0
      %v821 = vadd.f32 0.0, %v820
      %v822 = vpop.f32.mrf.mxu0
      %823 = vmatprep.mubr.bf16.mxu0 0
      %824 = vmatmul.mubr.bf16.gmra.mxu0 %v621
      %v825 = vpop.f32.mrf.mxu0
      %v826 = vadd.f32 0.0, %v825
      %v827 = vpop.f32.mrf.mxu0
      %v828 = vpop.f32.mrf.mxu0
      %v829 = vadd.f32 0.0, %v828
      %v830 = vpop.f32.mrf.mxu0
      %831 = vmatprep.mubr.bf16.mxu0 0
      %832 = vmatmul.mubr.bf16.gmra.mxu0 %v624
      %v833 = vpop.f32.mrf.mxu0
      %v834 = vadd.f32 0.0, %v833
      %v835 = vpop.f32.mrf.mxu0
      %v836 = vpop.f32.mrf.mxu0
      %v837 = vadd.f32 0.0, %v836
      %v838 = vpop.f32.mrf.mxu0
      %839 = vmatprep.mubr.bf16.mxu0 0
      %840 = vmatmul.mubr.bf16.gmra.mxu0 %v627
      %v841 = vpop.f32.mrf.mxu0
      %v842 = vadd.f32 0.0, %v841
      %v843 = vpop.f32.mrf.mxu0
      %v844 = vpop.f32.mrf.mxu0
      %v845 = vadd.f32 0.0, %v844
      %v846 = vpop.f32.mrf.mxu0
      %847 = vmatprep.mubr.bf16.mxu0 0
      %848 = vmatmul.mubr.bf16.gmra.mxu0 %v630
      %v849 = vpop.f32.mrf.mxu0
      %v850 = vadd.f32 0.0, %v849
      %v851 = vpop.f32.mrf.mxu0
      %v852 = vpop.f32.mrf.mxu0
      %v853 = vadd.f32 0.0, %v852
      %v854 = vpop.f32.mrf.mxu0
      %855 = vmatprep.mubr.bf16.mxu0 0
      %856 = vmatmul.mubr.bf16.gmra.mxu0 %v633
      %v857 = vpop.f32.mrf.mxu0
      %v858 = vadd.f32 0.0, %v857
      %v859 = vpop.f32.mrf.mxu0
      %v860 = vpop.f32.mrf.mxu0
      %v861 = vadd.f32 0.0, %v860
      %v862 = vpop.f32.mrf.mxu0
      %863 = vmatprep.mubr.bf16.mxu0 0
      %864 = vmatmul.mubr.bf16.gmra.mxu0 %v636
      %v865 = vpop.f32.mrf.mxu0
      %v866 = vadd.f32 0.0, %v865
      %v867 = vpop.f32.mrf.mxu0
      %v868 = vpop.f32.mrf.mxu0
      %v869 = vadd.f32 0.0, %v868
      %v870 = vpop.f32.mrf.mxu0
      %871 = vmatprep.mubr.bf16.mxu0 0
      %872 = vmatmul.mubr.bf16.gmra.mxu0 %v639
      %v873 = vpop.f32.mrf.mxu0
      %v874 = vadd.f32 0.0, %v873
      %v875 = vpop.f32.mrf.mxu0
      %v876 = vpop.f32.mrf.mxu0
      %v877 = vadd.f32 0.0, %v876
      %v878 = vpop.f32.mrf.mxu0
      %879 = vmatprep.mubr.bf16.mxu0 0
      %880 = vmatmul.mubr.bf16.gmra.mxu0 %v642
      %v881 = vpop.f32.mrf.mxu0
      %v882 = vadd.f32 0.0, %v881
      %v883 = vpop.f32.mrf.mxu0
      %v884 = vpop.f32.mrf.mxu0
      %v885 = vadd.f32 0.0, %v884
      %v886 = vpop.f32.mrf.mxu0
      %887 = vmatprep.mubr.bf16.mxu0 0
      %888 = vmatmul.mubr.bf16.gmra.mxu0 %v645
      %v889 = vpop.f32.mrf.mxu0
      %v890 = vadd.f32 0.0, %v889
      %v891 = vpop.f32.mrf.mxu0
      %v892 = vpop.f32.mrf.mxu0
      %v893 = vadd.f32 0.0, %v892
      %v894 = vpop.f32.mrf.mxu0
      %895 = vmatprep.mubr.bf16.mxu0 0
      %896 = vmatmul.mubr.bf16.gmra.mxu0 %v648
      %v897 = vpop.f32.mrf.mxu0
      %v898 = vadd.f32 0.0, %v897
      %v899 = vpop.f32.mrf.mxu0
      %v900 = vpop.f32.mrf.mxu0
      %v901 = vadd.f32 0.0, %v900
      %v902 = vpop.f32.mrf.mxu0
      %903 = vmatprep.mubr.bf16.mxu0 0
      %904 = vmatmul.mubr.bf16.gmra.mxu0 %v651
      %v905 = vpop.f32.mrf.mxu0
      %v906 = vadd.f32 0.0, %v905
      %v907 = vpop.f32.mrf.mxu0
      %v908 = vpop.f32.mrf.mxu0
      %v909 = vadd.f32 0.0, %v908
      %v910 = vpop.f32.mrf.mxu0
      %911 = vmatprep.mubr.bf16.mxu0 0
      %912 = vmatmul.mubr.bf16.gmra.mxu0 %v654
      %v913 = vpop.f32.mrf.mxu0
      %v914 = vadd.f32 0.0, %v913
      %v915 = vpop.f32.mrf.mxu0
      %v916 = vpop.f32.mrf.mxu0
      %v917 = vadd.f32 0.0, %v916
      %v918 = vpop.f32.mrf.mxu0
      %919 = vmatprep.mubr.bf16.mxu0 0
      %920 = vmatmul.mubr.bf16.gmra.mxu0 %v657
      %v921 = vpop.f32.mrf.mxu0
      %v922 = vadd.f32 0.0, %v921
      %v923 = vpop.f32.mrf.mxu0
      %v924 = vpop.f32.mrf.mxu0
      %v925 = vadd.f32 0.0, %v924
      %v926 = vpop.f32.mrf.mxu0
      %927 = vmatprep.mubr.bf16.mxu0 0
      %928 = vmatmul.mubr.bf16.gmra.mxu0 %v660
      %v929 = vpop.f32.mrf.mxu0
      %v930 = vadd.f32 0.0, %v929
      %v931 = vpop.f32.mrf.mxu0
      %v932 = vpop.f32.mrf.mxu0
      %v933 = vadd.f32 0.0, %v932
      %v934 = vpop.f32.mrf.mxu0
      %935 = vmatprep.mubr.bf16.mxu0 0
      %936 = vmatmul.mubr.bf16.gmra.mxu0 %v663
      %v937 = vpop.f32.mrf.mxu0
      %v938 = vadd.f32 0.0, %v937
      %v939 = vpop.f32.mrf.mxu0
      %v940 = vpop.f32.mrf.mxu0
      %v941 = vadd.f32 0.0, %v940
      %v942 = vpop.f32.mrf.mxu0
      %943 = vmatprep.mubr.bf16.mxu0 0
      %944 = vmatmul.mubr.bf16.gmra.mxu0 %v666
      %v945 = vpop.f32.mrf.mxu0
      %v946 = vadd.f32 0.0, %v945
      %v947 = vpop.f32.mrf.mxu0
      %v948 = vpop.f32.mrf.mxu0
      %v949 = vadd.f32 0.0, %v948
      %v950 = vpop.f32.mrf.mxu0
      %951 = vmatprep.mubr.bf16.mxu0 0
      %952 = vmatmul.mubr.bf16.gmra.mxu0 %v669
      %v953 = vpop.f32.mrf.mxu0
      %v954 = vadd.f32 0.0, %v953
      %v955 = vpop.f32.mrf.mxu0
      %v956 = vpop.f32.mrf.mxu0
      %v957 = vadd.f32 0.0, %v956
      %v958 = vpop.f32.mrf.mxu0
      %959 = vdwg.mxu0
      %v960 = vadd.f32 %v262, %v706
      %v961 = vadd.f32 %v263, %v709
      %v962 = vadd.f32 %v264, %v714
      %v963 = vadd.f32 %v265, %v717
      %v964 = vadd.f32 %v266, %v722
      %v965 = vadd.f32 %v267, %v725
      %v966 = vadd.f32 %v268, %v730
      %v967 = vadd.f32 %v269, %v733
      %v968 = vadd.f32 %v270, %v738
      %v969 = vadd.f32 %v271, %v741
      %v970 = vadd.f32 %v272, %v746
      %v971 = vadd.f32 %v273, %v749
      %v972 = vadd.f32 %v274, %v754
      %v973 = vadd.f32 %v275, %v757
      %v974 = vadd.f32 %v276, %v762
      %v975 = vadd.f32 %v277, %v765
      %v976 = vadd.f32 %v278, %v770
      %v977 = vadd.f32 %v279, %v773
      %v978 = vadd.f32 %v280, %v778
      %v979 = vadd.f32 %v281, %v781
      %v980 = vadd.f32 %v282, %v786
      %v981 = vadd.f32 %v283, %v789
      %v982 = vadd.f32 %v284, %v794
      %v983 = vadd.f32 %v285, %v797
      %v984 = vadd.f32 %v286, %v802
      %v985 = vadd.f32 %v287, %v805
      %v986 = vadd.f32 %v288, %v810
      %v987 = vadd.f32 %v289, %v813
      %v988 = vadd.f32 %v290, %v818
      %v989 = vadd.f32 %v291, %v821
      %v990 = vadd.f32 %v292, %v826
      %v991 = vadd.f32 %v293, %v829
      %v992 = vadd.f32 %v294, %v834
      %v993 = vadd.f32 %v295, %v837
      %v994 = vadd.f32 %v296, %v842
      %v995 = vadd.f32 %v297, %v845
      %v996 = vadd.f32 %v298, %v850
      %v997 = vadd.f32 %v299, %v853
      %v998 = vadd.f32 %v300, %v858
      %v999 = vadd.f32 %v301, %v861
      %v1000 = vadd.f32 %v302, %v866
      %v1001 = vadd.f32 %v303, %v869
      %v1002 = vadd.f32 %v304, %v874
      %v1003 = vadd.f32 %v305, %v877
      %v1004 = vadd.f32 %v306, %v882
      %v1005 = vadd.f32 %v307, %v885
      %v1006 = vadd.f32 %v308, %v890
      %v1007 = vadd.f32 %v309, %v893
      %v1008 = vadd.f32 %v310, %v898
      %v1009 = vadd.f32 %v311, %v901
      %v1010 = vadd.f32 %v312, %v906
      %v1011 = vadd.f32 %v313, %v909
      %v1012 = vadd.f32 %v314, %v914
      %v1013 = vadd.f32 %v315, %v917
      %v1014 = vadd.f32 %v316, %v922
      %v1015 = vadd.f32 %v317, %v925
      %v1016 = vadd.f32 %v318, %v930
      %v1017 = vadd.f32 %v319, %v933
      %v1018 = vadd.f32 %v320, %v938
      %v1019 = vadd.f32 %v321, %v941
      %v1020 = vadd.f32 %v322, %v946
      %v1021 = vadd.f32 %v323, %v949
      %v1022 = vadd.f32 %v324, %v954
      %v1023 = vadd.f32 %v325, %v957
      %vm1024 = vcmask 523264
      %1025 = vst.msk [vmem:[%s190] sm:$0xff] %vm1024, %v960
      %1026 = vst.msk [vmem:[%s190 + $0x8] sm:$0xff] %vm1024, %v961
      %1027 = vst.msk [vmem:[%s190 + $0x10] sm:$0xff] %vm1024, %v962
      %1028 = vst.msk [vmem:[%s190 + $0x18] sm:$0xff] %vm1024, %v963
      %1029 = vst.msk [vmem:[%s190 + $0x20] sm:$0xff] %vm1024, %v964
      %1030 = vst.msk [vmem:[%s190 + $0x28] sm:$0xff] %vm1024, %v965
      %1031 = vst.msk [vmem:[%s190 + $0x30] sm:$0xff] %vm1024, %v966
      %1032 = vst.msk [vmem:[%s190 + $0x38] sm:$0xff] %vm1024, %v967
      %1033 = vst.msk [vmem:[%s190 + $0x40] sm:$0xff] %vm1024, %v968
      %1034 = vst.msk [vmem:[%s190 + $0x48] sm:$0xff] %vm1024, %v969
      %1035 = vst.msk [vmem:[%s190 + $0x50] sm:$0xff] %vm1024, %v970
      %1036 = vst.msk [vmem:[%s190 + $0x58] sm:$0xff] %vm1024, %v971
      %1037 = vst.msk [vmem:[%s190 + $0x60] sm:$0xff] %vm1024, %v972
      %1038 = vst.msk [vmem:[%s190 + $0x68] sm:$0xff] %vm1024, %v973
      %1039 = vst.msk [vmem:[%s190 + $0x70] sm:$0xff] %vm1024, %v974
      %1040 = vst.msk [vmem:[%s190 + $0x78] sm:$0xff] %vm1024, %v975
      %1041 = vst.msk [vmem:[%s190 + $0x80] sm:$0xff] %vm1024, %v976
      %1042 = vst.msk [vmem:[%s190 + $0x88] sm:$0xff] %vm1024, %v977
      %1043 = vst.msk [vmem:[%s190 + $0x90] sm:$0xff] %vm1024, %v978
      %1044 = vst.msk [vmem:[%s190 + $0x98] sm:$0xff] %vm1024, %v979
      %1045 = vst.msk [vmem:[%s190 + $0xa0] sm:$0xff] %vm1024, %v980
      %1046 = vst.msk [vmem:[%s190 + $0xa8] sm:$0xff] %vm1024, %v981
      %1047 = vst.msk [vmem:[%s190 + $0xb0] sm:$0xff] %vm1024, %v982
      %1048 = vst.msk [vmem:[%s190 + $0xb8] sm:$0xff] %vm1024, %v983
      %1049 = vst.msk [vmem:[%s190 + $0xc0] sm:$0xff] %vm1024, %v984
      %1050 = vst.msk [vmem:[%s190 + $0xc8] sm:$0xff] %vm1024, %v985
      %1051 = vst.msk [vmem:[%s190 + $0xd0] sm:$0xff] %vm1024, %v986
      %1052 = vst.msk [vmem:[%s190 + $0xd8] sm:$0xff] %vm1024, %v987
      %1053 = vst.msk [vmem:[%s190 + $0xe0] sm:$0xff] %vm1024, %v988
      %1054 = vst.msk [vmem:[%s190 + $0xe8] sm:$0xff] %vm1024, %v989
      %1055 = vst.msk [vmem:[%s190 + $0xf0] sm:$0xff] %vm1024, %v990
      %1056 = vst.msk [vmem:[%s190 + $0xf8] sm:$0xff] %vm1024, %v991
      %1057 = vst.msk [vmem:[%s190 + $0x100] sm:$0xff] %vm1024, %v992
      %1058 = vst.msk [vmem:[%s190 + $0x108] sm:$0xff] %vm1024, %v993
      %1059 = vst.msk [vmem:[%s190 + $0x110] sm:$0xff] %vm1024, %v994
      %1060 = vst.msk [vmem:[%s190 + $0x118] sm:$0xff] %vm1024, %v995
      %1061 = vst.msk [vmem:[%s190 + $0x120] sm:$0xff] %vm1024, %v996
      %1062 = vst.msk [vmem:[%s190 + $0x128] sm:$0xff] %vm1024, %v997
      %1063 = vst.msk [vmem:[%s190 + $0x130] sm:$0xff] %vm1024, %v998
      %1064 = vst.msk [vmem:[%s190 + $0x138] sm:$0xff] %vm1024, %v999
      %1065 = vst.msk [vmem:[%s190 + $0x140] sm:$0xff] %vm1024, %v1000
      %1066 = vst.msk [vmem:[%s190 + $0x148] sm:$0xff] %vm1024, %v1001
      %1067 = vst.msk [vmem:[%s190 + $0x150] sm:$0xff] %vm1024, %v1002
      %1068 = vst.msk [vmem:[%s190 + $0x158] sm:$0xff] %vm1024, %v1003
      %1069 = vst.msk [vmem:[%s190 + $0x160] sm:$0xff] %vm1024, %v1004
      %1070 = vst.msk [vmem:[%s190 + $0x168] sm:$0xff] %vm1024, %v1005
      %1071 = vst.msk [vmem:[%s190 + $0x170] sm:$0xff] %vm1024, %v1006
      %1072 = vst.msk [vmem:[%s190 + $0x178] sm:$0xff] %vm1024, %v1007
      %1073 = vst.msk [vmem:[%s190 + $0x180] sm:$0xff] %vm1024, %v1008
      %1074 = vst.msk [vmem:[%s190 + $0x188] sm:$0xff] %vm1024, %v1009
      %1075 = vst.msk [vmem:[%s190 + $0x190] sm:$0xff] %vm1024, %v1010
      %1076 = vst.msk [vmem:[%s190 + $0x198] sm:$0xff] %vm1024, %v1011
      %1077 = vst.msk [vmem:[%s190 + $0x1a0] sm:$0xff] %vm1024, %v1012
      %1078 = vst.msk [vmem:[%s190 + $0x1a8] sm:$0xff] %vm1024, %v1013
      %1079 = vst.msk [vmem:[%s190 + $0x1b0] sm:$0xff] %vm1024, %v1014
      %1080 = vst.msk [vmem:[%s190 + $0x1b8] sm:$0xff] %vm1024, %v1015
      %1081 = vst.msk [vmem:[%s190 + $0x1c0] sm:$0xff] %vm1024, %v1016
      %1082 = vst.msk [vmem:[%s190 + $0x1c8] sm:$0xff] %vm1024, %v1017
      %1083 = vst.msk [vmem:[%s190 + $0x1d0] sm:$0xff] %vm1024, %v1018
      %1084 = vst.msk [vmem:[%s190 + $0x1d8] sm:$0xff] %vm1024, %v1019
      %1085 = vst.msk [vmem:[%s190 + $0x1e0] sm:$0xff] %vm1024, %v1020
      %1086 = vst.msk [vmem:[%s190 + $0x1e8] sm:$0xff] %vm1024, %v1021
      %1087 = vst.msk [vmem:[%s190 + $0x1f0] sm:$0xff] %vm1024, %v1022
      %1088 = vst.msk [vmem:[%s190 + $0x1f8] sm:$0xff] %vm1024, %v1023
      // Predicated region
      $region33: #{discriminator_forward.5} parent=27 // pred_check
        %p1089 = pneg %p193
      $region34: #{discriminator_forward.5} parent=27 // pred_check_branch
        %1091 = sbr.rel (%p1089) target = $region36
      $region35: #{discriminator_forward.5} parent=27 // pred_region
        %v1092 = vld [vmem:[%s190] sm:$0xff]
        %v1093 = vld [vmem:[%s190 + $0x8] sm:$0xff]
        %v1094 = vld [vmem:[%s190 + $0x10] sm:$0xff]
        %v1095 = vld [vmem:[%s190 + $0x18] sm:$0xff]
        %v1096 = vld [vmem:[%s190 + $0x20] sm:$0xff]
        %v1097 = vld [vmem:[%s190 + $0x28] sm:$0xff]
        %v1098 = vld [vmem:[%s190 + $0x30] sm:$0xff]
        %v1099 = vld [vmem:[%s190 + $0x38] sm:$0xff]
        %v1100 = vld [vmem:[%s190 + $0x40] sm:$0xff]
        %v1101 = vld [vmem:[%s190 + $0x48] sm:$0xff]
        %v1102 = vld [vmem:[%s190 + $0x50] sm:$0xff]
        %v1103 = vld [vmem:[%s190 + $0x58] sm:$0xff]
        %v1104 = vld [vmem:[%s190 + $0x60] sm:$0xff]
        %v1105 = vld [vmem:[%s190 + $0x68] sm:$0xff]
        %v1106 = vld [vmem:[%s190 + $0x70] sm:$0xff]
        %v1107 = vld [vmem:[%s190 + $0x78] sm:$0xff]
        %v1108 = vld [vmem:[%s190 + $0x80] sm:$0xff]
        %v1109 = vld [vmem:[%s190 + $0x88] sm:$0xff]
        %v1110 = vld [vmem:[%s190 + $0x90] sm:$0xff]
        %v1111 = vld [vmem:[%s190 + $0x98] sm:$0xff]
        %v1112 = vld [vmem:[%s190 + $0xa0] sm:$0xff]
        %v1113 = vld [vmem:[%s190 + $0xa8] sm:$0xff]
        %v1114 = vld [vmem:[%s190 + $0xb0] sm:$0xff]
        %v1115 = vld [vmem:[%s190 + $0xb8] sm:$0xff]
        %v1116 = vld [vmem:[%s190 + $0xc0] sm:$0xff]
        %v1117 = vld [vmem:[%s190 + $0xc8] sm:$0xff]
        %v1118 = vld [vmem:[%s190 + $0xd0] sm:$0xff]
        %v1119 = vld [vmem:[%s190 + $0xd8] sm:$0xff]
        %v1120 = vld [vmem:[%s190 + $0xe0] sm:$0xff]
        %v1121 = vld [vmem:[%s190 + $0xe8] sm:$0xff]
        %v1122 = vld [vmem:[%s190 + $0xf0] sm:$0xff]
        %v1123 = vld [vmem:[%s190 + $0xf8] sm:$0xff]
        %v1124 = vld [vmem:[%s190 + $0x100] sm:$0xff]
        %v1125 = vld [vmem:[%s190 + $0x108] sm:$0xff]
        %v1126 = vld [vmem:[%s190 + $0x110] sm:$0xff]
        %v1127 = vld [vmem:[%s190 + $0x118] sm:$0xff]
        %v1128 = vld [vmem:[%s190 + $0x120] sm:$0xff]
        %v1129 = vld [vmem:[%s190 + $0x128] sm:$0xff]
        %v1130 = vld [vmem:[%s190 + $0x130] sm:$0xff]
        %v1131 = vld [vmem:[%s190 + $0x138] sm:$0xff]
        %v1132 = vld [vmem:[%s190 + $0x140] sm:$0xff]
        %v1133 = vld [vmem:[%s190 + $0x148] sm:$0xff]
        %v1134 = vld [vmem:[%s190 + $0x150] sm:$0xff]
        %v1135 = vld [vmem:[%s190 + $0x158] sm:$0xff]
        %v1136 = vld [vmem:[%s190 + $0x160] sm:$0xff]
        %v1137 = vld [vmem:[%s190 + $0x168] sm:$0xff]
        %v1138 = vld [vmem:[%s190 + $0x170] sm:$0xff]
        %v1139 = vld [vmem:[%s190 + $0x178] sm:$0xff]
        %v1140 = vld [vmem:[%s190 + $0x180] sm:$0xff]
        %v1141 = vld [vmem:[%s190 + $0x188] sm:$0xff]
        %v1142 = vld [vmem:[%s190 + $0x190] sm:$0xff]
        %v1143 = vld [vmem:[%s190 + $0x198] sm:$0xff]
        %v1144 = vld [vmem:[%s190 + $0x1a0] sm:$0xff]
        %v1145 = vld [vmem:[%s190 + $0x1a8] sm:$0xff]
        %v1146 = vld [vmem:[%s190 + $0x1b0] sm:$0xff]
        %v1147 = vld [vmem:[%s190 + $0x1b8] sm:$0xff]
        %v1148 = vld [vmem:[%s190 + $0x1c0] sm:$0xff]
        %v1149 = vld [vmem:[%s190 + $0x1c8] sm:$0xff]
        %v1150 = vld [vmem:[%s190 + $0x1d0] sm:$0xff]
        %v1151 = vld [vmem:[%s190 + $0x1d8] sm:$0xff]
        %v1152 = vld [vmem:[%s190 + $0x1e0] sm:$0xff]
        %v1153 = vld [vmem:[%s190 + $0x1e8] sm:$0xff]
        %v1154 = vld [vmem:[%s190 + $0x1f0] sm:$0xff]
        %v1155 = vld [vmem:[%s190 + $0x1f8] sm:$0xff]
        %vm1156 = vcmp.gt.f32.partialorder %v1092, 0.0
        %vm1157 = vcmp.gt.f32.partialorder %v1093, 0.0
        %vm1158 = vcmp.gt.f32.partialorder %v1094, 0.0
        %vm1159 = vcmp.gt.f32.partialorder %v1095, 0.0
        %vm1160 = vcmp.gt.f32.partialorder %v1096, 0.0
        %vm1161 = vcmp.gt.f32.partialorder %v1097, 0.0
        %vm1162 = vcmp.gt.f32.partialorder %v1098, 0.0
        %vm1163 = vcmp.gt.f32.partialorder %v1099, 0.0
        %vm1164 = vcmp.gt.f32.partialorder %v1100, 0.0
        %vm1165 = vcmp.gt.f32.partialorder %v1101, 0.0
        %vm1166 = vcmp.gt.f32.partialorder %v1102, 0.0
        %vm1167 = vcmp.gt.f32.partialorder %v1103, 0.0
        %vm1168 = vcmp.gt.f32.partialorder %v1104, 0.0
        %vm1169 = vcmp.gt.f32.partialorder %v1105, 0.0
        %vm1170 = vcmp.gt.f32.partialorder %v1106, 0.0
        %vm1171 = vcmp.gt.f32.partialorder %v1107, 0.0
        %vm1172 = vcmp.gt.f32.partialorder %v1108, 0.0
        %vm1173 = vcmp.gt.f32.partialorder %v1109, 0.0
        %vm1174 = vcmp.gt.f32.partialorder %v1110, 0.0
        %vm1175 = vcmp.gt.f32.partialorder %v1111, 0.0
        %vm1176 = vcmp.gt.f32.partialorder %v1112, 0.0
        %vm1177 = vcmp.gt.f32.partialorder %v1113, 0.0
        %vm1178 = vcmp.gt.f32.partialorder %v1114, 0.0
        %vm1179 = vcmp.gt.f32.partialorder %v1115, 0.0
        %vm1180 = vcmp.gt.f32.partialorder %v1116, 0.0
        %vm1181 = vcmp.gt.f32.partialorder %v1117, 0.0
        %vm1182 = vcmp.gt.f32.partialorder %v1118, 0.0
        %vm1183 = vcmp.gt.f32.partialorder %v1119, 0.0
        %vm1184 = vcmp.gt.f32.partialorder %v1120, 0.0
        %vm1185 = vcmp.gt.f32.partialorder %v1121, 0.0
        %vm1186 = vcmp.gt.f32.partialorder %v1122, 0.0
        %vm1187 = vcmp.gt.f32.partialorder %v1123, 0.0
        %vm1188 = vcmp.gt.f32.partialorder %v1124, 0.0
        %vm1189 = vcmp.gt.f32.partialorder %v1125, 0.0
        %vm1190 = vcmp.gt.f32.partialorder %v1126, 0.0
        %vm1191 = vcmp.gt.f32.partialorder %v1127, 0.0
        %vm1192 = vcmp.gt.f32.partialorder %v1128, 0.0
        %vm1193 = vcmp.gt.f32.partialorder %v1129, 0.0
        %vm1194 = vcmp.gt.f32.partialorder %v1130, 0.0
        %vm1195 = vcmp.gt.f32.partialorder %v1131, 0.0
        %vm1196 = vcmp.gt.f32.partialorder %v1132, 0.0
        %vm1197 = vcmp.gt.f32.partialorder %v1133, 0.0
        %vm1198 = vcmp.gt.f32.partialorder %v1134, 0.0
        %vm1199 = vcmp.gt.f32.partialorder %v1135, 0.0
        %vm1200 = vcmp.gt.f32.partialorder %v1136, 0.0
        %vm1201 = vcmp.gt.f32.partialorder %v1137, 0.0
        %vm1202 = vcmp.gt.f32.partialorder %v1138, 0.0
        %vm1203 = vcmp.gt.f32.partialorder %v1139, 0.0
        %vm1204 = vcmp.gt.f32.partialorder %v1140, 0.0
        %vm1205 = vcmp.gt.f32.partialorder %v1141, 0.0
        %vm1206 = vcmp.gt.f32.partialorder %v1142, 0.0
        %vm1207 = vcmp.gt.f32.partialorder %v1143, 0.0
        %vm1208 = vcmp.gt.f32.partialorder %v1144, 0.0
        %vm1209 = vcmp.gt.f32.partialorder %v1145, 0.0
        %vm1210 = vcmp.gt.f32.partialorder %v1146, 0.0
        %vm1211 = vcmp.gt.f32.partialorder %v1147, 0.0
        %vm1212 = vcmp.gt.f32.partialorder %v1148, 0.0
        %vm1213 = vcmp.gt.f32.partialorder %v1149, 0.0
        %vm1214 = vcmp.gt.f32.partialorder %v1150, 0.0
        %vm1215 = vcmp.gt.f32.partialorder %v1151, 0.0
        %vm1216 = vcmp.gt.f32.partialorder %v1152, 0.0
        %vm1217 = vcmp.gt.f32.partialorder %v1153, 0.0
        %vm1218 = vcmp.gt.f32.partialorder %v1154, 0.0
        %vm1219 = vcmp.gt.f32.partialorder %v1155, 0.0
        %v1220 = vmul.f32 %v1092, 0.2
        %v1221 = vmul.f32 %v1093, 0.2
        %v1222 = vmul.f32 %v1094, 0.2
        %v1223 = vmul.f32 %v1095, 0.2
        %v1224 = vmul.f32 %v1096, 0.2
        %v1225 = vmul.f32 %v1097, 0.2
        %v1226 = vmul.f32 %v1098, 0.2
        %v1227 = vmul.f32 %v1099, 0.2
        %v1228 = vmul.f32 %v1100, 0.2
        %v1229 = vmul.f32 %v1101, 0.2
        %v1230 = vmul.f32 %v1102, 0.2
        %v1231 = vmul.f32 %v1103, 0.2
        %v1232 = vmul.f32 %v1104, 0.2
        %v1233 = vmul.f32 %v1105, 0.2
        %v1234 = vmul.f32 %v1106, 0.2
        %v1235 = vmul.f32 %v1107, 0.2
        %v1236 = vmul.f32 %v1108, 0.2
        %v1237 = vmul.f32 %v1109, 0.2
        %v1238 = vmul.f32 %v1110, 0.2
        %v1239 = vmul.f32 %v1111, 0.2
        %v1240 = vmul.f32 %v1112, 0.2
        %v1241 = vmul.f32 %v1113, 0.2
        %v1242 = vmul.f32 %v1114, 0.2
        %v1243 = vmul.f32 %v1115, 0.2
        %v1244 = vmul.f32 %v1116, 0.2
        %v1245 = vmul.f32 %v1117, 0.2
        %v1246 = vmul.f32 %v1118, 0.2
        %v1247 = vmul.f32 %v1119, 0.2
        %v1248 = vmul.f32 %v1120, 0.2
        %v1249 = vmul.f32 %v1121, 0.2
        %v1250 = vmul.f32 %v1122, 0.2
        %v1251 = vmul.f32 %v1123, 0.2
        %v1252 = vmul.f32 %v1124, 0.2
        %v1253 = vmul.f32 %v1125, 0.2
        %v1254 = vmul.f32 %v1126, 0.2
        %v1255 = vmul.f32 %v1127, 0.2
        %v1256 = vmul.f32 %v1128, 0.2
        %v1257 = vmul.f32 %v1129, 0.2
        %v1258 = vmul.f32 %v1130, 0.2
        %v1259 = vmul.f32 %v1131, 0.2
        %v1260 = vmul.f32 %v1132, 0.2
        %v1261 = vmul.f32 %v1133, 0.2
        %v1262 = vmul.f32 %v1134, 0.2
        %v1263 = vmul.f32 %v1135, 0.2
        %v1264 = vmul.f32 %v1136, 0.2
        %v1265 = vmul.f32 %v1137, 0.2
        %v1266 = vmul.f32 %v1138, 0.2
        %v1267 = vmul.f32 %v1139, 0.2
        %v1268 = vmul.f32 %v1140, 0.2
        %v1269 = vmul.f32 %v1141, 0.2
        %v1270 = vmul.f32 %v1142, 0.2
        %v1271 = vmul.f32 %v1143, 0.2
        %v1272 = vmul.f32 %v1144, 0.2
        %v1273 = vmul.f32 %v1145, 0.2
        %v1274 = vmul.f32 %v1146, 0.2
        %v1275 = vmul.f32 %v1147, 0.2
        %v1276 = vmul.f32 %v1148, 0.2
        %v1277 = vmul.f32 %v1149, 0.2
        %v1278 = vmul.f32 %v1150, 0.2
        %v1279 = vmul.f32 %v1151, 0.2
        %v1280 = vmul.f32 %v1152, 0.2
        %v1281 = vmul.f32 %v1153, 0.2
        %v1282 = vmul.f32 %v1154, 0.2
        %v1283 = vmul.f32 %v1155, 0.2
        %v1284 = vsel %vm1156, %v1092, %v1220
        %v1285 = vsel %vm1157, %v1093, %v1221
        %v1286 = vsel %vm1158, %v1094, %v1222
        %v1287 = vsel %vm1159, %v1095, %v1223
        %v1288 = vsel %vm1160, %v1096, %v1224
        %v1289 = vsel %vm1161, %v1097, %v1225
        %v1290 = vsel %vm1162, %v1098, %v1226
        %v1291 = vsel %vm1163, %v1099, %v1227
        %v1292 = vsel %vm1164, %v1100, %v1228
        %v1293 = vsel %vm1165, %v1101, %v1229
        %v1294 = vsel %vm1166, %v1102, %v1230
        %v1295 = vsel %vm1167, %v1103, %v1231
        %v1296 = vsel %vm1168, %v1104, %v1232
        %v1297 = vsel %vm1169, %v1105, %v1233
        %v1298 = vsel %vm1170, %v1106, %v1234
        %v1299 = vsel %vm1171, %v1107, %v1235
        %v1300 = vsel %vm1172, %v1108, %v1236
        %v1301 = vsel %vm1173, %v1109, %v1237
        %v1302 = vsel %vm1174, %v1110, %v1238
        %v1303 = vsel %vm1175, %v1111, %v1239
        %v1304 = vsel %vm1176, %v1112, %v1240
        %v1305 = vsel %vm1177, %v1113, %v1241
        %v1306 = vsel %vm1178, %v1114, %v1242
        %v1307 = vsel %vm1179, %v1115, %v1243
        %v1308 = vsel %vm1180, %v1116, %v1244
        %v1309 = vsel %vm1181, %v1117, %v1245
        %v1310 = vsel %vm1182, %v1118, %v1246
        %v1311 = vsel %vm1183, %v1119, %v1247
        %v1312 = vsel %vm1184, %v1120, %v1248
        %v1313 = vsel %vm1185, %v1121, %v1249
        %v1314 = vsel %vm1186, %v1122, %v1250
        %v1315 = vsel %vm1187, %v1123, %v1251
        %v1316 = vsel %vm1188, %v1124, %v1252
        %v1317 = vsel %vm1189, %v1125, %v1253
        %v1318 = vsel %vm1190, %v1126, %v1254
        %v1319 = vsel %vm1191, %v1127, %v1255
        %v1320 = vsel %vm1192, %v1128, %v1256
        %v1321 = vsel %vm1193, %v1129, %v1257
        %v1322 = vsel %vm1194, %v1130, %v1258
        %v1323 = vsel %vm1195, %v1131, %v1259
        %v1324 = vsel %vm1196, %v1132, %v1260
        %v1325 = vsel %vm1197, %v1133, %v1261
        %v1326 = vsel %vm1198, %v1134, %v1262
        %v1327 = vsel %vm1199, %v1135, %v1263
        %v1328 = vsel %vm1200, %v1136, %v1264
        %v1329 = vsel %vm1201, %v1137, %v1265
        %v1330 = vsel %vm1202, %v1138, %v1266
        %v1331 = vsel %vm1203, %v1139, %v1267
        %v1332 = vsel %vm1204, %v1140, %v1268
        %v1333 = vsel %vm1205, %v1141, %v1269
        %v1334 = vsel %vm1206, %v1142, %v1270
        %v1335 = vsel %vm1207, %v1143, %v1271
        %v1336 = vsel %vm1208, %v1144, %v1272
        %v1337 = vsel %vm1209, %v1145, %v1273
        %v1338 = vsel %vm1210, %v1146, %v1274
        %v1339 = vsel %vm1211, %v1147, %v1275
        %v1340 = vsel %vm1212, %v1148, %v1276
        %v1341 = vsel %vm1213, %v1149, %v1277
        %v1342 = vsel %vm1214, %v1150, %v1278
        %v1343 = vsel %vm1215, %v1151, %v1279
        %v1344 = vsel %vm1216, %v1152, %v1280
        %v1345 = vsel %vm1217, %v1153, %v1281
        %v1346 = vsel %vm1218, %v1154, %v1282
        %v1347 = vsel %vm1219, %v1155, %v1283
        %1348 = vst.msk [vmem:[%s190] sm:$0xff] %vm1024, %v1284
        %1349 = vst.msk [vmem:[%s190 + $0x8] sm:$0xff] %vm1024, %v1285
        %1350 = vst.msk [vmem:[%s190 + $0x10] sm:$0xff] %vm1024, %v1286
        %1351 = vst.msk [vmem:[%s190 + $0x18] sm:$0xff] %vm1024, %v1287
        %1352 = vst.msk [vmem:[%s190 + $0x20] sm:$0xff] %vm1024, %v1288
        %1353 = vst.msk [vmem:[%s190 + $0x28] sm:$0xff] %vm1024, %v1289
        %1354 = vst.msk [vmem:[%s190 + $0x30] sm:$0xff] %vm1024, %v1290
        %1355 = vst.msk [vmem:[%s190 + $0x38] sm:$0xff] %vm1024, %v1291
        %1356 = vst.msk [vmem:[%s190 + $0x40] sm:$0xff] %vm1024, %v1292
        %1357 = vst.msk [vmem:[%s190 + $0x48] sm:$0xff] %vm1024, %v1293
        %1358 = vst.msk [vmem:[%s190 + $0x50] sm:$0xff] %vm1024, %v1294
        %1359 = vst.msk [vmem:[%s190 + $0x58] sm:$0xff] %vm1024, %v1295
        %1360 = vst.msk [vmem:[%s190 + $0x60] sm:$0xff] %vm1024, %v1296
        %1361 = vst.msk [vmem:[%s190 + $0x68] sm:$0xff] %vm1024, %v1297
        %1362 = vst.msk [vmem:[%s190 + $0x70] sm:$0xff] %vm1024, %v1298
        %1363 = vst.msk [vmem:[%s190 + $0x78] sm:$0xff] %vm1024, %v1299
        %1364 = vst.msk [vmem:[%s190 + $0x80] sm:$0xff] %vm1024, %v1300
        %1365 = vst.msk [vmem:[%s190 + $0x88] sm:$0xff] %vm1024, %v1301
        %1366 = vst.msk [vmem:[%s190 + $0x90] sm:$0xff] %vm1024, %v1302
        %1367 = vst.msk [vmem:[%s190 + $0x98] sm:$0xff] %vm1024, %v1303
        %1368 = vst.msk [vmem:[%s190 + $0xa0] sm:$0xff] %vm1024, %v1304
        %1369 = vst.msk [vmem:[%s190 + $0xa8] sm:$0xff] %vm1024, %v1305
        %1370 = vst.msk [vmem:[%s190 + $0xb0] sm:$0xff] %vm1024, %v1306
        %1371 = vst.msk [vmem:[%s190 + $0xb8] sm:$0xff] %vm1024, %v1307
        %1372 = vst.msk [vmem:[%s190 + $0xc0] sm:$0xff] %vm1024, %v1308
        %1373 = vst.msk [vmem:[%s190 + $0xc8] sm:$0xff] %vm1024, %v1309
        %1374 = vst.msk [vmem:[%s190 + $0xd0] sm:$0xff] %vm1024, %v1310
        %1375 = vst.msk [vmem:[%s190 + $0xd8] sm:$0xff] %vm1024, %v1311
        %1376 = vst.msk [vmem:[%s190 + $0xe0] sm:$0xff] %vm1024, %v1312
        %1377 = vst.msk [vmem:[%s190 + $0xe8] sm:$0xff] %vm1024, %v1313
        %1378 = vst.msk [vmem:[%s190 + $0xf0] sm:$0xff] %vm1024, %v1314
        %1379 = vst.msk [vmem:[%s190 + $0xf8] sm:$0xff] %vm1024, %v1315
        %1380 = vst.msk [vmem:[%s190 + $0x100] sm:$0xff] %vm1024, %v1316
        %1381 = vst.msk [vmem:[%s190 + $0x108] sm:$0xff] %vm1024, %v1317
        %1382 = vst.msk [vmem:[%s190 + $0x110] sm:$0xff] %vm1024, %v1318
        %1383 = vst.msk [vmem:[%s190 + $0x118] sm:$0xff] %vm1024, %v1319
        %1384 = vst.msk [vmem:[%s190 + $0x120] sm:$0xff] %vm1024, %v1320
        %1385 = vst.msk [vmem:[%s190 + $0x128] sm:$0xff] %vm1024, %v1321
        %1386 = vst.msk [vmem:[%s190 + $0x130] sm:$0xff] %vm1024, %v1322
        %1387 = vst.msk [vmem:[%s190 + $0x138] sm:$0xff] %vm1024, %v1323
        %1388 = vst.msk [vmem:[%s190 + $0x140] sm:$0xff] %vm1024, %v1324
        %1389 = vst.msk [vmem:[%s190 + $0x148] sm:$0xff] %vm1024, %v1325
        %1390 = vst.msk [vmem:[%s190 + $0x150] sm:$0xff] %vm1024, %v1326
        %1391 = vst.msk [vmem:[%s190 + $0x158] sm:$0xff] %vm1024, %v1327
        %1392 = vst.msk [vmem:[%s190 + $0x160] sm:$0xff] %vm1024, %v1328
        %1393 = vst.msk [vmem:[%s190 + $0x168] sm:$0xff] %vm1024, %v1329
        %1394 = vst.msk [vmem:[%s190 + $0x170] sm:$0xff] %vm1024, %v1330
        %1395 = vst.msk [vmem:[%s190 + $0x178] sm:$0xff] %vm1024, %v1331
        %1396 = vst.msk [vmem:[%s190 + $0x180] sm:$0xff] %vm1024, %v1332
        %1397 = vst.msk [vmem:[%s190 + $0x188] sm:$0xff] %vm1024, %v1333
        %1398 = vst.msk [vmem:[%s190 + $0x190] sm:$0xff] %vm1024, %v1334
        %1399 = vst.msk [vmem:[%s190 + $0x198] sm:$0xff] %vm1024, %v1335
        %1400 = vst.msk [vmem:[%s190 + $0x1a0] sm:$0xff] %vm1024, %v1336
        %1401 = vst.msk [vmem:[%s190 + $0x1a8] sm:$0xff] %vm1024, %v1337
        %1402 = vst.msk [vmem:[%s190 + $0x1b0] sm:$0xff] %vm1024, %v1338
        %1403 = vst.msk [vmem:[%s190 + $0x1b8] sm:$0xff] %vm1024, %v1339
        %1404 = vst.msk [vmem:[%s190 + $0x1c0] sm:$0xff] %vm1024, %v1340
        %1405 = vst.msk [vmem:[%s190 + $0x1c8] sm:$0xff] %vm1024, %v1341
        %1406 = vst.msk [vmem:[%s190 + $0x1d0] sm:$0xff] %vm1024, %v1342
        %1407 = vst.msk [vmem:[%s190 + $0x1d8] sm:$0xff] %vm1024, %v1343
        %1408 = vst.msk [vmem:[%s190 + $0x1e0] sm:$0xff] %vm1024, %v1344
        %1409 = vst.msk [vmem:[%s190 + $0x1e8] sm:$0xff] %vm1024, %v1345
        %1410 = vst.msk [vmem:[%s190 + $0x1f0] sm:$0xff] %vm1024, %v1346
        %1411 = vst.msk [vmem:[%s190 + $0x1f8] sm:$0xff] %vm1024, %v1347
      $region36: #{discriminator_forward.5} parent=27 // pred_fallthru
        _
      %s1412 = smul.u32 64, %s17
      %p1413 = scmp.lt.s32.totalorder %s1412, 255
      %s1414 = scalar_select %p1413, %s1412, 255
      %s1415 = smul.addr %s1414, 8
      %s1416 = scalar_lea.vmem %s2, %s1415
      // Predicated region
      $region37: #{discriminator_forward.5} parent=27 // pred_check
        %p1417 = pneg %p97
      $region38: #{discriminator_forward.5} parent=27 // pred_check_branch
        %1419 = sbr.rel (%p1417) target = $region40
      $region39: #{discriminator_forward.5} parent=27 // pred_region
        %s1420 = smul.u32 64, %s17
      $region40: #{discriminator_forward.5} parent=27 // pred_fallthru
        _
    $region28: #{discriminator_forward.5} parent=5 // pred_fallthru
      _
    %p1421 = scmp.le.s32.totalorder 2, %s8
    // Predicated region
    $region41: #{discriminator_forward.5} parent=5 // pred_check
      %p1422 = pneg %p1421
    $region42: #{discriminator_forward.5} parent=5 // pred_check_branch
      %1424 = sbr.rel (%p1422) target = $region44
    $region43: #{discriminator_forward.5} parent=5 // pred_region
      %s1425 = ssub.s32 %s8, 2
      // Predicated region
      $region45: #{discriminator_forward.5} parent=43 // pred_check
        %p1426 = pneg %p103
      $region46: #{discriminator_forward.5} parent=43 // pred_check_branch
        %1428 = sbr.rel (%p1426) target = $region48
      $region47: #{discriminator_forward.5} parent=43 // pred_region
        %s1429 = smul.u32 64, %s19
        %p1430 = scmp.lt.s32.totalorder %s1429, 255
        %s1431 = scalar_select %p1430, %s1429, 255
        %s1432 = smul.addr %s1431, 8
        %s1433 = scalar_lea.vmem %s2, %s1432
      $region48: #{discriminator_forward.5} parent=43 // pred_fallthru
        _
    $region44: #{discriminator_forward.5} parent=5 // pred_fallthru
      _
  $region6: #{discriminator_forward.5} parent=0 // loop_footer
    %s12 = sadd.s32 1, %s8
  $region7: #{discriminator_forward.5} parent=0 // loop_footer_branch
    %7 = sbr.rel target = $region3
  $region8: #{discriminator_forward.5} parent=0 // loop_exit
    _

// kernel: discriminator_forward.6
$region0: #{discriminator_forward.6}
  #allocation0 [shape = 'u32[]', space=smem, size = 0x4, offset = 0x4, fixed_abs, tag = 'smem constant byte address 0x4 - core index']
  #allocation1 [shape = 'u32[144,128]{1,0:T(1,128)}', space=vmem, size = 0x12000, scoped, tag = 'internal scratch']
  %s0 = inlined_call_operand.vmem [shape: bf16[512,1024], index: 0, kind: input, shape index: {}]
  %s1 = inlined_call_operand.vmem [shape: bf16[1024,128], index: 1, kind: input, shape index: {}]
  %s2 = inlined_call_operand.vmem [shape: f32[1,128], index: 2, kind: input, shape index: {}]
  %s3 = inlined_call_operand.vmem [shape: f32[1,128], index: 3, kind: input, shape index: {}]
  %s4 = inlined_call_operand.vmem [shape: f32[512,128], index: 4, kind: output, shape index: {}]
  %s5 = sld [smem:[#allocation0]]
  $region34: #{discriminator_forward.6} parent=0
    _
  %s7 = ssub.s32 1, %s5
  %s8 = scalar_select 0, %s7, %s5
  // Predicated region
  $region2: #{discriminator_forward.6} parent=0 // pred_check
    _
  $region3: #{discriminator_forward.6} parent=0 // pred_check_branch
    %10 = sbr.rel (0) target = $region5
  $region4: #{discriminator_forward.6} parent=0 // pred_region
    _
  $region5: #{discriminator_forward.6} parent=0 // pred_fallthru
    _
  // Predicated region
  $region6: #{discriminator_forward.6} parent=0 // pred_check
    _
  $region7: #{discriminator_forward.6} parent=0 // pred_check_branch
    %12 = sbr.rel (0) target = $region9
  $region8: #{discriminator_forward.6} parent=0 // pred_region
    _
  $region9: #{discriminator_forward.6} parent=0 // pred_fallthru
    _
  // Predicated region
  $region10: #{discriminator_forward.6} parent=0 // pred_check
    _
  $region11: #{discriminator_forward.6} parent=0 // pred_check_branch
    %14 = sbr.rel (0) target = $region13
  $region12: #{discriminator_forward.6} parent=0 // pred_region
    _
  $region13: #{discriminator_forward.6} parent=0 // pred_fallthru
    _
  // Predicated region
  $region14: #{discriminator_forward.6} parent=0 // pred_check
    _
  $region15: #{discriminator_forward.6} parent=0 // pred_check_branch
    %16 = sbr.rel (0) target = $region17
  $region16: #{discriminator_forward.6} parent=0 // pred_region
    _
  $region17: #{discriminator_forward.6} parent=0 // pred_fallthru
    _
  %p18 = scmp.eq.s32.totalorder 0, 0
  // Predicated region
  $region18: #{discriminator_forward.6} parent=0 // pred_check
    %p19 = pneg %p18
  $region19: #{discriminator_forward.6} parent=0 // pred_check_branch
    %21 = sbr.rel (%p19) target = $region21
  $region20: #{discriminator_forward.6} parent=0 // pred_region
    %22 = vst [vmem:[%s4] sm:$0xff] 0.0
    %23 = vst [vmem:[%s4 + $0x8] sm:$0xff] 0.0
    %24 = vst [vmem:[%s4 + $0x10] sm:$0xff] 0.0
    %25 = vst [vmem:[%s4 + $0x18] sm:$0xff] 0.0
    %26 = vst [vmem:[%s4 + $0x20] sm:$0xff] 0.0
    %27 = vst [vmem:[%s4 + $0x28] sm:$0xff] 0.0
    %28 = vst [vmem:[%s4 + $0x30] sm:$0xff] 0.0
    %29 = vst [vmem:[%s4 + $0x38] sm:$0xff] 0.0
    %30 = vst [vmem:[%s4 + $0x40] sm:$0xff] 0.0
    %31 = vst [vmem:[%s4 + $0x48] sm:$0xff] 0.0
    %32 = vst [vmem:[%s4 + $0x50] sm:$0xff] 0.0
    %33 = vst [vmem:[%s4 + $0x58] sm:$0xff] 0.0
    %34 = vst [vmem:[%s4 + $0x60] sm:$0xff] 0.0
    %35 = vst [vmem:[%s4 + $0x68] sm:$0xff] 0.0
    %36 = vst [vmem:[%s4 + $0x70] sm:$0xff] 0.0
    %37 = vst [vmem:[%s4 + $0x78] sm:$0xff] 0.0
    %38 = vst [vmem:[%s4 + $0x80] sm:$0xff] 0.0
    %39 = vst [vmem:[%s4 + $0x88] sm:$0xff] 0.0
    %40 = vst [vmem:[%s4 + $0x90] sm:$0xff] 0.0
    %41 = vst [vmem:[%s4 + $0x98] sm:$0xff] 0.0
    %42 = vst [vmem:[%s4 + $0xa0] sm:$0xff] 0.0
    %43 = vst [vmem:[%s4 + $0xa8] sm:$0xff] 0.0
    %44 = vst [vmem:[%s4 + $0xb0] sm:$0xff] 0.0
    %45 = vst [vmem:[%s4 + $0xb8] sm:$0xff] 0.0
    %46 = vst [vmem:[%s4 + $0xc0] sm:$0xff] 0.0
    %47 = vst [vmem:[%s4 + $0xc8] sm:$0xff] 0.0
    %48 = vst [vmem:[%s4 + $0xd0] sm:$0xff] 0.0
    %49 = vst [vmem:[%s4 + $0xd8] sm:$0xff] 0.0
    %50 = vst [vmem:[%s4 + $0xe0] sm:$0xff] 0.0
    %51 = vst [vmem:[%s4 + $0xe8] sm:$0xff] 0.0
    %52 = vst [vmem:[%s4 + $0xf0] sm:$0xff] 0.0
    %53 = vst [vmem:[%s4 + $0xf8] sm:$0xff] 0.0
    %54 = vst [vmem:[%s4 + $0x100] sm:$0xff] 0.0
    %55 = vst [vmem:[%s4 + $0x108] sm:$0xff] 0.0
    %56 = vst [vmem:[%s4 + $0x110] sm:$0xff] 0.0
    %57 = vst [vmem:[%s4 + $0x118] sm:$0xff] 0.0
    %58 = vst [vmem:[%s4 + $0x120] sm:$0xff] 0.0
    %59 = vst [vmem:[%s4 + $0x128] sm:$0xff] 0.0
    %60 = vst [vmem:[%s4 + $0x130] sm:$0xff] 0.0
    %61 = vst [vmem:[%s4 + $0x138] sm:$0xff] 0.0
    %62 = vst [vmem:[%s4 + $0x140] sm:$0xff] 0.0
    %63 = vst [vmem:[%s4 + $0x148] sm:$0xff] 0.0
    %64 = vst [vmem:[%s4 + $0x150] sm:$0xff] 0.0
    %65 = vst [vmem:[%s4 + $0x158] sm:$0xff] 0.0
    %66 = vst [vmem:[%s4 + $0x160] sm:$0xff] 0.0
    %67 = vst [vmem:[%s4 + $0x168] sm:$0xff] 0.0
    %68 = vst [vmem:[%s4 + $0x170] sm:$0xff] 0.0
    %69 = vst [vmem:[%s4 + $0x178] sm:$0xff] 0.0
    %70 = vst [vmem:[%s4 + $0x180] sm:$0xff] 0.0
    %71 = vst [vmem:[%s4 + $0x188] sm:$0xff] 0.0
    %72 = vst [vmem:[%s4 + $0x190] sm:$0xff] 0.0
    %73 = vst [vmem:[%s4 + $0x198] sm:$0xff] 0.0
    %74 = vst [vmem:[%s4 + $0x1a0] sm:$0xff] 0.0
    %75 = vst [vmem:[%s4 + $0x1a8] sm:$0xff] 0.0
    %76 = vst [vmem:[%s4 + $0x1b0] sm:$0xff] 0.0
    %77 = vst [vmem:[%s4 + $0x1b8] sm:$0xff] 0.0
    %78 = vst [vmem:[%s4 + $0x1c0] sm:$0xff] 0.0
    %79 = vst [vmem:[%s4 + $0x1c8] sm:$0xff] 0.0
    %80 = vst [vmem:[%s4 + $0x1d0] sm:$0xff] 0.0
    %81 = vst [vmem:[%s4 + $0x1d8] sm:$0xff] 0.0
    %82 = vst [vmem:[%s4 + $0x1e0] sm:$0xff] 0.0
    %83 = vst [vmem:[%s4 + $0x1e8] sm:$0xff] 0.0
    %84 = vst [vmem:[%s4 + $0x1f0] sm:$0xff] 0.0
    %85 = vst [vmem:[%s4 + $0x1f8] sm:$0xff] 0.0
  $region21: #{discriminator_forward.6} parent=0 // pred_fallthru
    _
  %v86 = vld [vmem:[%s4] sm:$0xff]
  %v87 = vld [vmem:[%s4 + $0x8] sm:$0xff]
  %v88 = vld [vmem:[%s4 + $0x10] sm:$0xff]
  %v89 = vld [vmem:[%s4 + $0x18] sm:$0xff]
  %v90 = vld [vmem:[%s4 + $0x20] sm:$0xff]
  %v91 = vld [vmem:[%s4 + $0x28] sm:$0xff]
  %v92 = vld [vmem:[%s4 + $0x30] sm:$0xff]
  %v93 = vld [vmem:[%s4 + $0x38] sm:$0xff]
  %v94 = vld [vmem:[%s4 + $0x40] sm:$0xff]
  %v95 = vld [vmem:[%s4 + $0x48] sm:$0xff]
  %v96 = vld [vmem:[%s4 + $0x50] sm:$0xff]
  %v97 = vld [vmem:[%s4 + $0x58] sm:$0xff]
  %v98 = vld [vmem:[%s4 + $0x60] sm:$0xff]
  %v99 = vld [vmem:[%s4 + $0x68] sm:$0xff]
  %v100 = vld [vmem:[%s4 + $0x70] sm:$0xff]
  %v101 = vld [vmem:[%s4 + $0x78] sm:$0xff]
  %v102 = vld [vmem:[%s4 + $0x80] sm:$0xff]
  %v103 = vld [vmem:[%s4 + $0x88] sm:$0xff]
  %v104 = vld [vmem:[%s4 + $0x90] sm:$0xff]
  %v105 = vld [vmem:[%s4 + $0x98] sm:$0xff]
  %v106 = vld [vmem:[%s4 + $0xa0] sm:$0xff]
  %v107 = vld [vmem:[%s4 + $0xa8] sm:$0xff]
  %v108 = vld [vmem:[%s4 + $0xb0] sm:$0xff]
  %v109 = vld [vmem:[%s4 + $0xb8] sm:$0xff]
  %v110 = vld [vmem:[%s4 + $0xc0] sm:$0xff]
  %v111 = vld [vmem:[%s4 + $0xc8] sm:$0xff]
  %v112 = vld [vmem:[%s4 + $0xd0] sm:$0xff]
  %v113 = vld [vmem:[%s4 + $0xd8] sm:$0xff]
  %v114 = vld [vmem:[%s4 + $0xe0] sm:$0xff]
  %v115 = vld [vmem:[%s4 + $0xe8] sm:$0xff]
  %v116 = vld [vmem:[%s4 + $0xf0] sm:$0xff]
  %v117 = vld [vmem:[%s4 + $0xf8] sm:$0xff]
  %v118 = vld [vmem:[%s4 + $0x100] sm:$0xff]
  %v119 = vld [vmem:[%s4 + $0x108] sm:$0xff]
  %v120 = vld [vmem:[%s4 + $0x110] sm:$0xff]
  %v121 = vld [vmem:[%s4 + $0x118] sm:$0xff]
  %v122 = vld [vmem:[%s4 + $0x120] sm:$0xff]
  %v123 = vld [vmem:[%s4 + $0x128] sm:$0xff]
  %v124 = vld [vmem:[%s4 + $0x130] sm:$0xff]
  %v125 = vld [vmem:[%s4 + $0x138] sm:$0xff]
  %v126 = vld [vmem:[%s4 + $0x140] sm:$0xff]
  %v127 = vld [vmem:[%s4 + $0x148] sm:$0xff]
  %v128 = vld [vmem:[%s4 + $0x150] sm:$0xff]
  %v129 = vld [vmem:[%s4 + $0x158] sm:$0xff]
  %v130 = vld [vmem:[%s4 + $0x160] sm:$0xff]
  %v131 = vld [vmem:[%s4 + $0x168] sm:$0xff]
  %v132 = vld [vmem:[%s4 + $0x170] sm:$0xff]
  %v133 = vld [vmem:[%s4 + $0x178] sm:$0xff]
  %v134 = vld [vmem:[%s4 + $0x180] sm:$0xff]
  %v135 = vld [vmem:[%s4 + $0x188] sm:$0xff]
  %v136 = vld [vmem:[%s4 + $0x190] sm:$0xff]
  %v137 = vld [vmem:[%s4 + $0x198] sm:$0xff]
  %v138 = vld [vmem:[%s4 + $0x1a0] sm:$0xff]
  %v139 = vld [vmem:[%s4 + $0x1a8] sm:$0xff]
  %v140 = vld [vmem:[%s4 + $0x1b0] sm:$0xff]
  %v141 = vld [vmem:[%s4 + $0x1b8] sm:$0xff]
  %v142 = vld [vmem:[%s4 + $0x1c0] sm:$0xff]
  %v143 = vld [vmem:[%s4 + $0x1c8] sm:$0xff]
  %v144 = vld [vmem:[%s4 + $0x1d0] sm:$0xff]
  %v145 = vld [vmem:[%s4 + $0x1d8] sm:$0xff]
  %v146 = vld [vmem:[%s4 + $0x1e0] sm:$0xff]
  %v147 = vld [vmem:[%s4 + $0x1e8] sm:$0xff]
  %v148 = vld [vmem:[%s4 + $0x1f0] sm:$0xff]
  %v149 = vld [vmem:[%s4 + $0x1f8] sm:$0xff]
  %v150 = vld [vmem:[%s0] sm:$0xff]
  %v151 = vld [vmem:[%s0 + $0x8] sm:$0xff]
  %v152 = vld [vmem:[%s0 + $0x10] sm:$0xff]
  %v153 = vld [vmem:[%s0 + $0x18] sm:$0xff]
  %v154 = vld [vmem:[%s0 + $0x20] sm:$0xff]
  %v155 = vld [vmem:[%s0 + $0x28] sm:$0xff]
  %v156 = vld [vmem:[%s0 + $0x30] sm:$0xff]
  %v157 = vld [vmem:[%s0 + $0x38] sm:$0xff]
  %v158 = vld [vmem:[%s0 + $0x40] sm:$0xff]
  %v159 = vld [vmem:[%s0 + $0x48] sm:$0xff]
  %v160 = vld [vmem:[%s0 + $0x50] sm:$0xff]
  %v161 = vld [vmem:[%s0 + $0x58] sm:$0xff]
  %v162 = vld [vmem:[%s0 + $0x60] sm:$0xff]
  %v163 = vld [vmem:[%s0 + $0x68] sm:$0xff]
  %v164 = vld [vmem:[%s0 + $0x70] sm:$0xff]
  %v165 = vld [vmem:[%s0 + $0x78] sm:$0xff]
  %v166 = vld [vmem:[%s0 + $0x80] sm:$0xff]
  %v167 = vld [vmem:[%s0 + $0x88] sm:$0xff]
  %v168 = vld [vmem:[%s0 + $0x90] sm:$0xff]
  %v169 = vld [vmem:[%s0 + $0x98] sm:$0xff]
  %v170 = vld [vmem:[%s0 + $0xa0] sm:$0xff]
  %v171 = vld [vmem:[%s0 + $0xa8] sm:$0xff]
  %v172 = vld [vmem:[%s0 + $0xb0] sm:$0xff]
  %v173 = vld [vmem:[%s0 + $0xb8] sm:$0xff]
  %v174 = vld [vmem:[%s0 + $0xc0] sm:$0xff]
  %v175 = vld [vmem:[%s0 + $0xc8] sm:$0xff]
  %v176 = vld [vmem:[%s0 + $0xd0] sm:$0xff]
  %v177 = vld [vmem:[%s0 + $0xd8] sm:$0xff]
  %v178 = vld [vmem:[%s0 + $0xe0] sm:$0xff]
  %v179 = vld [vmem:[%s0 + $0xe8] sm:$0xff]
  %v180 = vld [vmem:[%s0 + $0xf0] sm:$0xff]
  %v181 = vld [vmem:[%s0 + $0xf8] sm:$0xff]
  %v182 = vld [vmem:[%s0 + $0x100] sm:$0xff]
  %v183 = vld [vmem:[%s0 + $0x108] sm:$0xff]
  %v184 = vld [vmem:[%s0 + $0x110] sm:$0xff]
  %v185 = vld [vmem:[%s0 + $0x118] sm:$0xff]
  %v186 = vld [vmem:[%s0 + $0x120] sm:$0xff]
  %v187 = vld [vmem:[%s0 + $0x128] sm:$0xff]
  %v188 = vld [vmem:[%s0 + $0x130] sm:$0xff]
  %v189 = vld [vmem:[%s0 + $0x138] sm:$0xff]
  %v190 = vld [vmem:[%s0 + $0x140] sm:$0xff]
  %v191 = vld [vmem:[%s0 + $0x148] sm:$0xff]
  %v192 = vld [vmem:[%s0 + $0x150] sm:$0xff]
  %v193 = vld [vmem:[%s0 + $0x158] sm:$0xff]
  %v194 = vld [vmem:[%s0 + $0x160] sm:$0xff]
  %v195 = vld [vmem:[%s0 + $0x168] sm:$0xff]
  %v196 = vld [vmem:[%s0 + $0x170] sm:$0xff]
  %v197 = vld [vmem:[%s0 + $0x178] sm:$0xff]
  %v198 = vld [vmem:[%s0 + $0x180] sm:$0xff]
  %v199 = vld [vmem:[%s0 + $0x188] sm:$0xff]
  %v200 = vld [vmem:[%s0 + $0x190] sm:$0xff]
  %v201 = vld [vmem:[%s0 + $0x198] sm:$0xff]
  %v202 = vld [vmem:[%s0 + $0x1a0] sm:$0xff]
  %v203 = vld [vmem:[%s0 + $0x1a8] sm:$0xff]
  %v204 = vld [vmem:[%s0 + $0x1b0] sm:$0xff]
  %v205 = vld [vmem:[%s0 + $0x1b8] sm:$0xff]
  %v206 = vld [vmem:[%s0 + $0x1c0] sm:$0xff]
  %v207 = vld [vmem:[%s0 + $0x1c8] sm:$0xff]
  %v208 = vld [vmem:[%s0 + $0x1d0] sm:$0xff]
  %v209 = vld [vmem:[%s0 + $0x1d8] sm:$0xff]
  %v210 = vld [vmem:[%s0 + $0x1e0] sm:$0xff]
  %v211 = vld [vmem:[%s0 + $0x1e8] sm:$0xff]
  %v212 = vld [vmem:[%s0 + $0x1f0] sm:$0xff]
  %v213 = vld [vmem:[%s0 + $0x1f8] sm:$0xff]
  %v214 = vld [vmem:[%s0 + $0x200] sm:$0xff]
  %v215 = vld [vmem:[%s0 + $0x208] sm:$0xff]
  %v216 = vld [vmem:[%s0 + $0x210] sm:$0xff]
  %v217 = vld [vmem:[%s0 + $0x218] sm:$0xff]
  %v218 = vld [vmem:[%s0 + $0x220] sm:$0xff]
  %v219 = vld [vmem:[%s0 + $0x228] sm:$0xff]
  %v220 = vld [vmem:[%s0 + $0x230] sm:$0xff]
  %v221 = vld [vmem:[%s0 + $0x238] sm:$0xff]
  %v222 = vld [vmem:[%s0 + $0x240] sm:$0xff]
  %v223 = vld [vmem:[%s0 + $0x248] sm:$0xff]
  %v224 = vld [vmem:[%s0 + $0x250] sm:$0xff]
  %v225 = vld [vmem:[%s0 + $0x258] sm:$0xff]
  %v226 = vld [vmem:[%s0 + $0x260] sm:$0xff]
  %v227 = vld [vmem:[%s0 + $0x268] sm:$0xff]
  %v228 = vld [vmem:[%s0 + $0x270] sm:$0xff]
  %v229 = vld [vmem:[%s0 + $0x278] sm:$0xff]
  %v230 = vld [vmem:[%s0 + $0x280] sm:$0xff]
  %v231 = vld [vmem:[%s0 + $0x288] sm:$0xff]
  %v232 = vld [vmem:[%s0 + $0x290] sm:$0xff]
  %v233 = vld [vmem:[%s0 + $0x298] sm:$0xff]
  %v234 = vld [vmem:[%s0 + $0x2a0] sm:$0xff]
  %v235 = vld [vmem:[%s0 + $0x2a8] sm:$0xff]
  %v236 = vld [vmem:[%s0 + $0x2b0] sm:$0xff]
  %v237 = vld [vmem:[%s0 + $0x2b8] sm:$0xff]
  %v238 = vld [vmem:[%s0 + $0x2c0] sm:$0xff]
  %v239 = vld [vmem:[%s0 + $0x2c8] sm:$0xff]
  %v240 = vld [vmem:[%s0 + $0x2d0] sm:$0xff]
  %v241 = vld [vmem:[%s0 + $0x2d8] sm:$0xff]
  %v242 = vld [vmem:[%s0 + $0x2e0] sm:$0xff]
  %v243 = vld [vmem:[%s0 + $0x2e8] sm:$0xff]
  %v244 = vld [vmem:[%s0 + $0x2f0] sm:$0xff]
  %v245 = vld [vmem:[%s0 + $0x2f8] sm:$0xff]
  %v246 = vld [vmem:[%s0 + $0x300] sm:$0xff]
  %v247 = vld [vmem:[%s0 + $0x308] sm:$0xff]
  %v248 = vld [vmem:[%s0 + $0x310] sm:$0xff]
  %v249 = vld [vmem:[%s0 + $0x318] sm:$0xff]
  %v250 = vld [vmem:[%s0 + $0x320] sm:$0xff]
  %v251 = vld [vmem:[%s0 + $0x328] sm:$0xff]
  %v252 = vld [vmem:[%s0 + $0x330] sm:$0xff]
  %v253 = vld [vmem:[%s0 + $0x338] sm:$0xff]
  %v254 = vld [vmem:[%s0 + $0x340] sm:$0xff]
  %v255 = vld [vmem:[%s0 + $0x348] sm:$0xff]
  %v256 = vld [vmem:[%s0 + $0x350] sm:$0xff]
  %v257 = vld [vmem:[%s0 + $0x358] sm:$0xff]
  %v258 = vld [vmem:[%s0 + $0x360] sm:$0xff]
  %v259 = vld [vmem:[%s0 + $0x368] sm:$0xff]
  %v260 = vld [vmem:[%s0 + $0x370] sm:$0xff]
  %v261 = vld [vmem:[%s0 + $0x378] sm:$0xff]
  %v262 = vld [vmem:[%s0 + $0x380] sm:$0xff]
  %v263 = vld [vmem:[%s0 + $0x388] sm:$0xff]
  %v264 = vld [vmem:[%s0 + $0x390] sm:$0xff]
  %v265 = vld [vmem:[%s0 + $0x398] sm:$0xff]
  %v266 = vld [vmem:[%s0 + $0x3a0] sm:$0xff]
  %v267 = vld [vmem:[%s0 + $0x3a8] sm:$0xff]
  %v268 = vld [vmem:[%s0 + $0x3b0] sm:$0xff]
  %v269 = vld [vmem:[%s0 + $0x3b8] sm:$0xff]
  %v270 = vld [vmem:[%s0 + $0x3c0] sm:$0xff]
  %v271 = vld [vmem:[%s0 + $0x3c8] sm:$0xff]
  %v272 = vld [vmem:[%s0 + $0x3d0] sm:$0xff]
  %v273 = vld [vmem:[%s0 + $0x3d8] sm:$0xff]
  %v274 = vld [vmem:[%s0 + $0x3e0] sm:$0xff]
  %v275 = vld [vmem:[%s0 + $0x3e8] sm:$0xff]
  %v276 = vld [vmem:[%s0 + $0x3f0] sm:$0xff]
  %v277 = vld [vmem:[%s0 + $0x3f8] sm:$0xff]
  %v278 = vld [vmem:[%s0 + $0x400] sm:$0xff]
  %v279 = vld [vmem:[%s0 + $0x408] sm:$0xff]
  %v280 = vld [vmem:[%s0 + $0x410] sm:$0xff]
  %v281 = vld [vmem:[%s0 + $0x418] sm:$0xff]
  %v282 = vld [vmem:[%s0 + $0x420] sm:$0xff]
  %v283 = vld [vmem:[%s0 + $0x428] sm:$0xff]
  %v284 = vld [vmem:[%s0 + $0x430] sm:$0xff]
  %v285 = vld [vmem:[%s0 + $0x438] sm:$0xff]
  %v286 = vld [vmem:[%s0 + $0x440] sm:$0xff]
  %v287 = vld [vmem:[%s0 + $0x448] sm:$0xff]
  %v288 = vld [vmem:[%s0 + $0x450] sm:$0xff]
  %v289 = vld [vmem:[%s0 + $0x458] sm:$0xff]
  %v290 = vld [vmem:[%s0 + $0x460] sm:$0xff]
  %v291 = vld [vmem:[%s0 + $0x468] sm:$0xff]
  %v292 = vld [vmem:[%s0 + $0x470] sm:$0xff]
  %v293 = vld [vmem:[%s0 + $0x478] sm:$0xff]
  %v294 = vld [vmem:[%s0 + $0x480] sm:$0xff]
  %v295 = vld [vmem:[%s0 + $0x488] sm:$0xff]
  %v296 = vld [vmem:[%s0 + $0x490] sm:$0xff]
  %v297 = vld [vmem:[%s0 + $0x498] sm:$0xff]
  %v298 = vld [vmem:[%s0 + $0x4a0] sm:$0xff]
  %v299 = vld [vmem:[%s0 + $0x4a8] sm:$0xff]
  %v300 = vld [vmem:[%s0 + $0x4b0] sm:$0xff]
  %v301 = vld [vmem:[%s0 + $0x4b8] sm:$0xff]
  %v302 = vld [vmem:[%s0 + $0x4c0] sm:$0xff]
  %v303 = vld [vmem:[%s0 + $0x4c8] sm:$0xff]
  %v304 = vld [vmem:[%s0 + $0x4d0] sm:$0xff]
  %v305 = vld [vmem:[%s0 + $0x4d8] sm:$0xff]
  %v306 = vld [vmem:[%s0 + $0x4e0] sm:$0xff]
  %v307 = vld [vmem:[%s0 + $0x4e8] sm:$0xff]
  %v308 = vld [vmem:[%s0 + $0x4f0] sm:$0xff]
  %v309 = vld [vmem:[%s0 + $0x4f8] sm:$0xff]
  %v310 = vld [vmem:[%s0 + $0x500] sm:$0xff]
  %v311 = vld [vmem:[%s0 + $0x508] sm:$0xff]
  %v312 = vld [vmem:[%s0 + $0x510] sm:$0xff]
  %v313 = vld [vmem:[%s0 + $0x518] sm:$0xff]
  %v314 = vld [vmem:[%s0 + $0x520] sm:$0xff]
  %v315 = vld [vmem:[%s0 + $0x528] sm:$0xff]
  %v316 = vld [vmem:[%s0 + $0x530] sm:$0xff]
  %v317 = vld [vmem:[%s0 + $0x538] sm:$0xff]
  %v318 = vld [vmem:[%s0 + $0x540] sm:$0xff]
  %v319 = vld [vmem:[%s0 + $0x548] sm:$0xff]
  %v320 = vld [vmem:[%s0 + $0x550] sm:$0xff]
  %v321 = vld [vmem:[%s0 + $0x558] sm:$0xff]
  %v322 = vld [vmem:[%s0 + $0x560] sm:$0xff]
  %v323 = vld [vmem:[%s0 + $0x568] sm:$0xff]
  %v324 = vld [vmem:[%s0 + $0x570] sm:$0xff]
  %v325 = vld [vmem:[%s0 + $0x578] sm:$0xff]
  %v326 = vld [vmem:[%s0 + $0x580] sm:$0xff]
  %v327 = vld [vmem:[%s0 + $0x588] sm:$0xff]
  %v328 = vld [vmem:[%s0 + $0x590] sm:$0xff]
  %v329 = vld [vmem:[%s0 + $0x598] sm:$0xff]
  %v330 = vld [vmem:[%s0 + $0x5a0] sm:$0xff]
  %v331 = vld [vmem:[%s0 + $0x5a8] sm:$0xff]
  %v332 = vld [vmem:[%s0 + $0x5b0] sm:$0xff]
  %v333 = vld [vmem:[%s0 + $0x5b8] sm:$0xff]
  %v334 = vld [vmem:[%s0 + $0x5c0] sm:$0xff]
  %v335 = vld [vmem:[%s0 + $0x5c8] sm:$0xff]
  %v336 = vld [vmem:[%s0 + $0x5d0] sm:$0xff]
  %v337 = vld [vmem:[%s0 + $0x5d8] sm:$0xff]
  %v338 = vld [vmem:[%s0 + $0x5e0] sm:$0xff]
  %v339 = vld [vmem:[%s0 + $0x5e8] sm:$0xff]
  %v340 = vld [vmem:[%s0 + $0x5f0] sm:$0xff]
  %v341 = vld [vmem:[%s0 + $0x5f8] sm:$0xff]
  %v342 = vld [vmem:[%s0 + $0x600] sm:$0xff]
  %v343 = vld [vmem:[%s0 + $0x608] sm:$0xff]
  %v344 = vld [vmem:[%s0 + $0x610] sm:$0xff]
  %v345 = vld [vmem:[%s0 + $0x618] sm:$0xff]
  %v346 = vld [vmem:[%s0 + $0x620] sm:$0xff]
  %v347 = vld [vmem:[%s0 + $0x628] sm:$0xff]
  %v348 = vld [vmem:[%s0 + $0x630] sm:$0xff]
  %v349 = vld [vmem:[%s0 + $0x638] sm:$0xff]
  %v350 = vld [vmem:[%s0 + $0x640] sm:$0xff]
  %v351 = vld [vmem:[%s0 + $0x648] sm:$0xff]
  %v352 = vld [vmem:[%s0 + $0x650] sm:$0xff]
  %v353 = vld [vmem:[%s0 + $0x658] sm:$0xff]
  %v354 = vld [vmem:[%s0 + $0x660] sm:$0xff]
  %v355 = vld [vmem:[%s0 + $0x668] sm:$0xff]
  %v356 = vld [vmem:[%s0 + $0x670] sm:$0xff]
  %v357 = vld [vmem:[%s0 + $0x678] sm:$0xff]
  %v358 = vld [vmem:[%s0 + $0x680] sm:$0xff]
  %v359 = vld [vmem:[%s0 + $0x688] sm:$0xff]
  %v360 = vld [vmem:[%s0 + $0x690] sm:$0xff]
  %v361 = vld [vmem:[%s0 + $0x698] sm:$0xff]
  %v362 = vld [vmem:[%s0 + $0x6a0] sm:$0xff]
  %v363 = vld [vmem:[%s0 + $0x6a8] sm:$0xff]
  %v364 = vld [vmem:[%s0 + $0x6b0] sm:$0xff]
  %v365 = vld [vmem:[%s0 + $0x6b8] sm:$0xff]
  %v366 = vld [vmem:[%s0 + $0x6c0] sm:$0xff]
  %v367 = vld [vmem:[%s0 + $0x6c8] sm:$0xff]
  %v368 = vld [vmem:[%s0 + $0x6d0] sm:$0xff]
  %v369 = vld [vmem:[%s0 + $0x6d8] sm:$0xff]
  %v370 = vld [vmem:[%s0 + $0x6e0] sm:$0xff]
  %v371 = vld [vmem:[%s0 + $0x6e8] sm:$0xff]
  %v372 = vld [vmem:[%s0 + $0x6f0] sm:$0xff]
  %v373 = vld [vmem:[%s0 + $0x6f8] sm:$0xff]
  %v374 = vld [vmem:[%s0 + $0x700] sm:$0xff]
  %v375 = vld [vmem:[%s0 + $0x708] sm:$0xff]
  %v376 = vld [vmem:[%s0 + $0x710] sm:$0xff]
  %v377 = vld [vmem:[%s0 + $0x718] sm:$0xff]
  %v378 = vld [vmem:[%s0 + $0x720] sm:$0xff]
  %v379 = vld [vmem:[%s0 + $0x728] sm:$0xff]
  %v380 = vld [vmem:[%s0 + $0x730] sm:$0xff]
  %v381 = vld [vmem:[%s0 + $0x738] sm:$0xff]
  %v382 = vld [vmem:[%s0 + $0x740] sm:$0xff]
  %v383 = vld [vmem:[%s0 + $0x748] sm:$0xff]
  %v384 = vld [vmem:[%s0 + $0x750] sm:$0xff]
  %v385 = vld [vmem:[%s0 + $0x758] sm:$0xff]
  %v386 = vld [vmem:[%s0 + $0x760] sm:$0xff]
  %v387 = vld [vmem:[%s0 + $0x768] sm:$0xff]
  %v388 = vld [vmem:[%s0 + $0x770] sm:$0xff]
  %v389 = vld [vmem:[%s0 + $0x778] sm:$0xff]
  %v390 = vld [vmem:[%s0 + $0x780] sm:$0xff]
  %v391 = vld [vmem:[%s0 + $0x788] sm:$0xff]
  %v392 = vld [vmem:[%s0 + $0x790] sm:$0xff]
  %v393 = vld [vmem:[%s0 + $0x798] sm:$0xff]
  %v394 = vld [vmem:[%s0 + $0x7a0] sm:$0xff]
  %v395 = vld [vmem:[%s0 + $0x7a8] sm:$0xff]
  %v396 = vld [vmem:[%s0 + $0x7b0] sm:$0xff]
  %v397 = vld [vmem:[%s0 + $0x7b8] sm:$0xff]
  %v398 = vld [vmem:[%s0 + $0x7c0] sm:$0xff]
  %v399 = vld [vmem:[%s0 + $0x7c8] sm:$0xff]
  %v400 = vld [vmem:[%s0 + $0x7d0] sm:$0xff]
  %v401 = vld [vmem:[%s0 + $0x7d8] sm:$0xff]
  %v402 = vld [vmem:[%s0 + $0x7e0] sm:$0xff]
  %v403 = vld [vmem:[%s0 + $0x7e8] sm:$0xff]
  %v404 = vld [vmem:[%s0 + $0x7f0] sm:$0xff]
  %v405 = vld [vmem:[%s0 + $0x7f8] sm:$0xff]
  %v406 = vld [vmem:[%s1] sm:$0xf]
  %v407 = vld [vmem:[%s1 + $0x4] sm:$0xf]
  %v408 = vld [vmem:[%s1 + $0x8] sm:$0xf]
  %v409 = vld [vmem:[%s1 + $0xc] sm:$0xf]
  %v410 = vld [vmem:[%s1 + $0x10] sm:$0xf]
  %v411 = vld [vmem:[%s1 + $0x14] sm:$0xf]
  %v412 = vld [vmem:[%s1 + $0x18] sm:$0xf]
  %v413 = vld [vmem:[%s1 + $0x1c] sm:$0xf]
  %v414 = vld [vmem:[%s1 + $0x20] sm:$0xf]
  %v415 = vld [vmem:[%s1 + $0x24] sm:$0xf]
  %v416 = vld [vmem:[%s1 + $0x28] sm:$0xf]
  %v417 = vld [vmem:[%s1 + $0x2c] sm:$0xf]
  %v418 = vld [vmem:[%s1 + $0x30] sm:$0xf]
  %v419 = vld [vmem:[%s1 + $0x34] sm:$0xf]
  %v420 = vld [vmem:[%s1 + $0x38] sm:$0xf]
  %v421 = vld [vmem:[%s1 + $0x3c] sm:$0xf]
  %v422 = vld [vmem:[%s1 + $0x40] sm:$0xf]
  %v423 = vld [vmem:[%s1 + $0x44] sm:$0xf]
  %v424 = vld [vmem:[%s1 + $0x48] sm:$0xf]
  %v425 = vld [vmem:[%s1 + $0x4c] sm:$0xf]
  %v426 = vld [vmem:[%s1 + $0x50] sm:$0xf]
  %v427 = vld [vmem:[%s1 + $0x54] sm:$0xf]
  %v428 = vld [vmem:[%s1 + $0x58] sm:$0xf]
  %v429 = vld [vmem:[%s1 + $0x5c] sm:$0xf]
  %v430 = vld [vmem:[%s1 + $0x60] sm:$0xf]
  %v431 = vld [vmem:[%s1 + $0x64] sm:$0xf]
  %v432 = vld [vmem:[%s1 + $0x68] sm:$0xf]
  %v433 = vld [vmem:[%s1 + $0x6c] sm:$0xf]
  %v434 = vld [vmem:[%s1 + $0x70] sm:$0xf]
  %v435 = vld [vmem:[%s1 + $0x74] sm:$0xf]
  %v436 = vld [vmem:[%s1 + $0x78] sm:$0xf]
  %v437 = vld [vmem:[%s1 + $0x7c] sm:$0xf]
  %v438 = vld [vmem:[%s1 + $0x80] sm:$0xf]
  %v439 = vld [vmem:[%s1 + $0x84] sm:$0xf]
  %v440 = vld [vmem:[%s1 + $0x88] sm:$0xf]
  %v441 = vld [vmem:[%s1 + $0x8c] sm:$0xf]
  %v442 = vld [vmem:[%s1 + $0x90] sm:$0xf]
  %v443 = vld [vmem:[%s1 + $0x94] sm:$0xf]
  %v444 = vld [vmem:[%s1 + $0x98] sm:$0xf]
  %v445 = vld [vmem:[%s1 + $0x9c] sm:$0xf]
  %v446 = vld [vmem:[%s1 + $0xa0] sm:$0xf]
  %v447 = vld [vmem:[%s1 + $0xa4] sm:$0xf]
  %v448 = vld [vmem:[%s1 + $0xa8] sm:$0xf]
  %v449 = vld [vmem:[%s1 + $0xac] sm:$0xf]
  %v450 = vld [vmem:[%s1 + $0xb0] sm:$0xf]
  %v451 = vld [vmem:[%s1 + $0xb4] sm:$0xf]
  %v452 = vld [vmem:[%s1 + $0xb8] sm:$0xf]
  %v453 = vld [vmem:[%s1 + $0xbc] sm:$0xf]
  %v454 = vld [vmem:[%s1 + $0xc0] sm:$0xf]
  %v455 = vld [vmem:[%s1 + $0xc4] sm:$0xf]
  %v456 = vld [vmem:[%s1 + $0xc8] sm:$0xf]
  %v457 = vld [vmem:[%s1 + $0xcc] sm:$0xf]
  %v458 = vld [vmem:[%s1 + $0xd0] sm:$0xf]
  %v459 = vld [vmem:[%s1 + $0xd4] sm:$0xf]
  %v460 = vld [vmem:[%s1 + $0xd8] sm:$0xf]
  %v461 = vld [vmem:[%s1 + $0xdc] sm:$0xf]
  %v462 = vld [vmem:[%s1 + $0xe0] sm:$0xf]
  %v463 = vld [vmem:[%s1 + $0xe4] sm:$0xf]
  %v464 = vld [vmem:[%s1 + $0xe8] sm:$0xf]
  %v465 = vld [vmem:[%s1 + $0xec] sm:$0xf]
  %v466 = vld [vmem:[%s1 + $0xf0] sm:$0xf]
  %v467 = vld [vmem:[%s1 + $0xf4] sm:$0xf]
  %v468 = vld [vmem:[%s1 + $0xf8] sm:$0xf]
  %v469 = vld [vmem:[%s1 + $0xfc] sm:$0xf]
  %v470 = vld [vmem:[%s1 + $0x100] sm:$0xf]
  %v471 = vld [vmem:[%s1 + $0x104] sm:$0xf]
  %v472 = vld [vmem:[%s1 + $0x108] sm:$0xf]
  %v473 = vld [vmem:[%s1 + $0x10c] sm:$0xf]
  %v474 = vld [vmem:[%s1 + $0x110] sm:$0xf]
  %v475 = vld [vmem:[%s1 + $0x114] sm:$0xf]
  %v476 = vld [vmem:[%s1 + $0x118] sm:$0xf]
  %v477 = vld [vmem:[%s1 + $0x11c] sm:$0xf]
  %v478 = vld [vmem:[%s1 + $0x120] sm:$0xf]
  %v479 = vld [vmem:[%s1 + $0x124] sm:$0xf]
  %v480 = vld [vmem:[%s1 + $0x128] sm:$0xf]
  %v481 = vld [vmem:[%s1 + $0x12c] sm:$0xf]
  %v482 = vld [vmem:[%s1 + $0x130] sm:$0xf]
  %v483 = vld [vmem:[%s1 + $0x134] sm:$0xf]
  %v484 = vld [vmem:[%s1 + $0x138] sm:$0xf]
  %v485 = vld [vmem:[%s1 + $0x13c] sm:$0xf]
  %v486 = vld [vmem:[%s1 + $0x140] sm:$0xf]
  %v487 = vld [vmem:[%s1 + $0x144] sm:$0xf]
  %v488 = vld [vmem:[%s1 + $0x148] sm:$0xf]
  %v489 = vld [vmem:[%s1 + $0x14c] sm:$0xf]
  %v490 = vld [vmem:[%s1 + $0x150] sm:$0xf]
  %v491 = vld [vmem:[%s1 + $0x154] sm:$0xf]
  %v492 = vld [vmem:[%s1 + $0x158] sm:$0xf]
  %v493 = vld [vmem:[%s1 + $0x15c] sm:$0xf]
  %v494 = vld [vmem:[%s1 + $0x160] sm:$0xf]
  %v495 = vld [vmem:[%s1 + $0x164] sm:$0xf]
  %v496 = vld [vmem:[%s1 + $0x168] sm:$0xf]
  %v497 = vld [vmem:[%s1 + $0x16c] sm:$0xf]
  %v498 = vld [vmem:[%s1 + $0x170] sm:$0xf]
  %v499 = vld [vmem:[%s1 + $0x174] sm:$0xf]
  %v500 = vld [vmem:[%s1 + $0x178] sm:$0xf]
  %v501 = vld [vmem:[%s1 + $0x17c] sm:$0xf]
  %v502 = vld [vmem:[%s1 + $0x180] sm:$0xf]
  %v503 = vld [vmem:[%s1 + $0x184] sm:$0xf]
  %v504 = vld [vmem:[%s1 + $0x188] sm:$0xf]
  %v505 = vld [vmem:[%s1 + $0x18c] sm:$0xf]
  %v506 = vld [vmem:[%s1 + $0x190] sm:$0xf]
  %v507 = vld [vmem:[%s1 + $0x194] sm:$0xf]
  %v508 = vld [vmem:[%s1 + $0x198] sm:$0xf]
  %v509 = vld [vmem:[%s1 + $0x19c] sm:$0xf]
  %v510 = vld [vmem:[%s1 + $0x1a0] sm:$0xf]
  %v511 = vld [vmem:[%s1 + $0x1a4] sm:$0xf]
  %v512 = vld [vmem:[%s1 + $0x1a8] sm:$0xf]
  %v513 = vld [vmem:[%s1 + $0x1ac] sm:$0xf]
  %v514 = vld [vmem:[%s1 + $0x1b0] sm:$0xf]
  %v515 = vld [vmem:[%s1 + $0x1b4] sm:$0xf]
  %v516 = vld [vmem:[%s1 + $0x1b8] sm:$0xf]
  %v517 = vld [vmem:[%s1 + $0x1bc] sm:$0xf]
  %v518 = vld [vmem:[%s1 + $0x1c0] sm:$0xf]
  %v519 = vld [vmem:[%s1 + $0x1c4] sm:$0xf]
  %v520 = vld [vmem:[%s1 + $0x1c8] sm:$0xf]
  %v521 = vld [vmem:[%s1 + $0x1cc] sm:$0xf]
  %v522 = vld [vmem:[%s1 + $0x1d0] sm:$0xf]
  %v523 = vld [vmem:[%s1 + $0x1d4] sm:$0xf]
  %v524 = vld [vmem:[%s1 + $0x1d8] sm:$0xf]
  %v525 = vld [vmem:[%s1 + $0x1dc] sm:$0xf]
  %v526 = vld [vmem:[%s1 + $0x1e0] sm:$0xf]
  %v527 = vld [vmem:[%s1 + $0x1e4] sm:$0xf]
  %v528 = vld [vmem:[%s1 + $0x1e8] sm:$0xf]
  %v529 = vld [vmem:[%s1 + $0x1ec] sm:$0xf]
  %v530 = vld [vmem:[%s1 + $0x1f0] sm:$0xf]
  %v531 = vld [vmem:[%s1 + $0x1f4] sm:$0xf]
  %v532 = vld [vmem:[%s1 + $0x1f8] sm:$0xf]
  %v533 = vld [vmem:[%s1 + $0x1fc] sm:$0xf]
  %v790 = vunpack.c.l.b16 %v150
  %v791 = vunpack.c.h.b16 %v150
  %v792 = vunpack.c.l.b16 %v151
  %v793 = vunpack.c.h.b16 %v151
  %v794 = vunpack.c.l.b16 %v152
  %v795 = vunpack.c.h.b16 %v152
  %v796 = vunpack.c.l.b16 %v153
  %v797 = vunpack.c.h.b16 %v153
  %v798 = vunpack.c.l.b16 %v154
  %v799 = vunpack.c.h.b16 %v154
  %v800 = vunpack.c.l.b16 %v155
  %v801 = vunpack.c.h.b16 %v155
  %v802 = vunpack.c.l.b16 %v156
  %v803 = vunpack.c.h.b16 %v156
  %v804 = vunpack.c.l.b16 %v157
  %v805 = vunpack.c.h.b16 %v157
  %v806 = vunpack.c.l.b16 %v158
  %v807 = vunpack.c.h.b16 %v158
  %v808 = vunpack.c.l.b16 %v159
  %v809 = vunpack.c.h.b16 %v159
  %v810 = vunpack.c.l.b16 %v160
  %v811 = vunpack.c.h.b16 %v160
  %v812 = vunpack.c.l.b16 %v161
  %v813 = vunpack.c.h.b16 %v161
  %v814 = vunpack.c.l.b16 %v162
  %v815 = vunpack.c.h.b16 %v162
  %v816 = vunpack.c.l.b16 %v163
  %v817 = vunpack.c.h.b16 %v163
  %v818 = vunpack.c.l.b16 %v164
  %v819 = vunpack.c.h.b16 %v164
  %v820 = vunpack.c.l.b16 %v165
  %v821 = vunpack.c.h.b16 %v165
  %v822 = vunpack.c.l.b16 %v166
  %v823 = vunpack.c.h.b16 %v166
  %v824 = vunpack.c.l.b16 %v167
  %v825 = vunpack.c.h.b16 %v167
  %v826 = vunpack.c.l.b16 %v168
  %v827 = vunpack.c.h.b16 %v168
  %v828 = vunpack.c.l.b16 %v169
  %v829 = vunpack.c.h.b16 %v169
  %v830 = vunpack.c.l.b16 %v170
  %v831 = vunpack.c.h.b16 %v170
  %v832 = vunpack.c.l.b16 %v171
  %v833 = vunpack.c.h.b16 %v171
  %v834 = vunpack.c.l.b16 %v172
  %v835 = vunpack.c.h.b16 %v172
  %v836 = vunpack.c.l.b16 %v173
  %v837 = vunpack.c.h.b16 %v173
  %v838 = vunpack.c.l.b16 %v174
  %v839 = vunpack.c.h.b16 %v174
  %v840 = vunpack.c.l.b16 %v175
  %v841 = vunpack.c.h.b16 %v175
  %v842 = vunpack.c.l.b16 %v176
  %v843 = vunpack.c.h.b16 %v176
  %v844 = vunpack.c.l.b16 %v177
  %v845 = vunpack.c.h.b16 %v177
  %v846 = vunpack.c.l.b16 %v178
  %v847 = vunpack.c.h.b16 %v178
  %v848 = vunpack.c.l.b16 %v179
  %v849 = vunpack.c.h.b16 %v179
  %v850 = vunpack.c.l.b16 %v180
  %v851 = vunpack.c.h.b16 %v180
  %v852 = vunpack.c.l.b16 %v181
  %v853 = vunpack.c.h.b16 %v181
  %v854 = vunpack.c.l.b16 %v182
  %v855 = vunpack.c.h.b16 %v182
  %v856 = vunpack.c.l.b16 %v183
  %v857 = vunpack.c.h.b16 %v183
  %v858 = vunpack.c.l.b16 %v184
  %v859 = vunpack.c.h.b16 %v184
  %v860 = vunpack.c.l.b16 %v185
  %v861 = vunpack.c.h.b16 %v185
  %v862 = vunpack.c.l.b16 %v186
  %v863 = vunpack.c.h.b16 %v186
  %v864 = vunpack.c.l.b16 %v187
  %v865 = vunpack.c.h.b16 %v187
  %v866 = vunpack.c.l.b16 %v188
  %v867 = vunpack.c.h.b16 %v188
  %v868 = vunpack.c.l.b16 %v189
  %v869 = vunpack.c.h.b16 %v189
  %v870 = vunpack.c.l.b16 %v190
  %v871 = vunpack.c.h.b16 %v190
  %v872 = vunpack.c.l.b16 %v191
  %v873 = vunpack.c.h.b16 %v191
  %v874 = vunpack.c.l.b16 %v192
  %v875 = vunpack.c.h.b16 %v192
  %v876 = vunpack.c.l.b16 %v193
  %v877 = vunpack.c.h.b16 %v193
  %v878 = vunpack.c.l.b16 %v194
  %v879 = vunpack.c.h.b16 %v194
  %v880 = vunpack.c.l.b16 %v195
  %v881 = vunpack.c.h.b16 %v195
  %v882 = vunpack.c.l.b16 %v196
  %v883 = vunpack.c.h.b16 %v196
  %v884 = vunpack.c.l.b16 %v197
  %v885 = vunpack.c.h.b16 %v197
  %v886 = vunpack.c.l.b16 %v198
  %v887 = vunpack.c.h.b16 %v198
  %v888 = vunpack.c.l.b16 %v199
  %v889 = vunpack.c.h.b16 %v199
  %v890 = vunpack.c.l.b16 %v200
  %v891 = vunpack.c.h.b16 %v200
  %v892 = vunpack.c.l.b16 %v201
  %v893 = vunpack.c.h.b16 %v201
  %v894 = vunpack.c.l.b16 %v202
  %v895 = vunpack.c.h.b16 %v202
  %v896 = vunpack.c.l.b16 %v203
  %v897 = vunpack.c.h.b16 %v203
  %v898 = vunpack.c.l.b16 %v204
  %v899 = vunpack.c.h.b16 %v204
  %v900 = vunpack.c.l.b16 %v205
  %v901 = vunpack.c.h.b16 %v205
  %v902 = vunpack.c.l.b16 %v206
  %v903 = vunpack.c.h.b16 %v206
  %v904 = vunpack.c.l.b16 %v207
  %v905 = vunpack.c.h.b16 %v207
  %v906 = vunpack.c.l.b16 %v208
  %v907 = vunpack.c.h.b16 %v208
  %v908 = vunpack.c.l.b16 %v209
  %v909 = vunpack.c.h.b16 %v209
  %v910 = vunpack.c.l.b16 %v210
  %v911 = vunpack.c.h.b16 %v210
  %v912 = vunpack.c.l.b16 %v211
  %v913 = vunpack.c.h.b16 %v211
  %v914 = vunpack.c.l.b16 %v212
  %v915 = vunpack.c.h.b16 %v212
  %v916 = vunpack.c.l.b16 %v213
  %v917 = vunpack.c.h.b16 %v213
  %v918 = vunpack.c.l.b16 %v214
  %v919 = vunpack.c.h.b16 %v214
  %v920 = vunpack.c.l.b16 %v215
  %v921 = vunpack.c.h.b16 %v215
  %v922 = vunpack.c.l.b16 %v216
  %v923 = vunpack.c.h.b16 %v216
  %v924 = vunpack.c.l.b16 %v217
  %v925 = vunpack.c.h.b16 %v217
  %v926 = vunpack.c.l.b16 %v218
  %v927 = vunpack.c.h.b16 %v218
  %v928 = vunpack.c.l.b16 %v219
  %v929 = vunpack.c.h.b16 %v219
  %v930 = vunpack.c.l.b16 %v220
  %v931 = vunpack.c.h.b16 %v220
  %v932 = vunpack.c.l.b16 %v221
  %v933 = vunpack.c.h.b16 %v221
  %v934 = vunpack.c.l.b16 %v222
  %v935 = vunpack.c.h.b16 %v222
  %v936 = vunpack.c.l.b16 %v223
  %v937 = vunpack.c.h.b16 %v223
  %v938 = vunpack.c.l.b16 %v224
  %v939 = vunpack.c.h.b16 %v224
  %v940 = vunpack.c.l.b16 %v225
  %v941 = vunpack.c.h.b16 %v225
  %v942 = vunpack.c.l.b16 %v226
  %v943 = vunpack.c.h.b16 %v226
  %v944 = vunpack.c.l.b16 %v227
  %v945 = vunpack.c.h.b16 %v227
  %v946 = vunpack.c.l.b16 %v228
  %v947 = vunpack.c.h.b16 %v228
  %v948 = vunpack.c.l.b16 %v229
  %v949 = vunpack.c.h.b16 %v229
  %v950 = vunpack.c.l.b16 %v230
  %v951 = vunpack.c.h.b16 %v230
  %v952 = vunpack.c.l.b16 %v231
  %v953 = vunpack.c.h.b16 %v231
  %v954 = vunpack.c.l.b16 %v232
  %v955 = vunpack.c.h.b16 %v232
  %v956 = vunpack.c.l.b16 %v233
  %v957 = vunpack.c.h.b16 %v233
  %v958 = vunpack.c.l.b16 %v234
  %v959 = vunpack.c.h.b16 %v234
  %v960 = vunpack.c.l.b16 %v235
  %v961 = vunpack.c.h.b16 %v235
  %v962 = vunpack.c.l.b16 %v236
  %v963 = vunpack.c.h.b16 %v236
  %v964 = vunpack.c.l.b16 %v237
  %v965 = vunpack.c.h.b16 %v237
  %v966 = vunpack.c.l.b16 %v238
  %v967 = vunpack.c.h.b16 %v238
  %v968 = vunpack.c.l.b16 %v239
  %v969 = vunpack.c.h.b16 %v239
  %v970 = vunpack.c.l.b16 %v240
  %v971 = vunpack.c.h.b16 %v240
  %v972 = vunpack.c.l.b16 %v241
  %v973 = vunpack.c.h.b16 %v241
  %v974 = vunpack.c.l.b16 %v242
  %v975 = vunpack.c.h.b16 %v242
  %v976 = vunpack.c.l.b16 %v243
  %v977 = vunpack.c.h.b16 %v243
  %v978 = vunpack.c.l.b16 %v244
  %v979 = vunpack.c.h.b16 %v244
  %v980 = vunpack.c.l.b16 %v245
  %v981 = vunpack.c.h.b16 %v245
  %v982 = vunpack.c.l.b16 %v246
  %v983 = vunpack.c.h.b16 %v246
  %v984 = vunpack.c.l.b16 %v247
  %v985 = vunpack.c.h.b16 %v247
  %v986 = vunpack.c.l.b16 %v248
  %v987 = vunpack.c.h.b16 %v248
  %v988 = vunpack.c.l.b16 %v249
  %v989 = vunpack.c.h.b16 %v249
  %v990 = vunpack.c.l.b16 %v250
  %v991 = vunpack.c.h.b16 %v250
  %v992 = vunpack.c.l.b16 %v251
  %v993 = vunpack.c.h.b16 %v251
  %v994 = vunpack.c.l.b16 %v252
  %v995 = vunpack.c.h.b16 %v252
  %v996 = vunpack.c.l.b16 %v253
  %v997 = vunpack.c.h.b16 %v253
  %v998 = vunpack.c.l.b16 %v254
  %v999 = vunpack.c.h.b16 %v254
  %v1000 = vunpack.c.l.b16 %v255
  %v1001 = vunpack.c.h.b16 %v255
  %v1002 = vunpack.c.l.b16 %v256
  %v1003 = vunpack.c.h.b16 %v256
  %v1004 = vunpack.c.l.b16 %v257
  %v1005 = vunpack.c.h.b16 %v257
  %v1006 = vunpack.c.l.b16 %v258
  %v1007 = vunpack.c.h.b16 %v258
  %v1008 = vunpack.c.l.b16 %v259
  %v1009 = vunpack.c.h.b16 %v259
  %v1010 = vunpack.c.l.b16 %v260
  %v1011 = vunpack.c.h.b16 %v260
  %v1012 = vunpack.c.l.b16 %v261
  %v1013 = vunpack.c.h.b16 %v261
  %v1014 = vunpack.c.l.b16 %v262
  %v1015 = vunpack.c.h.b16 %v262
  %v1016 = vunpack.c.l.b16 %v263
  %v1017 = vunpack.c.h.b16 %v263
  %v1018 = vunpack.c.l.b16 %v264
  %v1019 = vunpack.c.h.b16 %v264
  %v1020 = vunpack.c.l.b16 %v265
  %v1021 = vunpack.c.h.b16 %v265
  %v1022 = vunpack.c.l.b16 %v266
  %v1023 = vunpack.c.h.b16 %v266
  %v1024 = vunpack.c.l.b16 %v267
  %v1025 = vunpack.c.h.b16 %v267
  %v1026 = vunpack.c.l.b16 %v268
  %v1027 = vunpack.c.h.b16 %v268
  %v1028 = vunpack.c.l.b16 %v269
  %v1029 = vunpack.c.h.b16 %v269
  %v1030 = vunpack.c.l.b16 %v270
  %v1031 = vunpack.c.h.b16 %v270
  %v1032 = vunpack.c.l.b16 %v271
  %v1033 = vunpack.c.h.b16 %v271
  %v1034 = vunpack.c.l.b16 %v272
  %v1035 = vunpack.c.h.b16 %v272
  %v1036 = vunpack.c.l.b16 %v273
  %v1037 = vunpack.c.h.b16 %v273
  %v1038 = vunpack.c.l.b16 %v274
  %v1039 = vunpack.c.h.b16 %v274
  %v1040 = vunpack.c.l.b16 %v275
  %v1041 = vunpack.c.h.b16 %v275
  %v1042 = vunpack.c.l.b16 %v276
  %v1043 = vunpack.c.h.b16 %v276
  %v1044 = vunpack.c.l.b16 %v277
  %v1045 = vunpack.c.h.b16 %v277
  %v1046 = vunpack.c.l.b16 %v278
  %v1047 = vunpack.c.h.b16 %v278
  %v1048 = vunpack.c.l.b16 %v279
  %v1049 = vunpack.c.h.b16 %v279
  %v1050 = vunpack.c.l.b16 %v280
  %v1051 = vunpack.c.h.b16 %v280
  %v1052 = vunpack.c.l.b16 %v281
  %v1053 = vunpack.c.h.b16 %v281
  %v1054 = vunpack.c.l.b16 %v282
  %v1055 = vunpack.c.h.b16 %v282
  %v1056 = vunpack.c.l.b16 %v283
  %v1057 = vunpack.c.h.b16 %v283
  %v1058 = vunpack.c.l.b16 %v284
  %v1059 = vunpack.c.h.b16 %v284
  %v1060 = vunpack.c.l.b16 %v285
  %v1061 = vunpack.c.h.b16 %v285
  %v1062 = vunpack.c.l.b16 %v286
  %v1063 = vunpack.c.h.b16 %v286
  %v1064 = vunpack.c.l.b16 %v287
  %v1065 = vunpack.c.h.b16 %v287
  %v1066 = vunpack.c.l.b16 %v288
  %v1067 = vunpack.c.h.b16 %v288
  %v1068 = vunpack.c.l.b16 %v289
  %v1069 = vunpack.c.h.b16 %v289
  %v1070 = vunpack.c.l.b16 %v290
  %v1071 = vunpack.c.h.b16 %v290
  %v1072 = vunpack.c.l.b16 %v291
  %v1073 = vunpack.c.h.b16 %v291
  %v1074 = vunpack.c.l.b16 %v292
  %v1075 = vunpack.c.h.b16 %v292
  %v1076 = vunpack.c.l.b16 %v293
  %v1077 = vunpack.c.h.b16 %v293
  %v1078 = vunpack.c.l.b16 %v294
  %v1079 = vunpack.c.h.b16 %v294
  %v1080 = vunpack.c.l.b16 %v295
  %v1081 = vunpack.c.h.b16 %v295
  %v1082 = vunpack.c.l.b16 %v296
  %v1083 = vunpack.c.h.b16 %v296
  %v1084 = vunpack.c.l.b16 %v297
  %v1085 = vunpack.c.h.b16 %v297
  %v1086 = vunpack.c.l.b16 %v298
  %v1087 = vunpack.c.h.b16 %v298
  %v1088 = vunpack.c.l.b16 %v299
  %v1089 = vunpack.c.h.b16 %v299
  %v1090 = vunpack.c.l.b16 %v300
  %v1091 = vunpack.c.h.b16 %v300
  %v1092 = vunpack.c.l.b16 %v301
  %v1093 = vunpack.c.h.b16 %v301
  %v1094 = vunpack.c.l.b16 %v302
  %v1095 = vunpack.c.h.b16 %v302
  %v1096 = vunpack.c.l.b16 %v303
  %v1097 = vunpack.c.h.b16 %v303
  %v1098 = vunpack.c.l.b16 %v304
  %v1099 = vunpack.c.h.b16 %v304
  %v1100 = vunpack.c.l.b16 %v305
  %v1101 = vunpack.c.h.b16 %v305
  %v1102 = vunpack.c.l.b16 %v306
  %v1103 = vunpack.c.h.b16 %v306
  %v1104 = vunpack.c.l.b16 %v307
  %v1105 = vunpack.c.h.b16 %v307
  %v1106 = vunpack.c.l.b16 %v308
  %v1107 = vunpack.c.h.b16 %v308
  %v1108 = vunpack.c.l.b16 %v309
  %v1109 = vunpack.c.h.b16 %v309
  %v1110 = vunpack.c.l.b16 %v310
  %v1111 = vunpack.c.h.b16 %v310
  %v1112 = vunpack.c.l.b16 %v311
  %v1113 = vunpack.c.h.b16 %v311
  %v1114 = vunpack.c.l.b16 %v312
  %v1115 = vunpack.c.h.b16 %v312
  %v1116 = vunpack.c.l.b16 %v313
  %v1117 = vunpack.c.h.b16 %v313
  %v1118 = vunpack.c.l.b16 %v314
  %v1119 = vunpack.c.h.b16 %v314
  %v1120 = vunpack.c.l.b16 %v315
  %v1121 = vunpack.c.h.b16 %v315
  %v1122 = vunpack.c.l.b16 %v316
  %v1123 = vunpack.c.h.b16 %v316
  %v1124 = vunpack.c.l.b16 %v317
  %v1125 = vunpack.c.h.b16 %v317
  %v1126 = vunpack.c.l.b16 %v318
  %v1127 = vunpack.c.h.b16 %v318
  %v1128 = vunpack.c.l.b16 %v319
  %v1129 = vunpack.c.h.b16 %v319
  %v1130 = vunpack.c.l.b16 %v320
  %v1131 = vunpack.c.h.b16 %v320
  %v1132 = vunpack.c.l.b16 %v321
  %v1133 = vunpack.c.h.b16 %v321
  %v1134 = vunpack.c.l.b16 %v322
  %v1135 = vunpack.c.h.b16 %v322
  %v1136 = vunpack.c.l.b16 %v323
  %v1137 = vunpack.c.h.b16 %v323
  %v1138 = vunpack.c.l.b16 %v324
  %v1139 = vunpack.c.h.b16 %v324
  %v1140 = vunpack.c.l.b16 %v325
  %v1141 = vunpack.c.h.b16 %v325
  %v1142 = vunpack.c.l.b16 %v326
  %v1143 = vunpack.c.h.b16 %v326
  %v1144 = vunpack.c.l.b16 %v327
  %v1145 = vunpack.c.h.b16 %v327
  %v1146 = vunpack.c.l.b16 %v328
  %v1147 = vunpack.c.h.b16 %v328
  %v1148 = vunpack.c.l.b16 %v329
  %v1149 = vunpack.c.h.b16 %v329
  %v1150 = vunpack.c.l.b16 %v330
  %v1151 = vunpack.c.h.b16 %v330
  %v1152 = vunpack.c.l.b16 %v331
  %v1153 = vunpack.c.h.b16 %v331
  %v1154 = vunpack.c.l.b16 %v332
  %v1155 = vunpack.c.h.b16 %v332
  %v1156 = vunpack.c.l.b16 %v333
  %v1157 = vunpack.c.h.b16 %v333
  %v1158 = vunpack.c.l.b16 %v334
  %v1159 = vunpack.c.h.b16 %v334
  %v1160 = vunpack.c.l.b16 %v335
  %v1161 = vunpack.c.h.b16 %v335
  %v1162 = vunpack.c.l.b16 %v336
  %v1163 = vunpack.c.h.b16 %v336
  %v1164 = vunpack.c.l.b16 %v337
  %v1165 = vunpack.c.h.b16 %v337
  %v1166 = vunpack.c.l.b16 %v338
  %v1167 = vunpack.c.h.b16 %v338
  %v1168 = vunpack.c.l.b16 %v339
  %v1169 = vunpack.c.h.b16 %v339
  %v1170 = vunpack.c.l.b16 %v340
  %v1171 = vunpack.c.h.b16 %v340
  %v1172 = vunpack.c.l.b16 %v341
  %v1173 = vunpack.c.h.b16 %v341
  %v1174 = vunpack.c.l.b16 %v342
  %v1175 = vunpack.c.h.b16 %v342
  %v1176 = vunpack.c.l.b16 %v343
  %v1177 = vunpack.c.h.b16 %v343
  %v1178 = vunpack.c.l.b16 %v344
  %v1179 = vunpack.c.h.b16 %v344
  %v1180 = vunpack.c.l.b16 %v345
  %v1181 = vunpack.c.h.b16 %v345
  %v1182 = vunpack.c.l.b16 %v346
  %v1183 = vunpack.c.h.b16 %v346
  %v1184 = vunpack.c.l.b16 %v347
  %v1185 = vunpack.c.h.b16 %v347
  %v1186 = vunpack.c.l.b16 %v348
  %v1187 = vunpack.c.h.b16 %v348
  %v1188 = vunpack.c.l.b16 %v349
  %v1189 = vunpack.c.h.b16 %v349
  %v1190 = vunpack.c.l.b16 %v350
  %v1191 = vunpack.c.h.b16 %v350
  %v1192 = vunpack.c.l.b16 %v351
  %v1193 = vunpack.c.h.b16 %v351
  %v1194 = vunpack.c.l.b16 %v352
  %v1195 = vunpack.c.h.b16 %v352
  %v1196 = vunpack.c.l.b16 %v353
  %v1197 = vunpack.c.h.b16 %v353
  %v1198 = vunpack.c.l.b16 %v354
  %v1199 = vunpack.c.h.b16 %v354
  %v1200 = vunpack.c.l.b16 %v355
  %v1201 = vunpack.c.h.b16 %v355
  %v1202 = vunpack.c.l.b16 %v356
  %v1203 = vunpack.c.h.b16 %v356
  %v1204 = vunpack.c.l.b16 %v357
  %v1205 = vunpack.c.h.b16 %v357
  %v1206 = vunpack.c.l.b16 %v358
  %v1207 = vunpack.c.h.b16 %v358
  %v1208 = vunpack.c.l.b16 %v359
  %v1209 = vunpack.c.h.b16 %v359
  %v1210 = vunpack.c.l.b16 %v360
  %v1211 = vunpack.c.h.b16 %v360
  %v1212 = vunpack.c.l.b16 %v361
  %v1213 = vunpack.c.h.b16 %v361
  %v1214 = vunpack.c.l.b16 %v362
  %v1215 = vunpack.c.h.b16 %v362
  %v1216 = vunpack.c.l.b16 %v363
  %v1217 = vunpack.c.h.b16 %v363
  %v1218 = vunpack.c.l.b16 %v364
  %v1219 = vunpack.c.h.b16 %v364
  %v1220 = vunpack.c.l.b16 %v365
  %v1221 = vunpack.c.h.b16 %v365
  %v1222 = vunpack.c.l.b16 %v366
  %v1223 = vunpack.c.h.b16 %v366
  %v1224 = vunpack.c.l.b16 %v367
  %v1225 = vunpack.c.h.b16 %v367
  %v1226 = vunpack.c.l.b16 %v368
  %v1227 = vunpack.c.h.b16 %v368
  %v1228 = vunpack.c.l.b16 %v369
  %v1229 = vunpack.c.h.b16 %v369
  %v1230 = vunpack.c.l.b16 %v370
  %v1231 = vunpack.c.h.b16 %v370
  %v1232 = vunpack.c.l.b16 %v371
  %v1233 = vunpack.c.h.b16 %v371
  %v1234 = vunpack.c.l.b16 %v372
  %v1235 = vunpack.c.h.b16 %v372
  %v1236 = vunpack.c.l.b16 %v373
  %v1237 = vunpack.c.h.b16 %v373
  %v1238 = vunpack.c.l.b16 %v374
  %v1239 = vunpack.c.h.b16 %v374
  %v1240 = vunpack.c.l.b16 %v375
  %v1241 = vunpack.c.h.b16 %v375
  %v1242 = vunpack.c.l.b16 %v376
  %v1243 = vunpack.c.h.b16 %v376
  %v1244 = vunpack.c.l.b16 %v377
  %v1245 = vunpack.c.h.b16 %v377
  %v1246 = vunpack.c.l.b16 %v378
  %v1247 = vunpack.c.h.b16 %v378
  %v1248 = vunpack.c.l.b16 %v379
  %v1249 = vunpack.c.h.b16 %v379
  %v1250 = vunpack.c.l.b16 %v380
  %v1251 = vunpack.c.h.b16 %v380
  %v1252 = vunpack.c.l.b16 %v381
  %v1253 = vunpack.c.h.b16 %v381
  %v1254 = vunpack.c.l.b16 %v382
  %v1255 = vunpack.c.h.b16 %v382
  %v1256 = vunpack.c.l.b16 %v383
  %v1257 = vunpack.c.h.b16 %v383
  %v1258 = vunpack.c.l.b16 %v384
  %v1259 = vunpack.c.h.b16 %v384
  %v1260 = vunpack.c.l.b16 %v385
  %v1261 = vunpack.c.h.b16 %v385
  %v1262 = vunpack.c.l.b16 %v386
  %v1263 = vunpack.c.h.b16 %v386
  %v1264 = vunpack.c.l.b16 %v387
  %v1265 = vunpack.c.h.b16 %v387
  %v1266 = vunpack.c.l.b16 %v388
  %v1267 = vunpack.c.h.b16 %v388
  %v1268 = vunpack.c.l.b16 %v389
  %v1269 = vunpack.c.h.b16 %v389
  %v1270 = vunpack.c.l.b16 %v390
  %v1271 = vunpack.c.h.b16 %v390
  %v1272 = vunpack.c.l.b16 %v391
  %v1273 = vunpack.c.h.b16 %v391
  %v1274 = vunpack.c.l.b16 %v392
  %v1275 = vunpack.c.h.b16 %v392
  %v1276 = vunpack.c.l.b16 %v393
  %v1277 = vunpack.c.h.b16 %v393
  %v1278 = vunpack.c.l.b16 %v394
  %v1279 = vunpack.c.h.b16 %v394
  %v1280 = vunpack.c.l.b16 %v395
  %v1281 = vunpack.c.h.b16 %v395
  %v1282 = vunpack.c.l.b16 %v396
  %v1283 = vunpack.c.h.b16 %v396
  %v1284 = vunpack.c.l.b16 %v397
  %v1285 = vunpack.c.h.b16 %v397
  %v1286 = vunpack.c.l.b16 %v398
  %v1287 = vunpack.c.h.b16 %v398
  %v1288 = vunpack.c.l.b16 %v399
  %v1289 = vunpack.c.h.b16 %v399
  %v1290 = vunpack.c.l.b16 %v400
  %v1291 = vunpack.c.h.b16 %v400
  %v1292 = vunpack.c.l.b16 %v401
  %v1293 = vunpack.c.h.b16 %v401
  %v1294 = vunpack.c.l.b16 %v402
  %v1295 = vunpack.c.h.b16 %v402
  %v1296 = vunpack.c.l.b16 %v403
  %v1297 = vunpack.c.h.b16 %v403
  %v1298 = vunpack.c.l.b16 %v404
  %v1299 = vunpack.c.h.b16 %v404
  %v1300 = vunpack.c.l.b16 %v405
  %v1301 = vunpack.c.h.b16 %v405
  %v1302 = vpack.c.b16 %v798, %v790
  %v1303 = vpack.c.b16 %v799, %v791
  %v1304 = vpack.c.b16 %v800, %v792
  %v1305 = vpack.c.b16 %v801, %v793
  %v1306 = vpack.c.b16 %v802, %v794
  %v1307 = vpack.c.b16 %v803, %v795
  %v1308 = vpack.c.b16 %v804, %v796
  %v1309 = vpack.c.b16 %v805, %v797
  %v1310 = vpack.c.b16 %v814, %v806
  %v1311 = vpack.c.b16 %v815, %v807
  %v1312 = vpack.c.b16 %v816, %v808
  %v1313 = vpack.c.b16 %v817, %v809
  %v1314 = vpack.c.b16 %v818, %v810
  %v1315 = vpack.c.b16 %v819, %v811
  %v1316 = vpack.c.b16 %v820, %v812
  %v1317 = vpack.c.b16 %v821, %v813
  %v1318 = vpack.c.b16 %v830, %v822
  %v1319 = vpack.c.b16 %v831, %v823
  %v1320 = vpack.c.b16 %v832, %v824
  %v1321 = vpack.c.b16 %v833, %v825
  %v1322 = vpack.c.b16 %v834, %v826
  %v1323 = vpack.c.b16 %v835, %v827
  %v1324 = vpack.c.b16 %v836, %v828
  %v1325 = vpack.c.b16 %v837, %v829
  %v1326 = vpack.c.b16 %v846, %v838
  %v1327 = vpack.c.b16 %v847, %v839
  %v1328 = vpack.c.b16 %v848, %v840
  %v1329 = vpack.c.b16 %v849, %v841
  %v1330 = vpack.c.b16 %v850, %v842
  %v1331 = vpack.c.b16 %v851, %v843
  %v1332 = vpack.c.b16 %v852, %v844
  %v1333 = vpack.c.b16 %v853, %v845
  %v1334 = vpack.c.b16 %v862, %v854
  %v1335 = vpack.c.b16 %v863, %v855
  %v1336 = vpack.c.b16 %v864, %v856
  %v1337 = vpack.c.b16 %v865, %v857
  %v1338 = vpack.c.b16 %v866, %v858
  %v1339 = vpack.c.b16 %v867, %v859
  %v1340 = vpack.c.b16 %v868, %v860
  %v1341 = vpack.c.b16 %v869, %v861
  %v1342 = vpack.c.b16 %v878, %v870
  %v1343 = vpack.c.b16 %v879, %v871
  %v1344 = vpack.c.b16 %v880, %v872
  %v1345 = vpack.c.b16 %v881, %v873
  %v1346 = vpack.c.b16 %v882, %v874
  %v1347 = vpack.c.b16 %v883, %v875
  %v1348 = vpack.c.b16 %v884, %v876
  %v1349 = vpack.c.b16 %v885, %v877
  %v1350 = vpack.c.b16 %v894, %v886
  %v1351 = vpack.c.b16 %v895, %v887
  %v1352 = vpack.c.b16 %v896, %v888
  %v1353 = vpack.c.b16 %v897, %v889
  %v1354 = vpack.c.b16 %v898, %v890
  %v1355 = vpack.c.b16 %v899, %v891
  %v1356 = vpack.c.b16 %v900, %v892
  %v1357 = vpack.c.b16 %v901, %v893
  %v1358 = vpack.c.b16 %v910, %v902
  %v1359 = vpack.c.b16 %v911, %v903
  %v1360 = vpack.c.b16 %v912, %v904
  %v1361 = vpack.c.b16 %v913, %v905
  %v1362 = vpack.c.b16 %v914, %v906
  %v1363 = vpack.c.b16 %v915, %v907
  %v1364 = vpack.c.b16 %v916, %v908
  %v1365 = vpack.c.b16 %v917, %v909
  %v1366 = vpack.c.b16 %v926, %v918
  %v1367 = vpack.c.b16 %v927, %v919
  %v1368 = vpack.c.b16 %v928, %v920
  %v1369 = vpack.c.b16 %v929, %v921
  %v1370 = vpack.c.b16 %v930, %v922
  %v1371 = vpack.c.b16 %v931, %v923
  %v1372 = vpack.c.b16 %v932, %v924
  %v1373 = vpack.c.b16 %v933, %v925
  %v1374 = vpack.c.b16 %v942, %v934
  %v1375 = vpack.c.b16 %v943, %v935
  %v1376 = vpack.c.b16 %v944, %v936
  %v1377 = vpack.c.b16 %v945, %v937
  %v1378 = vpack.c.b16 %v946, %v938
  %v1379 = vpack.c.b16 %v947, %v939
  %v1380 = vpack.c.b16 %v948, %v940
  %v1381 = vpack.c.b16 %v949, %v941
  %v1382 = vpack.c.b16 %v958, %v950
  %v1383 = vpack.c.b16 %v959, %v951
  %v1384 = vpack.c.b16 %v960, %v952
  %v1385 = vpack.c.b16 %v961, %v953
  %v1386 = vpack.c.b16 %v962, %v954
  %v1387 = vpack.c.b16 %v963, %v955
  %v1388 = vpack.c.b16 %v964, %v956
  %v1389 = vpack.c.b16 %v965, %v957
  %v1390 = vpack.c.b16 %v974, %v966
  %v1391 = vpack.c.b16 %v975, %v967
  %v1392 = vpack.c.b16 %v976, %v968
  %v1393 = vpack.c.b16 %v977, %v969
  %v1394 = vpack.c.b16 %v978, %v970
  %v1395 = vpack.c.b16 %v979, %v971
  %v1396 = vpack.c.b16 %v980, %v972
  %v1397 = vpack.c.b16 %v981, %v973
  %v1398 = vpack.c.b16 %v990, %v982
  %v1399 = vpack.c.b16 %v991, %v983
  %v1400 = vpack.c.b16 %v992, %v984
  %v1401 = vpack.c.b16 %v993, %v985
  %v1402 = vpack.c.b16 %v994, %v986
  %v1403 = vpack.c.b16 %v995, %v987
  %v1404 = vpack.c.b16 %v996, %v988
  %v1405 = vpack.c.b16 %v997, %v989
  %v1406 = vpack.c.b16 %v1006, %v998
  %v1407 = vpack.c.b16 %v1007, %v999
  %v1408 = vpack.c.b16 %v1008, %v1000
  %v1409 = vpack.c.b16 %v1009, %v1001
  %v1410 = vpack.c.b16 %v1010, %v1002
  %v1411 = vpack.c.b16 %v1011, %v1003
  %v1412 = vpack.c.b16 %v1012, %v1004
  %v1413 = vpack.c.b16 %v1013, %v1005
  %v1414 = vpack.c.b16 %v1022, %v1014
  %v1415 = vpack.c.b16 %v1023, %v1015
  %v1416 = vpack.c.b16 %v1024, %v1016
  %v1417 = vpack.c.b16 %v1025, %v1017
  %v1418 = vpack.c.b16 %v1026, %v1018
  %v1419 = vpack.c.b16 %v1027, %v1019
  %v1420 = vpack.c.b16 %v1028, %v1020
  %v1421 = vpack.c.b16 %v1029, %v1021
  %v1422 = vpack.c.b16 %v1038, %v1030
  %v1423 = vpack.c.b16 %v1039, %v1031
  %v1424 = vpack.c.b16 %v1040, %v1032
  %v1425 = vpack.c.b16 %v1041, %v1033
  %v1426 = vpack.c.b16 %v1042, %v1034
  %v1427 = vpack.c.b16 %v1043, %v1035
  %v1428 = vpack.c.b16 %v1044, %v1036
  %v1429 = vpack.c.b16 %v1045, %v1037
  %v1430 = vpack.c.b16 %v1054, %v1046
  %v1431 = vpack.c.b16 %v1055, %v1047
  %v1432 = vpack.c.b16 %v1056, %v1048
  %v1433 = vpack.c.b16 %v1057, %v1049
  %v1434 = vpack.c.b16 %v1058, %v1050
  %v1435 = vpack.c.b16 %v1059, %v1051
  %v1436 = vpack.c.b16 %v1060, %v1052
  %v1437 = vpack.c.b16 %v1061, %v1053
  %v1438 = vpack.c.b16 %v1070, %v1062
  %v1439 = vpack.c.b16 %v1071, %v1063
  %v1440 = vpack.c.b16 %v1072, %v1064
  %v1441 = vpack.c.b16 %v1073, %v1065
  %v1442 = vpack.c.b16 %v1074, %v1066
  %v1443 = vpack.c.b16 %v1075, %v1067
  %v1444 = vpack.c.b16 %v1076, %v1068
  %v1445 = vpack.c.b16 %v1077, %v1069
  %v1446 = vpack.c.b16 %v1086, %v1078
  %v1447 = vpack.c.b16 %v1087, %v1079
  %v1448 = vpack.c.b16 %v1088, %v1080
  %v1449 = vpack.c.b16 %v1089, %v1081
  %v1450 = vpack.c.b16 %v1090, %v1082
  %v1451 = vpack.c.b16 %v1091, %v1083
  %v1452 = vpack.c.b16 %v1092, %v1084
  %v1453 = vpack.c.b16 %v1093, %v1085
  %v1454 = vpack.c.b16 %v1102, %v1094
  %v1455 = vpack.c.b16 %v1103, %v1095
  %v1456 = vpack.c.b16 %v1104, %v1096
  %v1457 = vpack.c.b16 %v1105, %v1097
  %v1458 = vpack.c.b16 %v1106, %v1098
  %v1459 = vpack.c.b16 %v1107, %v1099
  %v1460 = vpack.c.b16 %v1108, %v1100
  %v1461 = vpack.c.b16 %v1109, %v1101
  %v1462 = vpack.c.b16 %v1118, %v1110
  %v1463 = vpack.c.b16 %v1119, %v1111
  %v1464 = vpack.c.b16 %v1120, %v1112
  %v1465 = vpack.c.b16 %v1121, %v1113
  %v1466 = vpack.c.b16 %v1122, %v1114
  %v1467 = vpack.c.b16 %v1123, %v1115
  %v1468 = vpack.c.b16 %v1124, %v1116
  %v1469 = vpack.c.b16 %v1125, %v1117
  %v1470 = vpack.c.b16 %v1134, %v1126
  %v1471 = vpack.c.b16 %v1135, %v1127
  %v1472 = vpack.c.b16 %v1136, %v1128
  %v1473 = vpack.c.b16 %v1137, %v1129
  %v1474 = vpack.c.b16 %v1138, %v1130
  %v1475 = vpack.c.b16 %v1139, %v1131
  %v1476 = vpack.c.b16 %v1140, %v1132
  %v1477 = vpack.c.b16 %v1141, %v1133
  %v1478 = vpack.c.b16 %v1150, %v1142
  %v1479 = vpack.c.b16 %v1151, %v1143
  %v1480 = vpack.c.b16 %v1152, %v1144
  %v1481 = vpack.c.b16 %v1153, %v1145
  %v1482 = vpack.c.b16 %v1154, %v1146
  %v1483 = vpack.c.b16 %v1155, %v1147
  %v1484 = vpack.c.b16 %v1156, %v1148
  %v1485 = vpack.c.b16 %v1157, %v1149
  %v1486 = vpack.c.b16 %v1166, %v1158
  %v1487 = vpack.c.b16 %v1167, %v1159
  %v1488 = vpack.c.b16 %v1168, %v1160
  %v1489 = vpack.c.b16 %v1169, %v1161
  %v1490 = vpack.c.b16 %v1170, %v1162
  %v1491 = vpack.c.b16 %v1171, %v1163
  %v1492 = vpack.c.b16 %v1172, %v1164
  %v1493 = vpack.c.b16 %v1173, %v1165
  %v1494 = vpack.c.b16 %v1182, %v1174
  %v1495 = vpack.c.b16 %v1183, %v1175
  %v1496 = vpack.c.b16 %v1184, %v1176
  %v1497 = vpack.c.b16 %v1185, %v1177
  %v1498 = vpack.c.b16 %v1186, %v1178
  %v1499 = vpack.c.b16 %v1187, %v1179
  %v1500 = vpack.c.b16 %v1188, %v1180
  %v1501 = vpack.c.b16 %v1189, %v1181
  %v1502 = vpack.c.b16 %v1198, %v1190
  %v1503 = vpack.c.b16 %v1199, %v1191
  %v1504 = vpack.c.b16 %v1200, %v1192
  %v1505 = vpack.c.b16 %v1201, %v1193
  %v1506 = vpack.c.b16 %v1202, %v1194
  %v1507 = vpack.c.b16 %v1203, %v1195
  %v1508 = vpack.c.b16 %v1204, %v1196
  %v1509 = vpack.c.b16 %v1205, %v1197
  %v1510 = vpack.c.b16 %v1214, %v1206
  %v1511 = vpack.c.b16 %v1215, %v1207
  %v1512 = vpack.c.b16 %v1216, %v1208
  %v1513 = vpack.c.b16 %v1217, %v1209
  %v1514 = vpack.c.b16 %v1218, %v1210
  %v1515 = vpack.c.b16 %v1219, %v1211
  %v1516 = vpack.c.b16 %v1220, %v1212
  %v1517 = vpack.c.b16 %v1221, %v1213
  %v1518 = vpack.c.b16 %v1230, %v1222
  %v1519 = vpack.c.b16 %v1231, %v1223
  %v1520 = vpack.c.b16 %v1232, %v1224
  %v1521 = vpack.c.b16 %v1233, %v1225
  %v1522 = vpack.c.b16 %v1234, %v1226
  %v1523 = vpack.c.b16 %v1235, %v1227
  %v1524 = vpack.c.b16 %v1236, %v1228
  %v1525 = vpack.c.b16 %v1237, %v1229
  %v1526 = vpack.c.b16 %v1246, %v1238
  %v1527 = vpack.c.b16 %v1247, %v1239
  %v1528 = vpack.c.b16 %v1248, %v1240
  %v1529 = vpack.c.b16 %v1249, %v1241
  %v1530 = vpack.c.b16 %v1250, %v1242
  %v1531 = vpack.c.b16 %v1251, %v1243
  %v1532 = vpack.c.b16 %v1252, %v1244
  %v1533 = vpack.c.b16 %v1253, %v1245
  %v1534 = vpack.c.b16 %v1262, %v1254
  %v1535 = vpack.c.b16 %v1263, %v1255
  %v1536 = vpack.c.b16 %v1264, %v1256
  %v1537 = vpack.c.b16 %v1265, %v1257
  %v1538 = vpack.c.b16 %v1266, %v1258
  %v1539 = vpack.c.b16 %v1267, %v1259
  %v1540 = vpack.c.b16 %v1268, %v1260
  %v1541 = vpack.c.b16 %v1269, %v1261
  %v1542 = vpack.c.b16 %v1278, %v1270
  %v1543 = vpack.c.b16 %v1279, %v1271
  %v1544 = vpack.c.b16 %v1280, %v1272
  %v1545 = vpack.c.b16 %v1281, %v1273
  %v1546 = vpack.c.b16 %v1282, %v1274
  %v1547 = vpack.c.b16 %v1283, %v1275
  %v1548 = vpack.c.b16 %v1284, %v1276
  %v1549 = vpack.c.b16 %v1285, %v1277
  %v1550 = vpack.c.b16 %v1294, %v1286
  %v1551 = vpack.c.b16 %v1295, %v1287
  %v1552 = vpack.c.b16 %v1296, %v1288
  %v1553 = vpack.c.b16 %v1297, %v1289
  %v1554 = vpack.c.b16 %v1298, %v1290
  %v1555 = vpack.c.b16 %v1299, %v1291
  %v1556 = vpack.c.b16 %v1300, %v1292
  %v1557 = vpack.c.b16 %v1301, %v1293
  %v1942 = vunpack.c.l.b16 %v406
  %v1943 = vunpack.c.l.b16 %v407
  %v1944 = vunpack.c.l.b16 %v408
  %v1945 = vunpack.c.l.b16 %v409
  %v1946 = vunpack.c.l.b16 %v410
  %v1947 = vunpack.c.l.b16 %v411
  %v1948 = vunpack.c.l.b16 %v412
  %v1949 = vunpack.c.l.b16 %v413
  %v1950 = vunpack.c.l.b16 %v414
  %v1951 = vunpack.c.l.b16 %v415
  %v1952 = vunpack.c.l.b16 %v416
  %v1953 = vunpack.c.l.b16 %v417
  %v1954 = vunpack.c.l.b16 %v418
  %v1955 = vunpack.c.l.b16 %v419
  %v1956 = vunpack.c.l.b16 %v420
  %v1957 = vunpack.c.l.b16 %v421
  %v1958 = vunpack.c.l.b16 %v422
  %v1959 = vunpack.c.l.b16 %v423
  %v1960 = vunpack.c.l.b16 %v424
  %v1961 = vunpack.c.l.b16 %v425
  %v1962 = vunpack.c.l.b16 %v426
  %v1963 = vunpack.c.l.b16 %v427
  %v1964 = vunpack.c.l.b16 %v428
  %v1965 = vunpack.c.l.b16 %v429
  %v1966 = vunpack.c.l.b16 %v430
  %v1967 = vunpack.c.l.b16 %v431
  %v1968 = vunpack.c.l.b16 %v432
  %v1969 = vunpack.c.l.b16 %v433
  %v1970 = vunpack.c.l.b16 %v434
  %v1971 = vunpack.c.l.b16 %v435
  %v1972 = vunpack.c.l.b16 %v436
  %v1973 = vunpack.c.l.b16 %v437
  %v1974 = vunpack.c.l.b16 %v438
  %v1975 = vunpack.c.l.b16 %v439
  %v1976 = vunpack.c.l.b16 %v440
  %v1977 = vunpack.c.l.b16 %v441
  %v1978 = vunpack.c.l.b16 %v442
  %v1979 = vunpack.c.l.b16 %v443
  %v1980 = vunpack.c.l.b16 %v444
  %v1981 = vunpack.c.l.b16 %v445
  %v1982 = vunpack.c.l.b16 %v446
  %v1983 = vunpack.c.l.b16 %v447
  %v1984 = vunpack.c.l.b16 %v448
  %v1985 = vunpack.c.l.b16 %v449
  %v1986 = vunpack.c.l.b16 %v450
  %v1987 = vunpack.c.l.b16 %v451
  %v1988 = vunpack.c.l.b16 %v452
  %v1989 = vunpack.c.l.b16 %v453
  %v1990 = vunpack.c.l.b16 %v454
  %v1991 = vunpack.c.l.b16 %v455
  %v1992 = vunpack.c.l.b16 %v456
  %v1993 = vunpack.c.l.b16 %v457
  %v1994 = vunpack.c.l.b16 %v458
  %v1995 = vunpack.c.l.b16 %v459
  %v1996 = vunpack.c.l.b16 %v460
  %v1997 = vunpack.c.l.b16 %v461
  %v1998 = vunpack.c.l.b16 %v462
  %v1999 = vunpack.c.l.b16 %v463
  %v2000 = vunpack.c.l.b16 %v464
  %v2001 = vunpack.c.l.b16 %v465
  %v2002 = vunpack.c.l.b16 %v466
  %v2003 = vunpack.c.l.b16 %v467
  %v2004 = vunpack.c.l.b16 %v468
  %v2005 = vunpack.c.l.b16 %v469
  %v2006 = vunpack.c.l.b16 %v470
  %v2007 = vunpack.c.l.b16 %v471
  %v2008 = vunpack.c.l.b16 %v472
  %v2009 = vunpack.c.l.b16 %v473
  %v2010 = vunpack.c.l.b16 %v474
  %v2011 = vunpack.c.l.b16 %v475
  %v2012 = vunpack.c.l.b16 %v476
  %v2013 = vunpack.c.l.b16 %v477
  %v2014 = vunpack.c.l.b16 %v478
  %v2015 = vunpack.c.l.b16 %v479
  %v2016 = vunpack.c.l.b16 %v480
  %v2017 = vunpack.c.l.b16 %v481
  %v2018 = vunpack.c.l.b16 %v482
  %v2019 = vunpack.c.l.b16 %v483
  %v2020 = vunpack.c.l.b16 %v484
  %v2021 = vunpack.c.l.b16 %v485
  %v2022 = vunpack.c.l.b16 %v486
  %v2023 = vunpack.c.l.b16 %v487
  %v2024 = vunpack.c.l.b16 %v488
  %v2025 = vunpack.c.l.b16 %v489
  %v2026 = vunpack.c.l.b16 %v490
  %v2027 = vunpack.c.l.b16 %v491
  %v2028 = vunpack.c.l.b16 %v492
  %v2029 = vunpack.c.l.b16 %v493
  %v2030 = vunpack.c.l.b16 %v494
  %v2031 = vunpack.c.l.b16 %v495
  %v2032 = vunpack.c.l.b16 %v496
  %v2033 = vunpack.c.l.b16 %v497
  %v2034 = vunpack.c.l.b16 %v498
  %v2035 = vunpack.c.l.b16 %v499
  %v2036 = vunpack.c.l.b16 %v500
  %v2037 = vunpack.c.l.b16 %v501
  %v2038 = vunpack.c.l.b16 %v502
  %v2039 = vunpack.c.l.b16 %v503
  %v2040 = vunpack.c.l.b16 %v504
  %v2041 = vunpack.c.l.b16 %v505
  %v2042 = vunpack.c.l.b16 %v506
  %v2043 = vunpack.c.l.b16 %v507
  %v2044 = vunpack.c.l.b16 %v508
  %v2045 = vunpack.c.l.b16 %v509
  %v2046 = vunpack.c.l.b16 %v510
  %v2047 = vunpack.c.l.b16 %v511
  %v2048 = vunpack.c.l.b16 %v512
  %v2049 = vunpack.c.l.b16 %v513
  %v2050 = vunpack.c.l.b16 %v514
  %v2051 = vunpack.c.l.b16 %v515
  %v2052 = vunpack.c.l.b16 %v516
  %v2053 = vunpack.c.l.b16 %v517
  %v2054 = vunpack.c.l.b16 %v518
  %v2055 = vunpack.c.l.b16 %v519
  %v2056 = vunpack.c.l.b16 %v520
  %v2057 = vunpack.c.l.b16 %v521
  %v2058 = vunpack.c.l.b16 %v522
  %v2059 = vunpack.c.l.b16 %v523
  %v2060 = vunpack.c.l.b16 %v524
  %v2061 = vunpack.c.l.b16 %v525
  %v2062 = vunpack.c.l.b16 %v526
  %v2063 = vunpack.c.l.b16 %v527
  %v2064 = vunpack.c.l.b16 %v528
  %v2065 = vunpack.c.l.b16 %v529
  %v2066 = vunpack.c.l.b16 %v530
  %v2067 = vunpack.c.l.b16 %v531
  %v2068 = vunpack.c.l.b16 %v532
  %v2069 = vunpack.c.l.b16 %v533
  %v2070 = vpack.c.b16 %v1943, %v1942
  %v2071 = vpack.c.b16 %v1945, %v1944
  %v2072 = vpack.c.b16 %v1947, %v1946
  %v2073 = vpack.c.b16 %v1949, %v1948
  %v2074 = vpack.c.b16 %v1951, %v1950
  %v2075 = vpack.c.b16 %v1953, %v1952
  %v2076 = vpack.c.b16 %v1955, %v1954
  %v2077 = vpack.c.b16 %v1957, %v1956
  %v2078 = vpack.c.b16 %v1959, %v1958
  %v2079 = vpack.c.b16 %v1961, %v1960
  %v2080 = vpack.c.b16 %v1963, %v1962
  %v2081 = vpack.c.b16 %v1965, %v1964
  %v2082 = vpack.c.b16 %v1967, %v1966
  %v2083 = vpack.c.b16 %v1969, %v1968
  %v2084 = vpack.c.b16 %v1971, %v1970
  %v2085 = vpack.c.b16 %v1973, %v1972
  %v2086 = vpack.c.b16 %v1975, %v1974
  %v2087 = vpack.c.b16 %v1977, %v1976
  %v2088 = vpack.c.b16 %v1979, %v1978
  %v2089 = vpack.c.b16 %v1981, %v1980
  %v2090 = vpack.c.b16 %v1983, %v1982
  %v2091 = vpack.c.b16 %v1985, %v1984
  %v2092 = vpack.c.b16 %v1987, %v1986
  %v2093 = vpack.c.b16 %v1989, %v1988
  %v2094 = vpack.c.b16 %v1991, %v1990
  %v2095 = vpack.c.b16 %v1993, %v1992
  %v2096 = vpack.c.b16 %v1995, %v1994
  %v2097 = vpack.c.b16 %v1997, %v1996
  %v2098 = vpack.c.b16 %v1999, %v1998
  %v2099 = vpack.c.b16 %v2001, %v2000
  %v2100 = vpack.c.b16 %v2003, %v2002
  %v2101 = vpack.c.b16 %v2005, %v2004
  %v2102 = vpack.c.b16 %v2007, %v2006
  %v2103 = vpack.c.b16 %v2009, %v2008
  %v2104 = vpack.c.b16 %v2011, %v2010
  %v2105 = vpack.c.b16 %v2013, %v2012
  %v2106 = vpack.c.b16 %v2015, %v2014
  %v2107 = vpack.c.b16 %v2017, %v2016
  %v2108 = vpack.c.b16 %v2019, %v2018
  %v2109 = vpack.c.b16 %v2021, %v2020
  %v2110 = vpack.c.b16 %v2023, %v2022
  %v2111 = vpack.c.b16 %v2025, %v2024
  %v2112 = vpack.c.b16 %v2027, %v2026
  %v2113 = vpack.c.b16 %v2029, %v2028
  %v2114 = vpack.c.b16 %v2031, %v2030
  %v2115 = vpack.c.b16 %v2033, %v2032
  %v2116 = vpack.c.b16 %v2035, %v2034
  %v2117 = vpack.c.b16 %v2037, %v2036
  %v2118 = vpack.c.b16 %v2039, %v2038
  %v2119 = vpack.c.b16 %v2041, %v2040
  %v2120 = vpack.c.b16 %v2043, %v2042
  %v2121 = vpack.c.b16 %v2045, %v2044
  %v2122 = vpack.c.b16 %v2047, %v2046
  %v2123 = vpack.c.b16 %v2049, %v2048
  %v2124 = vpack.c.b16 %v2051, %v2050
  %v2125 = vpack.c.b16 %v2053, %v2052
  %v2126 = vpack.c.b16 %v2055, %v2054
  %v2127 = vpack.c.b16 %v2057, %v2056
  %v2128 = vpack.c.b16 %v2059, %v2058
  %v2129 = vpack.c.b16 %v2061, %v2060
  %v2130 = vpack.c.b16 %v2063, %v2062
  %v2131 = vpack.c.b16 %v2065, %v2064
  %v2132 = vpack.c.b16 %v2067, %v2066
  %v2133 = vpack.c.b16 %v2069, %v2068
  %2198 = vmatprep.subr.bf16.mxu0 0
  %2199 = vmatpush1.bf16.msra.mxu0 %v2077
  %2200 = vmatprep.subr.bf16.mxu0 0
  %2201 = vmatpush1.bf16.msra.mxu0 %v2076
  %2202 = vmatprep.subr.bf16.mxu0 0
  %2203 = vmatpush1.bf16.msra.mxu0 %v2075
  %2204 = vmatprep.subr.bf16.mxu0 0
  %2205 = vmatpush1.bf16.msra.mxu0 %v2074
  %2206 = vmatprep.subr.bf16.mxu0 0
  %2207 = vmatpush1.bf16.msra.mxu0 %v2073
  %2208 = vmatprep.subr.bf16.mxu0 0
  %2209 = vmatpush1.bf16.msra.mxu0 %v2072
  %2210 = vmatprep.subr.bf16.mxu0 0
  %2211 = vmatpush1.bf16.msra.mxu0 %v2071
  %2212 = vmatprep.subr.bf16.mxu0 0
  %2213 = vmatpush1.bf16.msra.mxu0 %v2070
  %2214 = vmatprep.subr.bf16.mxu0 0
  %2215 = vmatpush2.bf16.msra.mxu0 %v2085
  %2216 = vmatprep.subr.bf16.mxu0 0
  %2217 = vmatpush2.bf16.msra.mxu0 %v2084
  %2218 = vmatprep.subr.bf16.mxu0 0
  %2219 = vmatpush2.bf16.msra.mxu0 %v2083
  %2220 = vmatprep.subr.bf16.mxu0 0
  %2221 = vmatpush2.bf16.msra.mxu0 %v2082
  %2222 = vmatprep.subr.bf16.mxu0 0
  %2223 = vmatpush2.bf16.msra.mxu0 %v2081
  %2224 = vmatprep.subr.bf16.mxu0 0
  %2225 = vmatpush2.bf16.msra.mxu0 %v2080
  %2226 = vmatprep.subr.bf16.mxu0 0
  %2227 = vmatpush2.bf16.msra.mxu0 %v2079
  %2228 = vmatprep.subr.bf16.mxu0 0
  %2229 = vmatpush2.bf16.msra.mxu0 %v2078
  %2230 = vmatprep.mubr.bf16.mxu0 %v1303
  %2231 = vmatmul.mubr.bf16.gmra.mxu0 %v1302
  %v2232 = vpop.f32.mrf.mxu0
  %v2233 = vadd.f32 0.0, %v2232
  %v2234 = vpop.f32.mrf.mxu0
  %v2235 = vpop.f32.mrf.mxu0
  %v2236 = vadd.f32 0.0, %v2235
  %v2237 = vpop.f32.mrf.mxu0
  %2238 = vmatprep.mubr.bf16.mxu0 %v1311
  %2239 = vmatmul.mubr.bf16.gmra.mxu0 %v1310
  %v2240 = vpop.f32.mrf.mxu0
  %v2241 = vadd.f32 0.0, %v2240
  %v2242 = vpop.f32.mrf.mxu0
  %v2243 = vpop.f32.mrf.mxu0
  %v2244 = vadd.f32 0.0, %v2243
  %v2245 = vpop.f32.mrf.mxu0
  %2246 = vmatprep.mubr.bf16.mxu0 %v1319
  %2247 = vmatmul.mubr.bf16.gmra.mxu0 %v1318
  %v2248 = vpop.f32.mrf.mxu0
  %v2249 = vadd.f32 0.0, %v2248
  %v2250 = vpop.f32.mrf.mxu0
  %v2251 = vpop.f32.mrf.mxu0
  %v2252 = vadd.f32 0.0, %v2251
  %v2253 = vpop.f32.mrf.mxu0
  %2254 = vmatprep.mubr.bf16.mxu0 %v1327
  %2255 = vmatmul.mubr.bf16.gmra.mxu0 %v1326
  %v2256 = vpop.f32.mrf.mxu0
  %v2257 = vadd.f32 0.0, %v2256
  %v2258 = vpop.f32.mrf.mxu0
  %v2259 = vpop.f32.mrf.mxu0
  %v2260 = vadd.f32 0.0, %v2259
  %v2261 = vpop.f32.mrf.mxu0
  %2262 = vmatprep.mubr.bf16.mxu0 %v1335
  %2263 = vmatmul.mubr.bf16.gmra.mxu0 %v1334
  %v2264 = vpop.f32.mrf.mxu0
  %v2265 = vadd.f32 0.0, %v2264
  %v2266 = vpop.f32.mrf.mxu0
  %v2267 = vpop.f32.mrf.mxu0
  %v2268 = vadd.f32 0.0, %v2267
  %v2269 = vpop.f32.mrf.mxu0
  %2270 = vmatprep.mubr.bf16.mxu0 %v1343
  %2271 = vmatmul.mubr.bf16.gmra.mxu0 %v1342
  %v2272 = vpop.f32.mrf.mxu0
  %v2273 = vadd.f32 0.0, %v2272
  %v2274 = vpop.f32.mrf.mxu0
  %v2275 = vpop.f32.mrf.mxu0
  %v2276 = vadd.f32 0.0, %v2275
  %v2277 = vpop.f32.mrf.mxu0
  %2278 = vmatprep.mubr.bf16.mxu0 %v1351
  %2279 = vmatmul.mubr.bf16.gmra.mxu0 %v1350
  %v2280 = vpop.f32.mrf.mxu0
  %v2281 = vadd.f32 0.0, %v2280
  %v2282 = vpop.f32.mrf.mxu0
  %v2283 = vpop.f32.mrf.mxu0
  %v2284 = vadd.f32 0.0, %v2283
  %v2285 = vpop.f32.mrf.mxu0
  %2286 = vmatprep.mubr.bf16.mxu0 %v1359
  %2287 = vmatmul.mubr.bf16.gmra.mxu0 %v1358
  %v2288 = vpop.f32.mrf.mxu0
  %v2289 = vadd.f32 0.0, %v2288
  %v2290 = vpop.f32.mrf.mxu0
  %v2291 = vpop.f32.mrf.mxu0
  %v2292 = vadd.f32 0.0, %v2291
  %v2293 = vpop.f32.mrf.mxu0
  %2294 = vmatprep.mubr.bf16.mxu0 %v1367
  %2295 = vmatmul.mubr.bf16.gmra.mxu0 %v1366
  %v2296 = vpop.f32.mrf.mxu0
  %v2297 = vadd.f32 0.0, %v2296
  %v2298 = vpop.f32.mrf.mxu0
  %v2299 = vpop.f32.mrf.mxu0
  %v2300 = vadd.f32 0.0, %v2299
  %v2301 = vpop.f32.mrf.mxu0
  %2302 = vmatprep.mubr.bf16.mxu0 %v1375
  %2303 = vmatmul.mubr.bf16.gmra.mxu0 %v1374
  %v2304 = vpop.f32.mrf.mxu0
  %v2305 = vadd.f32 0.0, %v2304
  %v2306 = vpop.f32.mrf.mxu0
  %v2307 = vpop.f32.mrf.mxu0
  %v2308 = vadd.f32 0.0, %v2307
  %v2309 = vpop.f32.mrf.mxu0
  %2310 = vmatprep.mubr.bf16.mxu0 %v1383
  %2311 = vmatmul.mubr.bf16.gmra.mxu0 %v1382
  %v2312 = vpop.f32.mrf.mxu0
  %v2313 = vadd.f32 0.0, %v2312
  %v2314 = vpop.f32.mrf.mxu0
  %v2315 = vpop.f32.mrf.mxu0
  %v2316 = vadd.f32 0.0, %v2315
  %v2317 = vpop.f32.mrf.mxu0
  %2318 = vmatprep.mubr.bf16.mxu0 %v1391
  %2319 = vmatmul.mubr.bf16.gmra.mxu0 %v1390
  %v2320 = vpop.f32.mrf.mxu0
  %v2321 = vadd.f32 0.0, %v2320
  %v2322 = vpop.f32.mrf.mxu0
  %v2323 = vpop.f32.mrf.mxu0
  %v2324 = vadd.f32 0.0, %v2323
  %v2325 = vpop.f32.mrf.mxu0
  %2326 = vmatprep.mubr.bf16.mxu0 %v1399
  %2327 = vmatmul.mubr.bf16.gmra.mxu0 %v1398
  %v2328 = vpop.f32.mrf.mxu0
  %v2329 = vadd.f32 0.0, %v2328
  %v2330 = vpop.f32.mrf.mxu0
  %v2331 = vpop.f32.mrf.mxu0
  %v2332 = vadd.f32 0.0, %v2331
  %v2333 = vpop.f32.mrf.mxu0
  %2334 = vmatprep.mubr.bf16.mxu0 %v1407
  %2335 = vmatmul.mubr.bf16.gmra.mxu0 %v1406
  %v2336 = vpop.f32.mrf.mxu0
  %v2337 = vadd.f32 0.0, %v2336
  %v2338 = vpop.f32.mrf.mxu0
  %v2339 = vpop.f32.mrf.mxu0
  %v2340 = vadd.f32 0.0, %v2339
  %v2341 = vpop.f32.mrf.mxu0
  %2342 = vmatprep.mubr.bf16.mxu0 %v1415
  %2343 = vmatmul.mubr.bf16.gmra.mxu0 %v1414
  %v2344 = vpop.f32.mrf.mxu0
  %v2345 = vadd.f32 0.0, %v2344
  %v2346 = vpop.f32.mrf.mxu0
  %v2347 = vpop.f32.mrf.mxu0
  %v2348 = vadd.f32 0.0, %v2347
  %v2349 = vpop.f32.mrf.mxu0
  %2350 = vmatprep.mubr.bf16.mxu0 %v1423
  %2351 = vmatmul.mubr.bf16.gmra.mxu0 %v1422
  %v2352 = vpop.f32.mrf.mxu0
  %v2353 = vadd.f32 0.0, %v2352
  %v2354 = vpop.f32.mrf.mxu0
  %v2355 = vpop.f32.mrf.mxu0
  %v2356 = vadd.f32 0.0, %v2355
  %v2357 = vpop.f32.mrf.mxu0
  %2358 = vmatprep.mubr.bf16.mxu0 %v1431
  %2359 = vmatmul.mubr.bf16.gmra.mxu0 %v1430
  %v2360 = vpop.f32.mrf.mxu0
  %v2361 = vadd.f32 0.0, %v2360
  %v2362 = vpop.f32.mrf.mxu0
  %v2363 = vpop.f32.mrf.mxu0
  %v2364 = vadd.f32 0.0, %v2363
  %v2365 = vpop.f32.mrf.mxu0
  %2366 = vmatprep.mubr.bf16.mxu0 %v1439
  %2367 = vmatmul.mubr.bf16.gmra.mxu0 %v1438
  %v2368 = vpop.f32.mrf.mxu0
  %v2369 = vadd.f32 0.0, %v2368
  %v2370 = vpop.f32.mrf.mxu0
  %v2371 = vpop.f32.mrf.mxu0
  %v2372 = vadd.f32 0.0, %v2371
  %v2373 = vpop.f32.mrf.mxu0
  %2374 = vmatprep.mubr.bf16.mxu0 %v1447
  %2375 = vmatmul.mubr.bf16.gmra.mxu0 %v1446
  %v2376 = vpop.f32.mrf.mxu0
  %v2377 = vadd.f32 0.0, %v2376
  %v2378 = vpop.f32.mrf.mxu0
  %v2379 = vpop.f32.mrf.mxu0
  %v2380 = vadd.f32 0.0, %v2379
  %v2381 = vpop.f32.mrf.mxu0
  %2382 = vmatprep.mubr.bf16.mxu0 %v1455
  %2383 = vmatmul.mubr.bf16.gmra.mxu0 %v1454
  %v2384 = vpop.f32.mrf.mxu0
  %v2385 = vadd.f32 0.0, %v2384
  %v2386 = vpop.f32.mrf.mxu0
  %v2387 = vpop.f32.mrf.mxu0
  %v2388 = vadd.f32 0.0, %v2387
  %v2389 = vpop.f32.mrf.mxu0
  %2390 = vmatprep.mubr.bf16.mxu0 %v1463
  %2391 = vmatmul.mubr.bf16.gmra.mxu0 %v1462
  %v2392 = vpop.f32.mrf.mxu0
  %v2393 = vadd.f32 0.0, %v2392
  %v2394 = vpop.f32.mrf.mxu0
  %v2395 = vpop.f32.mrf.mxu0
  %v2396 = vadd.f32 0.0, %v2395
  %v2397 = vpop.f32.mrf.mxu0
  %2398 = vmatprep.mubr.bf16.mxu0 %v1471
  %2399 = vmatmul.mubr.bf16.gmra.mxu0 %v1470
  %v2400 = vpop.f32.mrf.mxu0
  %v2401 = vadd.f32 0.0, %v2400
  %v2402 = vpop.f32.mrf.mxu0
  %v2403 = vpop.f32.mrf.mxu0
  %v2404 = vadd.f32 0.0, %v2403
  %v2405 = vpop.f32.mrf.mxu0
  %2406 = vmatprep.mubr.bf16.mxu0 %v1479
  %2407 = vmatmul.mubr.bf16.gmra.mxu0 %v1478
  %v2408 = vpop.f32.mrf.mxu0
  %v2409 = vadd.f32 0.0, %v2408
  %v2410 = vpop.f32.mrf.mxu0
  %v2411 = vpop.f32.mrf.mxu0
  %v2412 = vadd.f32 0.0, %v2411
  %v2413 = vpop.f32.mrf.mxu0
  %2414 = vmatprep.mubr.bf16.mxu0 %v1487
  %2415 = vmatmul.mubr.bf16.gmra.mxu0 %v1486
  %v2416 = vpop.f32.mrf.mxu0
  %v2417 = vadd.f32 0.0, %v2416
  %v2418 = vpop.f32.mrf.mxu0
  %v2419 = vpop.f32.mrf.mxu0
  %v2420 = vadd.f32 0.0, %v2419
  %v2421 = vpop.f32.mrf.mxu0
  %2422 = vmatprep.mubr.bf16.mxu0 %v1495
  %2423 = vmatmul.mubr.bf16.gmra.mxu0 %v1494
  %v2424 = vpop.f32.mrf.mxu0
  %v2425 = vadd.f32 0.0, %v2424
  %v2426 = vpop.f32.mrf.mxu0
  %v2427 = vpop.f32.mrf.mxu0
  %v2428 = vadd.f32 0.0, %v2427
  %v2429 = vpop.f32.mrf.mxu0
  %2430 = vmatprep.mubr.bf16.mxu0 %v1503
  %2431 = vmatmul.mubr.bf16.gmra.mxu0 %v1502
  %v2432 = vpop.f32.mrf.mxu0
  %v2433 = vadd.f32 0.0, %v2432
  %v2434 = vpop.f32.mrf.mxu0
  %v2435 = vpop.f32.mrf.mxu0
  %v2436 = vadd.f32 0.0, %v2435
  %v2437 = vpop.f32.mrf.mxu0
  %2438 = vmatprep.mubr.bf16.mxu0 %v1511
  %2439 = vmatmul.mubr.bf16.gmra.mxu0 %v1510
  %v2440 = vpop.f32.mrf.mxu0
  %v2441 = vadd.f32 0.0, %v2440
  %v2442 = vpop.f32.mrf.mxu0
  %v2443 = vpop.f32.mrf.mxu0
  %v2444 = vadd.f32 0.0, %v2443
  %v2445 = vpop.f32.mrf.mxu0
  %2446 = vmatprep.mubr.bf16.mxu0 %v1519
  %2447 = vmatmul.mubr.bf16.gmra.mxu0 %v1518
  %v2448 = vpop.f32.mrf.mxu0
  %v2449 = vadd.f32 0.0, %v2448
  %v2450 = vpop.f32.mrf.mxu0
  %v2451 = vpop.f32.mrf.mxu0
  %v2452 = vadd.f32 0.0, %v2451
  %v2453 = vpop.f32.mrf.mxu0
  %2454 = vmatprep.mubr.bf16.mxu0 %v1527
  %2455 = vmatmul.mubr.bf16.gmra.mxu0 %v1526
  %v2456 = vpop.f32.mrf.mxu0
  %v2457 = vadd.f32 0.0, %v2456
  %v2458 = vpop.f32.mrf.mxu0
  %v2459 = vpop.f32.mrf.mxu0
  %v2460 = vadd.f32 0.0, %v2459
  %v2461 = vpop.f32.mrf.mxu0
  %2462 = vmatprep.mubr.bf16.mxu0 %v1535
  %2463 = vmatmul.mubr.bf16.gmra.mxu0 %v1534
  %v2464 = vpop.f32.mrf.mxu0
  %v2465 = vadd.f32 0.0, %v2464
  %v2466 = vpop.f32.mrf.mxu0
  %v2467 = vpop.f32.mrf.mxu0
  %v2468 = vadd.f32 0.0, %v2467
  %v2469 = vpop.f32.mrf.mxu0
  %2470 = vmatprep.mubr.bf16.mxu0 %v1543
  %2471 = vmatmul.mubr.bf16.gmra.mxu0 %v1542
  %v2472 = vpop.f32.mrf.mxu0
  %v2473 = vadd.f32 0.0, %v2472
  %v2474 = vpop.f32.mrf.mxu0
  %v2475 = vpop.f32.mrf.mxu0
  %v2476 = vadd.f32 0.0, %v2475
  %v2477 = vpop.f32.mrf.mxu0
  %2478 = vmatprep.mubr.bf16.mxu0 %v1551
  %2479 = vmatmul.mubr.bf16.gmra.mxu0 %v1550
  %v2480 = vpop.f32.mrf.mxu0
  %v2481 = vadd.f32 0.0, %v2480
  %v2482 = vpop.f32.mrf.mxu0
  %v2483 = vpop.f32.mrf.mxu0
  %v2484 = vadd.f32 0.0, %v2483
  %v2485 = vpop.f32.mrf.mxu0
  %2486 = vdwg.mxu0
  %2487 = vmatprep.subr.bf16.mxu0 0
  %2488 = vmatpush1.bf16.msra.mxu0 %v2093
  %2489 = vmatprep.subr.bf16.mxu0 0
  %2490 = vmatpush1.bf16.msra.mxu0 %v2092
  %2491 = vmatprep.subr.bf16.mxu0 0
  %2492 = vmatpush1.bf16.msra.mxu0 %v2091
  %2493 = vmatprep.subr.bf16.mxu0 0
  %2494 = vmatpush1.bf16.msra.mxu0 %v2090
  %2495 = vmatprep.subr.bf16.mxu0 0
  %2496 = vmatpush1.bf16.msra.mxu0 %v2089
  %2497 = vmatprep.subr.bf16.mxu0 0
  %2498 = vmatpush1.bf16.msra.mxu0 %v2088
  %2499 = vmatprep.subr.bf16.mxu0 0
  %2500 = vmatpush1.bf16.msra.mxu0 %v2087
  %2501 = vmatprep.subr.bf16.mxu0 0
  %2502 = vmatpush1.bf16.msra.mxu0 %v2086
  %2503 = vmatprep.subr.bf16.mxu0 0
  %2504 = vmatpush2.bf16.msra.mxu0 %v2101
  %2505 = vmatprep.subr.bf16.mxu0 0
  %2506 = vmatpush2.bf16.msra.mxu0 %v2100
  %2507 = vmatprep.subr.bf16.mxu0 0
  %2508 = vmatpush2.bf16.msra.mxu0 %v2099
  %2509 = vmatprep.subr.bf16.mxu0 0
  %2510 = vmatpush2.bf16.msra.mxu0 %v2098
  %2511 = vmatprep.subr.bf16.mxu0 0
  %2512 = vmatpush2.bf16.msra.mxu0 %v2097
  %2513 = vmatprep.subr.bf16.mxu0 0
  %2514 = vmatpush2.bf16.msra.mxu0 %v2096
  %2515 = vmatprep.subr.bf16.mxu0 0
  %2516 = vmatpush2.bf16.msra.mxu0 %v2095
  %2517 = vmatprep.subr.bf16.mxu0 0
  %2518 = vmatpush2.bf16.msra.mxu0 %v2094
  %2519 = vmatprep.mubr.bf16.mxu0 %v1305
  %2520 = vmatmul.mubr.bf16.gmra.mxu0 %v1304
  %v2521 = vpop.f32.mrf.mxu0
  %v2522 = vadd.f32 %v2233, %v2521
  %v2523 = vpop.f32.mrf.mxu0
  %v2524 = vpop.f32.mrf.mxu0
  %v2525 = vadd.f32 %v2236, %v2524
  %v2526 = vpop.f32.mrf.mxu0
  %2527 = vmatprep.mubr.bf16.mxu0 %v1313
  %2528 = vmatmul.mubr.bf16.gmra.mxu0 %v1312
  %v2529 = vpop.f32.mrf.mxu0
  %v2530 = vadd.f32 %v2241, %v2529
  %v2531 = vpop.f32.mrf.mxu0
  %v2532 = vpop.f32.mrf.mxu0
  %v2533 = vadd.f32 %v2244, %v2532
  %v2534 = vpop.f32.mrf.mxu0
  %2535 = vmatprep.mubr.bf16.mxu0 %v1321
  %2536 = vmatmul.mubr.bf16.gmra.mxu0 %v1320
  %v2537 = vpop.f32.mrf.mxu0
  %v2538 = vadd.f32 %v2249, %v2537
  %v2539 = vpop.f32.mrf.mxu0
  %v2540 = vpop.f32.mrf.mxu0
  %v2541 = vadd.f32 %v2252, %v2540
  %v2542 = vpop.f32.mrf.mxu0
  %2543 = vmatprep.mubr.bf16.mxu0 %v1329
  %2544 = vmatmul.mubr.bf16.gmra.mxu0 %v1328
  %v2545 = vpop.f32.mrf.mxu0
  %v2546 = vadd.f32 %v2257, %v2545
  %v2547 = vpop.f32.mrf.mxu0
  %v2548 = vpop.f32.mrf.mxu0
  %v2549 = vadd.f32 %v2260, %v2548
  %v2550 = vpop.f32.mrf.mxu0
  %2551 = vmatprep.mubr.bf16.mxu0 %v1337
  %2552 = vmatmul.mubr.bf16.gmra.mxu0 %v1336
  %v2553 = vpop.f32.mrf.mxu0
  %v2554 = vadd.f32 %v2265, %v2553
  %v2555 = vpop.f32.mrf.mxu0
  %v2556 = vpop.f32.mrf.mxu0
  %v2557 = vadd.f32 %v2268, %v2556
  %v2558 = vpop.f32.mrf.mxu0
  %2559 = vmatprep.mubr.bf16.mxu0 %v1345
  %2560 = vmatmul.mubr.bf16.gmra.mxu0 %v1344
  %v2561 = vpop.f32.mrf.mxu0
  %v2562 = vadd.f32 %v2273, %v2561
  %v2563 = vpop.f32.mrf.mxu0
  %v2564 = vpop.f32.mrf.mxu0
  %v2565 = vadd.f32 %v2276, %v2564
  %v2566 = vpop.f32.mrf.mxu0
  %2567 = vmatprep.mubr.bf16.mxu0 %v1353
  %2568 = vmatmul.mubr.bf16.gmra.mxu0 %v1352
  %v2569 = vpop.f32.mrf.mxu0
  %v2570 = vadd.f32 %v2281, %v2569
  %v2571 = vpop.f32.mrf.mxu0
  %v2572 = vpop.f32.mrf.mxu0
  %v2573 = vadd.f32 %v2284, %v2572
  %v2574 = vpop.f32.mrf.mxu0
  %2575 = vmatprep.mubr.bf16.mxu0 %v1361
  %2576 = vmatmul.mubr.bf16.gmra.mxu0 %v1360
  %v2577 = vpop.f32.mrf.mxu0
  %v2578 = vadd.f32 %v2289, %v2577
  %v2579 = vpop.f32.mrf.mxu0
  %v2580 = vpop.f32.mrf.mxu0
  %v2581 = vadd.f32 %v2292, %v2580
  %v2582 = vpop.f32.mrf.mxu0
  %2583 = vmatprep.mubr.bf16.mxu0 %v1369
  %2584 = vmatmul.mubr.bf16.gmra.mxu0 %v1368
  %v2585 = vpop.f32.mrf.mxu0
  %v2586 = vadd.f32 %v2297, %v2585
  %v2587 = vpop.f32.mrf.mxu0
  %v2588 = vpop.f32.mrf.mxu0
  %v2589 = vadd.f32 %v2300, %v2588
  %v2590 = vpop.f32.mrf.mxu0
  %2591 = vmatprep.mubr.bf16.mxu0 %v1377
  %2592 = vmatmul.mubr.bf16.gmra.mxu0 %v1376
  %v2593 = vpop.f32.mrf.mxu0
  %v2594 = vadd.f32 %v2305, %v2593
  %v2595 = vpop.f32.mrf.mxu0
  %v2596 = vpop.f32.mrf.mxu0
  %v2597 = vadd.f32 %v2308, %v2596
  %v2598 = vpop.f32.mrf.mxu0
  %2599 = vmatprep.mubr.bf16.mxu0 %v1385
  %2600 = vmatmul.mubr.bf16.gmra.mxu0 %v1384
  %v2601 = vpop.f32.mrf.mxu0
  %v2602 = vadd.f32 %v2313, %v2601
  %v2603 = vpop.f32.mrf.mxu0
  %v2604 = vpop.f32.mrf.mxu0
  %v2605 = vadd.f32 %v2316, %v2604
  %v2606 = vpop.f32.mrf.mxu0
  %2607 = vmatprep.mubr.bf16.mxu0 %v1393
  %2608 = vmatmul.mubr.bf16.gmra.mxu0 %v1392
  %v2609 = vpop.f32.mrf.mxu0
  %v2610 = vadd.f32 %v2321, %v2609
  %v2611 = vpop.f32.mrf.mxu0
  %v2612 = vpop.f32.mrf.mxu0
  %v2613 = vadd.f32 %v2324, %v2612
  %v2614 = vpop.f32.mrf.mxu0
  %2615 = vmatprep.mubr.bf16.mxu0 %v1401
  %2616 = vmatmul.mubr.bf16.gmra.mxu0 %v1400
  %v2617 = vpop.f32.mrf.mxu0
  %v2618 = vadd.f32 %v2329, %v2617
  %v2619 = vpop.f32.mrf.mxu0
  %v2620 = vpop.f32.mrf.mxu0
  %v2621 = vadd.f32 %v2332, %v2620
  %v2622 = vpop.f32.mrf.mxu0
  %2623 = vmatprep.mubr.bf16.mxu0 %v1409
  %2624 = vmatmul.mubr.bf16.gmra.mxu0 %v1408
  %v2625 = vpop.f32.mrf.mxu0
  %v2626 = vadd.f32 %v2337, %v2625
  %v2627 = vpop.f32.mrf.mxu0
  %v2628 = vpop.f32.mrf.mxu0
  %v2629 = vadd.f32 %v2340, %v2628
  %v2630 = vpop.f32.mrf.mxu0
  %2631 = vmatprep.mubr.bf16.mxu0 %v1417
  %2632 = vmatmul.mubr.bf16.gmra.mxu0 %v1416
  %v2633 = vpop.f32.mrf.mxu0
  %v2634 = vadd.f32 %v2345, %v2633
  %v2635 = vpop.f32.mrf.mxu0
  %v2636 = vpop.f32.mrf.mxu0
  %v2637 = vadd.f32 %v2348, %v2636
  %v2638 = vpop.f32.mrf.mxu0
  %2639 = vmatprep.mubr.bf16.mxu0 %v1425
  %2640 = vmatmul.mubr.bf16.gmra.mxu0 %v1424
  %v2641 = vpop.f32.mrf.mxu0
  %v2642 = vadd.f32 %v2353, %v2641
  %v2643 = vpop.f32.mrf.mxu0
  %v2644 = vpop.f32.mrf.mxu0
  %v2645 = vadd.f32 %v2356, %v2644
  %v2646 = vpop.f32.mrf.mxu0
  %2647 = vmatprep.mubr.bf16.mxu0 %v1433
  %2648 = vmatmul.mubr.bf16.gmra.mxu0 %v1432
  %v2649 = vpop.f32.mrf.mxu0
  %v2650 = vadd.f32 %v2361, %v2649
  %v2651 = vpop.f32.mrf.mxu0
  %v2652 = vpop.f32.mrf.mxu0
  %v2653 = vadd.f32 %v2364, %v2652
  %v2654 = vpop.f32.mrf.mxu0
  %2655 = vmatprep.mubr.bf16.mxu0 %v1441
  %2656 = vmatmul.mubr.bf16.gmra.mxu0 %v1440
  %v2657 = vpop.f32.mrf.mxu0
  %v2658 = vadd.f32 %v2369, %v2657
  %v2659 = vpop.f32.mrf.mxu0
  %v2660 = vpop.f32.mrf.mxu0
  %v2661 = vadd.f32 %v2372, %v2660
  %v2662 = vpop.f32.mrf.mxu0
  %2663 = vmatprep.mubr.bf16.mxu0 %v1449
  %2664 = vmatmul.mubr.bf16.gmra.mxu0 %v1448
  %v2665 = vpop.f32.mrf.mxu0
  %v2666 = vadd.f32 %v2377, %v2665
  %v2667 = vpop.f32.mrf.mxu0
  %v2668 = vpop.f32.mrf.mxu0
  %v2669 = vadd.f32 %v2380, %v2668
  %v2670 = vpop.f32.mrf.mxu0
  %2671 = vmatprep.mubr.bf16.mxu0 %v1457
  %2672 = vmatmul.mubr.bf16.gmra.mxu0 %v1456
  %v2673 = vpop.f32.mrf.mxu0
  %v2674 = vadd.f32 %v2385, %v2673
  %v2675 = vpop.f32.mrf.mxu0
  %v2676 = vpop.f32.mrf.mxu0
  %v2677 = vadd.f32 %v2388, %v2676
  %v2678 = vpop.f32.mrf.mxu0
  %2679 = vmatprep.mubr.bf16.mxu0 %v1465
  %2680 = vmatmul.mubr.bf16.gmra.mxu0 %v1464
  %v2681 = vpop.f32.mrf.mxu0
  %v2682 = vadd.f32 %v2393, %v2681
  %v2683 = vpop.f32.mrf.mxu0
  %v2684 = vpop.f32.mrf.mxu0
  %v2685 = vadd.f32 %v2396, %v2684
  %v2686 = vpop.f32.mrf.mxu0
  %2687 = vmatprep.mubr.bf16.mxu0 %v1473
  %2688 = vmatmul.mubr.bf16.gmra.mxu0 %v1472
  %v2689 = vpop.f32.mrf.mxu0
  %v2690 = vadd.f32 %v2401, %v2689
  %v2691 = vpop.f32.mrf.mxu0
  %v2692 = vpop.f32.mrf.mxu0
  %v2693 = vadd.f32 %v2404, %v2692
  %v2694 = vpop.f32.mrf.mxu0
  %2695 = vmatprep.mubr.bf16.mxu0 %v1481
  %2696 = vmatmul.mubr.bf16.gmra.mxu0 %v1480
  %v2697 = vpop.f32.mrf.mxu0
  %v2698 = vadd.f32 %v2409, %v2697
  %v2699 = vpop.f32.mrf.mxu0
  %v2700 = vpop.f32.mrf.mxu0
  %v2701 = vadd.f32 %v2412, %v2700
  %v2702 = vpop.f32.mrf.mxu0
  %2703 = vmatprep.mubr.bf16.mxu0 %v1489
  %2704 = vmatmul.mubr.bf16.gmra.mxu0 %v1488
  %v2705 = vpop.f32.mrf.mxu0
  %v2706 = vadd.f32 %v2417, %v2705
  %v2707 = vpop.f32.mrf.mxu0
  %v2708 = vpop.f32.mrf.mxu0
  %v2709 = vadd.f32 %v2420, %v2708
  %v2710 = vpop.f32.mrf.mxu0
  %2711 = vmatprep.mubr.bf16.mxu0 %v1497
  %2712 = vmatmul.mubr.bf16.gmra.mxu0 %v1496
  %v2713 = vpop.f32.mrf.mxu0
  %v2714 = vadd.f32 %v2425, %v2713
  %v2715 = vpop.f32.mrf.mxu0
  %v2716 = vpop.f32.mrf.mxu0
  %v2717 = vadd.f32 %v2428, %v2716
  %v2718 = vpop.f32.mrf.mxu0
  %2719 = vmatprep.mubr.bf16.mxu0 %v1505
  %2720 = vmatmul.mubr.bf16.gmra.mxu0 %v1504
  %v2721 = vpop.f32.mrf.mxu0
  %v2722 = vadd.f32 %v2433, %v2721
  %v2723 = vpop.f32.mrf.mxu0
  %v2724 = vpop.f32.mrf.mxu0
  %v2725 = vadd.f32 %v2436, %v2724
  %v2726 = vpop.f32.mrf.mxu0
  %2727 = vmatprep.mubr.bf16.mxu0 %v1513
  %2728 = vmatmul.mubr.bf16.gmra.mxu0 %v1512
  %v2729 = vpop.f32.mrf.mxu0
  %v2730 = vadd.f32 %v2441, %v2729
  %v2731 = vpop.f32.mrf.mxu0
  %v2732 = vpop.f32.mrf.mxu0
  %v2733 = vadd.f32 %v2444, %v2732
  %v2734 = vpop.f32.mrf.mxu0
  %2735 = vmatprep.mubr.bf16.mxu0 %v1521
  %2736 = vmatmul.mubr.bf16.gmra.mxu0 %v1520
  %v2737 = vpop.f32.mrf.mxu0
  %v2738 = vadd.f32 %v2449, %v2737
  %v2739 = vpop.f32.mrf.mxu0
  %v2740 = vpop.f32.mrf.mxu0
  %v2741 = vadd.f32 %v2452, %v2740
  %v2742 = vpop.f32.mrf.mxu0
  %2743 = vmatprep.mubr.bf16.mxu0 %v1529
  %2744 = vmatmul.mubr.bf16.gmra.mxu0 %v1528
  %v2745 = vpop.f32.mrf.mxu0
  %v2746 = vadd.f32 %v2457, %v2745
  %v2747 = vpop.f32.mrf.mxu0
  %v2748 = vpop.f32.mrf.mxu0
  %v2749 = vadd.f32 %v2460, %v2748
  %v2750 = vpop.f32.mrf.mxu0
  %2751 = vmatprep.mubr.bf16.mxu0 %v1537
  %2752 = vmatmul.mubr.bf16.gmra.mxu0 %v1536
  %v2753 = vpop.f32.mrf.mxu0
  %v2754 = vadd.f32 %v2465, %v2753
  %v2755 = vpop.f32.mrf.mxu0
  %v2756 = vpop.f32.mrf.mxu0
  %v2757 = vadd.f32 %v2468, %v2756
  %v2758 = vpop.f32.mrf.mxu0
  %2759 = vmatprep.mubr.bf16.mxu0 %v1545
  %2760 = vmatmul.mubr.bf16.gmra.mxu0 %v1544
  %v2761 = vpop.f32.mrf.mxu0
  %v2762 = vadd.f32 %v2473, %v2761
  %v2763 = vpop.f32.mrf.mxu0
  %v2764 = vpop.f32.mrf.mxu0
  %v2765 = vadd.f32 %v2476, %v2764
  %v2766 = vpop.f32.mrf.mxu0
  %2767 = vmatprep.mubr.bf16.mxu0 %v1553
  %2768 = vmatmul.mubr.bf16.gmra.mxu0 %v1552
  %v2769 = vpop.f32.mrf.mxu0
  %v2770 = vadd.f32 %v2481, %v2769
  %v2771 = vpop.f32.mrf.mxu0
  %v2772 = vpop.f32.mrf.mxu0
  %v2773 = vadd.f32 %v2484, %v2772
  %v2774 = vpop.f32.mrf.mxu0
  %2775 = vdwg.mxu0
  %2776 = vmatprep.subr.bf16.mxu0 0
  %2777 = vmatpush1.bf16.msra.mxu0 %v2109
  %2778 = vmatprep.subr.bf16.mxu0 0
  %2779 = vmatpush1.bf16.msra.mxu0 %v2108
  %2780 = vmatprep.subr.bf16.mxu0 0
  %2781 = vmatpush1.bf16.msra.mxu0 %v2107
  %2782 = vmatprep.subr.bf16.mxu0 0
  %2783 = vmatpush1.bf16.msra.mxu0 %v2106
  %2784 = vmatprep.subr.bf16.mxu0 0
  %2785 = vmatpush1.bf16.msra.mxu0 %v2105
  %2786 = vmatprep.subr.bf16.mxu0 0
  %2787 = vmatpush1.bf16.msra.mxu0 %v2104
  %2788 = vmatprep.subr.bf16.mxu0 0
  %2789 = vmatpush1.bf16.msra.mxu0 %v2103
  %2790 = vmatprep.subr.bf16.mxu0 0
  %2791 = vmatpush1.bf16.msra.mxu0 %v2102
  %2792 = vmatprep.subr.bf16.mxu0 0
  %2793 = vmatpush2.bf16.msra.mxu0 %v2117
  %2794 = vmatprep.subr.bf16.mxu0 0
  %2795 = vmatpush2.bf16.msra.mxu0 %v2116
  %2796 = vmatprep.subr.bf16.mxu0 0
  %2797 = vmatpush2.bf16.msra.mxu0 %v2115
  %2798 = vmatprep.subr.bf16.mxu0 0
  %2799 = vmatpush2.bf16.msra.mxu0 %v2114
  %2800 = vmatprep.subr.bf16.mxu0 0
  %2801 = vmatpush2.bf16.msra.mxu0 %v2113
  %2802 = vmatprep.subr.bf16.mxu0 0
  %2803 = vmatpush2.bf16.msra.mxu0 %v2112
  %2804 = vmatprep.subr.bf16.mxu0 0
  %2805 = vmatpush2.bf16.msra.mxu0 %v2111
  %2806 = vmatprep.subr.bf16.mxu0 0
  %2807 = vmatpush2.bf16.msra.mxu0 %v2110
  %2808 = vmatprep.mubr.bf16.mxu0 %v1307
  %2809 = vmatmul.mubr.bf16.gmra.mxu0 %v1306
  %v2810 = vpop.f32.mrf.mxu0
  %v2811 = vadd.f32 %v2522, %v2810
  %v2812 = vpop.f32.mrf.mxu0
  %v2813 = vpop.f32.mrf.mxu0
  %v2814 = vadd.f32 %v2525, %v2813
  %v2815 = vpop.f32.mrf.mxu0
  %2816 = vmatprep.mubr.bf16.mxu0 %v1315
  %2817 = vmatmul.mubr.bf16.gmra.mxu0 %v1314
  %v2818 = vpop.f32.mrf.mxu0
  %v2819 = vadd.f32 %v2530, %v2818
  %v2820 = vpop.f32.mrf.mxu0
  %v2821 = vpop.f32.mrf.mxu0
  %v2822 = vadd.f32 %v2533, %v2821
  %v2823 = vpop.f32.mrf.mxu0
  %2824 = vmatprep.mubr.bf16.mxu0 %v1323
  %2825 = vmatmul.mubr.bf16.gmra.mxu0 %v1322
  %v2826 = vpop.f32.mrf.mxu0
  %v2827 = vadd.f32 %v2538, %v2826
  %v2828 = vpop.f32.mrf.mxu0
  %v2829 = vpop.f32.mrf.mxu0
  %v2830 = vadd.f32 %v2541, %v2829
  %v2831 = vpop.f32.mrf.mxu0
  %2832 = vmatprep.mubr.bf16.mxu0 %v1331
  %2833 = vmatmul.mubr.bf16.gmra.mxu0 %v1330
  %v2834 = vpop.f32.mrf.mxu0
  %v2835 = vadd.f32 %v2546, %v2834
  %v2836 = vpop.f32.mrf.mxu0
  %v2837 = vpop.f32.mrf.mxu0
  %v2838 = vadd.f32 %v2549, %v2837
  %v2839 = vpop.f32.mrf.mxu0
  %2840 = vmatprep.mubr.bf16.mxu0 %v1339
  %2841 = vmatmul.mubr.bf16.gmra.mxu0 %v1338
  %v2842 = vpop.f32.mrf.mxu0
  %v2843 = vadd.f32 %v2554, %v2842
  %v2844 = vpop.f32.mrf.mxu0
  %v2845 = vpop.f32.mrf.mxu0
  %v2846 = vadd.f32 %v2557, %v2845
  %v2847 = vpop.f32.mrf.mxu0
  %2848 = vmatprep.mubr.bf16.mxu0 %v1347
  %2849 = vmatmul.mubr.bf16.gmra.mxu0 %v1346
  %v2850 = vpop.f32.mrf.mxu0
  %v2851 = vadd.f32 %v2562, %v2850
  %v2852 = vpop.f32.mrf.mxu0
  %v2853 = vpop.f32.mrf.mxu0
  %v2854 = vadd.f32 %v2565, %v2853
  %v2855 = vpop.f32.mrf.mxu0
  %2856 = vmatprep.mubr.bf16.mxu0 %v1355
  %2857 = vmatmul.mubr.bf16.gmra.mxu0 %v1354
  %v2858 = vpop.f32.mrf.mxu0
  %v2859 = vadd.f32 %v2570, %v2858
  %v2860 = vpop.f32.mrf.mxu0
  %v2861 = vpop.f32.mrf.mxu0
  %v2862 = vadd.f32 %v2573, %v2861
  %v2863 = vpop.f32.mrf.mxu0
  %2864 = vmatprep.mubr.bf16.mxu0 %v1363
  %2865 = vmatmul.mubr.bf16.gmra.mxu0 %v1362
  %v2866 = vpop.f32.mrf.mxu0
  %v2867 = vadd.f32 %v2578, %v2866
  %v2868 = vpop.f32.mrf.mxu0
  %v2869 = vpop.f32.mrf.mxu0
  %v2870 = vadd.f32 %v2581, %v2869
  %v2871 = vpop.f32.mrf.mxu0
  %2872 = vmatprep.mubr.bf16.mxu0 %v1371
  %2873 = vmatmul.mubr.bf16.gmra.mxu0 %v1370
  %v2874 = vpop.f32.mrf.mxu0
  %v2875 = vadd.f32 %v2586, %v2874
  %v2876 = vpop.f32.mrf.mxu0
  %v2877 = vpop.f32.mrf.mxu0
  %v2878 = vadd.f32 %v2589, %v2877
  %v2879 = vpop.f32.mrf.mxu0
  %2880 = vmatprep.mubr.bf16.mxu0 %v1379
  %2881 = vmatmul.mubr.bf16.gmra.mxu0 %v1378
  %v2882 = vpop.f32.mrf.mxu0
  %v2883 = vadd.f32 %v2594, %v2882
  %v2884 = vpop.f32.mrf.mxu0
  %v2885 = vpop.f32.mrf.mxu0
  %v2886 = vadd.f32 %v2597, %v2885
  %v2887 = vpop.f32.mrf.mxu0
  %2888 = vmatprep.mubr.bf16.mxu0 %v1387
  %2889 = vmatmul.mubr.bf16.gmra.mxu0 %v1386
  %v2890 = vpop.f32.mrf.mxu0
  %v2891 = vadd.f32 %v2602, %v2890
  %v2892 = vpop.f32.mrf.mxu0
  %v2893 = vpop.f32.mrf.mxu0
  %v2894 = vadd.f32 %v2605, %v2893
  %v2895 = vpop.f32.mrf.mxu0
  %2896 = vmatprep.mubr.bf16.mxu0 %v1395
  %2897 = vmatmul.mubr.bf16.gmra.mxu0 %v1394
  %v2898 = vpop.f32.mrf.mxu0
  %v2899 = vadd.f32 %v2610, %v2898
  %v2900 = vpop.f32.mrf.mxu0
  %v2901 = vpop.f32.mrf.mxu0
  %v2902 = vadd.f32 %v2613, %v2901
  %v2903 = vpop.f32.mrf.mxu0
  %2904 = vmatprep.mubr.bf16.mxu0 %v1403
  %2905 = vmatmul.mubr.bf16.gmra.mxu0 %v1402
  %v2906 = vpop.f32.mrf.mxu0
  %v2907 = vadd.f32 %v2618, %v2906
  %v2908 = vpop.f32.mrf.mxu0
  %v2909 = vpop.f32.mrf.mxu0
  %v2910 = vadd.f32 %v2621, %v2909
  %v2911 = vpop.f32.mrf.mxu0
  %2912 = vmatprep.mubr.bf16.mxu0 %v1411
  %2913 = vmatmul.mubr.bf16.gmra.mxu0 %v1410
  %v2914 = vpop.f32.mrf.mxu0
  %v2915 = vadd.f32 %v2626, %v2914
  %v2916 = vpop.f32.mrf.mxu0
  %v2917 = vpop.f32.mrf.mxu0
  %v2918 = vadd.f32 %v2629, %v2917
  %v2919 = vpop.f32.mrf.mxu0
  %2920 = vmatprep.mubr.bf16.mxu0 %v1419
  %2921 = vmatmul.mubr.bf16.gmra.mxu0 %v1418
  %v2922 = vpop.f32.mrf.mxu0
  %v2923 = vadd.f32 %v2634, %v2922
  %v2924 = vpop.f32.mrf.mxu0
  %v2925 = vpop.f32.mrf.mxu0
  %v2926 = vadd.f32 %v2637, %v2925
  %v2927 = vpop.f32.mrf.mxu0
  %2928 = vmatprep.mubr.bf16.mxu0 %v1427
  %2929 = vmatmul.mubr.bf16.gmra.mxu0 %v1426
  %v2930 = vpop.f32.mrf.mxu0
  %v2931 = vadd.f32 %v2642, %v2930
  %v2932 = vpop.f32.mrf.mxu0
  %v2933 = vpop.f32.mrf.mxu0
  %v2934 = vadd.f32 %v2645, %v2933
  %v2935 = vpop.f32.mrf.mxu0
  %2936 = vmatprep.mubr.bf16.mxu0 %v1435
  %2937 = vmatmul.mubr.bf16.gmra.mxu0 %v1434
  %v2938 = vpop.f32.mrf.mxu0
  %v2939 = vadd.f32 %v2650, %v2938
  %v2940 = vpop.f32.mrf.mxu0
  %v2941 = vpop.f32.mrf.mxu0
  %v2942 = vadd.f32 %v2653, %v2941
  %v2943 = vpop.f32.mrf.mxu0
  %2944 = vmatprep.mubr.bf16.mxu0 %v1443
  %2945 = vmatmul.mubr.bf16.gmra.mxu0 %v1442
  %v2946 = vpop.f32.mrf.mxu0
  %v2947 = vadd.f32 %v2658, %v2946
  %v2948 = vpop.f32.mrf.mxu0
  %v2949 = vpop.f32.mrf.mxu0
  %v2950 = vadd.f32 %v2661, %v2949
  %v2951 = vpop.f32.mrf.mxu0
  %2952 = vmatprep.mubr.bf16.mxu0 %v1451
  %2953 = vmatmul.mubr.bf16.gmra.mxu0 %v1450
  %v2954 = vpop.f32.mrf.mxu0
  %v2955 = vadd.f32 %v2666, %v2954
  %v2956 = vpop.f32.mrf.mxu0
  %v2957 = vpop.f32.mrf.mxu0
  %v2958 = vadd.f32 %v2669, %v2957
  %v2959 = vpop.f32.mrf.mxu0
  %2960 = vmatprep.mubr.bf16.mxu0 %v1459
  %2961 = vmatmul.mubr.bf16.gmra.mxu0 %v1458
  %v2962 = vpop.f32.mrf.mxu0
  %v2963 = vadd.f32 %v2674, %v2962
  %v2964 = vpop.f32.mrf.mxu0
  %v2965 = vpop.f32.mrf.mxu0
  %v2966 = vadd.f32 %v2677, %v2965
  %v2967 = vpop.f32.mrf.mxu0
  %2968 = vmatprep.mubr.bf16.mxu0 %v1467
  %2969 = vmatmul.mubr.bf16.gmra.mxu0 %v1466
  %v2970 = vpop.f32.mrf.mxu0
  %v2971 = vadd.f32 %v2682, %v2970
  %v2972 = vpop.f32.mrf.mxu0
  %v2973 = vpop.f32.mrf.mxu0
  %v2974 = vadd.f32 %v2685, %v2973
  %v2975 = vpop.f32.mrf.mxu0
  %2976 = vmatprep.mubr.bf16.mxu0 %v1475
  %2977 = vmatmul.mubr.bf16.gmra.mxu0 %v1474
  %v2978 = vpop.f32.mrf.mxu0
  %v2979 = vadd.f32 %v2690, %v2978
  %v2980 = vpop.f32.mrf.mxu0
  %v2981 = vpop.f32.mrf.mxu0
  %v2982 = vadd.f32 %v2693, %v2981
  %v2983 = vpop.f32.mrf.mxu0
  %2984 = vmatprep.mubr.bf16.mxu0 %v1483
  %2985 = vmatmul.mubr.bf16.gmra.mxu0 %v1482
  %v2986 = vpop.f32.mrf.mxu0
  %v2987 = vadd.f32 %v2698, %v2986
  %v2988 = vpop.f32.mrf.mxu0
  %v2989 = vpop.f32.mrf.mxu0
  %v2990 = vadd.f32 %v2701, %v2989
  %v2991 = vpop.f32.mrf.mxu0
  %2992 = vmatprep.mubr.bf16.mxu0 %v1491
  %2993 = vmatmul.mubr.bf16.gmra.mxu0 %v1490
  %v2994 = vpop.f32.mrf.mxu0
  %v2995 = vadd.f32 %v2706, %v2994
  %v2996 = vpop.f32.mrf.mxu0
  %v2997 = vpop.f32.mrf.mxu0
  %v2998 = vadd.f32 %v2709, %v2997
  %v2999 = vpop.f32.mrf.mxu0
  %3000 = vmatprep.mubr.bf16.mxu0 %v1499
  %3001 = vmatmul.mubr.bf16.gmra.mxu0 %v1498
  %v3002 = vpop.f32.mrf.mxu0
  %v3003 = vadd.f32 %v2714, %v3002
  %v3004 = vpop.f32.mrf.mxu0
  %v3005 = vpop.f32.mrf.mxu0
  %v3006 = vadd.f32 %v2717, %v3005
  %v3007 = vpop.f32.mrf.mxu0
  %3008 = vmatprep.mubr.bf16.mxu0 %v1507
  %3009 = vmatmul.mubr.bf16.gmra.mxu0 %v1506
  %v3010 = vpop.f32.mrf.mxu0
  %v3011 = vadd.f32 %v2722, %v3010
  %v3012 = vpop.f32.mrf.mxu0
  %v3013 = vpop.f32.mrf.mxu0
  %v3014 = vadd.f32 %v2725, %v3013
  %v3015 = vpop.f32.mrf.mxu0
  %3016 = vmatprep.mubr.bf16.mxu0 %v1515
  %3017 = vmatmul.mubr.bf16.gmra.mxu0 %v1514
  %v3018 = vpop.f32.mrf.mxu0
  %v3019 = vadd.f32 %v2730, %v3018
  %v3020 = vpop.f32.mrf.mxu0
  %v3021 = vpop.f32.mrf.mxu0
  %v3022 = vadd.f32 %v2733, %v3021
  %v3023 = vpop.f32.mrf.mxu0
  %3024 = vmatprep.mubr.bf16.mxu0 %v1523
  %3025 = vmatmul.mubr.bf16.gmra.mxu0 %v1522
  %v3026 = vpop.f32.mrf.mxu0
  %v3027 = vadd.f32 %v2738, %v3026
  %v3028 = vpop.f32.mrf.mxu0
  %v3029 = vpop.f32.mrf.mxu0
  %v3030 = vadd.f32 %v2741, %v3029
  %v3031 = vpop.f32.mrf.mxu0
  %3032 = vmatprep.mubr.bf16.mxu0 %v1531
  %3033 = vmatmul.mubr.bf16.gmra.mxu0 %v1530
  %v3034 = vpop.f32.mrf.mxu0
  %v3035 = vadd.f32 %v2746, %v3034
  %v3036 = vpop.f32.mrf.mxu0
  %v3037 = vpop.f32.mrf.mxu0
  %v3038 = vadd.f32 %v2749, %v3037
  %v3039 = vpop.f32.mrf.mxu0
  %3040 = vmatprep.mubr.bf16.mxu0 %v1539
  %3041 = vmatmul.mubr.bf16.gmra.mxu0 %v1538
  %v3042 = vpop.f32.mrf.mxu0
  %v3043 = vadd.f32 %v2754, %v3042
  %v3044 = vpop.f32.mrf.mxu0
  %v3045 = vpop.f32.mrf.mxu0
  %v3046 = vadd.f32 %v2757, %v3045
  %v3047 = vpop.f32.mrf.mxu0
  %3048 = vmatprep.mubr.bf16.mxu0 %v1547
  %3049 = vmatmul.mubr.bf16.gmra.mxu0 %v1546
  %v3050 = vpop.f32.mrf.mxu0
  %v3051 = vadd.f32 %v2762, %v3050
  %v3052 = vpop.f32.mrf.mxu0
  %v3053 = vpop.f32.mrf.mxu0
  %v3054 = vadd.f32 %v2765, %v3053
  %v3055 = vpop.f32.mrf.mxu0
  %3056 = vmatprep.mubr.bf16.mxu0 %v1555
  %3057 = vmatmul.mubr.bf16.gmra.mxu0 %v1554
  %v3058 = vpop.f32.mrf.mxu0
  %v3059 = vadd.f32 %v2770, %v3058
  %v3060 = vpop.f32.mrf.mxu0
  %v3061 = vpop.f32.mrf.mxu0
  %v3062 = vadd.f32 %v2773, %v3061
  %v3063 = vpop.f32.mrf.mxu0
  %3064 = vdwg.mxu0
  %3065 = vmatprep.subr.bf16.mxu0 0
  %3066 = vmatpush1.bf16.msra.mxu0 %v2125
  %3067 = vmatprep.subr.bf16.mxu0 0
  %3068 = vmatpush1.bf16.msra.mxu0 %v2124
  %3069 = vmatprep.subr.bf16.mxu0 0
  %3070 = vmatpush1.bf16.msra.mxu0 %v2123
  %3071 = vmatprep.subr.bf16.mxu0 0
  %3072 = vmatpush1.bf16.msra.mxu0 %v2122
  %3073 = vmatprep.subr.bf16.mxu0 0
  %3074 = vmatpush1.bf16.msra.mxu0 %v2121
  %3075 = vmatprep.subr.bf16.mxu0 0
  %3076 = vmatpush1.bf16.msra.mxu0 %v2120
  %3077 = vmatprep.subr.bf16.mxu0 0
  %3078 = vmatpush1.bf16.msra.mxu0 %v2119
  %3079 = vmatprep.subr.bf16.mxu0 0
  %3080 = vmatpush1.bf16.msra.mxu0 %v2118
  %3081 = vmatprep.subr.bf16.mxu0 0
  %3082 = vmatpush2.bf16.msra.mxu0 %v2133
  %3083 = vmatprep.subr.bf16.mxu0 0
  %3084 = vmatpush2.bf16.msra.mxu0 %v2132
  %3085 = vmatprep.subr.bf16.mxu0 0
  %3086 = vmatpush2.bf16.msra.mxu0 %v2131
  %3087 = vmatprep.subr.bf16.mxu0 0
  %3088 = vmatpush2.bf16.msra.mxu0 %v2130
  %3089 = vmatprep.subr.bf16.mxu0 0
  %3090 = vmatpush2.bf16.msra.mxu0 %v2129
  %3091 = vmatprep.subr.bf16.mxu0 0
  %3092 = vmatpush2.bf16.msra.mxu0 %v2128
  %3093 = vmatprep.subr.bf16.mxu0 0
  %3094 = vmatpush2.bf16.msra.mxu0 %v2127
  %3095 = vmatprep.subr.bf16.mxu0 0
  %3096 = vmatpush2.bf16.msra.mxu0 %v2126
  %3097 = vmatprep.mubr.bf16.mxu0 %v1309
  %3098 = vmatmul.mubr.bf16.gmra.mxu0 %v1308
  %v3099 = vpop.f32.mrf.mxu0
  %v3100 = vadd.f32 %v2811, %v3099
  %v3101 = vpop.f32.mrf.mxu0
  %v3102 = vpop.f32.mrf.mxu0
  %v3103 = vadd.f32 %v2814, %v3102
  %v3104 = vpop.f32.mrf.mxu0
  %3105 = vmatprep.mubr.bf16.mxu0 %v1317
  %3106 = vmatmul.mubr.bf16.gmra.mxu0 %v1316
  %v3107 = vpop.f32.mrf.mxu0
  %v3108 = vadd.f32 %v2819, %v3107
  %v3109 = vpop.f32.mrf.mxu0
  %v3110 = vpop.f32.mrf.mxu0
  %v3111 = vadd.f32 %v2822, %v3110
  %v3112 = vpop.f32.mrf.mxu0
  %3113 = vmatprep.mubr.bf16.mxu0 %v1325
  %3114 = vmatmul.mubr.bf16.gmra.mxu0 %v1324
  %v3115 = vpop.f32.mrf.mxu0
  %v3116 = vadd.f32 %v2827, %v3115
  %v3117 = vpop.f32.mrf.mxu0
  %v3118 = vpop.f32.mrf.mxu0
  %v3119 = vadd.f32 %v2830, %v3118
  %v3120 = vpop.f32.mrf.mxu0
  %3121 = vmatprep.mubr.bf16.mxu0 %v1333
  %3122 = vmatmul.mubr.bf16.gmra.mxu0 %v1332
  %v3123 = vpop.f32.mrf.mxu0
  %v3124 = vadd.f32 %v2835, %v3123
  %v3125 = vpop.f32.mrf.mxu0
  %v3126 = vpop.f32.mrf.mxu0
  %v3127 = vadd.f32 %v2838, %v3126
  %v3128 = vpop.f32.mrf.mxu0
  %3129 = vmatprep.mubr.bf16.mxu0 %v1341
  %3130 = vmatmul.mubr.bf16.gmra.mxu0 %v1340
  %v3131 = vpop.f32.mrf.mxu0
  %v3132 = vadd.f32 %v2843, %v3131
  %v3133 = vpop.f32.mrf.mxu0
  %v3134 = vpop.f32.mrf.mxu0
  %v3135 = vadd.f32 %v2846, %v3134
  %v3136 = vpop.f32.mrf.mxu0
  %3137 = vmatprep.mubr.bf16.mxu0 %v1349
  %3138 = vmatmul.mubr.bf16.gmra.mxu0 %v1348
  %v3139 = vpop.f32.mrf.mxu0
  %v3140 = vadd.f32 %v2851, %v3139
  %v3141 = vpop.f32.mrf.mxu0
  %v3142 = vpop.f32.mrf.mxu0
  %v3143 = vadd.f32 %v2854, %v3142
  %v3144 = vpop.f32.mrf.mxu0
  %3145 = vmatprep.mubr.bf16.mxu0 %v1357
  %3146 = vmatmul.mubr.bf16.gmra.mxu0 %v1356
  %v3147 = vpop.f32.mrf.mxu0
  %v3148 = vadd.f32 %v2859, %v3147
  %v3149 = vpop.f32.mrf.mxu0
  %v3150 = vpop.f32.mrf.mxu0
  %v3151 = vadd.f32 %v2862, %v3150
  %v3152 = vpop.f32.mrf.mxu0
  %3153 = vmatprep.mubr.bf16.mxu0 %v1365
  %3154 = vmatmul.mubr.bf16.gmra.mxu0 %v1364
  %v3155 = vpop.f32.mrf.mxu0
  %v3156 = vadd.f32 %v2867, %v3155
  %v3157 = vpop.f32.mrf.mxu0
  %v3158 = vpop.f32.mrf.mxu0
  %v3159 = vadd.f32 %v2870, %v3158
  %v3160 = vpop.f32.mrf.mxu0
  %3161 = vmatprep.mubr.bf16.mxu0 %v1373
  %3162 = vmatmul.mubr.bf16.gmra.mxu0 %v1372
  %v3163 = vpop.f32.mrf.mxu0
  %v3164 = vadd.f32 %v2875, %v3163
  %v3165 = vpop.f32.mrf.mxu0
  %v3166 = vpop.f32.mrf.mxu0
  %v3167 = vadd.f32 %v2878, %v3166
  %v3168 = vpop.f32.mrf.mxu0
  %3169 = vmatprep.mubr.bf16.mxu0 %v1381
  %3170 = vmatmul.mubr.bf16.gmra.mxu0 %v1380
  %v3171 = vpop.f32.mrf.mxu0
  %v3172 = vadd.f32 %v2883, %v3171
  %v3173 = vpop.f32.mrf.mxu0
  %v3174 = vpop.f32.mrf.mxu0
  %v3175 = vadd.f32 %v2886, %v3174
  %v3176 = vpop.f32.mrf.mxu0
  %3177 = vmatprep.mubr.bf16.mxu0 %v1389
  %3178 = vmatmul.mubr.bf16.gmra.mxu0 %v1388
  %v3179 = vpop.f32.mrf.mxu0
  %v3180 = vadd.f32 %v2891, %v3179
  %v3181 = vpop.f32.mrf.mxu0
  %v3182 = vpop.f32.mrf.mxu0
  %v3183 = vadd.f32 %v2894, %v3182
  %v3184 = vpop.f32.mrf.mxu0
  %3185 = vmatprep.mubr.bf16.mxu0 %v1397
  %3186 = vmatmul.mubr.bf16.gmra.mxu0 %v1396
  %v3187 = vpop.f32.mrf.mxu0
  %v3188 = vadd.f32 %v2899, %v3187
  %v3189 = vpop.f32.mrf.mxu0
  %v3190 = vpop.f32.mrf.mxu0
  %v3191 = vadd.f32 %v2902, %v3190
  %v3192 = vpop.f32.mrf.mxu0
  %3193 = vmatprep.mubr.bf16.mxu0 %v1405
  %3194 = vmatmul.mubr.bf16.gmra.mxu0 %v1404
  %v3195 = vpop.f32.mrf.mxu0
  %v3196 = vadd.f32 %v2907, %v3195
  %v3197 = vpop.f32.mrf.mxu0
  %v3198 = vpop.f32.mrf.mxu0
  %v3199 = vadd.f32 %v2910, %v3198
  %v3200 = vpop.f32.mrf.mxu0
  %3201 = vmatprep.mubr.bf16.mxu0 %v1413
  %3202 = vmatmul.mubr.bf16.gmra.mxu0 %v1412
  %v3203 = vpop.f32.mrf.mxu0
  %v3204 = vadd.f32 %v2915, %v3203
  %v3205 = vpop.f32.mrf.mxu0
  %v3206 = vpop.f32.mrf.mxu0
  %v3207 = vadd.f32 %v2918, %v3206
  %v3208 = vpop.f32.mrf.mxu0
  %3209 = vmatprep.mubr.bf16.mxu0 %v1421
  %3210 = vmatmul.mubr.bf16.gmra.mxu0 %v1420
  %v3211 = vpop.f32.mrf.mxu0
  %v3212 = vadd.f32 %v2923, %v3211
  %v3213 = vpop.f32.mrf.mxu0
  %v3214 = vpop.f32.mrf.mxu0
  %v3215 = vadd.f32 %v2926, %v3214
  %v3216 = vpop.f32.mrf.mxu0
  %3217 = vmatprep.mubr.bf16.mxu0 %v1429
  %3218 = vmatmul.mubr.bf16.gmra.mxu0 %v1428
  %v3219 = vpop.f32.mrf.mxu0
  %v3220 = vadd.f32 %v2931, %v3219
  %v3221 = vpop.f32.mrf.mxu0
  %v3222 = vpop.f32.mrf.mxu0
  %v3223 = vadd.f32 %v2934, %v3222
  %v3224 = vpop.f32.mrf.mxu0
  %3225 = vmatprep.mubr.bf16.mxu0 %v1437
  %3226 = vmatmul.mubr.bf16.gmra.mxu0 %v1436
  %v3227 = vpop.f32.mrf.mxu0
  %v3228 = vadd.f32 %v2939, %v3227
  %v3229 = vpop.f32.mrf.mxu0
  %v3230 = vpop.f32.mrf.mxu0
  %v3231 = vadd.f32 %v2942, %v3230
  %v3232 = vpop.f32.mrf.mxu0
  %3233 = vmatprep.mubr.bf16.mxu0 %v1445
  %3234 = vmatmul.mubr.bf16.gmra.mxu0 %v1444
  %v3235 = vpop.f32.mrf.mxu0
  %v3236 = vadd.f32 %v2947, %v3235
  %v3237 = vpop.f32.mrf.mxu0
  %v3238 = vpop.f32.mrf.mxu0
  %v3239 = vadd.f32 %v2950, %v3238
  %v3240 = vpop.f32.mrf.mxu0
  %3241 = vmatprep.mubr.bf16.mxu0 %v1453
  %3242 = vmatmul.mubr.bf16.gmra.mxu0 %v1452
  %v3243 = vpop.f32.mrf.mxu0
  %v3244 = vadd.f32 %v2955, %v3243
  %v3245 = vpop.f32.mrf.mxu0
  %v3246 = vpop.f32.mrf.mxu0
  %v3247 = vadd.f32 %v2958, %v3246
  %v3248 = vpop.f32.mrf.mxu0
  %3249 = vmatprep.mubr.bf16.mxu0 %v1461
  %3250 = vmatmul.mubr.bf16.gmra.mxu0 %v1460
  %v3251 = vpop.f32.mrf.mxu0
  %v3252 = vadd.f32 %v2963, %v3251
  %v3253 = vpop.f32.mrf.mxu0
  %v3254 = vpop.f32.mrf.mxu0
  %v3255 = vadd.f32 %v2966, %v3254
  %v3256 = vpop.f32.mrf.mxu0
  %3257 = vmatprep.mubr.bf16.mxu0 %v1469
  %3258 = vmatmul.mubr.bf16.gmra.mxu0 %v1468
  %v3259 = vpop.f32.mrf.mxu0
  %v3260 = vadd.f32 %v2971, %v3259
  %v3261 = vpop.f32.mrf.mxu0
  %v3262 = vpop.f32.mrf.mxu0
  %v3263 = vadd.f32 %v2974, %v3262
  %v3264 = vpop.f32.mrf.mxu0
  %3265 = vmatprep.mubr.bf16.mxu0 %v1477
  %3266 = vmatmul.mubr.bf16.gmra.mxu0 %v1476
  %v3267 = vpop.f32.mrf.mxu0
  %v3268 = vadd.f32 %v2979, %v3267
  %v3269 = vpop.f32.mrf.mxu0
  %v3270 = vpop.f32.mrf.mxu0
  %v3271 = vadd.f32 %v2982, %v3270
  %v3272 = vpop.f32.mrf.mxu0
  %3273 = vmatprep.mubr.bf16.mxu0 %v1485
  %3274 = vmatmul.mubr.bf16.gmra.mxu0 %v1484
  %v3275 = vpop.f32.mrf.mxu0
  %v3276 = vadd.f32 %v2987, %v3275
  %v3277 = vpop.f32.mrf.mxu0
  %v3278 = vpop.f32.mrf.mxu0
  %v3279 = vadd.f32 %v2990, %v3278
  %v3280 = vpop.f32.mrf.mxu0
  %3281 = vmatprep.mubr.bf16.mxu0 %v1493
  %3282 = vmatmul.mubr.bf16.gmra.mxu0 %v1492
  %v3283 = vpop.f32.mrf.mxu0
  %v3284 = vadd.f32 %v2995, %v3283
  %v3285 = vpop.f32.mrf.mxu0
  %v3286 = vpop.f32.mrf.mxu0
  %v3287 = vadd.f32 %v2998, %v3286
  %v3288 = vpop.f32.mrf.mxu0
  %3289 = vmatprep.mubr.bf16.mxu0 %v1501
  %3290 = vmatmul.mubr.bf16.gmra.mxu0 %v1500
  %v3291 = vpop.f32.mrf.mxu0
  %v3292 = vadd.f32 %v3003, %v3291
  %v3293 = vpop.f32.mrf.mxu0
  %v3294 = vpop.f32.mrf.mxu0
  %v3295 = vadd.f32 %v3006, %v3294
  %v3296 = vpop.f32.mrf.mxu0
  %3297 = vmatprep.mubr.bf16.mxu0 %v1509
  %3298 = vmatmul.mubr.bf16.gmra.mxu0 %v1508
  %v3299 = vpop.f32.mrf.mxu0
  %v3300 = vadd.f32 %v3011, %v3299
  %v3301 = vpop.f32.mrf.mxu0
  %v3302 = vpop.f32.mrf.mxu0
  %v3303 = vadd.f32 %v3014, %v3302
  %v3304 = vpop.f32.mrf.mxu0
  %3305 = vmatprep.mubr.bf16.mxu0 %v1517
  %3306 = vmatmul.mubr.bf16.gmra.mxu0 %v1516
  %v3307 = vpop.f32.mrf.mxu0
  %v3308 = vadd.f32 %v3019, %v3307
  %v3309 = vpop.f32.mrf.mxu0
  %v3310 = vpop.f32.mrf.mxu0
  %v3311 = vadd.f32 %v3022, %v3310
  %v3312 = vpop.f32.mrf.mxu0
  %3313 = vmatprep.mubr.bf16.mxu0 %v1525
  %3314 = vmatmul.mubr.bf16.gmra.mxu0 %v1524
  %v3315 = vpop.f32.mrf.mxu0
  %v3316 = vadd.f32 %v3027, %v3315
  %v3317 = vpop.f32.mrf.mxu0
  %v3318 = vpop.f32.mrf.mxu0
  %v3319 = vadd.f32 %v3030, %v3318
  %v3320 = vpop.f32.mrf.mxu0
  %3321 = vmatprep.mubr.bf16.mxu0 %v1533
  %3322 = vmatmul.mubr.bf16.gmra.mxu0 %v1532
  %v3323 = vpop.f32.mrf.mxu0
  %v3324 = vadd.f32 %v3035, %v3323
  %v3325 = vpop.f32.mrf.mxu0
  %v3326 = vpop.f32.mrf.mxu0
  %v3327 = vadd.f32 %v3038, %v3326
  %v3328 = vpop.f32.mrf.mxu0
  %3329 = vmatprep.mubr.bf16.mxu0 %v1541
  %3330 = vmatmul.mubr.bf16.gmra.mxu0 %v1540
  %v3331 = vpop.f32.mrf.mxu0
  %v3332 = vadd.f32 %v3043, %v3331
  %v3333 = vpop.f32.mrf.mxu0
  %v3334 = vpop.f32.mrf.mxu0
  %v3335 = vadd.f32 %v3046, %v3334
  %v3336 = vpop.f32.mrf.mxu0
  %3337 = vmatprep.mubr.bf16.mxu0 %v1549
  %3338 = vmatmul.mubr.bf16.gmra.mxu0 %v1548
  %v3339 = vpop.f32.mrf.mxu0
  %v3340 = vadd.f32 %v3051, %v3339
  %v3341 = vpop.f32.mrf.mxu0
  %v3342 = vpop.f32.mrf.mxu0
  %v3343 = vadd.f32 %v3054, %v3342
  %v3344 = vpop.f32.mrf.mxu0
  %3345 = vmatprep.mubr.bf16.mxu0 %v1557
  %3346 = vmatmul.mubr.bf16.gmra.mxu0 %v1556
  %v3347 = vpop.f32.mrf.mxu0
  %v3348 = vadd.f32 %v3059, %v3347
  %v3349 = vpop.f32.mrf.mxu0
  %v3350 = vpop.f32.mrf.mxu0
  %v3351 = vadd.f32 %v3062, %v3350
  %v3352 = vpop.f32.mrf.mxu0
  %3353 = vdwg.mxu0
  %v3354 = vadd.f32 %v86, %v3100
  %v3355 = vadd.f32 %v87, %v3103
  %v3356 = vadd.f32 %v88, %v3108
  %v3357 = vadd.f32 %v89, %v3111
  %v3358 = vadd.f32 %v90, %v3116
  %v3359 = vadd.f32 %v91, %v3119
  %v3360 = vadd.f32 %v92, %v3124
  %v3361 = vadd.f32 %v93, %v3127
  %v3362 = vadd.f32 %v94, %v3132
  %v3363 = vadd.f32 %v95, %v3135
  %v3364 = vadd.f32 %v96, %v3140
  %v3365 = vadd.f32 %v97, %v3143
  %v3366 = vadd.f32 %v98, %v3148
  %v3367 = vadd.f32 %v99, %v3151
  %v3368 = vadd.f32 %v100, %v3156
  %v3369 = vadd.f32 %v101, %v3159
  %v3370 = vadd.f32 %v102, %v3164
  %v3371 = vadd.f32 %v103, %v3167
  %v3372 = vadd.f32 %v104, %v3172
  %v3373 = vadd.f32 %v105, %v3175
  %v3374 = vadd.f32 %v106, %v3180
  %v3375 = vadd.f32 %v107, %v3183
  %v3376 = vadd.f32 %v108, %v3188
  %v3377 = vadd.f32 %v109, %v3191
  %v3378 = vadd.f32 %v110, %v3196
  %v3379 = vadd.f32 %v111, %v3199
  %v3380 = vadd.f32 %v112, %v3204
  %v3381 = vadd.f32 %v113, %v3207
  %v3382 = vadd.f32 %v114, %v3212
  %v3383 = vadd.f32 %v115, %v3215
  %v3384 = vadd.f32 %v116, %v3220
  %v3385 = vadd.f32 %v117, %v3223
  %v3386 = vadd.f32 %v118, %v3228
  %v3387 = vadd.f32 %v119, %v3231
  %v3388 = vadd.f32 %v120, %v3236
  %v3389 = vadd.f32 %v121, %v3239
  %v3390 = vadd.f32 %v122, %v3244
  %v3391 = vadd.f32 %v123, %v3247
  %v3392 = vadd.f32 %v124, %v3252
  %v3393 = vadd.f32 %v125, %v3255
  %v3394 = vadd.f32 %v126, %v3260
  %v3395 = vadd.f32 %v127, %v3263
  %v3396 = vadd.f32 %v128, %v3268
  %v3397 = vadd.f32 %v129, %v3271
  %v3398 = vadd.f32 %v130, %v3276
  %v3399 = vadd.f32 %v131, %v3279
  %v3400 = vadd.f32 %v132, %v3284
  %v3401 = vadd.f32 %v133, %v3287
  %v3402 = vadd.f32 %v134, %v3292
  %v3403 = vadd.f32 %v135, %v3295
  %v3404 = vadd.f32 %v136, %v3300
  %v3405 = vadd.f32 %v137, %v3303
  %v3406 = vadd.f32 %v138, %v3308
  %v3407 = vadd.f32 %v139, %v3311
  %v3408 = vadd.f32 %v140, %v3316
  %v3409 = vadd.f32 %v141, %v3319
  %v3410 = vadd.f32 %v142, %v3324
  %v3411 = vadd.f32 %v143, %v3327
  %v3412 = vadd.f32 %v144, %v3332
  %v3413 = vadd.f32 %v145, %v3335
  %v3414 = vadd.f32 %v146, %v3340
  %v3415 = vadd.f32 %v147, %v3343
  %v3416 = vadd.f32 %v148, %v3348
  %v3417 = vadd.f32 %v149, %v3351
  %3418 = vst [vmem:[%s4] sm:$0xff] %v3354
  %3419 = vst [vmem:[%s4 + $0x8] sm:$0xff] %v3355
  %3420 = vst [vmem:[%s4 + $0x10] sm:$0xff] %v3356
  %3421 = vst [vmem:[%s4 + $0x18] sm:$0xff] %v3357
  %3422 = vst [vmem:[%s4 + $0x20] sm:$0xff] %v3358
  %3423 = vst [vmem:[%s4 + $0x28] sm:$0xff] %v3359
  %3424 = vst [vmem:[%s4 + $0x30] sm:$0xff] %v3360
  %3425 = vst [vmem:[%s4 + $0x38] sm:$0xff] %v3361
  %3426 = vst [vmem:[%s4 + $0x40] sm:$0xff] %v3362
  %3427 = vst [vmem:[%s4 + $0x48] sm:$0xff] %v3363
  %3428 = vst [vmem:[%s4 + $0x50] sm:$0xff] %v3364
  %3429 = vst [vmem:[%s4 + $0x58] sm:$0xff] %v3365
  %3430 = vst [vmem:[%s4 + $0x60] sm:$0xff] %v3366
  %3431 = vst [vmem:[%s4 + $0x68] sm:$0xff] %v3367
  %3432 = vst [vmem:[%s4 + $0x70] sm:$0xff] %v3368
  %3433 = vst [vmem:[%s4 + $0x78] sm:$0xff] %v3369
  %3434 = vst [vmem:[%s4 + $0x80] sm:$0xff] %v3370
  %3435 = vst [vmem:[%s4 + $0x88] sm:$0xff] %v3371
  %3436 = vst [vmem:[%s4 + $0x90] sm:$0xff] %v3372
  %3437 = vst [vmem:[%s4 + $0x98] sm:$0xff] %v3373
  %3438 = vst [vmem:[%s4 + $0xa0] sm:$0xff] %v3374
  %3439 = vst [vmem:[%s4 + $0xa8] sm:$0xff] %v3375
  %3440 = vst [vmem:[%s4 + $0xb0] sm:$0xff] %v3376
  %3441 = vst [vmem:[%s4 + $0xb8] sm:$0xff] %v3377
  %3442 = vst [vmem:[%s4 + $0xc0] sm:$0xff] %v3378
  %3443 = vst [vmem:[%s4 + $0xc8] sm:$0xff] %v3379
  %3444 = vst [vmem:[%s4 + $0xd0] sm:$0xff] %v3380
  %3445 = vst [vmem:[%s4 + $0xd8] sm:$0xff] %v3381
  %3446 = vst [vmem:[%s4 + $0xe0] sm:$0xff] %v3382
  %3447 = vst [vmem:[%s4 + $0xe8] sm:$0xff] %v3383
  %3448 = vst [vmem:[%s4 + $0xf0] sm:$0xff] %v3384
  %3449 = vst [vmem:[%s4 + $0xf8] sm:$0xff] %v3385
  %3450 = vst [vmem:[%s4 + $0x100] sm:$0xff] %v3386
  %3451 = vst [vmem:[%s4 + $0x108] sm:$0xff] %v3387
  %3452 = vst [vmem:[%s4 + $0x110] sm:$0xff] %v3388
  %3453 = vst [vmem:[%s4 + $0x118] sm:$0xff] %v3389
  %3454 = vst [vmem:[%s4 + $0x120] sm:$0xff] %v3390
  %3455 = vst [vmem:[%s4 + $0x128] sm:$0xff] %v3391
  %3456 = vst [vmem:[%s4 + $0x130] sm:$0xff] %v3392
  %3457 = vst [vmem:[%s4 + $0x138] sm:$0xff] %v3393
  %3458 = vst [vmem:[%s4 + $0x140] sm:$0xff] %v3394
  %3459 = vst [vmem:[%s4 + $0x148] sm:$0xff] %v3395
  %3460 = vst [vmem:[%s4 + $0x150] sm:$0xff] %v3396
  %3461 = vst [vmem:[%s4 + $0x158] sm:$0xff] %v3397
  %3462 = vst [vmem:[%s4 + $0x160] sm:$0xff] %v3398
  %3463 = vst [vmem:[%s4 + $0x168] sm:$0xff] %v3399
  %3464 = vst [vmem:[%s4 + $0x170] sm:$0xff] %v3400
  %3465 = vst [vmem:[%s4 + $0x178] sm:$0xff] %v3401
  %3466 = vst [vmem:[%s4 + $0x180] sm:$0xff] %v3402
  %3467 = vst [vmem:[%s4 + $0x188] sm:$0xff] %v3403
  %3468 = vst [vmem:[%s4 + $0x190] sm:$0xff] %v3404
  %3469 = vst [vmem:[%s4 + $0x198] sm:$0xff] %v3405
  %3470 = vst [vmem:[%s4 + $0x1a0] sm:$0xff] %v3406
  %3471 = vst [vmem:[%s4 + $0x1a8] sm:$0xff] %v3407
  %3472 = vst [vmem:[%s4 + $0x1b0] sm:$0xff] %v3408
  %3473 = vst [vmem:[%s4 + $0x1b8] sm:$0xff] %v3409
  %3474 = vst [vmem:[%s4 + $0x1c0] sm:$0xff] %v3410
  %3475 = vst [vmem:[%s4 + $0x1c8] sm:$0xff] %v3411
  %3476 = vst [vmem:[%s4 + $0x1d0] sm:$0xff] %v3412
  %3477 = vst [vmem:[%s4 + $0x1d8] sm:$0xff] %v3413
  %3478 = vst [vmem:[%s4 + $0x1e0] sm:$0xff] %v3414
  %3479 = vst [vmem:[%s4 + $0x1e8] sm:$0xff] %v3415
  %3480 = vst [vmem:[%s4 + $0x1f0] sm:$0xff] %v3416
  %3481 = vst [vmem:[%s4 + $0x1f8] sm:$0xff] %v3417
  // Predicated region
  $region22: #{discriminator_forward.6} parent=0 // pred_check
    %p3482 = pneg %p18
  $region23: #{discriminator_forward.6} parent=0 // pred_check_branch
    %3484 = sbr.rel (%p3482) target = $region25
  $region24: #{discriminator_forward.6} parent=0 // pred_region
    %v3485 = vld [vmem:[%s4] sm:$0xff]
    %v3486 = vld [vmem:[%s4 + $0x8] sm:$0xff]
    %v3487 = vld [vmem:[%s4 + $0x10] sm:$0xff]
    %v3488 = vld [vmem:[%s4 + $0x18] sm:$0xff]
    %v3489 = vld [vmem:[%s4 + $0x20] sm:$0xff]
    %v3490 = vld [vmem:[%s4 + $0x28] sm:$0xff]
    %v3491 = vld [vmem:[%s4 + $0x30] sm:$0xff]
    %v3492 = vld [vmem:[%s4 + $0x38] sm:$0xff]
    %v3493 = vld [vmem:[%s4 + $0x40] sm:$0xff]
    %v3494 = vld [vmem:[%s4 + $0x48] sm:$0xff]
    %v3495 = vld [vmem:[%s4 + $0x50] sm:$0xff]
    %v3496 = vld [vmem:[%s4 + $0x58] sm:$0xff]
    %v3497 = vld [vmem:[%s4 + $0x60] sm:$0xff]
    %v3498 = vld [vmem:[%s4 + $0x68] sm:$0xff]
    %v3499 = vld [vmem:[%s4 + $0x70] sm:$0xff]
    %v3500 = vld [vmem:[%s4 + $0x78] sm:$0xff]
    %v3501 = vld [vmem:[%s4 + $0x80] sm:$0xff]
    %v3502 = vld [vmem:[%s4 + $0x88] sm:$0xff]
    %v3503 = vld [vmem:[%s4 + $0x90] sm:$0xff]
    %v3504 = vld [vmem:[%s4 + $0x98] sm:$0xff]
    %v3505 = vld [vmem:[%s4 + $0xa0] sm:$0xff]
    %v3506 = vld [vmem:[%s4 + $0xa8] sm:$0xff]
    %v3507 = vld [vmem:[%s4 + $0xb0] sm:$0xff]
    %v3508 = vld [vmem:[%s4 + $0xb8] sm:$0xff]
    %v3509 = vld [vmem:[%s4 + $0xc0] sm:$0xff]
    %v3510 = vld [vmem:[%s4 + $0xc8] sm:$0xff]
    %v3511 = vld [vmem:[%s4 + $0xd0] sm:$0xff]
    %v3512 = vld [vmem:[%s4 + $0xd8] sm:$0xff]
    %v3513 = vld [vmem:[%s4 + $0xe0] sm:$0xff]
    %v3514 = vld [vmem:[%s4 + $0xe8] sm:$0xff]
    %v3515 = vld [vmem:[%s4 + $0xf0] sm:$0xff]
    %v3516 = vld [vmem:[%s4 + $0xf8] sm:$0xff]
    %v3517 = vld [vmem:[%s4 + $0x100] sm:$0xff]
    %v3518 = vld [vmem:[%s4 + $0x108] sm:$0xff]
    %v3519 = vld [vmem:[%s4 + $0x110] sm:$0xff]
    %v3520 = vld [vmem:[%s4 + $0x118] sm:$0xff]
    %v3521 = vld [vmem:[%s4 + $0x120] sm:$0xff]
    %v3522 = vld [vmem:[%s4 + $0x128] sm:$0xff]
    %v3523 = vld [vmem:[%s4 + $0x130] sm:$0xff]
    %v3524 = vld [vmem:[%s4 + $0x138] sm:$0xff]
    %v3525 = vld [vmem:[%s4 + $0x140] sm:$0xff]
    %v3526 = vld [vmem:[%s4 + $0x148] sm:$0xff]
    %v3527 = vld [vmem:[%s4 + $0x150] sm:$0xff]
    %v3528 = vld [vmem:[%s4 + $0x158] sm:$0xff]
    %v3529 = vld [vmem:[%s4 + $0x160] sm:$0xff]
    %v3530 = vld [vmem:[%s4 + $0x168] sm:$0xff]
    %v3531 = vld [vmem:[%s4 + $0x170] sm:$0xff]
    %v3532 = vld [vmem:[%s4 + $0x178] sm:$0xff]
    %v3533 = vld [vmem:[%s4 + $0x180] sm:$0xff]
    %v3534 = vld [vmem:[%s4 + $0x188] sm:$0xff]
    %v3535 = vld [vmem:[%s4 + $0x190] sm:$0xff]
    %v3536 = vld [vmem:[%s4 + $0x198] sm:$0xff]
    %v3537 = vld [vmem:[%s4 + $0x1a0] sm:$0xff]
    %v3538 = vld [vmem:[%s4 + $0x1a8] sm:$0xff]
    %v3539 = vld [vmem:[%s4 + $0x1b0] sm:$0xff]
    %v3540 = vld [vmem:[%s4 + $0x1b8] sm:$0xff]
    %v3541 = vld [vmem:[%s4 + $0x1c0] sm:$0xff]
    %v3542 = vld [vmem:[%s4 + $0x1c8] sm:$0xff]
    %v3543 = vld [vmem:[%s4 + $0x1d0] sm:$0xff]
    %v3544 = vld [vmem:[%s4 + $0x1d8] sm:$0xff]
    %v3545 = vld [vmem:[%s4 + $0x1e0] sm:$0xff]
    %v3546 = vld [vmem:[%s4 + $0x1e8] sm:$0xff]
    %v3547 = vld [vmem:[%s4 + $0x1f0] sm:$0xff]
    %v3548 = vld [vmem:[%s4 + $0x1f8] sm:$0xff]
    %v3549 = vadd.f32 %v3485, %v3486
    %v3550 = vadd.f32 %v3549, %v3487
    %v3551 = vadd.f32 %v3550, %v3488
    %v3552 = vadd.f32 %v3551, %v3489
    %v3553 = vadd.f32 %v3552, %v3490
    %v3554 = vadd.f32 %v3553, %v3491
    %v3555 = vadd.f32 %v3554, %v3492
    %v3556 = vadd.f32 %v3555, %v3493
    %v3557 = vadd.f32 %v3556, %v3494
    %v3558 = vadd.f32 %v3557, %v3495
    %v3559 = vadd.f32 %v3558, %v3496
    %v3560 = vadd.f32 %v3559, %v3497
    %v3561 = vadd.f32 %v3560, %v3498
    %v3562 = vadd.f32 %v3561, %v3499
    %v3563 = vadd.f32 %v3562, %v3500
    %v3564 = vadd.f32 %v3563, %v3501
    %v3565 = vadd.f32 %v3564, %v3502
    %v3566 = vadd.f32 %v3565, %v3503
    %v3567 = vadd.f32 %v3566, %v3504
    %v3568 = vadd.f32 %v3567, %v3505
    %v3569 = vadd.f32 %v3568, %v3506
    %v3570 = vadd.f32 %v3569, %v3507
    %v3571 = vadd.f32 %v3570, %v3508
    %v3572 = vadd.f32 %v3571, %v3509
    %v3573 = vadd.f32 %v3572, %v3510
    %v3574 = vadd.f32 %v3573, %v3511
    %v3575 = vadd.f32 %v3574, %v3512
    %v3576 = vadd.f32 %v3575, %v3513
    %v3577 = vadd.f32 %v3576, %v3514
    %v3578 = vadd.f32 %v3577, %v3515
    %v3579 = vadd.f32 %v3578, %v3516
    %v3580 = vadd.f32 %v3579, %v3517
    %v3581 = vadd.f32 %v3580, %v3518
    %v3582 = vadd.f32 %v3581, %v3519
    %v3583 = vadd.f32 %v3582, %v3520
    %v3584 = vadd.f32 %v3583, %v3521
    %v3585 = vadd.f32 %v3584, %v3522
    %v3586 = vadd.f32 %v3585, %v3523
    %v3587 = vadd.f32 %v3586, %v3524
    %v3588 = vadd.f32 %v3587, %v3525
    %v3589 = vadd.f32 %v3588, %v3526
    %v3590 = vadd.f32 %v3589, %v3527
    %v3591 = vadd.f32 %v3590, %v3528
    %v3592 = vadd.f32 %v3591, %v3529
    %v3593 = vadd.f32 %v3592, %v3530
    %v3594 = vadd.f32 %v3593, %v3531
    %v3595 = vadd.f32 %v3594, %v3532
    %v3596 = vadd.f32 %v3595, %v3533
    %v3597 = vadd.f32 %v3596, %v3534
    %v3598 = vadd.f32 %v3597, %v3535
    %v3599 = vadd.f32 %v3598, %v3536
    %v3600 = vadd.f32 %v3599, %v3537
    %v3601 = vadd.f32 %v3600, %v3538
    %v3602 = vadd.f32 %v3601, %v3539
    %v3603 = vadd.f32 %v3602, %v3540
    %v3604 = vadd.f32 %v3603, %v3541
    %v3605 = vadd.f32 %v3604, %v3542
    %v3606 = vadd.f32 %v3605, %v3543
    %v3607 = vadd.f32 %v3606, %v3544
    %v3608 = vadd.f32 %v3607, %v3545
    %v3609 = vadd.f32 %v3608, %v3546
    %v3610 = vadd.f32 %v3609, %v3547
    %v3611 = vadd.f32 %v3610, %v3548
    %v3612 = vrot.slane %v3611, 4
    %v3613 = vadd.f32 %v3611, %v3612
    %v3614 = vrot.slane %v3613, 2
    %v3615 = vadd.f32 %v3613, %v3614
    %v3616 = vrot.slane %v3615, 1
    %v3617 = vadd.f32 %v3615, %v3616
    %v3618 = vmul.f32 %v3617, 0.001953125
    %v3619 = vmul.f32 %v3485, %v3485
    %v3620 = vmul.f32 %v3486, %v3486
    %v3621 = vmul.f32 %v3487, %v3487
    %v3622 = vmul.f32 %v3488, %v3488
    %v3623 = vmul.f32 %v3489, %v3489
    %v3624 = vmul.f32 %v3490, %v3490
    %v3625 = vmul.f32 %v3491, %v3491
    %v3626 = vmul.f32 %v3492, %v3492
    %v3627 = vmul.f32 %v3493, %v3493
    %v3628 = vmul.f32 %v3494, %v3494
    %v3629 = vmul.f32 %v3495, %v3495
    %v3630 = vmul.f32 %v3496, %v3496
    %v3631 = vmul.f32 %v3497, %v3497
    %v3632 = vmul.f32 %v3498, %v3498
    %v3633 = vmul.f32 %v3499, %v3499
    %v3634 = vmul.f32 %v3500, %v3500
    %v3635 = vmul.f32 %v3501, %v3501
    %v3636 = vmul.f32 %v3502, %v3502
    %v3637 = vmul.f32 %v3503, %v3503
    %v3638 = vmul.f32 %v3504, %v3504
    %v3639 = vmul.f32 %v3505, %v3505
    %v3640 = vmul.f32 %v3506, %v3506
    %v3641 = vmul.f32 %v3507, %v3507
    %v3642 = vmul.f32 %v3508, %v3508
    %v3643 = vmul.f32 %v3509, %v3509
    %v3644 = vmul.f32 %v3510, %v3510
    %v3645 = vmul.f32 %v3511, %v3511
    %v3646 = vmul.f32 %v3512, %v3512
    %v3647 = vmul.f32 %v3513, %v3513
    %v3648 = vmul.f32 %v3514, %v3514
    %v3649 = vmul.f32 %v3515, %v3515
    %v3650 = vmul.f32 %v3516, %v3516
    %v3651 = vmul.f32 %v3517, %v3517
    %v3652 = vmul.f32 %v3518, %v3518
    %v3653 = vmul.f32 %v3519, %v3519
    %v3654 = vmul.f32 %v3520, %v3520
    %v3655 = vmul.f32 %v3521, %v3521
    %v3656 = vmul.f32 %v3522, %v3522
    %v3657 = vmul.f32 %v3523, %v3523
    %v3658 = vmul.f32 %v3524, %v3524
    %v3659 = vmul.f32 %v3525, %v3525
    %v3660 = vmul.f32 %v3526, %v3526
    %v3661 = vmul.f32 %v3527, %v3527
    %v3662 = vmul.f32 %v3528, %v3528
    %v3663 = vmul.f32 %v3529, %v3529
    %v3664 = vmul.f32 %v3530, %v3530
    %v3665 = vmul.f32 %v3531, %v3531
    %v3666 = vmul.f32 %v3532, %v3532
    %v3667 = vmul.f32 %v3533, %v3533
    %v3668 = vmul.f32 %v3534, %v3534
    %v3669 = vmul.f32 %v3535, %v3535
    %v3670 = vmul.f32 %v3536, %v3536
    %v3671 = vmul.f32 %v3537, %v3537
    %v3672 = vmul.f32 %v3538, %v3538
    %v3673 = vmul.f32 %v3539, %v3539
    %v3674 = vmul.f32 %v3540, %v3540
    %v3675 = vmul.f32 %v3541, %v3541
    %v3676 = vmul.f32 %v3542, %v3542
    %v3677 = vmul.f32 %v3543, %v3543
    %v3678 = vmul.f32 %v3544, %v3544
    %v3679 = vmul.f32 %v3545, %v3545
    %v3680 = vmul.f32 %v3546, %v3546
    %v3681 = vmul.f32 %v3547, %v3547
    %v3682 = vmul.f32 %v3548, %v3548
    %v3683 = vadd.f32 %v3619, %v3620
    %v3684 = vadd.f32 %v3683, %v3621
    %v3685 = vadd.f32 %v3684, %v3622
    %v3686 = vadd.f32 %v3685, %v3623
    %v3687 = vadd.f32 %v3686, %v3624
    %v3688 = vadd.f32 %v3687, %v3625
    %v3689 = vadd.f32 %v3688, %v3626
    %v3690 = vadd.f32 %v3689, %v3627
    %v3691 = vadd.f32 %v3690, %v3628
    %v3692 = vadd.f32 %v3691, %v3629
    %v3693 = vadd.f32 %v3692, %v3630
    %v3694 = vadd.f32 %v3693, %v3631
    %v3695 = vadd.f32 %v3694, %v3632
    %v3696 = vadd.f32 %v3695, %v3633
    %v3697 = vadd.f32 %v3696, %v3634
    %v3698 = vadd.f32 %v3697, %v3635
    %v3699 = vadd.f32 %v3698, %v3636
    %v3700 = vadd.f32 %v3699, %v3637
    %v3701 = vadd.f32 %v3700, %v3638
    %v3702 = vadd.f32 %v3701, %v3639
    %v3703 = vadd.f32 %v3702, %v3640
    %v3704 = vadd.f32 %v3703, %v3641
    %v3705 = vadd.f32 %v3704, %v3642
    %v3706 = vadd.f32 %v3705, %v3643
    %v3707 = vadd.f32 %v3706, %v3644
    %v3708 = vadd.f32 %v3707, %v3645
    %v3709 = vadd.f32 %v3708, %v3646
    %v3710 = vadd.f32 %v3709, %v3647
    %v3711 = vadd.f32 %v3710, %v3648
    %v3712 = vadd.f32 %v3711, %v3649
    %v3713 = vadd.f32 %v3712, %v3650
    %v3714 = vadd.f32 %v3713, %v3651
    %v3715 = vadd.f32 %v3714, %v3652
    %v3716 = vadd.f32 %v3715, %v3653
    %v3717 = vadd.f32 %v3716, %v3654
    %v3718 = vadd.f32 %v3717, %v3655
    %v3719 = vadd.f32 %v3718, %v3656
    %v3720 = vadd.f32 %v3719, %v3657
    %v3721 = vadd.f32 %v3720, %v3658
    %v3722 = vadd.f32 %v3721, %v3659
    %v3723 = vadd.f32 %v3722, %v3660
    %v3724 = vadd.f32 %v3723, %v3661
    %v3725 = vadd.f32 %v3724, %v3662
    %v3726 = vadd.f32 %v3725, %v3663
    %v3727 = vadd.f32 %v3726, %v3664
    %v3728 = vadd.f32 %v3727, %v3665
    %v3729 = vadd.f32 %v3728, %v3666
    %v3730 = vadd.f32 %v3729, %v3667
    %v3731 = vadd.f32 %v3730, %v3668
    %v3732 = vadd.f32 %v3731, %v3669
    %v3733 = vadd.f32 %v3732, %v3670
    %v3734 = vadd.f32 %v3733, %v3671
    %v3735 = vadd.f32 %v3734, %v3672
    %v3736 = vadd.f32 %v3735, %v3673
    %v3737 = vadd.f32 %v3736, %v3674
    %v3738 = vadd.f32 %v3737, %v3675
    %v3739 = vadd.f32 %v3738, %v3676
    %v3740 = vadd.f32 %v3739, %v3677
    %v3741 = vadd.f32 %v3740, %v3678
    %v3742 = vadd.f32 %v3741, %v3679
    %v3743 = vadd.f32 %v3742, %v3680
    %v3744 = vadd.f32 %v3743, %v3681
    %v3745 = vadd.f32 %v3744, %v3682
    %v3746 = vrot.slane %v3745, 4
    %v3747 = vadd.f32 %v3745, %v3746
    %v3748 = vrot.slane %v3747, 2
    %v3749 = vadd.f32 %v3747, %v3748
    %v3750 = vrot.slane %v3749, 1
    %v3751 = vadd.f32 %v3749, %v3750
    %v3752 = vmul.f32 %v3751, 0.001953125
    %v3753 = vmul.f32 %v3618, %v3618
    %v3754 = vsub.f32 %v3752, %v3753
    %v3755 = vmax.f32 %v3754, 0.0
    %v3756 = vadd.f32 %v3755, 1e-05
    %v3757 = vrsqrt.pop %v3756
    %v3758 = vsub.f32 %v3485, %v3618
    %v3759 = vsub.f32 %v3486, %v3618
    %v3760 = vsub.f32 %v3487, %v3618
    %v3761 = vsub.f32 %v3488, %v3618
    %v3762 = vsub.f32 %v3489, %v3618
    %v3763 = vsub.f32 %v3490, %v3618
    %v3764 = vsub.f32 %v3491, %v3618
    %v3765 = vsub.f32 %v3492, %v3618
    %v3766 = vsub.f32 %v3493, %v3618
    %v3767 = vsub.f32 %v3494, %v3618
    %v3768 = vsub.f32 %v3495, %v3618
    %v3769 = vsub.f32 %v3496, %v3618
    %v3770 = vsub.f32 %v3497, %v3618
    %v3771 = vsub.f32 %v3498, %v3618
    %v3772 = vsub.f32 %v3499, %v3618
    %v3773 = vsub.f32 %v3500, %v3618
    %v3774 = vsub.f32 %v3501, %v3618
    %v3775 = vsub.f32 %v3502, %v3618
    %v3776 = vsub.f32 %v3503, %v3618
    %v3777 = vsub.f32 %v3504, %v3618
    %v3778 = vsub.f32 %v3505, %v3618
    %v3779 = vsub.f32 %v3506, %v3618
    %v3780 = vsub.f32 %v3507, %v3618
    %v3781 = vsub.f32 %v3508, %v3618
    %v3782 = vsub.f32 %v3509, %v3618
    %v3783 = vsub.f32 %v3510, %v3618
    %v3784 = vsub.f32 %v3511, %v3618
    %v3785 = vsub.f32 %v3512, %v3618
    %v3786 = vsub.f32 %v3513, %v3618
    %v3787 = vsub.f32 %v3514, %v3618
    %v3788 = vsub.f32 %v3515, %v3618
    %v3789 = vsub.f32 %v3516, %v3618
    %v3790 = vsub.f32 %v3517, %v3618
    %v3791 = vsub.f32 %v3518, %v3618
    %v3792 = vsub.f32 %v3519, %v3618
    %v3793 = vsub.f32 %v3520, %v3618
    %v3794 = vsub.f32 %v3521, %v3618
    %v3795 = vsub.f32 %v3522, %v3618
    %v3796 = vsub.f32 %v3523, %v3618
    %v3797 = vsub.f32 %v3524, %v3618
    %v3798 = vsub.f32 %v3525, %v3618
    %v3799 = vsub.f32 %v3526, %v3618
    %v3800 = vsub.f32 %v3527, %v3618
    %v3801 = vsub.f32 %v3528, %v3618
    %v3802 = vsub.f32 %v3529, %v3618
    %v3803 = vsub.f32 %v3530, %v3618
    %v3804 = vsub.f32 %v3531, %v3618
    %v3805 = vsub.f32 %v3532, %v3618
    %v3806 = vsub.f32 %v3533, %v3618
    %v3807 = vsub.f32 %v3534, %v3618
    %v3808 = vsub.f32 %v3535, %v3618
    %v3809 = vsub.f32 %v3536, %v3618
    %v3810 = vsub.f32 %v3537, %v3618
    %v3811 = vsub.f32 %v3538, %v3618
    %v3812 = vsub.f32 %v3539, %v3618
    %v3813 = vsub.f32 %v3540, %v3618
    %v3814 = vsub.f32 %v3541, %v3618
    %v3815 = vsub.f32 %v3542, %v3618
    %v3816 = vsub.f32 %v3543, %v3618
    %v3817 = vsub.f32 %v3544, %v3618
    %v3818 = vsub.f32 %v3545, %v3618
    %v3819 = vsub.f32 %v3546, %v3618
    %v3820 = vsub.f32 %v3547, %v3618
    %v3821 = vsub.f32 %v3548, %v3618
    %v3822 = vmul.f32 %v3758, %v3757
    %v3823 = vmul.f32 %v3759, %v3757
    %v3824 = vmul.f32 %v3760, %v3757
    %v3825 = vmul.f32 %v3761, %v3757
    %v3826 = vmul.f32 %v3762, %v3757
    %v3827 = vmul.f32 %v3763, %v3757
    %v3828 = vmul.f32 %v3764, %v3757
    %v3829 = vmul.f32 %v3765, %v3757
    %v3830 = vmul.f32 %v3766, %v3757
    %v3831 = vmul.f32 %v3767, %v3757
    %v3832 = vmul.f32 %v3768, %v3757
    %v3833 = vmul.f32 %v3769, %v3757
    %v3834 = vmul.f32 %v3770, %v3757
    %v3835 = vmul.f32 %v3771, %v3757
    %v3836 = vmul.f32 %v3772, %v3757
    %v3837 = vmul.f32 %v3773, %v3757
    %v3838 = vmul.f32 %v3774, %v3757
    %v3839 = vmul.f32 %v3775, %v3757
    %v3840 = vmul.f32 %v3776, %v3757
    %v3841 = vmul.f32 %v3777, %v3757
    %v3842 = vmul.f32 %v3778, %v3757
    %v3843 = vmul.f32 %v3779, %v3757
    %v3844 = vmul.f32 %v3780, %v3757
    %v3845 = vmul.f32 %v3781, %v3757
    %v3846 = vmul.f32 %v3782, %v3757
    %v3847 = vmul.f32 %v3783, %v3757
    %v3848 = vmul.f32 %v3784, %v3757
    %v3849 = vmul.f32 %v3785, %v3757
    %v3850 = vmul.f32 %v3786, %v3757
    %v3851 = vmul.f32 %v3787, %v3757
    %v3852 = vmul.f32 %v3788, %v3757
    %v3853 = vmul.f32 %v3789, %v3757
    %v3854 = vmul.f32 %v3790, %v3757
    %v3855 = vmul.f32 %v3791, %v3757
    %v3856 = vmul.f32 %v3792, %v3757
    %v3857 = vmul.f32 %v3793, %v3757
    %v3858 = vmul.f32 %v3794, %v3757
    %v3859 = vmul.f32 %v3795, %v3757
    %v3860 = vmul.f32 %v3796, %v3757
    %v3861 = vmul.f32 %v3797, %v3757
    %v3862 = vmul.f32 %v3798, %v3757
    %v3863 = vmul.f32 %v3799, %v3757
    %v3864 = vmul.f32 %v3800, %v3757
    %v3865 = vmul.f32 %v3801, %v3757
    %v3866 = vmul.f32 %v3802, %v3757
    %v3867 = vmul.f32 %v3803, %v3757
    %v3868 = vmul.f32 %v3804, %v3757
    %v3869 = vmul.f32 %v3805, %v3757
    %v3870 = vmul.f32 %v3806, %v3757
    %v3871 = vmul.f32 %v3807, %v3757
    %v3872 = vmul.f32 %v3808, %v3757
    %v3873 = vmul.f32 %v3809, %v3757
    %v3874 = vmul.f32 %v3810, %v3757
    %v3875 = vmul.f32 %v3811, %v3757
    %v3876 = vmul.f32 %v3812, %v3757
    %v3877 = vmul.f32 %v3813, %v3757
    %v3878 = vmul.f32 %v3814, %v3757
    %v3879 = vmul.f32 %v3815, %v3757
    %v3880 = vmul.f32 %v3816, %v3757
    %v3881 = vmul.f32 %v3817, %v3757
    %v3882 = vmul.f32 %v3818, %v3757
    %v3883 = vmul.f32 %v3819, %v3757
    %v3884 = vmul.f32 %v3820, %v3757
    %v3885 = vmul.f32 %v3821, %v3757
    %v3886 = vld [vmem:[%s2] sm:$0x1]
    %v3888 = vlaneseq
    %v3889 = vshrl.u32 %v3888, 7
    %v3890 = vsub.s32 0, %v3889
    %v3891 = vrot.slane %v3886, %v3890
    %v3893 = vmul.f32 %v3822, %v3891
    %v3894 = vmul.f32 %v3823, %v3891
    %v3895 = vmul.f32 %v3824, %v3891
    %v3896 = vmul.f32 %v3825, %v3891
    %v3897 = vmul.f32 %v3826, %v3891
    %v3898 = vmul.f32 %v3827, %v3891
    %v3899 = vmul.f32 %v3828, %v3891
    %v3900 = vmul.f32 %v3829, %v3891
    %v3901 = vmul.f32 %v3830, %v3891
    %v3902 = vmul.f32 %v3831, %v3891
    %v3903 = vmul.f32 %v3832, %v3891
    %v3904 = vmul.f32 %v3833, %v3891
    %v3905 = vmul.f32 %v3834, %v3891
    %v3906 = vmul.f32 %v3835, %v3891
    %v3907 = vmul.f32 %v3836, %v3891
    %v3908 = vmul.f32 %v3837, %v3891
    %v3909 = vmul.f32 %v3838, %v3891
    %v3910 = vmul.f32 %v3839, %v3891
    %v3911 = vmul.f32 %v3840, %v3891
    %v3912 = vmul.f32 %v3841, %v3891
    %v3913 = vmul.f32 %v3842, %v3891
    %v3914 = vmul.f32 %v3843, %v3891
    %v3915 = vmul.f32 %v3844, %v3891
    %v3916 = vmul.f32 %v3845, %v3891
    %v3917 = vmul.f32 %v3846, %v3891
    %v3918 = vmul.f32 %v3847, %v3891
    %v3919 = vmul.f32 %v3848, %v3891
    %v3920 = vmul.f32 %v3849, %v3891
    %v3921 = vmul.f32 %v3850, %v3891
    %v3922 = vmul.f32 %v3851, %v3891
    %v3923 = vmul.f32 %v3852, %v3891
    %v3924 = vmul.f32 %v3853, %v3891
    %v3925 = vmul.f32 %v3854, %v3891
    %v3926 = vmul.f32 %v3855, %v3891
    %v3927 = vmul.f32 %v3856, %v3891
    %v3928 = vmul.f32 %v3857, %v3891
    %v3929 = vmul.f32 %v3858, %v3891
    %v3930 = vmul.f32 %v3859, %v3891
    %v3931 = vmul.f32 %v3860, %v3891
    %v3932 = vmul.f32 %v3861, %v3891
    %v3933 = vmul.f32 %v3862, %v3891
    %v3934 = vmul.f32 %v3863, %v3891
    %v3935 = vmul.f32 %v3864, %v3891
    %v3936 = vmul.f32 %v3865, %v3891
    %v3937 = vmul.f32 %v3866, %v3891
    %v3938 = vmul.f32 %v3867, %v3891
    %v3939 = vmul.f32 %v3868, %v3891
    %v3940 = vmul.f32 %v3869, %v3891
    %v3941 = vmul.f32 %v3870, %v3891
    %v3942 = vmul.f32 %v3871, %v3891
    %v3943 = vmul.f32 %v3872, %v3891
    %v3944 = vmul.f32 %v3873, %v3891
    %v3945 = vmul.f32 %v3874, %v3891
    %v3946 = vmul.f32 %v3875, %v3891
    %v3947 = vmul.f32 %v3876, %v3891
    %v3948 = vmul.f32 %v3877, %v3891
    %v3949 = vmul.f32 %v3878, %v3891
    %v3950 = vmul.f32 %v3879, %v3891
    %v3951 = vmul.f32 %v3880, %v3891
    %v3952 = vmul.f32 %v3881, %v3891
    %v3953 = vmul.f32 %v3882, %v3891
    %v3954 = vmul.f32 %v3883, %v3891
    %v3955 = vmul.f32 %v3884, %v3891
    %v3956 = vmul.f32 %v3885, %v3891
    %v3957 = vld [vmem:[%s3] sm:$0x1]
    %v3959 = vlaneseq
    %v3960 = vshrl.u32 %v3959, 7
    %v3961 = vsub.s32 0, %v3960
    %v3962 = vrot.slane %v3957, %v3961
    %v3964 = vadd.f32 %v3893, %v3962
    %v3965 = vadd.f32 %v3894, %v3962
    %v3966 = vadd.f32 %v3895, %v3962
    %v3967 = vadd.f32 %v3896, %v3962
    %v3968 = vadd.f32 %v3897, %v3962
    %v3969 = vadd.f32 %v3898, %v3962
    %v3970 = vadd.f32 %v3899, %v3962
    %v3971 = vadd.f32 %v3900, %v3962
    %v3972 = vadd.f32 %v3901, %v3962
    %v3973 = vadd.f32 %v3902, %v3962
    %v3974 = vadd.f32 %v3903, %v3962
    %v3975 = vadd.f32 %v3904, %v3962
    %v3976 = vadd.f32 %v3905, %v3962
    %v3977 = vadd.f32 %v3906, %v3962
    %v3978 = vadd.f32 %v3907, %v3962
    %v3979 = vadd.f32 %v3908, %v3962
    %v3980 = vadd.f32 %v3909, %v3962
    %v3981 = vadd.f32 %v3910, %v3962
    %v3982 = vadd.f32 %v3911, %v3962
    %v3983 = vadd.f32 %v3912, %v3962
    %v3984 = vadd.f32 %v3913, %v3962
    %v3985 = vadd.f32 %v3914, %v3962
    %v3986 = vadd.f32 %v3915, %v3962
    %v3987 = vadd.f32 %v3916, %v3962
    %v3988 = vadd.f32 %v3917, %v3962
    %v3989 = vadd.f32 %v3918, %v3962
    %v3990 = vadd.f32 %v3919, %v3962
    %v3991 = vadd.f32 %v3920, %v3962
    %v3992 = vadd.f32 %v3921, %v3962
    %v3993 = vadd.f32 %v3922, %v3962
    %v3994 = vadd.f32 %v3923, %v3962
    %v3995 = vadd.f32 %v3924, %v3962
    %v3996 = vadd.f32 %v3925, %v3962
    %v3997 = vadd.f32 %v3926, %v3962
    %v3998 = vadd.f32 %v3927, %v3962
    %v3999 = vadd.f32 %v3928, %v3962
    %v4000 = vadd.f32 %v3929, %v3962
    %v4001 = vadd.f32 %v3930, %v3962
    %v4002 = vadd.f32 %v3931, %v3962
    %v4003 = vadd.f32 %v3932, %v3962
    %v4004 = vadd.f32 %v3933, %v3962
    %v4005 = vadd.f32 %v3934, %v3962
    %v4006 = vadd.f32 %v3935, %v3962
    %v4007 = vadd.f32 %v3936, %v3962
    %v4008 = vadd.f32 %v3937, %v3962
    %v4009 = vadd.f32 %v3938, %v3962
    %v4010 = vadd.f32 %v3939, %v3962
    %v4011 = vadd.f32 %v3940, %v3962
    %v4012 = vadd.f32 %v3941, %v3962
    %v4013 = vadd.f32 %v3942, %v3962
    %v4014 = vadd.f32 %v3943, %v3962
    %v4015 = vadd.f32 %v3944, %v3962
    %v4016 = vadd.f32 %v3945, %v3962
    %v4017 = vadd.f32 %v3946, %v3962
    %v4018 = vadd.f32 %v3947, %v3962
    %v4019 = vadd.f32 %v3948, %v3962
    %v4020 = vadd.f32 %v3949, %v3962
    %v4021 = vadd.f32 %v3950, %v3962
    %v4022 = vadd.f32 %v3951, %v3962
    %v4023 = vadd.f32 %v3952, %v3962
    %v4024 = vadd.f32 %v3953, %v3962
    %v4025 = vadd.f32 %v3954, %v3962
    %v4026 = vadd.f32 %v3955, %v3962
    %v4027 = vadd.f32 %v3956, %v3962
    %vm4028 = vcmp.gt.f32.partialorder %v3964, 0.0
    %vm4029 = vcmp.gt.f32.partialorder %v3965, 0.0
    %vm4030 = vcmp.gt.f32.partialorder %v3966, 0.0
    %vm4031 = vcmp.gt.f32.partialorder %v3967, 0.0
    %vm4032 = vcmp.gt.f32.partialorder %v3968, 0.0
    %vm4033 = vcmp.gt.f32.partialorder %v3969, 0.0
    %vm4034 = vcmp.gt.f32.partialorder %v3970, 0.0
    %vm4035 = vcmp.gt.f32.partialorder %v3971, 0.0
    %vm4036 = vcmp.gt.f32.partialorder %v3972, 0.0
    %vm4037 = vcmp.gt.f32.partialorder %v3973, 0.0
    %vm4038 = vcmp.gt.f32.partialorder %v3974, 0.0
    %vm4039 = vcmp.gt.f32.partialorder %v3975, 0.0
    %vm4040 = vcmp.gt.f32.partialorder %v3976, 0.0
    %vm4041 = vcmp.gt.f32.partialorder %v3977, 0.0
    %vm4042 = vcmp.gt.f32.partialorder %v3978, 0.0
    %vm4043 = vcmp.gt.f32.partialorder %v3979, 0.0
    %vm4044 = vcmp.gt.f32.partialorder %v3980, 0.0
    %vm4045 = vcmp.gt.f32.partialorder %v3981, 0.0
    %vm4046 = vcmp.gt.f32.partialorder %v3982, 0.0
    %vm4047 = vcmp.gt.f32.partialorder %v3983, 0.0
    %vm4048 = vcmp.gt.f32.partialorder %v3984, 0.0
    %vm4049 = vcmp.gt.f32.partialorder %v3985, 0.0
    %vm4050 = vcmp.gt.f32.partialorder %v3986, 0.0
    %vm4051 = vcmp.gt.f32.partialorder %v3987, 0.0
    %vm4052 = vcmp.gt.f32.partialorder %v3988, 0.0
    %vm4053 = vcmp.gt.f32.partialorder %v3989, 0.0
    %vm4054 = vcmp.gt.f32.partialorder %v3990, 0.0
    %vm4055 = vcmp.gt.f32.partialorder %v3991, 0.0
    %vm4056 = vcmp.gt.f32.partialorder %v3992, 0.0
    %vm4057 = vcmp.gt.f32.partialorder %v3993, 0.0
    %vm4058 = vcmp.gt.f32.partialorder %v3994, 0.0
    %vm4059 = vcmp.gt.f32.partialorder %v3995, 0.0
    %vm4060 = vcmp.gt.f32.partialorder %v3996, 0.0
    %vm4061 = vcmp.gt.f32.partialorder %v3997, 0.0
    %vm4062 = vcmp.gt.f32.partialorder %v3998, 0.0
    %vm4063 = vcmp.gt.f32.partialorder %v3999, 0.0
    %vm4064 = vcmp.gt.f32.partialorder %v4000, 0.0
    %vm4065 = vcmp.gt.f32.partialorder %v4001, 0.0
    %vm4066 = vcmp.gt.f32.partialorder %v4002, 0.0
    %vm4067 = vcmp.gt.f32.partialorder %v4003, 0.0
    %vm4068 = vcmp.gt.f32.partialorder %v4004, 0.0
    %vm4069 = vcmp.gt.f32.partialorder %v4005, 0.0
    %vm4070 = vcmp.gt.f32.partialorder %v4006, 0.0
    %vm4071 = vcmp.gt.f32.partialorder %v4007, 0.0
    %vm4072 = vcmp.gt.f32.partialorder %v4008, 0.0
    %vm4073 = vcmp.gt.f32.partialorder %v4009, 0.0
    %vm4074 = vcmp.gt.f32.partialorder %v4010, 0.0
    %vm4075 = vcmp.gt.f32.partialorder %v4011, 0.0
    %vm4076 = vcmp.gt.f32.partialorder %v4012, 0.0
    %vm4077 = vcmp.gt.f32.partialorder %v4013, 0.0
    %vm4078 = vcmp.gt.f32.partialorder %v4014, 0.0
    %vm4079 = vcmp.gt.f32.partialorder %v4015, 0.0
    %vm4080 = vcmp.gt.f32.partialorder %v4016, 0.0
    %vm4081 = vcmp.gt.f32.partialorder %v4017, 0.0
    %vm4082 = vcmp.gt.f32.partialorder %v4018, 0.0
    %vm4083 = vcmp.gt.f32.partialorder %v4019, 0.0
    %vm4084 = vcmp.gt.f32.partialorder %v4020, 0.0
    %vm4085 = vcmp.gt.f32.partialorder %v4021, 0.0
    %vm4086 = vcmp.gt.f32.partialorder %v4022, 0.0
    %vm4087 = vcmp.gt.f32.partialorder %v4023, 0.0
    %vm4088 = vcmp.gt.f32.partialorder %v4024, 0.0
    %vm4089 = vcmp.gt.f32.partialorder %v4025, 0.0
    %vm4090 = vcmp.gt.f32.partialorder %v4026, 0.0
    %vm4091 = vcmp.gt.f32.partialorder %v4027, 0.0
    %v4092 = vmul.f32 %v3964, 0.2
    %v4093 = vmul.f32 %v3965, 0.2
    %v4094 = vmul.f32 %v3966, 0.2
    %v4095 = vmul.f32 %v3967, 0.2
    %v4096 = vmul.f32 %v3968, 0.2
    %v4097 = vmul.f32 %v3969, 0.2
    %v4098 = vmul.f32 %v3970, 0.2
    %v4099 = vmul.f32 %v3971, 0.2
    %v4100 = vmul.f32 %v3972, 0.2
    %v4101 = vmul.f32 %v3973, 0.2
    %v4102 = vmul.f32 %v3974, 0.2
    %v4103 = vmul.f32 %v3975, 0.2
    %v4104 = vmul.f32 %v3976, 0.2
    %v4105 = vmul.f32 %v3977, 0.2
    %v4106 = vmul.f32 %v3978, 0.2
    %v4107 = vmul.f32 %v3979, 0.2
    %v4108 = vmul.f32 %v3980, 0.2
    %v4109 = vmul.f32 %v3981, 0.2
    %v4110 = vmul.f32 %v3982, 0.2
    %v4111 = vmul.f32 %v3983, 0.2
    %v4112 = vmul.f32 %v3984, 0.2
    %v4113 = vmul.f32 %v3985, 0.2
    %v4114 = vmul.f32 %v3986, 0.2
    %v4115 = vmul.f32 %v3987, 0.2
    %v4116 = vmul.f32 %v3988, 0.2
    %v4117 = vmul.f32 %v3989, 0.2
    %v4118 = vmul.f32 %v3990, 0.2
    %v4119 = vmul.f32 %v3991, 0.2
    %v4120 = vmul.f32 %v3992, 0.2
    %v4121 = vmul.f32 %v3993, 0.2
    %v4122 = vmul.f32 %v3994, 0.2
    %v4123 = vmul.f32 %v3995, 0.2
    %v4124 = vmul.f32 %v3996, 0.2
    %v4125 = vmul.f32 %v3997, 0.2
    %v4126 = vmul.f32 %v3998, 0.2
    %v4127 = vmul.f32 %v3999, 0.2
    %v4128 = vmul.f32 %v4000, 0.2
    %v4129 = vmul.f32 %v4001, 0.2
    %v4130 = vmul.f32 %v4002, 0.2
    %v4131 = vmul.f32 %v4003, 0.2
    %v4132 = vmul.f32 %v4004, 0.2
    %v4133 = vmul.f32 %v4005, 0.2
    %v4134 = vmul.f32 %v4006, 0.2
    %v4135 = vmul.f32 %v4007, 0.2
    %v4136 = vmul.f32 %v4008, 0.2
    %v4137 = vmul.f32 %v4009, 0.2
    %v4138 = vmul.f32 %v4010, 0.2
    %v4139 = vmul.f32 %v4011, 0.2
    %v4140 = vmul.f32 %v4012, 0.2
    %v4141 = vmul.f32 %v4013, 0.2
    %v4142 = vmul.f32 %v4014, 0.2
    %v4143 = vmul.f32 %v4015, 0.2
    %v4144 = vmul.f32 %v4016, 0.2
    %v4145 = vmul.f32 %v4017, 0.2
    %v4146 = vmul.f32 %v4018, 0.2
    %v4147 = vmul.f32 %v4019, 0.2
    %v4148 = vmul.f32 %v4020, 0.2
    %v4149 = vmul.f32 %v4021, 0.2
    %v4150 = vmul.f32 %v4022, 0.2
    %v4151 = vmul.f32 %v4023, 0.2
    %v4152 = vmul.f32 %v4024, 0.2
    %v4153 = vmul.f32 %v4025, 0.2
    %v4154 = vmul.f32 %v4026, 0.2
    %v4155 = vmul.f32 %v4027, 0.2
    %v4156 = vsel %vm4028, %v3964, %v4092
    %v4157 = vsel %vm4029, %v3965, %v4093
    %v4158 = vsel %vm4030, %v3966, %v4094
    %v4159 = vsel %vm4031, %v3967, %v4095
    %v4160 = vsel %vm4032, %v3968, %v4096
    %v4161 = vsel %vm4033, %v3969, %v4097
    %v4162 = vsel %vm4034, %v3970, %v4098
    %v4163 = vsel %vm4035, %v3971, %v4099
    %v4164 = vsel %vm4036, %v3972, %v4100
    %v4165 = vsel %vm4037, %v3973, %v4101
    %v4166 = vsel %vm4038, %v3974, %v4102
    %v4167 = vsel %vm4039, %v3975, %v4103
    %v4168 = vsel %vm4040, %v3976, %v4104
    %v4169 = vsel %vm4041, %v3977, %v4105
    %v4170 = vsel %vm4042, %v3978, %v4106
    %v4171 = vsel %vm4043, %v3979, %v4107
    %v4172 = vsel %vm4044, %v3980, %v4108
    %v4173 = vsel %vm4045, %v3981, %v4109
    %v4174 = vsel %vm4046, %v3982, %v4110
    %v4175 = vsel %vm4047, %v3983, %v4111
    %v4176 = vsel %vm4048, %v3984, %v4112
    %v4177 = vsel %vm4049, %v3985, %v4113
    %v4178 = vsel %vm4050, %v3986, %v4114
    %v4179 = vsel %vm4051, %v3987, %v4115
    %v4180 = vsel %vm4052, %v3988, %v4116
    %v4181 = vsel %vm4053, %v3989, %v4117
    %v4182 = vsel %vm4054, %v3990, %v4118
    %v4183 = vsel %vm4055, %v3991, %v4119
    %v4184 = vsel %vm4056, %v3992, %v4120
    %v4185 = vsel %vm4057, %v3993, %v4121
    %v4186 = vsel %vm4058, %v3994, %v4122
    %v4187 = vsel %vm4059, %v3995, %v4123
    %v4188 = vsel %vm4060, %v3996, %v4124
    %v4189 = vsel %vm4061, %v3997, %v4125
    %v4190 = vsel %vm4062, %v3998, %v4126
    %v4191 = vsel %vm4063, %v3999, %v4127
    %v4192 = vsel %vm4064, %v4000, %v4128
    %v4193 = vsel %vm4065, %v4001, %v4129
    %v4194 = vsel %vm4066, %v4002, %v4130
    %v4195 = vsel %vm4067, %v4003, %v4131
    %v4196 = vsel %vm4068, %v4004, %v4132
    %v4197 = vsel %vm4069, %v4005, %v4133
    %v4198 = vsel %vm4070, %v4006, %v4134
    %v4199 = vsel %vm4071, %v4007, %v4135
    %v4200 = vsel %vm4072, %v4008, %v4136
    %v4201 = vsel %vm4073, %v4009, %v4137
    %v4202 = vsel %vm4074, %v4010, %v4138
    %v4203 = vsel %vm4075, %v4011, %v4139
    %v4204 = vsel %vm4076, %v4012, %v4140
    %v4205 = vsel %vm4077, %v4013, %v4141
    %v4206 = vsel %vm4078, %v4014, %v4142
    %v4207 = vsel %vm4079, %v4015, %v4143
    %v4208 = vsel %vm4080, %v4016, %v4144
    %v4209 = vsel %vm4081, %v4017, %v4145
    %v4210 = vsel %vm4082, %v4018, %v4146
    %v4211 = vsel %vm4083, %v4019, %v4147
    %v4212 = vsel %vm4084, %v4020, %v4148
    %v4213 = vsel %vm4085, %v4021, %v4149
    %v4214 = vsel %vm4086, %v4022, %v4150
    %v4215 = vsel %vm4087, %v4023, %v4151
    %v4216 = vsel %vm4088, %v4024, %v4152
    %v4217 = vsel %vm4089, %v4025, %v4153
    %v4218 = vsel %vm4090, %v4026, %v4154
    %v4219 = vsel %vm4091, %v4027, %v4155
    %4220 = vst [vmem:[%s4] sm:$0xff] %v4156
    %4221 = vst [vmem:[%s4 + $0x8] sm:$0xff] %v4157
    %4222 = vst [vmem:[%s4 + $0x10] sm:$0xff] %v4158
    %4223 = vst [vmem:[%s4 + $0x18] sm:$0xff] %v4159
    %4224 = vst [vmem:[%s4 + $0x20] sm:$0xff] %v4160
    %4225 = vst [vmem:[%s4 + $0x28] sm:$0xff] %v4161
    %4226 = vst [vmem:[%s4 + $0x30] sm:$0xff] %v4162
    %4227 = vst [vmem:[%s4 + $0x38] sm:$0xff] %v4163
    %4228 = vst [vmem:[%s4 + $0x40] sm:$0xff] %v4164
    %4229 = vst [vmem:[%s4 + $0x48] sm:$0xff] %v4165
    %4230 = vst [vmem:[%s4 + $0x50] sm:$0xff] %v4166
    %4231 = vst [vmem:[%s4 + $0x58] sm:$0xff] %v4167
    %4232 = vst [vmem:[%s4 + $0x60] sm:$0xff] %v4168
    %4233 = vst [vmem:[%s4 + $0x68] sm:$0xff] %v4169
    %4234 = vst [vmem:[%s4 + $0x70] sm:$0xff] %v4170
    %4235 = vst [vmem:[%s4 + $0x78] sm:$0xff] %v4171
    %4236 = vst [vmem:[%s4 + $0x80] sm:$0xff] %v4172
    %4237 = vst [vmem:[%s4 + $0x88] sm:$0xff] %v4173
    %4238 = vst [vmem:[%s4 + $0x90] sm:$0xff] %v4174
    %4239 = vst [vmem:[%s4 + $0x98] sm:$0xff] %v4175
    %4240 = vst [vmem:[%s4 + $0xa0] sm:$0xff] %v4176
    %4241 = vst [vmem:[%s4 + $0xa8] sm:$0xff] %v4177
    %4242 = vst [vmem:[%s4 + $0xb0] sm:$0xff] %v4178
    %4243 = vst [vmem:[%s4 + $0xb8] sm:$0xff] %v4179
    %4244 = vst [vmem:[%s4 + $0xc0] sm:$0xff] %v4180
    %4245 = vst [vmem:[%s4 + $0xc8] sm:$0xff] %v4181
    %4246 = vst [vmem:[%s4 + $0xd0] sm:$0xff] %v4182
    %4247 = vst [vmem:[%s4 + $0xd8] sm:$0xff] %v4183
    %4248 = vst [vmem:[%s4 + $0xe0] sm:$0xff] %v4184
    %4249 = vst [vmem:[%s4 + $0xe8] sm:$0xff] %v4185
    %4250 = vst [vmem:[%s4 + $0xf0] sm:$0xff] %v4186
    %4251 = vst [vmem:[%s4 + $0xf8] sm:$0xff] %v4187
    %4252 = vst [vmem:[%s4 + $0x100] sm:$0xff] %v4188
    %4253 = vst [vmem:[%s4 + $0x108] sm:$0xff] %v4189
    %4254 = vst [vmem:[%s4 + $0x110] sm:$0xff] %v4190
    %4255 = vst [vmem:[%s4 + $0x118] sm:$0xff] %v4191
    %4256 = vst [vmem:[%s4 + $0x120] sm:$0xff] %v4192
    %4257 = vst [vmem:[%s4 + $0x128] sm:$0xff] %v4193
    %4258 = vst [vmem:[%s4 + $0x130] sm:$0xff] %v4194
    %4259 = vst [vmem:[%s4 + $0x138] sm:$0xff] %v4195
    %4260 = vst [vmem:[%s4 + $0x140] sm:$0xff] %v4196
    %4261 = vst [vmem:[%s4 + $0x148] sm:$0xff] %v4197
    %4262 = vst [vmem:[%s4 + $0x150] sm:$0xff] %v4198
    %4263 = vst [vmem:[%s4 + $0x158] sm:$0xff] %v4199
    %4264 = vst [vmem:[%s4 + $0x160] sm:$0xff] %v4200
    %4265 = vst [vmem:[%s4 + $0x168] sm:$0xff] %v4201
    %4266 = vst [vmem:[%s4 + $0x170] sm:$0xff] %v4202
    %4267 = vst [vmem:[%s4 + $0x178] sm:$0xff] %v4203
    %4268 = vst [vmem:[%s4 + $0x180] sm:$0xff] %v4204
    %4269 = vst [vmem:[%s4 + $0x188] sm:$0xff] %v4205
    %4270 = vst [vmem:[%s4 + $0x190] sm:$0xff] %v4206
    %4271 = vst [vmem:[%s4 + $0x198] sm:$0xff] %v4207
    %4272 = vst [vmem:[%s4 + $0x1a0] sm:$0xff] %v4208
    %4273 = vst [vmem:[%s4 + $0x1a8] sm:$0xff] %v4209
    %4274 = vst [vmem:[%s4 + $0x1b0] sm:$0xff] %v4210
    %4275 = vst [vmem:[%s4 + $0x1b8] sm:$0xff] %v4211
    %4276 = vst [vmem:[%s4 + $0x1c0] sm:$0xff] %v4212
    %4277 = vst [vmem:[%s4 + $0x1c8] sm:$0xff] %v4213
    %4278 = vst [vmem:[%s4 + $0x1d0] sm:$0xff] %v4214
    %4279 = vst [vmem:[%s4 + $0x1d8] sm:$0xff] %v4215
    %4280 = vst [vmem:[%s4 + $0x1e0] sm:$0xff] %v4216
    %4281 = vst [vmem:[%s4 + $0x1e8] sm:$0xff] %v4217
    %4282 = vst [vmem:[%s4 + $0x1f0] sm:$0xff] %v4218
    %4283 = vst [vmem:[%s4 + $0x1f8] sm:$0xff] %v4219
  $region25: #{discriminator_forward.6} parent=0 // pred_fallthru
    _
  // Predicated region
  $region26: #{discriminator_forward.6} parent=0 // pred_check
    _
  $region27: #{discriminator_forward.6} parent=0 // pred_check_branch
    %4285 = sbr.rel (0) target = $region29
  $region28: #{discriminator_forward.6} parent=0 // pred_region
    _
  $region29: #{discriminator_forward.6} parent=0 // pred_fallthru
    _
  // Predicated region
  $region30: #{discriminator_forward.6} parent=0 // pred_check
    _
  $region31: #{discriminator_forward.6} parent=0 // pred_check_branch
    %4287 = sbr.rel (0) target = $region33
  $region32: #{discriminator_forward.6} parent=0 // pred_region
    _
  $region33: #{discriminator_forward.6} parent=0 // pred_fallthru
    _

// kernel: discriminator_forward.7
$region0: #{discriminator_forward.7}
  #allocation0 [shape = 'u32[]', space=smem, size = 0x4, offset = 0x4, fixed_abs, tag = 'smem constant byte address 0x4 - core index']
  #allocation1 [shape = 'u32[144,128]{1,0:T(1,128)}', space=vmem, size = 0x12000, scoped, tag = 'internal scratch']
  %s0 = inlined_call_operand.vmem [shape: bf16[128,2048], index: 0, kind: input, shape index: {}]
  %s1 = inlined_call_operand.vmem [shape: bf16[2048,256], index: 1, kind: input, shape index: {}]
  %s2 = inlined_call_operand.vmem [shape: f32[1,256], index: 2, kind: input, shape index: {}]
  %s3 = inlined_call_operand.vmem [shape: f32[1,256], index: 3, kind: input, shape index: {}]
  %s4 = inlined_call_operand.vmem [shape: f32[128,256], index: 4, kind: output, shape index: {}]
  %s5 = sld [smem:[#allocation0]]
  $region80: #{discriminator_forward.7} parent=0
    _
  %s7 = ssub.s32 1, %s5
  %s8 = scalar_select 0, %s7, %s5
  $region1: #{discriminator_forward.7} parent=0
    #allocation2 [shape = 'u8[524288]{0}', space=vmem, size = 0x80000, scoped, tag = 'input window, operand 0']
    loop: start=0, step=1, limit=4
    $region2: #{discriminator_forward.7} parent=1 // loop_pre_header
      _
    $region3: #{discriminator_forward.7} parent=1 // loop_header
      %s10 = sphi 0, %s14
      %p11 = scmp.ge.s32.totalorder %s10, 4
      %s17 = sphi 0, %s29
      %s18 = sphi 0, %s25
      %s19 = sphi 0, %s17
      %s20 = sphi 0, %s18
      %s21 = sphi 0, %s19
      %s22 = sphi 0, %s20
      %s34 = sphi 0, %s36
      %s37 = sphi 0, %s34
      %s38 = sphi 0, %s37
      %s54 = sphi 0, %s38
      %s60 = sphi 0, %s62
      %s63 = sphi 0, %s60
      %s64 = sphi 0, %s63
      %s80 = sphi 0, %s64
      %s84 = sphi 0, %s84
      %s86 = sphi 0, %s84
      %s87 = sphi 0, %s86
      %s101 = sphi 0, %s87
      %s105 = sphi 0, %s105
      %s107 = sphi 0, %s105
      %s108 = sphi 0, %s107
      %s122 = sphi 0, %s108
      %s128 = sphi 0, %s130
      %s131 = sphi 0, %s128
      %s132 = sphi 0, %s131
      %s148 = sphi 0, %s132
    $region4: #{discriminator_forward.7} parent=1 // loop_header_branch
      %13 = sbr.rel (%p11) target = $region8
    $region5: #{discriminator_forward.7} parent=1 // loop_body
      %s15 = ssub.s32 %s10, 1
      %s16 = ssub.s32 %s10, 2
      %s23 = sadd.s32 1, %s18
      %p24 = scmp.ge.s32.totalorder %s23, 2
      %s25 = scalar_select %p24, 0, %s23
      %s26 = sadd.s32 1, %s17
      %s27 = scalar_select %p24, %s26, %s17
      %p28 = scmp.ge.s32.totalorder %s27, 1
      %s29 = scalar_select %p28, 0, %s27
      %s30 = ssub.s32 %s17, %s29
      %s31 = ssub.s32 %s18, %s25
      %s32 = sor.u32 %s30, %s31
      %p33 = scmp.eq.s32.totalorder %s32, 0
      %s35 = sadd.s32 %s34, 1
      %s36 = scalar_select %p33, %s34, %s35
      %p39 = pneg %p33
      %p40 = scmp.eq.s32.totalorder %s10, 1
      %p41 = por %p39, %p40
      %p42 = scmp.ne.s32.totalorder %s34, %s37
      %p43 = scmp.eq.s32.totalorder %s10, 0
      %p44 = por %p42, %p43
      %p45 = scmp.ne.s32.totalorder %s34, %s37
      %p46 = scmp.eq.s32.totalorder %s15, 1
      %p47 = por %p45, %p46
      %p48 = scmp.ne.s32.totalorder %s37, %s38
      %p49 = scmp.eq.s32.totalorder %s15, 0
      %p50 = por %p48, %p49
      %p51 = scmp.ne.s32.totalorder %s37, %s38
      %p52 = scmp.eq.s32.totalorder %s16, 1
      %p53 = por %p51, %p52
      %p55 = scmp.ne.s32.totalorder %s38, %s54
      %p56 = scmp.eq.s32.totalorder %s16, 0
      %p57 = por %p55, %p56
      %s58 = ssub.s32 %s18, %s25
      %p59 = scmp.eq.s32.totalorder %s58, 0
      %s61 = sadd.s32 %s60, 1
      %s62 = scalar_select %p59, %s60, %s61
      %p65 = pneg %p59
      %p66 = scmp.eq.s32.totalorder %s10, 1
      %p67 = por %p65, %p66
      %p68 = scmp.ne.s32.totalorder %s60, %s63
      %p69 = scmp.eq.s32.totalorder %s10, 0
      %p70 = por %p68, %p69
      %p71 = scmp.ne.s32.totalorder %s60, %s63
      %p72 = scmp.eq.s32.totalorder %s15, 1
      %p73 = por %p71, %p72
      %p74 = scmp.ne.s32.totalorder %s63, %s64
      %p75 = scmp.eq.s32.totalorder %s15, 0
      %p76 = por %p74, %p75
      %p77 = scmp.ne.s32.totalorder %s63, %s64
      %p78 = scmp.eq.s32.totalorder %s16, 1
      %p79 = por %p77, %p78
      %p81 = scmp.ne.s32.totalorder %s64, %s80
      %p82 = scmp.eq.s32.totalorder %s16, 0
      %p83 = por %p81, %p82
      %s85 = sadd.s32 %s84, 1
      %p88 = scmp.eq.s32.totalorder %s10, 1
      %p89 = scmp.ne.s32.totalorder %s84, %s86
      %p90 = scmp.eq.s32.totalorder %s10, 0
      %p91 = por %p89, %p90
      %p92 = scmp.ne.s32.totalorder %s84, %s86
      %p93 = scmp.eq.s32.totalorder %s15, 1
      %p94 = por %p92, %p93
      %p95 = scmp.ne.s32.totalorder %s86, %s87
      %p96 = scmp.eq.s32.totalorder %s15, 0
      %p97 = por %p95, %p96
      %p98 = scmp.ne.s32.totalorder %s86, %s87
      %p99 = scmp.eq.s32.totalorder %s16, 1
      %p100 = por %p98, %p99
      %p102 = scmp.ne.s32.totalorder %s87, %s101
      %p103 = scmp.eq.s32.totalorder %s16, 0
      %p104 = por %p102, %p103
      %s106 = sadd.s32 %s105, 1
      %p109 = scmp.eq.s32.totalorder %s10, 1
      %p110 = scmp.ne.s32.totalorder %s105, %s107
      %p111 = scmp.eq.s32.totalorder %s10, 0
      %p112 = por %p110, %p111
      %p113 = scmp.ne.s32.totalorder %s105, %s107
      %p114 = scmp.eq.s32.totalorder %s15, 1
      %p115 = por %p113, %p114
      %p116 = scmp.ne.s32.totalorder %s107, %s108
      %p117 = scmp.eq.s32.totalorder %s15, 0
      %p118 = por %p116, %p117
      %p119 = scmp.ne.s32.totalorder %s107, %s108
      %p120 = scmp.eq.s32.totalorder %s16, 1
      %p121 = por %p119, %p120
      %p123 = scmp.ne.s32.totalorder %s108, %s122
      %p124 = scmp.eq.s32.totalorder %s16, 0
      %p125 = por %p123, %p124
      %s126 = ssub.s32 %s17, %s29
      %p127 = scmp.eq.s32.totalorder %s126, 0
      %s129 = sadd.s32 %s128, 1
      %s130 = scalar_select %p127, %s128, %s129
      %p133 = pneg %p127
      %p134 = scmp.eq.s32.totalorder %s10, 1
      %p135 = por %p133, %p134
      %p136 = scmp.ne.s32.totalorder %s128, %s131
      %p137 = scmp.eq.s32.totalorder %s10, 0
      %p138 = por %p136, %p137
      %p139 = scmp.ne.s32.totalorder %s128, %s131
      %p140 = scmp.eq.s32.totalorder %s15, 1
      %p141 = por %p139, %p140
      %p142 = scmp.ne.s32.totalorder %s131, %s132
      %p143 = scmp.eq.s32.totalorder %s15, 0
      %p144 = por %p142, %p143
      %p145 = scmp.ne.s32.totalorder %s131, %s132
      %p146 = scmp.eq.s32.totalorder %s16, 1
      %p147 = por %p145, %p146
      %p149 = scmp.ne.s32.totalorder %s132, %s148
      %p150 = scmp.eq.s32.totalorder %s16, 0
      %p151 = por %p149, %p150
      %p152 = scmp.le.s32.totalorder 1, %s10
      %p153 = scmp.lt.s32.totalorder %s10, 3
      %p154 = pnand %p152, %p153
      %p155 = pneg %p154
      // Predicated region
      $region9: #{discriminator_forward.7} parent=5 // pred_check
        _
      $region10: #{discriminator_forward.7} parent=5 // pred_check_branch
        %157 = sbr.rel (%p154) target = $region12
      $region11: #{discriminator_forward.7} parent=5 // pred_region
        %s158 = ssub.s32 %s10, 1
        // Predicated region
        $region13: #{discriminator_forward.7} parent=11 // pred_check
          %p159 = pneg %p97
        $region14: #{discriminator_forward.7} parent=11 // pred_check_branch
          %161 = sbr.rel (%p159) target = $region16
        $region15: #{discriminator_forward.7} parent=11 // pred_region
          _
        $region16: #{discriminator_forward.7} parent=11 // pred_fallthru
          _
        // Predicated region
        $region17: #{discriminator_forward.7} parent=11 // pred_check
          %p162 = pneg %p118
        $region18: #{discriminator_forward.7} parent=11 // pred_check_branch
          %164 = sbr.rel (%p162) target = $region20
        $region19: #{discriminator_forward.7} parent=11 // pred_region
          _
        $region20: #{discriminator_forward.7} parent=11 // pred_fallthru
          _
      $region12: #{discriminator_forward.7} parent=5 // pred_fallthru
        _
      %p165 = scmp.lt.s32.totalorder %s10, 2
      // Predicated region
      $region21: #{discriminator_forward.7} parent=5 // pred_check
        %p166 = pneg %p165
      $region22: #{discriminator_forward.7} parent=5 // pred_check_branch
        %168 = sbr.rel (%p166) target = $region24
      $region23: #{discriminator_forward.7} parent=5 // pred_region
        // Predicated region
        $region25: #{discriminator_forward.7} parent=23 // pred_check
          %p169 = pneg %p44
        $region26: #{discriminator_forward.7} parent=23 // pred_check_branch
          %171 = sbr.rel (%p169) target = $region28
        $region27: #{discriminator_forward.7} parent=23 // pred_region
          %s172 = sand.u32 %s34, 1
          %s173 = sand.u32 %s34, 1
          %s174 = smul.addr %s173, 512
          %s175 = scalar_lea.vmem [#allocation2], %s174
          %s176 = smul.u32 16, %s17
          %s177 = smul.u32 8, %s18
          %s178 = smul.addr %s176, 16
          %s179 = sadd.s32 %s177, %s178
          %s180 = smul.addr %s179, 4
          %s181 = scalar_lea.vmem %s0, %s180
          // Predicated region
          $region29: #{discriminator_forward.7} parent=27 // pred_check
            _
          $region30: #{discriminator_forward.7} parent=27 // pred_check_branch
            %183 = sbr.rel (0) target = $region32
          $region31: #{discriminator_forward.7} parent=27 // pred_region
            // Predicated region
            $region33: #{discriminator_forward.7} parent=31 // pred_check
              _
            $region34: #{discriminator_forward.7} parent=31 // pred_check_branch
              %185 = sbr.rel (0) target = $region36
            $region35: #{discriminator_forward.7} parent=31 // pred_region
              loop: start=0, step=1, limit=1
              $region37: #{discriminator_forward.7} parent=35 // loop_pre_header
                _
              $region38: #{discriminator_forward.7} parent=35 // loop_header
                %s187 = sphi 0, %s191
                %p188 = scmp.ge.s32.totalorder %s187, 1
                %s192 = sphi %s181, %s181
                %s193 = sphi %s175, %s175
              $region39: #{discriminator_forward.7} parent=35 // loop_header_branch
                %190 = sbr.rel (%p188) target = $region43
              $region40: #{discriminator_forward.7} parent=35 // loop_body
                %v194 = vld [vmem:[%s192] sm:$0xff]
                %195 = vst [vmem:[%s193] sm:$0xff] %v194
                %v196 = vld [vmem:[%s192 + $0x8] sm:$0xff]
                %197 = vst [vmem:[%s193 + $0x8] sm:$0xff] %v196
                %v198 = vld [vmem:[%s192 + $0x10] sm:$0xff]
                %199 = vst [vmem:[%s193 + $0x10] sm:$0xff] %v198
                %v200 = vld [vmem:[%s192 + $0x18] sm:$0xff]
                %201 = vst [vmem:[%s193 + $0x18] sm:$0xff] %v200
                %v202 = vld [vmem:[%s192 + $0x40] sm:$0xff]
                %203 = vst [vmem:[%s193 + $0x20] sm:$0xff] %v202
                %v204 = vld [vmem:[%s192 + $0x48] sm:$0xff]
                %205 = vst [vmem:[%s193 + $0x28] sm:$0xff] %v204
                %v206 = vld [vmem:[%s192 + $0x50] sm:$0xff]
                %207 = vst [vmem:[%s193 + $0x30] sm:$0xff] %v206
                %v208 = vld [vmem:[%s192 + $0x58] sm:$0xff]
                %209 = vst [vmem:[%s193 + $0x38] sm:$0xff] %v208
                %v210 = vld [vmem:[%s192 + $0x80] sm:$0xff]
                %211 = vst [vmem:[%s193 + $0x40] sm:$0xff] %v210
                %v212 = vld [vmem:[%s192 + $0x88] sm:$0xff]
                %213 = vst [vmem:[%s193 + $0x48] sm:$0xff] %v212
                %v214 = vld [vmem:[%s192 + $0x90] sm:$0xff]
                %215 = vst [vmem:[%s193 + $0x50] sm:$0xff] %v214
                %v216 = vld [vmem:[%s192 + $0x98] sm:$0xff]
                %217 = vst [vmem:[%s193 + $0x58] sm:$0xff] %v216
                %v218 = vld [vmem:[%s192 + $0xc0] sm:$0xff]
                %219 = vst [vmem:[%s193 + $0x60] sm:$0xff] %v218
                %v220 = vld [vmem:[%s192 + $0xc8] sm:$0xff]
                %221 = vst [vmem:[%s193 + $0x68] sm:$0xff] %v220
                %v222 = vld [vmem:[%s192 + $0xd0] sm:$0xff]
                %223 = vst [vmem:[%s193 + $0x70] sm:$0xff] %v222
                %v224 = vld [vmem:[%s192 + $0xd8] sm:$0xff]
                %225 = vst [vmem:[%s193 + $0x78] sm:$0xff] %v224
                %v226 = vld [vmem:[%s192 + $0x100] sm:$0xff]
                %227 = vst [vmem:[%s193 + $0x80] sm:$0xff] %v226
                %v228 = vld [vmem:[%s192 + $0x108] sm:$0xff]
                %229 = vst [vmem:[%s193 + $0x88] sm:$0xff] %v228
                %v230 = vld [vmem:[%s192 + $0x110] sm:$0xff]
                %231 = vst [vmem:[%s193 + $0x90] sm:$0xff] %v230
                %v232 = vld [vmem:[%s192 + $0x118] sm:$0xff]
                %233 = vst [vmem:[%s193 + $0x98] sm:$0xff] %v232
                %v234 = vld [vmem:[%s192 + $0x140] sm:$0xff]
                %235 = vst [vmem:[%s193 + $0xa0] sm:$0xff] %v234
                %v236 = vld [vmem:[%s192 + $0x148] sm:$0xff]
                %237 = vst [vmem:[%s193 + $0xa8] sm:$0xff] %v236
                %v238 = vld [vmem:[%s192 + $0x150] sm:$0xff]
                %239 = vst [vmem:[%s193 + $0xb0] sm:$0xff] %v238
                %v240 = vld [vmem:[%s192 + $0x158] sm:$0xff]
                %241 = vst [vmem:[%s193 + $0xb8] sm:$0xff] %v240
                %v242 = vld [vmem:[%s192 + $0x180] sm:$0xff]
                %243 = vst [vmem:[%s193 + $0xc0] sm:$0xff] %v242
                %v244 = vld [vmem:[%s192 + $0x188] sm:$0xff]
                %245 = vst [vmem:[%s193 + $0xc8] sm:$0xff] %v244
                %v246 = vld [vmem:[%s192 + $0x190] sm:$0xff]
                %247 = vst [vmem:[%s193 + $0xd0] sm:$0xff] %v246
                %v248 = vld [vmem:[%s192 + $0x198] sm:$0xff]
                %249 = vst [vmem:[%s193 + $0xd8] sm:$0xff] %v248
                %v250 = vld [vmem:[%s192 + $0x1c0] sm:$0xff]
                %251 = vst [vmem:[%s193 + $0xe0] sm:$0xff] %v250
                %v252 = vld [vmem:[%s192 + $0x1c8] sm:$0xff]
                %253 = vst [vmem:[%s193 + $0xe8] sm:$0xff] %v252
                %v254 = vld [vmem:[%s192 + $0x1d0] sm:$0xff]
                %255 = vst [vmem:[%s193 + $0xf0] sm:$0xff] %v254
                %v256 = vld [vmem:[%s192 + $0x1d8] sm:$0xff]
                %257 = vst [vmem:[%s193 + $0xf8] sm:$0xff] %v256
                %v258 = vld [vmem:[%s192 + $0x200] sm:$0xff]
                %259 = vst [vmem:[%s193 + $0x100] sm:$0xff] %v258
                %v260 = vld [vmem:[%s192 + $0x208] sm:$0xff]
                %261 = vst [vmem:[%s193 + $0x108] sm:$0xff] %v260
                %v262 = vld [vmem:[%s192 + $0x210] sm:$0xff]
                %263 = vst [vmem:[%s193 + $0x110] sm:$0xff] %v262
                %v264 = vld [vmem:[%s192 + $0x218] sm:$0xff]
                %265 = vst [vmem:[%s193 + $0x118] sm:$0xff] %v264
                %v266 = vld [vmem:[%s192 + $0x240] sm:$0xff]
                %267 = vst [vmem:[%s193 + $0x120] sm:$0xff] %v266
                %v268 = vld [vmem:[%s192 + $0x248] sm:$0xff]
                %269 = vst [vmem:[%s193 + $0x128] sm:$0xff] %v268
                %v270 = vld [vmem:[%s192 + $0x250] sm:$0xff]
                %271 = vst [vmem:[%s193 + $0x130] sm:$0xff] %v270
                %v272 = vld [vmem:[%s192 + $0x258] sm:$0xff]
                %273 = vst [vmem:[%s193 + $0x138] sm:$0xff] %v272
                %v274 = vld [vmem:[%s192 + $0x280] sm:$0xff]
                %275 = vst [vmem:[%s193 + $0x140] sm:$0xff] %v274
                %v276 = vld [vmem:[%s192 + $0x288] sm:$0xff]
                %277 = vst [vmem:[%s193 + $0x148] sm:$0xff] %v276
                %v278 = vld [vmem:[%s192 + $0x290] sm:$0xff]
                %279 = vst [vmem:[%s193 + $0x150] sm:$0xff] %v278
                %v280 = vld [vmem:[%s192 + $0x298] sm:$0xff]
                %281 = vst [vmem:[%s193 + $0x158] sm:$0xff] %v280
                %v282 = vld [vmem:[%s192 + $0x2c0] sm:$0xff]
                %283 = vst [vmem:[%s193 + $0x160] sm:$0xff] %v282
                %v284 = vld [vmem:[%s192 + $0x2c8] sm:$0xff]
                %285 = vst [vmem:[%s193 + $0x168] sm:$0xff] %v284
                %v286 = vld [vmem:[%s192 + $0x2d0] sm:$0xff]
                %287 = vst [vmem:[%s193 + $0x170] sm:$0xff] %v286
                %v288 = vld [vmem:[%s192 + $0x2d8] sm:$0xff]
                %289 = vst [vmem:[%s193 + $0x178] sm:$0xff] %v288
                %v290 = vld [vmem:[%s192 + $0x300] sm:$0xff]
                %291 = vst [vmem:[%s193 + $0x180] sm:$0xff] %v290
                %v292 = vld [vmem:[%s192 + $0x308] sm:$0xff]
                %293 = vst [vmem:[%s193 + $0x188] sm:$0xff] %v292
                %v294 = vld [vmem:[%s192 + $0x310] sm:$0xff]
                %295 = vst [vmem:[%s193 + $0x190] sm:$0xff] %v294
                %v296 = vld [vmem:[%s192 + $0x318] sm:$0xff]
                %297 = vst [vmem:[%s193 + $0x198] sm:$0xff] %v296
                %v298 = vld [vmem:[%s192 + $0x340] sm:$0xff]
                %299 = vst [vmem:[%s193 + $0x1a0] sm:$0xff] %v298
                %v300 = vld [vmem:[%s192 + $0x348] sm:$0xff]
                %301 = vst [vmem:[%s193 + $0x1a8] sm:$0xff] %v300
                %v302 = vld [vmem:[%s192 + $0x350] sm:$0xff]
                %303 = vst [vmem:[%s193 + $0x1b0] sm:$0xff] %v302
                %v304 = vld [vmem:[%s192 + $0x358] sm:$0xff]
                %305 = vst [vmem:[%s193 + $0x1b8] sm:$0xff] %v304
                %v306 = vld [vmem:[%s192 + $0x380] sm:$0xff]
                %307 = vst [vmem:[%s193 + $0x1c0] sm:$0xff] %v306
                %v308 = vld [vmem:[%s192 + $0x388] sm:$0xff]
                %309 = vst [vmem:[%s193 + $0x1c8] sm:$0xff] %v308
                %v310 = vld [vmem:[%s192 + $0x390] sm:$0xff]
                %311 = vst [vmem:[%s193 + $0x1d0] sm:$0xff] %v310
                %v312 = vld [vmem:[%s192 + $0x398] sm:$0xff]
                %313 = vst [vmem:[%s193 + $0x1d8] sm:$0xff] %v312
                %v314 = vld [vmem:[%s192 + $0x3c0] sm:$0xff]
                %315 = vst [vmem:[%s193 + $0x1e0] sm:$0xff] %v314
                %v316 = vld [vmem:[%s192 + $0x3c8] sm:$0xff]
                %317 = vst [vmem:[%s193 + $0x1e8] sm:$0xff] %v316
                %v318 = vld [vmem:[%s192 + $0x3d0] sm:$0xff]
                %319 = vst [vmem:[%s193 + $0x1f0] sm:$0xff] %v318
                %v320 = vld [vmem:[%s192 + $0x3d8] sm:$0xff]
                %321 = vst [vmem:[%s193 + $0x1f8] sm:$0xff] %v320
              $region41: #{discriminator_forward.7} parent=35 // loop_footer
                %s191 = sadd.s32 1, %s187
              $region42: #{discriminator_forward.7} parent=35 // loop_footer_branch
                %186 = sbr.rel target = $region38
              $region43: #{discriminator_forward.7} parent=35 // loop_exit
                _
            $region36: #{discriminator_forward.7} parent=31 // pred_fallthru
              _
            // Predicated region
            $region44: #{discriminator_forward.7} parent=31 // pred_check
              _
            $region45: #{discriminator_forward.7} parent=31 // pred_check_branch
              %323 = sbr.rel target = $region47
            $region46: #{discriminator_forward.7} parent=31 // pred_region
              _
            $region47: #{discriminator_forward.7} parent=31 // pred_fallthru
              _
          $region32: #{discriminator_forward.7} parent=27 // pred_fallthru
            _
          %324 = vnop
        $region28: #{discriminator_forward.7} parent=23 // pred_fallthru
          _
        // Predicated region
        $region48: #{discriminator_forward.7} parent=23 // pred_check
          %p325 = pneg %p70
        $region49: #{discriminator_forward.7} parent=23 // pred_check_branch
          %327 = sbr.rel (%p325) target = $region51
        $region50: #{discriminator_forward.7} parent=23 // pred_region
          %s328 = smul.u32 128, %s18
          %p329 = scmp.lt.s32.totalorder %s328, 255
          %s330 = scalar_select %p329, %s328, 255
          %s331 = smul.addr %s330, 2
          %s332 = smul.addr %s331, 4
          %s333 = scalar_lea.vmem %s1, %s332
          %s334 = smul.u32 128, %s18
        $region51: #{discriminator_forward.7} parent=23 // pred_fallthru
          _
      $region24: #{discriminator_forward.7} parent=5 // pred_fallthru
        _
      %p335 = scmp.le.s32.totalorder 1, %s10
      %p336 = scmp.lt.s32.totalorder %s10, 3
      %p337 = pnand %p335, %p336
      %p338 = pneg %p337
      // Predicated region
      $region52: #{discriminator_forward.7} parent=5 // pred_check
        _
      $region53: #{discriminator_forward.7} parent=5 // pred_check_branch
        %340 = sbr.rel (%p337) target = $region55
      $region54: #{discriminator_forward.7} parent=5 // pred_region
        %s341 = ssub.s32 %s10, 1
        %s342 = sand.u32 %s37, 1
        %s343 = sand.u32 %s37, 1
        %s344 = smul.addr %s343, 512
        %s345 = scalar_lea.vmem [#allocation2], %s344
        // Predicated region
        $region56: #{discriminator_forward.7} parent=54 // pred_check
          %p346 = pneg %p50
        $region57: #{discriminator_forward.7} parent=54 // pred_check_branch
          %348 = sbr.rel (%p346) target = $region59
        $region58: #{discriminator_forward.7} parent=54 // pred_region
          _
        $region59: #{discriminator_forward.7} parent=54 // pred_fallthru
          _
        %s349 = sand.u32 %s37, 1
        %s350 = sand.u32 %s37, 1
        %s351 = smul.addr %s350, 512
        %s352 = scalar_lea.vmem [#allocation2], %s351
        %p353 = pneg %p50
        %p354 = pneg %p47
        %s355 = smul.u32 128, %s20
        %p356 = scmp.lt.s32.totalorder %s355, 255
        %s357 = scalar_select %p356, %s355, 255
        %s358 = smul.addr %s357, 2
        %s359 = smul.addr %s358, 4
        %s360 = scalar_lea.vmem %s1, %s359
        %p361 = pneg %p76
        %p362 = pneg %p73
        %p363 = pneg %p97
        %p364 = pneg %p94
        %p365 = pneg %p118
        %p366 = pneg %p115
        %p367 = pneg %p144
        %p368 = pneg %p141
        %s369 = smul.u32 16, %s19
        %p370 = scmp.lt.s32.totalorder %s369, 15
        %s371 = scalar_select %p370, %s369, 15
        %s372 = smul.addr %s371, 2
        %s373 = smul.addr %s372, 8
        %s374 = scalar_lea.vmem %s4, %s373
        %s375 = smul.u32 16, %s19
        %s376 = smul.u32 8, %s20
        %s377 = smul.u32 128, %s20
        %p378 = scmp.lt.s32.totalorder %s377, 255
        %s379 = scalar_select %p378, %s377, 255
        %s380 = smul.addr %s379, 2
        %s381 = smul.addr %s380, 4
        %s382 = scalar_lea.vmem %s1, %s381
        %s383 = smul.u32 128, %s20
        %s384 = smul.u32 16, %s19
        %p385 = scmp.lt.s32.totalorder %s384, 15
        %s386 = scalar_select %p385, %s384, 15
        %s387 = smul.addr %s386, 2
        %s388 = smul.addr %s387, 8
        %s389 = scalar_lea.vmem %s4, %s388
        %s390 = smul.u32 16, %s19
        %p391 = scmp.eq.s32.totalorder %s20, 0
        // Predicated region
        $region60: #{discriminator_forward.7} parent=54 // pred_check
          %p392 = pneg %p391
        $region61: #{discriminator_forward.7} parent=54 // pred_check_branch
          %394 = sbr.rel (%p392) target = $region63
        $region62: #{discriminator_forward.7} parent=54 // pred_region
          %395 = vst [vmem:[%s389] sm:$0xff] 0.0
          %396 = vst [vmem:[%s389 + $0x8] sm:$0xff] 0.0
          %397 = vst [vmem:[%s389 + $0x10] sm:$0xff] 0.0
          %398 = vst [vmem:[%s389 + $0x18] sm:$0xff] 0.0
          %399 = vst [vmem:[%s389 + $0x20] sm:$0xff] 0.0
          %400 = vst [vmem:[%s389 + $0x28] sm:$0xff] 0.0
          %401 = vst [vmem:[%s389 + $0x30] sm:$0xff] 0.0
          %402 = vst [vmem:[%s389 + $0x38] sm:$0xff] 0.0
          %403 = vst [vmem:[%s389 + $0x40] sm:$0xff] 0.0
          %404 = vst [vmem:[%s389 + $0x48] sm:$0xff] 0.0
          %405 = vst [vmem:[%s389 + $0x50] sm:$0xff] 0.0
          %406 = vst [vmem:[%s389 + $0x58] sm:$0xff] 0.0
          %407 = vst [vmem:[%s389 + $0x60] sm:$0xff] 0.0
          %408 = vst [vmem:[%s389 + $0x68] sm:$0xff] 0.0
          %409 = vst [vmem:[%s389 + $0x70] sm:$0xff] 0.0
          %410 = vst [vmem:[%s389 + $0x78] sm:$0xff] 0.0
          %411 = vst [vmem:[%s389 + $0x80] sm:$0xff] 0.0
          %412 = vst [vmem:[%s389 + $0x88] sm:$0xff] 0.0
          %413 = vst [vmem:[%s389 + $0x90] sm:$0xff] 0.0
          %414 = vst [vmem:[%s389 + $0x98] sm:$0xff] 0.0
          %415 = vst [vmem:[%s389 + $0xa0] sm:$0xff] 0.0
          %416 = vst [vmem:[%s389 + $0xa8] sm:$0xff] 0.0
          %417 = vst [vmem:[%s389 + $0xb0] sm:$0xff] 0.0
          %418 = vst [vmem:[%s389 + $0xb8] sm:$0xff] 0.0
          %419 = vst [vmem:[%s389 + $0xc0] sm:$0xff] 0.0
          %420 = vst [vmem:[%s389 + $0xc8] sm:$0xff] 0.0
          %421 = vst [vmem:[%s389 + $0xd0] sm:$0xff] 0.0
          %422 = vst [vmem:[%s389 + $0xd8] sm:$0xff] 0.0
          %423 = vst [vmem:[%s389 + $0xe0] sm:$0xff] 0.0
          %424 = vst [vmem:[%s389 + $0xe8] sm:$0xff] 0.0
          %425 = vst [vmem:[%s389 + $0xf0] sm:$0xff] 0.0
          %426 = vst [vmem:[%s389 + $0xf8] sm:$0xff] 0.0
        $region63: #{discriminator_forward.7} parent=54 // pred_fallthru
          _
        %v427 = vld [vmem:[%s389] sm:$0xff]
        %v428 = vld [vmem:[%s389 + $0x8] sm:$0xff]
        %v429 = vld [vmem:[%s389 + $0x10] sm:$0xff]
        %v430 = vld [vmem:[%s389 + $0x18] sm:$0xff]
        %v431 = vld [vmem:[%s389 + $0x20] sm:$0xff]
        %v432 = vld [vmem:[%s389 + $0x28] sm:$0xff]
        %v433 = vld [vmem:[%s389 + $0x30] sm:$0xff]
        %v434 = vld [vmem:[%s389 + $0x38] sm:$0xff]
        %v435 = vld [vmem:[%s389 + $0x40] sm:$0xff]
        %v436 = vld [vmem:[%s389 + $0x48] sm:$0xff]
        %v437 = vld [vmem:[%s389 + $0x50] sm:$0xff]
        %v438 = vld [vmem:[%s389 + $0x58] sm:$0xff]
        %v439 = vld [vmem:[%s389 + $0x60] sm:$0xff]
        %v440 = vld [vmem:[%s389 + $0x68] sm:$0xff]
        %v441 = vld [vmem:[%s389 + $0x70] sm:$0xff]
        %v442 = vld [vmem:[%s389 + $0x78] sm:$0xff]
        %v443 = vld [vmem:[%s389 + $0x80] sm:$0xff]
        %v444 = vld [vmem:[%s389 + $0x88] sm:$0xff]
        %v445 = vld [vmem:[%s389 + $0x90] sm:$0xff]
        %v446 = vld [vmem:[%s389 + $0x98] sm:$0xff]
        %v447 = vld [vmem:[%s389 + $0xa0] sm:$0xff]
        %v448 = vld [vmem:[%s389 + $0xa8] sm:$0xff]
        %v449 = vld [vmem:[%s389 + $0xb0] sm:$0xff]
        %v450 = vld [vmem:[%s389 + $0xb8] sm:$0xff]
        %v451 = vld [vmem:[%s389 + $0xc0] sm:$0xff]
        %v452 = vld [vmem:[%s389 + $0xc8] sm:$0xff]
        %v453 = vld [vmem:[%s389 + $0xd0] sm:$0xff]
        %v454 = vld [vmem:[%s389 + $0xd8] sm:$0xff]
        %v455 = vld [vmem:[%s389 + $0xe0] sm:$0xff]
        %v456 = vld [vmem:[%s389 + $0xe8] sm:$0xff]
        %v457 = vld [vmem:[%s389 + $0xf0] sm:$0xff]
        %v458 = vld [vmem:[%s389 + $0xf8] sm:$0xff]
        %v459 = vld [vmem:[%s345] sm:$0xff]
        %v460 = vld [vmem:[%s345 + $0x8] sm:$0xff]
        %v461 = vld [vmem:[%s345 + $0x10] sm:$0xff]
        %v462 = vld [vmem:[%s345 + $0x18] sm:$0xff]
        %v463 = vld [vmem:[%s345 + $0x20] sm:$0xff]
        %v464 = vld [vmem:[%s345 + $0x28] sm:$0xff]
        %v465 = vld [vmem:[%s345 + $0x30] sm:$0xff]
        %v466 = vld [vmem:[%s345 + $0x38] sm:$0xff]
        %v467 = vld [vmem:[%s345 + $0x40] sm:$0xff]
        %v468 = vld [vmem:[%s345 + $0x48] sm:$0xff]
        %v469 = vld [vmem:[%s345 + $0x50] sm:$0xff]
        %v470 = vld [vmem:[%s345 + $0x58] sm:$0xff]
        %v471 = vld [vmem:[%s345 + $0x60] sm:$0xff]
        %v472 = vld [vmem:[%s345 + $0x68] sm:$0xff]
        %v473 = vld [vmem:[%s345 + $0x70] sm:$0xff]
        %v474 = vld [vmem:[%s345 + $0x78] sm:$0xff]
        %v475 = vld [vmem:[%s345 + $0x80] sm:$0xff]
        %v476 = vld [vmem:[%s345 + $0x88] sm:$0xff]
        %v477 = vld [vmem:[%s345 + $0x90] sm:$0xff]
        %v478 = vld [vmem:[%s345 + $0x98] sm:$0xff]
        %v479 = vld [vmem:[%s345 + $0xa0] sm:$0xff]
        %v480 = vld [vmem:[%s345 + $0xa8] sm:$0xff]
        %v481 = vld [vmem:[%s345 + $0xb0] sm:$0xff]
        %v482 = vld [vmem:[%s345 + $0xb8] sm:$0xff]
        %v483 = vld [vmem:[%s345 + $0xc0] sm:$0xff]
        %v484 = vld [vmem:[%s345 + $0xc8] sm:$0xff]
        %v485 = vld [vmem:[%s345 + $0xd0] sm:$0xff]
        %v486 = vld [vmem:[%s345 + $0xd8] sm:$0xff]
        %v487 = vld [vmem:[%s345 + $0xe0] sm:$0xff]
        %v488 = vld [vmem:[%s345 + $0xe8] sm:$0xff]
        %v489 = vld [vmem:[%s345 + $0xf0] sm:$0xff]
        %v490 = vld [vmem:[%s345 + $0xf8] sm:$0xff]
        %v491 = vld [vmem:[%s345 + $0x100] sm:$0xff]
        %v492 = vld [vmem:[%s345 + $0x108] sm:$0xff]
        %v493 = vld [vmem:[%s345 + $0x110] sm:$0xff]
        %v494 = vld [vmem:[%s345 + $0x118] sm:$0xff]
        %v495 = vld [vmem:[%s345 + $0x120] sm:$0xff]
        %v496 = vld [vmem:[%s345 + $0x128] sm:$0xff]
        %v497 = vld [vmem:[%s345 + $0x130] sm:$0xff]
        %v498 = vld [vmem:[%s345 + $0x138] sm:$0xff]
        %v499 = vld [vmem:[%s345 + $0x140] sm:$0xff]
        %v500 = vld [vmem:[%s345 + $0x148] sm:$0xff]
        %v501 = vld [vmem:[%s345 + $0x150] sm:$0xff]
        %v502 = vld [vmem:[%s345 + $0x158] sm:$0xff]
        %v503 = vld [vmem:[%s345 + $0x160] sm:$0xff]
        %v504 = vld [vmem:[%s345 + $0x168] sm:$0xff]
        %v505 = vld [vmem:[%s345 + $0x170] sm:$0xff]
        %v506 = vld [vmem:[%s345 + $0x178] sm:$0xff]
        %v507 = vld [vmem:[%s345 + $0x180] sm:$0xff]
        %v508 = vld [vmem:[%s345 + $0x188] sm:$0xff]
        %v509 = vld [vmem:[%s345 + $0x190] sm:$0xff]
        %v510 = vld [vmem:[%s345 + $0x198] sm:$0xff]
        %v511 = vld [vmem:[%s345 + $0x1a0] sm:$0xff]
        %v512 = vld [vmem:[%s345 + $0x1a8] sm:$0xff]
        %v513 = vld [vmem:[%s345 + $0x1b0] sm:$0xff]
        %v514 = vld [vmem:[%s345 + $0x1b8] sm:$0xff]
        %v515 = vld [vmem:[%s345 + $0x1c0] sm:$0xff]
        %v516 = vld [vmem:[%s345 + $0x1c8] sm:$0xff]
        %v517 = vld [vmem:[%s345 + $0x1d0] sm:$0xff]
        %v518 = vld [vmem:[%s345 + $0x1d8] sm:$0xff]
        %v519 = vld [vmem:[%s345 + $0x1e0] sm:$0xff]
        %v520 = vld [vmem:[%s345 + $0x1e8] sm:$0xff]
        %v521 = vld [vmem:[%s345 + $0x1f0] sm:$0xff]
        %v522 = vld [vmem:[%s345 + $0x1f8] sm:$0xff]
        %v523 = vld [vmem:[%s382] sm:$0xff]
        %v524 = vld [vmem:[%s382 + $0x8] sm:$0xff]
        %v525 = vld [vmem:[%s382 + $0x10] sm:$0xff]
        %v526 = vld [vmem:[%s382 + $0x18] sm:$0xff]
        %v527 = vld [vmem:[%s382 + $0x20] sm:$0xff]
        %v528 = vld [vmem:[%s382 + $0x28] sm:$0xff]
        %v529 = vld [vmem:[%s382 + $0x30] sm:$0xff]
        %v530 = vld [vmem:[%s382 + $0x38] sm:$0xff]
        %v531 = vld [vmem:[%s382 + $0x40] sm:$0xff]
        %v532 = vld [vmem:[%s382 + $0x48] sm:$0xff]
        %v533 = vld [vmem:[%s382 + $0x50] sm:$0xff]
        %v534 = vld [vmem:[%s382 + $0x58] sm:$0xff]
        %v535 = vld [vmem:[%s382 + $0x60] sm:$0xff]
        %v536 = vld [vmem:[%s382 + $0x68] sm:$0xff]
        %v537 = vld [vmem:[%s382 + $0x70] sm:$0xff]
        %v538 = vld [vmem:[%s382 + $0x78] sm:$0xff]
        %v539 = vld [vmem:[%s382 + $0x80] sm:$0xff]
        %v540 = vld [vmem:[%s382 + $0x88] sm:$0xff]
        %v541 = vld [vmem:[%s382 + $0x90] sm:$0xff]
        %v542 = vld [vmem:[%s382 + $0x98] sm:$0xff]
        %v543 = vld [vmem:[%s382 + $0xa0] sm:$0xff]
        %v544 = vld [vmem:[%s382 + $0xa8] sm:$0xff]
        %v545 = vld [vmem:[%s382 + $0xb0] sm:$0xff]
        %v546 = vld [vmem:[%s382 + $0xb8] sm:$0xff]
        %v547 = vld [vmem:[%s382 + $0xc0] sm:$0xff]
        %v548 = vld [vmem:[%s382 + $0xc8] sm:$0xff]
        %v549 = vld [vmem:[%s382 + $0xd0] sm:$0xff]
        %v550 = vld [vmem:[%s382 + $0xd8] sm:$0xff]
        %v551 = vld [vmem:[%s382 + $0xe0] sm:$0xff]
        %v552 = vld [vmem:[%s382 + $0xe8] sm:$0xff]
        %v553 = vld [vmem:[%s382 + $0xf0] sm:$0xff]
        %v554 = vld [vmem:[%s382 + $0xf8] sm:$0xff]
        %v555 = vld [vmem:[%s382 + $0x100] sm:$0xff]
        %v556 = vld [vmem:[%s382 + $0x108] sm:$0xff]
        %v557 = vld [vmem:[%s382 + $0x110] sm:$0xff]
        %v558 = vld [vmem:[%s382 + $0x118] sm:$0xff]
        %v559 = vld [vmem:[%s382 + $0x120] sm:$0xff]
        %v560 = vld [vmem:[%s382 + $0x128] sm:$0xff]
        %v561 = vld [vmem:[%s382 + $0x130] sm:$0xff]
        %v562 = vld [vmem:[%s382 + $0x138] sm:$0xff]
        %v563 = vld [vmem:[%s382 + $0x140] sm:$0xff]
        %v564 = vld [vmem:[%s382 + $0x148] sm:$0xff]
        %v565 = vld [vmem:[%s382 + $0x150] sm:$0xff]
        %v566 = vld [vmem:[%s382 + $0x158] sm:$0xff]
        %v567 = vld [vmem:[%s382 + $0x160] sm:$0xff]
        %v568 = vld [vmem:[%s382 + $0x168] sm:$0xff]
        %v569 = vld [vmem:[%s382 + $0x170] sm:$0xff]
        %v570 = vld [vmem:[%s382 + $0x178] sm:$0xff]
        %v571 = vld [vmem:[%s382 + $0x180] sm:$0xff]
        %v572 = vld [vmem:[%s382 + $0x188] sm:$0xff]
        %v573 = vld [vmem:[%s382 + $0x190] sm:$0xff]
        %v574 = vld [vmem:[%s382 + $0x198] sm:$0xff]
        %v575 = vld [vmem:[%s382 + $0x1a0] sm:$0xff]
        %v576 = vld [vmem:[%s382 + $0x1a8] sm:$0xff]
        %v577 = vld [vmem:[%s382 + $0x1b0] sm:$0xff]
        %v578 = vld [vmem:[%s382 + $0x1b8] sm:$0xff]
        %v579 = vld [vmem:[%s382 + $0x1c0] sm:$0xff]
        %v580 = vld [vmem:[%s382 + $0x1c8] sm:$0xff]
        %v581 = vld [vmem:[%s382 + $0x1d0] sm:$0xff]
        %v582 = vld [vmem:[%s382 + $0x1d8] sm:$0xff]
        %v583 = vld [vmem:[%s382 + $0x1e0] sm:$0xff]
        %v584 = vld [vmem:[%s382 + $0x1e8] sm:$0xff]
        %v585 = vld [vmem:[%s382 + $0x1f0] sm:$0xff]
        %v586 = vld [vmem:[%s382 + $0x1f8] sm:$0xff]
        %v587 = vld [vmem:[%s382 + $0x200] sm:$0xff]
        %v588 = vld [vmem:[%s382 + $0x208] sm:$0xff]
        %v589 = vld [vmem:[%s382 + $0x210] sm:$0xff]
        %v590 = vld [vmem:[%s382 + $0x218] sm:$0xff]
        %v591 = vld [vmem:[%s382 + $0x220] sm:$0xff]
        %v592 = vld [vmem:[%s382 + $0x228] sm:$0xff]
        %v593 = vld [vmem:[%s382 + $0x230] sm:$0xff]
        %v594 = vld [vmem:[%s382 + $0x238] sm:$0xff]
        %v595 = vld [vmem:[%s382 + $0x240] sm:$0xff]
        %v596 = vld [vmem:[%s382 + $0x248] sm:$0xff]
        %v597 = vld [vmem:[%s382 + $0x250] sm:$0xff]
        %v598 = vld [vmem:[%s382 + $0x258] sm:$0xff]
        %v599 = vld [vmem:[%s382 + $0x260] sm:$0xff]
        %v600 = vld [vmem:[%s382 + $0x268] sm:$0xff]
        %v601 = vld [vmem:[%s382 + $0x270] sm:$0xff]
        %v602 = vld [vmem:[%s382 + $0x278] sm:$0xff]
        %v603 = vld [vmem:[%s382 + $0x280] sm:$0xff]
        %v604 = vld [vmem:[%s382 + $0x288] sm:$0xff]
        %v605 = vld [vmem:[%s382 + $0x290] sm:$0xff]
        %v606 = vld [vmem:[%s382 + $0x298] sm:$0xff]
        %v607 = vld [vmem:[%s382 + $0x2a0] sm:$0xff]
        %v608 = vld [vmem:[%s382 + $0x2a8] sm:$0xff]
        %v609 = vld [vmem:[%s382 + $0x2b0] sm:$0xff]
        %v610 = vld [vmem:[%s382 + $0x2b8] sm:$0xff]
        %v611 = vld [vmem:[%s382 + $0x2c0] sm:$0xff]
        %v612 = vld [vmem:[%s382 + $0x2c8] sm:$0xff]
        %v613 = vld [vmem:[%s382 + $0x2d0] sm:$0xff]
        %v614 = vld [vmem:[%s382 + $0x2d8] sm:$0xff]
        %v615 = vld [vmem:[%s382 + $0x2e0] sm:$0xff]
        %v616 = vld [vmem:[%s382 + $0x2e8] sm:$0xff]
        %v617 = vld [vmem:[%s382 + $0x2f0] sm:$0xff]
        %v618 = vld [vmem:[%s382 + $0x2f8] sm:$0xff]
        %v619 = vld [vmem:[%s382 + $0x300] sm:$0xff]
        %v620 = vld [vmem:[%s382 + $0x308] sm:$0xff]
        %v621 = vld [vmem:[%s382 + $0x310] sm:$0xff]
        %v622 = vld [vmem:[%s382 + $0x318] sm:$0xff]
        %v623 = vld [vmem:[%s382 + $0x320] sm:$0xff]
        %v624 = vld [vmem:[%s382 + $0x328] sm:$0xff]
        %v625 = vld [vmem:[%s382 + $0x330] sm:$0xff]
        %v626 = vld [vmem:[%s382 + $0x338] sm:$0xff]
        %v627 = vld [vmem:[%s382 + $0x340] sm:$0xff]
        %v628 = vld [vmem:[%s382 + $0x348] sm:$0xff]
        %v629 = vld [vmem:[%s382 + $0x350] sm:$0xff]
        %v630 = vld [vmem:[%s382 + $0x358] sm:$0xff]
        %v631 = vld [vmem:[%s382 + $0x360] sm:$0xff]
        %v632 = vld [vmem:[%s382 + $0x368] sm:$0xff]
        %v633 = vld [vmem:[%s382 + $0x370] sm:$0xff]
        %v634 = vld [vmem:[%s382 + $0x378] sm:$0xff]
        %v635 = vld [vmem:[%s382 + $0x380] sm:$0xff]
        %v636 = vld [vmem:[%s382 + $0x388] sm:$0xff]
        %v637 = vld [vmem:[%s382 + $0x390] sm:$0xff]
        %v638 = vld [vmem:[%s382 + $0x398] sm:$0xff]
        %v639 = vld [vmem:[%s382 + $0x3a0] sm:$0xff]
        %v640 = vld [vmem:[%s382 + $0x3a8] sm:$0xff]
        %v641 = vld [vmem:[%s382 + $0x3b0] sm:$0xff]
        %v642 = vld [vmem:[%s382 + $0x3b8] sm:$0xff]
        %v643 = vld [vmem:[%s382 + $0x3c0] sm:$0xff]
        %v644 = vld [vmem:[%s382 + $0x3c8] sm:$0xff]
        %v645 = vld [vmem:[%s382 + $0x3d0] sm:$0xff]
        %v646 = vld [vmem:[%s382 + $0x3d8] sm:$0xff]
        %v647 = vld [vmem:[%s382 + $0x3e0] sm:$0xff]
        %v648 = vld [vmem:[%s382 + $0x3e8] sm:$0xff]
        %v649 = vld [vmem:[%s382 + $0x3f0] sm:$0xff]
        %v650 = vld [vmem:[%s382 + $0x3f8] sm:$0xff]
        %v715 = vunpack.c.l.b16 %v459
        %v716 = vunpack.c.h.b16 %v459
        %v717 = vunpack.c.l.b16 %v460
        %v718 = vunpack.c.h.b16 %v460
        %v719 = vunpack.c.l.b16 %v461
        %v720 = vunpack.c.h.b16 %v461
        %v721 = vunpack.c.l.b16 %v462
        %v722 = vunpack.c.h.b16 %v462
        %v723 = vunpack.c.l.b16 %v463
        %v724 = vunpack.c.h.b16 %v463
        %v725 = vunpack.c.l.b16 %v464
        %v726 = vunpack.c.h.b16 %v464
        %v727 = vunpack.c.l.b16 %v465
        %v728 = vunpack.c.h.b16 %v465
        %v729 = vunpack.c.l.b16 %v466
        %v730 = vunpack.c.h.b16 %v466
        %v731 = vunpack.c.l.b16 %v467
        %v732 = vunpack.c.h.b16 %v467
        %v733 = vunpack.c.l.b16 %v468
        %v734 = vunpack.c.h.b16 %v468
        %v735 = vunpack.c.l.b16 %v469
        %v736 = vunpack.c.h.b16 %v469
        %v737 = vunpack.c.l.b16 %v470
        %v738 = vunpack.c.h.b16 %v470
        %v739 = vunpack.c.l.b16 %v471
        %v740 = vunpack.c.h.b16 %v471
        %v741 = vunpack.c.l.b16 %v472
        %v742 = vunpack.c.h.b16 %v472
        %v743 = vunpack.c.l.b16 %v473
        %v744 = vunpack.c.h.b16 %v473
        %v745 = vunpack.c.l.b16 %v474
        %v746 = vunpack.c.h.b16 %v474
        %v747 = vunpack.c.l.b16 %v475
        %v748 = vunpack.c.h.b16 %v475
        %v749 = vunpack.c.l.b16 %v476
        %v750 = vunpack.c.h.b16 %v476
        %v751 = vunpack.c.l.b16 %v477
        %v752 = vunpack.c.h.b16 %v477
        %v753 = vunpack.c.l.b16 %v478
        %v754 = vunpack.c.h.b16 %v478
        %v755 = vunpack.c.l.b16 %v479
        %v756 = vunpack.c.h.b16 %v479
        %v757 = vunpack.c.l.b16 %v480
        %v758 = vunpack.c.h.b16 %v480
        %v759 = vunpack.c.l.b16 %v481
        %v760 = vunpack.c.h.b16 %v481
        %v761 = vunpack.c.l.b16 %v482
        %v762 = vunpack.c.h.b16 %v482
        %v763 = vunpack.c.l.b16 %v483
        %v764 = vunpack.c.h.b16 %v483
        %v765 = vunpack.c.l.b16 %v484
        %v766 = vunpack.c.h.b16 %v484
        %v767 = vunpack.c.l.b16 %v485
        %v768 = vunpack.c.h.b16 %v485
        %v769 = vunpack.c.l.b16 %v486
        %v770 = vunpack.c.h.b16 %v486
        %v771 = vunpack.c.l.b16 %v487
        %v772 = vunpack.c.h.b16 %v487
        %v773 = vunpack.c.l.b16 %v488
        %v774 = vunpack.c.h.b16 %v488
        %v775 = vunpack.c.l.b16 %v489
        %v776 = vunpack.c.h.b16 %v489
        %v777 = vunpack.c.l.b16 %v490
        %v778 = vunpack.c.h.b16 %v490
        %v779 = vunpack.c.l.b16 %v491
        %v780 = vunpack.c.h.b16 %v491
        %v781 = vunpack.c.l.b16 %v492
        %v782 = vunpack.c.h.b16 %v492
        %v783 = vunpack.c.l.b16 %v493
        %v784 = vunpack.c.h.b16 %v493
        %v785 = vunpack.c.l.b16 %v494
        %v786 = vunpack.c.h.b16 %v494
        %v787 = vunpack.c.l.b16 %v495
        %v788 = vunpack.c.h.b16 %v495
        %v789 = vunpack.c.l.b16 %v496
        %v790 = vunpack.c.h.b16 %v496
        %v791 = vunpack.c.l.b16 %v497
        %v792 = vunpack.c.h.b16 %v497
        %v793 = vunpack.c.l.b16 %v498
        %v794 = vunpack.c.h.b16 %v498
        %v795 = vunpack.c.l.b16 %v499
        %v796 = vunpack.c.h.b16 %v499
        %v797 = vunpack.c.l.b16 %v500
        %v798 = vunpack.c.h.b16 %v500
        %v799 = vunpack.c.l.b16 %v501
        %v800 = vunpack.c.h.b16 %v501
        %v801 = vunpack.c.l.b16 %v502
        %v802 = vunpack.c.h.b16 %v502
        %v803 = vunpack.c.l.b16 %v503
        %v804 = vunpack.c.h.b16 %v503
        %v805 = vunpack.c.l.b16 %v504
        %v806 = vunpack.c.h.b16 %v504
        %v807 = vunpack.c.l.b16 %v505
        %v808 = vunpack.c.h.b16 %v505
        %v809 = vunpack.c.l.b16 %v506
        %v810 = vunpack.c.h.b16 %v506
        %v811 = vunpack.c.l.b16 %v507
        %v812 = vunpack.c.h.b16 %v507
        %v813 = vunpack.c.l.b16 %v508
        %v814 = vunpack.c.h.b16 %v508
        %v815 = vunpack.c.l.b16 %v509
        %v816 = vunpack.c.h.b16 %v509
        %v817 = vunpack.c.l.b16 %v510
        %v818 = vunpack.c.h.b16 %v510
        %v819 = vunpack.c.l.b16 %v511
        %v820 = vunpack.c.h.b16 %v511
        %v821 = vunpack.c.l.b16 %v512
        %v822 = vunpack.c.h.b16 %v512
        %v823 = vunpack.c.l.b16 %v513
        %v824 = vunpack.c.h.b16 %v513
        %v825 = vunpack.c.l.b16 %v514
        %v826 = vunpack.c.h.b16 %v514
        %v827 = vunpack.c.l.b16 %v515
        %v828 = vunpack.c.h.b16 %v515
        %v829 = vunpack.c.l.b16 %v516
        %v830 = vunpack.c.h.b16 %v516
        %v831 = vunpack.c.l.b16 %v517
        %v832 = vunpack.c.h.b16 %v517
        %v833 = vunpack.c.l.b16 %v518
        %v834 = vunpack.c.h.b16 %v518
        %v835 = vunpack.c.l.b16 %v519
        %v836 = vunpack.c.h.b16 %v519
        %v837 = vunpack.c.l.b16 %v520
        %v838 = vunpack.c.h.b16 %v520
        %v839 = vunpack.c.l.b16 %v521
        %v840 = vunpack.c.h.b16 %v521
        %v841 = vunpack.c.l.b16 %v522
        %v842 = vunpack.c.h.b16 %v522
        %v843 = vpack.c.b16 %v723, %v715
        %v844 = vpack.c.b16 %v724, %v716
        %v845 = vpack.c.b16 %v725, %v717
        %v846 = vpack.c.b16 %v726, %v718
        %v847 = vpack.c.b16 %v727, %v719
        %v848 = vpack.c.b16 %v728, %v720
        %v849 = vpack.c.b16 %v729, %v721
        %v850 = vpack.c.b16 %v730, %v722
        %v851 = vpack.c.b16 %v739, %v731
        %v852 = vpack.c.b16 %v740, %v732
        %v853 = vpack.c.b16 %v741, %v733
        %v854 = vpack.c.b16 %v742, %v734
        %v855 = vpack.c.b16 %v743, %v735
        %v856 = vpack.c.b16 %v744, %v736
        %v857 = vpack.c.b16 %v745, %v737
        %v858 = vpack.c.b16 %v746, %v738
        %v859 = vpack.c.b16 %v755, %v747
        %v860 = vpack.c.b16 %v756, %v748
        %v861 = vpack.c.b16 %v757, %v749
        %v862 = vpack.c.b16 %v758, %v750
        %v863 = vpack.c.b16 %v759, %v751
        %v864 = vpack.c.b16 %v760, %v752
        %v865 = vpack.c.b16 %v761, %v753
        %v866 = vpack.c.b16 %v762, %v754
        %v867 = vpack.c.b16 %v771, %v763
        %v868 = vpack.c.b16 %v772, %v764
        %v869 = vpack.c.b16 %v773, %v765
        %v870 = vpack.c.b16 %v774, %v766
        %v871 = vpack.c.b16 %v775, %v767
        %v872 = vpack.c.b16 %v776, %v768
        %v873 = vpack.c.b16 %v777, %v769
        %v874 = vpack.c.b16 %v778, %v770
        %v875 = vpack.c.b16 %v787, %v779
        %v876 = vpack.c.b16 %v788, %v780
        %v877 = vpack.c.b16 %v789, %v781
        %v878 = vpack.c.b16 %v790, %v782
        %v879 = vpack.c.b16 %v791, %v783
        %v880 = vpack.c.b16 %v792, %v784
        %v881 = vpack.c.b16 %v793, %v785
        %v882 = vpack.c.b16 %v794, %v786
        %v883 = vpack.c.b16 %v803, %v795
        %v884 = vpack.c.b16 %v804, %v796
        %v885 = vpack.c.b16 %v805, %v797
        %v886 = vpack.c.b16 %v806, %v798
        %v887 = vpack.c.b16 %v807, %v799
        %v888 = vpack.c.b16 %v808, %v800
        %v889 = vpack.c.b16 %v809, %v801
        %v890 = vpack.c.b16 %v810, %v802
        %v891 = vpack.c.b16 %v819, %v811
        %v892 = vpack.c.b16 %v820, %v812
        %v893 = vpack.c.b16 %v821, %v813
        %v894 = vpack.c.b16 %v822, %v814
        %v895 = vpack.c.b16 %v823, %v815
        %v896 = vpack.c.b16 %v824, %v816
        %v897 = vpack.c.b16 %v825, %v817
        %v898 = vpack.c.b16 %v826, %v818
        %v899 = vpack.c.b16 %v835, %v827
        %v900 = vpack.c.b16 %v836, %v828
        %v901 = vpack.c.b16 %v837, %v829
        %v902 = vpack.c.b16 %v838, %v830
        %v903 = vpack.c.b16 %v839, %v831
        %v904 = vpack.c.b16 %v840, %v832
        %v905 = vpack.c.b16 %v841, %v833
        %v906 = vpack.c.b16 %v842, %v834
        %v1099 = vunpack.c.l.b16 %v523
        %v1100 = vunpack.c.h.b16 %v523
        %v1101 = vunpack.c.l.b16 %v524
        %v1102 = vunpack.c.h.b16 %v524
        %v1103 = vunpack.c.l.b16 %v525
        %v1104 = vunpack.c.h.b16 %v525
        %v1105 = vunpack.c.l.b16 %v526
        %v1106 = vunpack.c.h.b16 %v526
        %v1107 = vunpack.c.l.b16 %v527
        %v1108 = vunpack.c.h.b16 %v527
        %v1109 = vunpack.c.l.b16 %v528
        %v1110 = vunpack.c.h.b16 %v528
        %v1111 = vunpack.c.l.b16 %v529
        %v1112 = vunpack.c.h.b16 %v529
        %v1113 = vunpack.c.l.b16 %v530
        %v1114 = vunpack.c.h.b16 %v530
        %v1115 = vunpack.c.l.b16 %v531
        %v1116 = vunpack.c.h.b16 %v531
        %v1117 = vunpack.c.l.b16 %v532
        %v1118 = vunpack.c.h.b16 %v532
        %v1119 = vunpack.c.l.b16 %v533
        %v1120 = vunpack.c.h.b16 %v533
        %v1121 = vunpack.c.l.b16 %v534
        %v1122 = vunpack.c.h.b16 %v534
        %v1123 = vunpack.c.l.b16 %v535
        %v1124 = vunpack.c.h.b16 %v535
        %v1125 = vunpack.c.l.b16 %v536
        %v1126 = vunpack.c.h.b16 %v536
        %v1127 = vunpack.c.l.b16 %v537
        %v1128 = vunpack.c.h.b16 %v537
        %v1129 = vunpack.c.l.b16 %v538
        %v1130 = vunpack.c.h.b16 %v538
        %v1131 = vunpack.c.l.b16 %v539
        %v1132 = vunpack.c.h.b16 %v539
        %v1133 = vunpack.c.l.b16 %v540
        %v1134 = vunpack.c.h.b16 %v540
        %v1135 = vunpack.c.l.b16 %v541
        %v1136 = vunpack.c.h.b16 %v541
        %v1137 = vunpack.c.l.b16 %v542
        %v1138 = vunpack.c.h.b16 %v542
        %v1139 = vunpack.c.l.b16 %v543
        %v1140 = vunpack.c.h.b16 %v543
        %v1141 = vunpack.c.l.b16 %v544
        %v1142 = vunpack.c.h.b16 %v544
        %v1143 = vunpack.c.l.b16 %v545
        %v1144 = vunpack.c.h.b16 %v545
        %v1145 = vunpack.c.l.b16 %v546
        %v1146 = vunpack.c.h.b16 %v546
        %v1147 = vunpack.c.l.b16 %v547
        %v1148 = vunpack.c.h.b16 %v547
        %v1149 = vunpack.c.l.b16 %v548
        %v1150 = vunpack.c.h.b16 %v548
        %v1151 = vunpack.c.l.b16 %v549
        %v1152 = vunpack.c.h.b16 %v549
        %v1153 = vunpack.c.l.b16 %v550
        %v1154 = vunpack.c.h.b16 %v550
        %v1155 = vunpack.c.l.b16 %v551
        %v1156 = vunpack.c.h.b16 %v551
        %v1157 = vunpack.c.l.b16 %v552
        %v1158 = vunpack.c.h.b16 %v552
        %v1159 = vunpack.c.l.b16 %v553
        %v1160 = vunpack.c.h.b16 %v553
        %v1161 = vunpack.c.l.b16 %v554
        %v1162 = vunpack.c.h.b16 %v554
        %v1163 = vunpack.c.l.b16 %v555
        %v1164 = vunpack.c.h.b16 %v555
        %v1165 = vunpack.c.l.b16 %v556
        %v1166 = vunpack.c.h.b16 %v556
        %v1167 = vunpack.c.l.b16 %v557
        %v1168 = vunpack.c.h.b16 %v557
        %v1169 = vunpack.c.l.b16 %v558
        %v1170 = vunpack.c.h.b16 %v558
        %v1171 = vunpack.c.l.b16 %v559
        %v1172 = vunpack.c.h.b16 %v559
        %v1173 = vunpack.c.l.b16 %v560
        %v1174 = vunpack.c.h.b16 %v560
        %v1175 = vunpack.c.l.b16 %v561
        %v1176 = vunpack.c.h.b16 %v561
        %v1177 = vunpack.c.l.b16 %v562
        %v1178 = vunpack.c.h.b16 %v562
        %v1179 = vunpack.c.l.b16 %v563
        %v1180 = vunpack.c.h.b16 %v563
        %v1181 = vunpack.c.l.b16 %v564
        %v1182 = vunpack.c.h.b16 %v564
        %v1183 = vunpack.c.l.b16 %v565
        %v1184 = vunpack.c.h.b16 %v565
        %v1185 = vunpack.c.l.b16 %v566
        %v1186 = vunpack.c.h.b16 %v566
        %v1187 = vunpack.c.l.b16 %v567
        %v1188 = vunpack.c.h.b16 %v567
        %v1189 = vunpack.c.l.b16 %v568
        %v1190 = vunpack.c.h.b16 %v568
        %v1191 = vunpack.c.l.b16 %v569
        %v1192 = vunpack.c.h.b16 %v569
        %v1193 = vunpack.c.l.b16 %v570
        %v1194 = vunpack.c.h.b16 %v570
        %v1195 = vunpack.c.l.b16 %v571
        %v1196 = vunpack.c.h.b16 %v571
        %v1197 = vunpack.c.l.b16 %v572
        %v1198 = vunpack.c.h.b16 %v572
        %v1199 = vunpack.c.l.b16 %v573
        %v1200 = vunpack.c.h.b16 %v573
        %v1201 = vunpack.c.l.b16 %v574
        %v1202 = vunpack.c.h.b16 %v574
        %v1203 = vunpack.c.l.b16 %v575
        %v1204 = vunpack.c.h.b16 %v575
        %v1205 = vunpack.c.l.b16 %v576
        %v1206 = vunpack.c.h.b16 %v576
        %v1207 = vunpack.c.l.b16 %v577
        %v1208 = vunpack.c.h.b16 %v577
        %v1209 = vunpack.c.l.b16 %v578
        %v1210 = vunpack.c.h.b16 %v578
        %v1211 = vunpack.c.l.b16 %v579
        %v1212 = vunpack.c.h.b16 %v579
        %v1213 = vunpack.c.l.b16 %v580
        %v1214 = vunpack.c.h.b16 %v580
        %v1215 = vunpack.c.l.b16 %v581
        %v1216 = vunpack.c.h.b16 %v581
        %v1217 = vunpack.c.l.b16 %v582
        %v1218 = vunpack.c.h.b16 %v582
        %v1219 = vunpack.c.l.b16 %v583
        %v1220 = vunpack.c.h.b16 %v583
        %v1221 = vunpack.c.l.b16 %v584
        %v1222 = vunpack.c.h.b16 %v584
        %v1223 = vunpack.c.l.b16 %v585
        %v1224 = vunpack.c.h.b16 %v585
        %v1225 = vunpack.c.l.b16 %v586
        %v1226 = vunpack.c.h.b16 %v586
        %v1227 = vunpack.c.l.b16 %v587
        %v1228 = vunpack.c.h.b16 %v587
        %v1229 = vunpack.c.l.b16 %v588
        %v1230 = vunpack.c.h.b16 %v588
        %v1231 = vunpack.c.l.b16 %v589
        %v1232 = vunpack.c.h.b16 %v589
        %v1233 = vunpack.c.l.b16 %v590
        %v1234 = vunpack.c.h.b16 %v590
        %v1235 = vunpack.c.l.b16 %v591
        %v1236 = vunpack.c.h.b16 %v591
        %v1237 = vunpack.c.l.b16 %v592
        %v1238 = vunpack.c.h.b16 %v592
        %v1239 = vunpack.c.l.b16 %v593
        %v1240 = vunpack.c.h.b16 %v593
        %v1241 = vunpack.c.l.b16 %v594
        %v1242 = vunpack.c.h.b16 %v594
        %v1243 = vunpack.c.l.b16 %v595
        %v1244 = vunpack.c.h.b16 %v595
        %v1245 = vunpack.c.l.b16 %v596
        %v1246 = vunpack.c.h.b16 %v596
        %v1247 = vunpack.c.l.b16 %v597
        %v1248 = vunpack.c.h.b16 %v597
        %v1249 = vunpack.c.l.b16 %v598
        %v1250 = vunpack.c.h.b16 %v598
        %v1251 = vunpack.c.l.b16 %v599
        %v1252 = vunpack.c.h.b16 %v599
        %v1253 = vunpack.c.l.b16 %v600
        %v1254 = vunpack.c.h.b16 %v600
        %v1255 = vunpack.c.l.b16 %v601
        %v1256 = vunpack.c.h.b16 %v601
        %v1257 = vunpack.c.l.b16 %v602
        %v1258 = vunpack.c.h.b16 %v602
        %v1259 = vunpack.c.l.b16 %v603
        %v1260 = vunpack.c.h.b16 %v603
        %v1261 = vunpack.c.l.b16 %v604
        %v1262 = vunpack.c.h.b16 %v604
        %v1263 = vunpack.c.l.b16 %v605
        %v1264 = vunpack.c.h.b16 %v605
        %v1265 = vunpack.c.l.b16 %v606
        %v1266 = vunpack.c.h.b16 %v606
        %v1267 = vunpack.c.l.b16 %v607
        %v1268 = vunpack.c.h.b16 %v607
        %v1269 = vunpack.c.l.b16 %v608
        %v1270 = vunpack.c.h.b16 %v608
        %v1271 = vunpack.c.l.b16 %v609
        %v1272 = vunpack.c.h.b16 %v609
        %v1273 = vunpack.c.l.b16 %v610
        %v1274 = vunpack.c.h.b16 %v610
        %v1275 = vunpack.c.l.b16 %v611
        %v1276 = vunpack.c.h.b16 %v611
        %v1277 = vunpack.c.l.b16 %v612
        %v1278 = vunpack.c.h.b16 %v612
        %v1279 = vunpack.c.l.b16 %v613
        %v1280 = vunpack.c.h.b16 %v613
        %v1281 = vunpack.c.l.b16 %v614
        %v1282 = vunpack.c.h.b16 %v614
        %v1283 = vunpack.c.l.b16 %v615
        %v1284 = vunpack.c.h.b16 %v615
        %v1285 = vunpack.c.l.b16 %v616
        %v1286 = vunpack.c.h.b16 %v616
        %v1287 = vunpack.c.l.b16 %v617
        %v1288 = vunpack.c.h.b16 %v617
        %v1289 = vunpack.c.l.b16 %v618
        %v1290 = vunpack.c.h.b16 %v618
        %v1291 = vunpack.c.l.b16 %v619
        %v1292 = vunpack.c.h.b16 %v619
        %v1293 = vunpack.c.l.b16 %v620
        %v1294 = vunpack.c.h.b16 %v620
        %v1295 = vunpack.c.l.b16 %v621
        %v1296 = vunpack.c.h.b16 %v621
        %v1297 = vunpack.c.l.b16 %v622
        %v1298 = vunpack.c.h.b16 %v622
        %v1299 = vunpack.c.l.b16 %v623
        %v1300 = vunpack.c.h.b16 %v623
        %v1301 = vunpack.c.l.b16 %v624
        %v1302 = vunpack.c.h.b16 %v624
        %v1303 = vunpack.c.l.b16 %v625
        %v1304 = vunpack.c.h.b16 %v625
        %v1305 = vunpack.c.l.b16 %v626
        %v1306 = vunpack.c.h.b16 %v626
        %v1307 = vunpack.c.l.b16 %v627
        %v1308 = vunpack.c.h.b16 %v627
        %v1309 = vunpack.c.l.b16 %v628
        %v1310 = vunpack.c.h.b16 %v628
        %v1311 = vunpack.c.l.b16 %v629
        %v1312 = vunpack.c.h.b16 %v629
        %v1313 = vunpack.c.l.b16 %v630
        %v1314 = vunpack.c.h.b16 %v630
        %v1315 = vunpack.c.l.b16 %v631
        %v1316 = vunpack.c.h.b16 %v631
        %v1317 = vunpack.c.l.b16 %v632
        %v1318 = vunpack.c.h.b16 %v632
        %v1319 = vunpack.c.l.b16 %v633
        %v1320 = vunpack.c.h.b16 %v633
        %v1321 = vunpack.c.l.b16 %v634
        %v1322 = vunpack.c.h.b16 %v634
        %v1323 = vunpack.c.l.b16 %v635
        %v1324 = vunpack.c.h.b16 %v635
        %v1325 = vunpack.c.l.b16 %v636
        %v1326 = vunpack.c.h.b16 %v636
        %v1327 = vunpack.c.l.b16 %v637
        %v1328 = vunpack.c.h.b16 %v637
        %v1329 = vunpack.c.l.b16 %v638
        %v1330 = vunpack.c.h.b16 %v638
        %v1331 = vunpack.c.l.b16 %v639
        %v1332 = vunpack.c.h.b16 %v639
        %v1333 = vunpack.c.l.b16 %v640
        %v1334 = vunpack.c.h.b16 %v640
        %v1335 = vunpack.c.l.b16 %v641
        %v1336 = vunpack.c.h.b16 %v641
        %v1337 = vunpack.c.l.b16 %v642
        %v1338 = vunpack.c.h.b16 %v642
        %v1339 = vunpack.c.l.b16 %v643
        %v1340 = vunpack.c.h.b16 %v643
        %v1341 = vunpack.c.l.b16 %v644
        %v1342 = vunpack.c.h.b16 %v644
        %v1343 = vunpack.c.l.b16 %v645
        %v1344 = vunpack.c.h.b16 %v645
        %v1345 = vunpack.c.l.b16 %v646
        %v1346 = vunpack.c.h.b16 %v646
        %v1347 = vunpack.c.l.b16 %v647
        %v1348 = vunpack.c.h.b16 %v647
        %v1349 = vunpack.c.l.b16 %v648
        %v1350 = vunpack.c.h.b16 %v648
        %v1351 = vunpack.c.l.b16 %v649
        %v1352 = vunpack.c.h.b16 %v649
        %v1353 = vunpack.c.l.b16 %v650
        %v1354 = vunpack.c.h.b16 %v650
        %v1355 = vpack.c.b16 %v1101, %v1099
        %v1356 = vpack.c.b16 %v1102, %v1100
        %v1357 = vpack.c.b16 %v1105, %v1103
        %v1358 = vpack.c.b16 %v1106, %v1104
        %v1359 = vpack.c.b16 %v1109, %v1107
        %v1360 = vpack.c.b16 %v1110, %v1108
        %v1361 = vpack.c.b16 %v1113, %v1111
        %v1362 = vpack.c.b16 %v1114, %v1112
        %v1363 = vpack.c.b16 %v1117, %v1115
        %v1364 = vpack.c.b16 %v1118, %v1116
        %v1365 = vpack.c.b16 %v1121, %v1119
        %v1366 = vpack.c.b16 %v1122, %v1120
        %v1367 = vpack.c.b16 %v1125, %v1123
        %v1368 = vpack.c.b16 %v1126, %v1124
        %v1369 = vpack.c.b16 %v1129, %v1127
        %v1370 = vpack.c.b16 %v1130, %v1128
        %v1371 = vpack.c.b16 %v1133, %v1131
        %v1372 = vpack.c.b16 %v1134, %v1132
        %v1373 = vpack.c.b16 %v1137, %v1135
        %v1374 = vpack.c.b16 %v1138, %v1136
        %v1375 = vpack.c.b16 %v1141, %v1139
        %v1376 = vpack.c.b16 %v1142, %v1140
        %v1377 = vpack.c.b16 %v1145, %v1143
        %v1378 = vpack.c.b16 %v1146, %v1144
        %v1379 = vpack.c.b16 %v1149, %v1147
        %v1380 = vpack.c.b16 %v1150, %v1148
        %v1381 = vpack.c.b16 %v1153, %v1151
        %v1382 = vpack.c.b16 %v1154, %v1152
        %v1383 = vpack.c.b16 %v1157, %v1155
        %v1384 = vpack.c.b16 %v1158, %v1156
        %v1385 = vpack.c.b16 %v1161, %v1159
        %v1386 = vpack.c.b16 %v1162, %v1160
        %v1387 = vpack.c.b16 %v1165, %v1163
        %v1388 = vpack.c.b16 %v1166, %v1164
        %v1389 = vpack.c.b16 %v1169, %v1167
        %v1390 = vpack.c.b16 %v1170, %v1168
        %v1391 = vpack.c.b16 %v1173, %v1171
        %v1392 = vpack.c.b16 %v1174, %v1172
        %v1393 = vpack.c.b16 %v1177, %v1175
        %v1394 = vpack.c.b16 %v1178, %v1176
        %v1395 = vpack.c.b16 %v1181, %v1179
        %v1396 = vpack.c.b16 %v1182, %v1180
        %v1397 = vpack.c.b16 %v1185, %v1183
        %v1398 = vpack.c.b16 %v1186, %v1184
        %v1399 = vpack.c.b16 %v1189, %v1187
        %v1400 = vpack.c.b16 %v1190, %v1188
        %v1401 = vpack.c.b16 %v1193, %v1191
        %v1402 = vpack.c.b16 %v1194, %v1192
        %v1403 = vpack.c.b16 %v1197, %v1195
        %v1404 = vpack.c.b16 %v1198, %v1196
        %v1405 = vpack.c.b16 %v1201, %v1199
        %v1406 = vpack.c.b16 %v1202, %v1200
        %v1407 = vpack.c.b16 %v1205, %v1203
        %v1408 = vpack.c.b16 %v1206, %v1204
        %v1409 = vpack.c.b16 %v1209, %v1207
        %v1410 = vpack.c.b16 %v1210, %v1208
        %v1411 = vpack.c.b16 %v1213, %v1211
        %v1412 = vpack.c.b16 %v1214, %v1212
        %v1413 = vpack.c.b16 %v1217, %v1215
        %v1414 = vpack.c.b16 %v1218, %v1216
        %v1415 = vpack.c.b16 %v1221, %v1219
        %v1416 = vpack.c.b16 %v1222, %v1220
        %v1417 = vpack.c.b16 %v1225, %v1223
        %v1418 = vpack.c.b16 %v1226, %v1224
        %v1419 = vpack.c.b16 %v1229, %v1227
        %v1420 = vpack.c.b16 %v1230, %v1228
        %v1421 = vpack.c.b16 %v1233, %v1231
        %v1422 = vpack.c.b16 %v1234, %v1232
        %v1423 = vpack.c.b16 %v1237, %v1235
        %v1424 = vpack.c.b16 %v1238, %v1236
        %v1425 = vpack.c.b16 %v1241, %v1239
        %v1426 = vpack.c.b16 %v1242, %v1240
        %v1427 = vpack.c.b16 %v1245, %v1243
        %v1428 = vpack.c.b16 %v1246, %v1244
        %v1429 = vpack.c.b16 %v1249, %v1247
        %v1430 = vpack.c.b16 %v1250, %v1248
        %v1431 = vpack.c.b16 %v1253, %v1251
        %v1432 = vpack.c.b16 %v1254, %v1252
        %v1433 = vpack.c.b16 %v1257, %v1255
        %v1434 = vpack.c.b16 %v1258, %v1256
        %v1435 = vpack.c.b16 %v1261, %v1259
        %v1436 = vpack.c.b16 %v1262, %v1260
        %v1437 = vpack.c.b16 %v1265, %v1263
        %v1438 = vpack.c.b16 %v1266, %v1264
        %v1439 = vpack.c.b16 %v1269, %v1267
        %v1440 = vpack.c.b16 %v1270, %v1268
        %v1441 = vpack.c.b16 %v1273, %v1271
        %v1442 = vpack.c.b16 %v1274, %v1272
        %v1443 = vpack.c.b16 %v1277, %v1275
        %v1444 = vpack.c.b16 %v1278, %v1276
        %v1445 = vpack.c.b16 %v1281, %v1279
        %v1446 = vpack.c.b16 %v1282, %v1280
        %v1447 = vpack.c.b16 %v1285, %v1283
        %v1448 = vpack.c.b16 %v1286, %v1284
        %v1449 = vpack.c.b16 %v1289, %v1287
        %v1450 = vpack.c.b16 %v1290, %v1288
        %v1451 = vpack.c.b16 %v1293, %v1291
        %v1452 = vpack.c.b16 %v1294, %v1292
        %v1453 = vpack.c.b16 %v1297, %v1295
        %v1454 = vpack.c.b16 %v1298, %v1296
        %v1455 = vpack.c.b16 %v1301, %v1299
        %v1456 = vpack.c.b16 %v1302, %v1300
        %v1457 = vpack.c.b16 %v1305, %v1303
        %v1458 = vpack.c.b16 %v1306, %v1304
        %v1459 = vpack.c.b16 %v1309, %v1307
        %v1460 = vpack.c.b16 %v1310, %v1308
        %v1461 = vpack.c.b16 %v1313, %v1311
        %v1462 = vpack.c.b16 %v1314, %v1312
        %v1463 = vpack.c.b16 %v1317, %v1315
        %v1464 = vpack.c.b16 %v1318, %v1316
        %v1465 = vpack.c.b16 %v1321, %v1319
        %v1466 = vpack.c.b16 %v1322, %v1320
        %v1467 = vpack.c.b16 %v1325, %v1323
        %v1468 = vpack.c.b16 %v1326, %v1324
        %v1469 = vpack.c.b16 %v1329, %v1327
        %v1470 = vpack.c.b16 %v1330, %v1328
        %v1471 = vpack.c.b16 %v1333, %v1331
        %v1472 = vpack.c.b16 %v1334, %v1332
        %v1473 = vpack.c.b16 %v1337, %v1335
        %v1474 = vpack.c.b16 %v1338, %v1336
        %v1475 = vpack.c.b16 %v1341, %v1339
        %v1476 = vpack.c.b16 %v1342, %v1340
        %v1477 = vpack.c.b16 %v1345, %v1343
        %v1478 = vpack.c.b16 %v1346, %v1344
        %v1479 = vpack.c.b16 %v1349, %v1347
        %v1480 = vpack.c.b16 %v1350, %v1348
        %v1481 = vpack.c.b16 %v1353, %v1351
        %v1482 = vpack.c.b16 %v1354, %v1352
        %1611 = vmatprep.subr.bf16.mxu0 %v1370
        %1612 = vmatpush1.bf16.msra.mxu0 %v1369
        %1613 = vmatprep.subr.bf16.mxu0 %v1368
        %1614 = vmatpush1.bf16.msra.mxu0 %v1367
        %1615 = vmatprep.subr.bf16.mxu0 %v1366
        %1616 = vmatpush1.bf16.msra.mxu0 %v1365
        %1617 = vmatprep.subr.bf16.mxu0 %v1364
        %1618 = vmatpush1.bf16.msra.mxu0 %v1363
        %1619 = vmatprep.subr.bf16.mxu0 %v1362
        %1620 = vmatpush1.bf16.msra.mxu0 %v1361
        %1621 = vmatprep.subr.bf16.mxu0 %v1360
        %1622 = vmatpush1.bf16.msra.mxu0 %v1359
        %1623 = vmatprep.subr.bf16.mxu0 %v1358
        %1624 = vmatpush1.bf16.msra.mxu0 %v1357
        %1625 = vmatprep.subr.bf16.mxu0 %v1356
        %1626 = vmatpush1.bf16.msra.mxu0 %v1355
        %1627 = vmatprep.subr.bf16.mxu0 %v1386
        %1628 = vmatpush2.bf16.msra.mxu0 %v1385
        %1629 = vmatprep.subr.bf16.mxu0 %v1384
        %1630 = vmatpush2.bf16.msra.mxu0 %v1383
        %1631 = vmatprep.subr.bf16.mxu0 %v1382
        %1632 = vmatpush2.bf16.msra.mxu0 %v1381
        %1633 = vmatprep.subr.bf16.mxu0 %v1380
        %1634 = vmatpush2.bf16.msra.mxu0 %v1379
        %1635 = vmatprep.subr.bf16.mxu0 %v1378
        %1636 = vmatpush2.bf16.msra.mxu0 %v1377
        %1637 = vmatprep.subr.bf16.mxu0 %v1376
        %1638 = vmatpush2.bf16.msra.mxu0 %v1375
        %1639 = vmatprep.subr.bf16.mxu0 %v1374
        %1640 = vmatpush2.bf16.msra.mxu0 %v1373
        %1641 = vmatprep.subr.bf16.mxu0 %v1372
        %1642 = vmatpush2.bf16.msra.mxu0 %v1371
        %1643 = vmatprep.mubr.bf16.mxu0 %v844
        %1644 = vmatmul.mubr.bf16.gmra.mxu0 %v843
        %v1645 = vpop.f32.mrf.mxu0
        %v1646 = vadd.f32 0.0, %v1645
        %v1647 = vpop.f32.mrf.mxu0
        %v1648 = vadd.f32 0.0, %v1647
        %v1649 = vpop.f32.mrf.mxu0
        %v1650 = vadd.f32 0.0, %v1649
        %v1651 = vpop.f32.mrf.mxu0
        %v1652 = vadd.f32 0.0, %v1651
        %1653 = vmatprep.mubr.bf16.mxu0 %v852
        %1654 = vmatmul.mubr.bf16.gmra.mxu0 %v851
        %v1655 = vpop.f32.mrf.mxu0
        %v1656 = vadd.f32 0.0, %v1655
        %v1657 = vpop.f32.mrf.mxu0
        %v1658 = vadd.f32 0.0, %v1657
        %v1659 = vpop.f32.mrf.mxu0
        %v1660 = vadd.f32 0.0, %v1659
        %v1661 = vpop.f32.mrf.mxu0
        %v1662 = vadd.f32 0.0, %v1661
        %1663 = vmatprep.mubr.bf16.mxu0 %v860
        %1664 = vmatmul.mubr.bf16.gmra.mxu0 %v859
        %v1665 = vpop.f32.mrf.mxu0
        %v1666 = vadd.f32 0.0, %v1665
        %v1667 = vpop.f32.mrf.mxu0
        %v1668 = vadd.f32 0.0, %v1667
        %v1669 = vpop.f32.mrf.mxu0
        %v1670 = vadd.f32 0.0, %v1669
        %v1671 = vpop.f32.mrf.mxu0
        %v1672 = vadd.f32 0.0, %v1671
        %1673 = vmatprep.mubr.bf16.mxu0 %v868
        %1674 = vmatmul.mubr.bf16.gmra.mxu0 %v867
        %v1675 = vpop.f32.mrf.mxu0
        %v1676 = vadd.f32 0.0, %v1675
        %v1677 = vpop.f32.mrf.mxu0
        %v1678 = vadd.f32 0.0, %v1677
        %v1679 = vpop.f32.mrf.mxu0
        %v1680 = vadd.f32 0.0, %v1679
        %v1681 = vpop.f32.mrf.mxu0
        %v1682 = vadd.f32 0.0, %v1681
        %1683 = vmatprep.mubr.bf16.mxu0 %v876
        %1684 = vmatmul.mubr.bf16.gmra.mxu0 %v875
        %v1685 = vpop.f32.mrf.mxu0
        %v1686 = vadd.f32 0.0, %v1685
        %v1687 = vpop.f32.mrf.mxu0
        %v1688 = vadd.f32 0.0, %v1687
        %v1689 = vpop.f32.mrf.mxu0
        %v1690 = vadd.f32 0.0, %v1689
        %v1691 = vpop.f32.mrf.mxu0
        %v1692 = vadd.f32 0.0, %v1691
        %1693 = vmatprep.mubr.bf16.mxu0 %v884
        %1694 = vmatmul.mubr.bf16.gmra.mxu0 %v883
        %v1695 = vpop.f32.mrf.mxu0
        %v1696 = vadd.f32 0.0, %v1695
        %v1697 = vpop.f32.mrf.mxu0
        %v1698 = vadd.f32 0.0, %v1697
        %v1699 = vpop.f32.mrf.mxu0
        %v1700 = vadd.f32 0.0, %v1699
        %v1701 = vpop.f32.mrf.mxu0
        %v1702 = vadd.f32 0.0, %v1701
        %1703 = vmatprep.mubr.bf16.mxu0 %v892
        %1704 = vmatmul.mubr.bf16.gmra.mxu0 %v891
        %v1705 = vpop.f32.mrf.mxu0
        %v1706 = vadd.f32 0.0, %v1705
        %v1707 = vpop.f32.mrf.mxu0
        %v1708 = vadd.f32 0.0, %v1707
        %v1709 = vpop.f32.mrf.mxu0
        %v1710 = vadd.f32 0.0, %v1709
        %v1711 = vpop.f32.mrf.mxu0
        %v1712 = vadd.f32 0.0, %v1711
        %1713 = vmatprep.mubr.bf16.mxu0 %v900
        %1714 = vmatmul.mubr.bf16.gmra.mxu0 %v899
        %v1715 = vpop.f32.mrf.mxu0
        %v1716 = vadd.f32 0.0, %v1715
        %v1717 = vpop.f32.mrf.mxu0
        %v1718 = vadd.f32 0.0, %v1717
        %v1719 = vpop.f32.mrf.mxu0
        %v1720 = vadd.f32 0.0, %v1719
        %v1721 = vpop.f32.mrf.mxu0
        %v1722 = vadd.f32 0.0, %v1721
        %1723 = vdwg.mxu0
        %1724 = vmatprep.subr.bf16.mxu0 %v1402
        %1725 = vmatpush1.bf16.msra.mxu0 %v1401
        %1726 = vmatprep.subr.bf16.mxu0 %v1400
        %1727 = vmatpush1.bf16.msra.mxu0 %v1399
        %1728 = vmatprep.subr.bf16.mxu0 %v1398
        %1729 = vmatpush1.bf16.msra.mxu0 %v1397
        %1730 = vmatprep.subr.bf16.mxu0 %v1396
        %1731 = vmatpush1.bf16.msra.mxu0 %v1395
        %1732 = vmatprep.subr.bf16.mxu0 %v1394
        %1733 = vmatpush1.bf16.msra.mxu0 %v1393
        %1734 = vmatprep.subr.bf16.mxu0 %v1392
        %1735 = vmatpush1.bf16.msra.mxu0 %v1391
        %1736 = vmatprep.subr.bf16.mxu0 %v1390
        %1737 = vmatpush1.bf16.msra.mxu0 %v1389
        %1738 = vmatprep.subr.bf16.mxu0 %v1388
        %1739 = vmatpush1.bf16.msra.mxu0 %v1387
        %1740 = vmatprep.subr.bf16.mxu0 %v1418
        %1741 = vmatpush2.bf16.msra.mxu0 %v1417
        %1742 = vmatprep.subr.bf16.mxu0 %v1416
        %1743 = vmatpush2.bf16.msra.mxu0 %v1415
        %1744 = vmatprep.subr.bf16.mxu0 %v1414
        %1745 = vmatpush2.bf16.msra.mxu0 %v1413
        %1746 = vmatprep.subr.bf16.mxu0 %v1412
        %1747 = vmatpush2.bf16.msra.mxu0 %v1411
        %1748 = vmatprep.subr.bf16.mxu0 %v1410
        %1749 = vmatpush2.bf16.msra.mxu0 %v1409
        %1750 = vmatprep.subr.bf16.mxu0 %v1408
        %1751 = vmatpush2.bf16.msra.mxu0 %v1407
        %1752 = vmatprep.subr.bf16.mxu0 %v1406
        %1753 = vmatpush2.bf16.msra.mxu0 %v1405
        %1754 = vmatprep.subr.bf16.mxu0 %v1404
        %1755 = vmatpush2.bf16.msra.mxu0 %v1403
        %1756 = vmatprep.mubr.bf16.mxu0 %v846
        %1757 = vmatmul.mubr.bf16.gmra.mxu0 %v845
        %v1758 = vpop.f32.mrf.mxu0
        %v1759 = vadd.f32 %v1646, %v1758
        %v1760 = vpop.f32.mrf.mxu0
        %v1761 = vadd.f32 %v1648, %v1760
        %v1762 = vpop.f32.mrf.mxu0
        %v1763 = vadd.f32 %v1650, %v1762
        %v1764 = vpop.f32.mrf.mxu0
        %v1765 = vadd.f32 %v1652, %v1764
        %1766 = vmatprep.mubr.bf16.mxu0 %v854
        %1767 = vmatmul.mubr.bf16.gmra.mxu0 %v853
        %v1768 = vpop.f32.mrf.mxu0
        %v1769 = vadd.f32 %v1656, %v1768
        %v1770 = vpop.f32.mrf.mxu0
        %v1771 = vadd.f32 %v1658, %v1770
        %v1772 = vpop.f32.mrf.mxu0
        %v1773 = vadd.f32 %v1660, %v1772
        %v1774 = vpop.f32.mrf.mxu0
        %v1775 = vadd.f32 %v1662, %v1774
        %1776 = vmatprep.mubr.bf16.mxu0 %v862
        %1777 = vmatmul.mubr.bf16.gmra.mxu0 %v861
        %v1778 = vpop.f32.mrf.mxu0
        %v1779 = vadd.f32 %v1666, %v1778
        %v1780 = vpop.f32.mrf.mxu0
        %v1781 = vadd.f32 %v1668, %v1780
        %v1782 = vpop.f32.mrf.mxu0
        %v1783 = vadd.f32 %v1670, %v1782
        %v1784 = vpop.f32.mrf.mxu0
        %v1785 = vadd.f32 %v1672, %v1784
        %1786 = vmatprep.mubr.bf16.mxu0 %v870
        %1787 = vmatmul.mubr.bf16.gmra.mxu0 %v869
        %v1788 = vpop.f32.mrf.mxu0
        %v1789 = vadd.f32 %v1676, %v1788
        %v1790 = vpop.f32.mrf.mxu0
        %v1791 = vadd.f32 %v1678, %v1790
        %v1792 = vpop.f32.mrf.mxu0
        %v1793 = vadd.f32 %v1680, %v1792
        %v1794 = vpop.f32.mrf.mxu0
        %v1795 = vadd.f32 %v1682, %v1794
        %1796 = vmatprep.mubr.bf16.mxu0 %v878
        %1797 = vmatmul.mubr.bf16.gmra.mxu0 %v877
        %v1798 = vpop.f32.mrf.mxu0
        %v1799 = vadd.f32 %v1686, %v1798
        %v1800 = vpop.f32.mrf.mxu0
        %v1801 = vadd.f32 %v1688, %v1800
        %v1802 = vpop.f32.mrf.mxu0
        %v1803 = vadd.f32 %v1690, %v1802
        %v1804 = vpop.f32.mrf.mxu0
        %v1805 = vadd.f32 %v1692, %v1804
        %1806 = vmatprep.mubr.bf16.mxu0 %v886
        %1807 = vmatmul.mubr.bf16.gmra.mxu0 %v885
        %v1808 = vpop.f32.mrf.mxu0
        %v1809 = vadd.f32 %v1696, %v1808
        %v1810 = vpop.f32.mrf.mxu0
        %v1811 = vadd.f32 %v1698, %v1810
        %v1812 = vpop.f32.mrf.mxu0
        %v1813 = vadd.f32 %v1700, %v1812
        %v1814 = vpop.f32.mrf.mxu0
        %v1815 = vadd.f32 %v1702, %v1814
        %1816 = vmatprep.mubr.bf16.mxu0 %v894
        %1817 = vmatmul.mubr.bf16.gmra.mxu0 %v893
        %v1818 = vpop.f32.mrf.mxu0
        %v1819 = vadd.f32 %v1706, %v1818
        %v1820 = vpop.f32.mrf.mxu0
        %v1821 = vadd.f32 %v1708, %v1820
        %v1822 = vpop.f32.mrf.mxu0
        %v1823 = vadd.f32 %v1710, %v1822
        %v1824 = vpop.f32.mrf.mxu0
        %v1825 = vadd.f32 %v1712, %v1824
        %1826 = vmatprep.mubr.bf16.mxu0 %v902
        %1827 = vmatmul.mubr.bf16.gmra.mxu0 %v901
        %v1828 = vpop.f32.mrf.mxu0
        %v1829 = vadd.f32 %v1716, %v1828
        %v1830 = vpop.f32.mrf.mxu0
        %v1831 = vadd.f32 %v1718, %v1830
        %v1832 = vpop.f32.mrf.mxu0
        %v1833 = vadd.f32 %v1720, %v1832
        %v1834 = vpop.f32.mrf.mxu0
        %v1835 = vadd.f32 %v1722, %v1834
        %1836 = vdwg.mxu0
        %1837 = vmatprep.subr.bf16.mxu0 %v1434
        %1838 = vmatpush1.bf16.msra.mxu0 %v1433
        %1839 = vmatprep.subr.bf16.mxu0 %v1432
        %1840 = vmatpush1.bf16.msra.mxu0 %v1431
        %1841 = vmatprep.subr.bf16.mxu0 %v1430
        %1842 = vmatpush1.bf16.msra.mxu0 %v1429
        %1843 = vmatprep.subr.bf16.mxu0 %v1428
        %1844 = vmatpush1.bf16.msra.mxu0 %v1427
        %1845 = vmatprep.subr.bf16.mxu0 %v1426
        %1846 = vmatpush1.bf16.msra.mxu0 %v1425
        %1847 = vmatprep.subr.bf16.mxu0 %v1424
        %1848 = vmatpush1.bf16.msra.mxu0 %v1423
        %1849 = vmatprep.subr.bf16.mxu0 %v1422
        %1850 = vmatpush1.bf16.msra.mxu0 %v1421
        %1851 = vmatprep.subr.bf16.mxu0 %v1420
        %1852 = vmatpush1.bf16.msra.mxu0 %v1419
        %1853 = vmatprep.subr.bf16.mxu0 %v1450
        %1854 = vmatpush2.bf16.msra.mxu0 %v1449
        %1855 = vmatprep.subr.bf16.mxu0 %v1448
        %1856 = vmatpush2.bf16.msra.mxu0 %v1447
        %1857 = vmatprep.subr.bf16.mxu0 %v1446
        %1858 = vmatpush2.bf16.msra.mxu0 %v1445
        %1859 = vmatprep.subr.bf16.mxu0 %v1444
        %1860 = vmatpush2.bf16.msra.mxu0 %v1443
        %1861 = vmatprep.subr.bf16.mxu0 %v1442
        %1862 = vmatpush2.bf16.msra.mxu0 %v1441
        %1863 = vmatprep.subr.bf16.mxu0 %v1440
        %1864 = vmatpush2.bf16.msra.mxu0 %v1439
        %1865 = vmatprep.subr.bf16.mxu0 %v1438
        %1866 = vmatpush2.bf16.msra.mxu0 %v1437
        %1867 = vmatprep.subr.bf16.mxu0 %v1436
        %1868 = vmatpush2.bf16.msra.mxu0 %v1435
        %1869 = vmatprep.mubr.bf16.mxu0 %v848
        %1870 = vmatmul.mubr.bf16.gmra.mxu0 %v847
        %v1871 = vpop.f32.mrf.mxu0
        %v1872 = vadd.f32 %v1759, %v1871
        %v1873 = vpop.f32.mrf.mxu0
        %v1874 = vadd.f32 %v1761, %v1873
        %v1875 = vpop.f32.mrf.mxu0
        %v1876 = vadd.f32 %v1763, %v1875
        %v1877 = vpop.f32.mrf.mxu0
        %v1878 = vadd.f32 %v1765, %v1877
        %1879 = vmatprep.mubr.bf16.mxu0 %v856
        %1880 = vmatmul.mubr.bf16.gmra.mxu0 %v855
        %v1881 = vpop.f32.mrf.mxu0
        %v1882 = vadd.f32 %v1769, %v1881
        %v1883 = vpop.f32.mrf.mxu0
        %v1884 = vadd.f32 %v1771, %v1883
        %v1885 = vpop.f32.mrf.mxu0
        %v1886 = vadd.f32 %v1773, %v1885
        %v1887 = vpop.f32.mrf.mxu0
        %v1888 = vadd.f32 %v1775, %v1887
        %1889 = vmatprep.mubr.bf16.mxu0 %v864
        %1890 = vmatmul.mubr.bf16.gmra.mxu0 %v863
        %v1891 = vpop.f32.mrf.mxu0
        %v1892 = vadd.f32 %v1779, %v1891
        %v1893 = vpop.f32.mrf.mxu0
        %v1894 = vadd.f32 %v1781, %v1893
        %v1895 = vpop.f32.mrf.mxu0
        %v1896 = vadd.f32 %v1783, %v1895
        %v1897 = vpop.f32.mrf.mxu0
        %v1898 = vadd.f32 %v1785, %v1897
        %1899 = vmatprep.mubr.bf16.mxu0 %v872
        %1900 = vmatmul.mubr.bf16.gmra.mxu0 %v871
        %v1901 = vpop.f32.mrf.mxu0
        %v1902 = vadd.f32 %v1789, %v1901
        %v1903 = vpop.f32.mrf.mxu0
        %v1904 = vadd.f32 %v1791, %v1903
        %v1905 = vpop.f32.mrf.mxu0
        %v1906 = vadd.f32 %v1793, %v1905
        %v1907 = vpop.f32.mrf.mxu0
        %v1908 = vadd.f32 %v1795, %v1907
        %1909 = vmatprep.mubr.bf16.mxu0 %v880
        %1910 = vmatmul.mubr.bf16.gmra.mxu0 %v879
        %v1911 = vpop.f32.mrf.mxu0
        %v1912 = vadd.f32 %v1799, %v1911
        %v1913 = vpop.f32.mrf.mxu0
        %v1914 = vadd.f32 %v1801, %v1913
        %v1915 = vpop.f32.mrf.mxu0
        %v1916 = vadd.f32 %v1803, %v1915
        %v1917 = vpop.f32.mrf.mxu0
        %v1918 = vadd.f32 %v1805, %v1917
        %1919 = vmatprep.mubr.bf16.mxu0 %v888
        %1920 = vmatmul.mubr.bf16.gmra.mxu0 %v887
        %v1921 = vpop.f32.mrf.mxu0
        %v1922 = vadd.f32 %v1809, %v1921
        %v1923 = vpop.f32.mrf.mxu0
        %v1924 = vadd.f32 %v1811, %v1923
        %v1925 = vpop.f32.mrf.mxu0
        %v1926 = vadd.f32 %v1813, %v1925
        %v1927 = vpop.f32.mrf.mxu0
        %v1928 = vadd.f32 %v1815, %v1927
        %1929 = vmatprep.mubr.bf16.mxu0 %v896
        %1930 = vmatmul.mubr.bf16.gmra.mxu0 %v895
        %v1931 = vpop.f32.mrf.mxu0
        %v1932 = vadd.f32 %v1819, %v1931
        %v1933 = vpop.f32.mrf.mxu0
        %v1934 = vadd.f32 %v1821, %v1933
        %v1935 = vpop.f32.mrf.mxu0
        %v1936 = vadd.f32 %v1823, %v1935
        %v1937 = vpop.f32.mrf.mxu0
        %v1938 = vadd.f32 %v1825, %v1937
        %1939 = vmatprep.mubr.bf16.mxu0 %v904
        %1940 = vmatmul.mubr.bf16.gmra.mxu0 %v903
        %v1941 = vpop.f32.mrf.mxu0
        %v1942 = vadd.f32 %v1829, %v1941
        %v1943 = vpop.f32.mrf.mxu0
        %v1944 = vadd.f32 %v1831, %v1943
        %v1945 = vpop.f32.mrf.mxu0
        %v1946 = vadd.f32 %v1833, %v1945
        %v1947 = vpop.f32.mrf.mxu0
        %v1948 = vadd.f32 %v1835, %v1947
        %1949 = vdwg.mxu0
        %1950 = vmatprep.subr.bf16.mxu0 %v1466
        %1951 = vmatpush1.bf16.msra.mxu0 %v1465
        %1952 = vmatprep.subr.bf16.mxu0 %v1464
        %1953 = vmatpush1.bf16.msra.mxu0 %v1463
        %1954 = vmatprep.subr.bf16.mxu0 %v1462
        %1955 = vmatpush1.bf16.msra.mxu0 %v1461
        %1956 = vmatprep.subr.bf16.mxu0 %v1460
        %1957 = vmatpush1.bf16.msra.mxu0 %v1459
        %1958 = vmatprep.subr.bf16.mxu0 %v1458
        %1959 = vmatpush1.bf16.msra.mxu0 %v1457
        %1960 = vmatprep.subr.bf16.mxu0 %v1456
        %1961 = vmatpush1.bf16.msra.mxu0 %v1455
        %1962 = vmatprep.subr.bf16.mxu0 %v1454
        %1963 = vmatpush1.bf16.msra.mxu0 %v1453
        %1964 = vmatprep.subr.bf16.mxu0 %v1452
        %1965 = vmatpush1.bf16.msra.mxu0 %v1451
        %1966 = vmatprep.subr.bf16.mxu0 %v1482
        %1967 = vmatpush2.bf16.msra.mxu0 %v1481
        %1968 = vmatprep.subr.bf16.mxu0 %v1480
        %1969 = vmatpush2.bf16.msra.mxu0 %v1479
        %1970 = vmatprep.subr.bf16.mxu0 %v1478
        %1971 = vmatpush2.bf16.msra.mxu0 %v1477
        %1972 = vmatprep.subr.bf16.mxu0 %v1476
        %1973 = vmatpush2.bf16.msra.mxu0 %v1475
        %1974 = vmatprep.subr.bf16.mxu0 %v1474
        %1975 = vmatpush2.bf16.msra.mxu0 %v1473
        %1976 = vmatprep.subr.bf16.mxu0 %v1472
        %1977 = vmatpush2.bf16.msra.mxu0 %v1471
        %1978 = vmatprep.subr.bf16.mxu0 %v1470
        %1979 = vmatpush2.bf16.msra.mxu0 %v1469
        %1980 = vmatprep.subr.bf16.mxu0 %v1468
        %1981 = vmatpush2.bf16.msra.mxu0 %v1467
        %1982 = vmatprep.mubr.bf16.mxu0 %v850
        %1983 = vmatmul.mubr.bf16.gmra.mxu0 %v849
        %v1984 = vpop.f32.mrf.mxu0
        %v1985 = vadd.f32 %v1872, %v1984
        %v1986 = vpop.f32.mrf.mxu0
        %v1987 = vadd.f32 %v1874, %v1986
        %v1988 = vpop.f32.mrf.mxu0
        %v1989 = vadd.f32 %v1876, %v1988
        %v1990 = vpop.f32.mrf.mxu0
        %v1991 = vadd.f32 %v1878, %v1990
        %1992 = vmatprep.mubr.bf16.mxu0 %v858
        %1993 = vmatmul.mubr.bf16.gmra.mxu0 %v857
        %v1994 = vpop.f32.mrf.mxu0
        %v1995 = vadd.f32 %v1882, %v1994
        %v1996 = vpop.f32.mrf.mxu0
        %v1997 = vadd.f32 %v1884, %v1996
        %v1998 = vpop.f32.mrf.mxu0
        %v1999 = vadd.f32 %v1886, %v1998
        %v2000 = vpop.f32.mrf.mxu0
        %v2001 = vadd.f32 %v1888, %v2000
        %2002 = vmatprep.mubr.bf16.mxu0 %v866
        %2003 = vmatmul.mubr.bf16.gmra.mxu0 %v865
        %v2004 = vpop.f32.mrf.mxu0
        %v2005 = vadd.f32 %v1892, %v2004
        %v2006 = vpop.f32.mrf.mxu0
        %v2007 = vadd.f32 %v1894, %v2006
        %v2008 = vpop.f32.mrf.mxu0
        %v2009 = vadd.f32 %v1896, %v2008
        %v2010 = vpop.f32.mrf.mxu0
        %v2011 = vadd.f32 %v1898, %v2010
        %2012 = vmatprep.mubr.bf16.mxu0 %v874
        %2013 = vmatmul.mubr.bf16.gmra.mxu0 %v873
        %v2014 = vpop.f32.mrf.mxu0
        %v2015 = vadd.f32 %v1902, %v2014
        %v2016 = vpop.f32.mrf.mxu0
        %v2017 = vadd.f32 %v1904, %v2016
        %v2018 = vpop.f32.mrf.mxu0
        %v2019 = vadd.f32 %v1906, %v2018
        %v2020 = vpop.f32.mrf.mxu0
        %v2021 = vadd.f32 %v1908, %v2020
        %2022 = vmatprep.mubr.bf16.mxu0 %v882
        %2023 = vmatmul.mubr.bf16.gmra.mxu0 %v881
        %v2024 = vpop.f32.mrf.mxu0
        %v2025 = vadd.f32 %v1912, %v2024
        %v2026 = vpop.f32.mrf.mxu0
        %v2027 = vadd.f32 %v1914, %v2026
        %v2028 = vpop.f32.mrf.mxu0
        %v2029 = vadd.f32 %v1916, %v2028
        %v2030 = vpop.f32.mrf.mxu0
        %v2031 = vadd.f32 %v1918, %v2030
        %2032 = vmatprep.mubr.bf16.mxu0 %v890
        %2033 = vmatmul.mubr.bf16.gmra.mxu0 %v889
        %v2034 = vpop.f32.mrf.mxu0
        %v2035 = vadd.f32 %v1922, %v2034
        %v2036 = vpop.f32.mrf.mxu0
        %v2037 = vadd.f32 %v1924, %v2036
        %v2038 = vpop.f32.mrf.mxu0
        %v2039 = vadd.f32 %v1926, %v2038
        %v2040 = vpop.f32.mrf.mxu0
        %v2041 = vadd.f32 %v1928, %v2040
        %2042 = vmatprep.mubr.bf16.mxu0 %v898
        %2043 = vmatmul.mubr.bf16.gmra.mxu0 %v897
        %v2044 = vpop.f32.mrf.mxu0
        %v2045 = vadd.f32 %v1932, %v2044
        %v2046 = vpop.f32.mrf.mxu0
        %v2047 = vadd.f32 %v1934, %v2046
        %v2048 = vpop.f32.mrf.mxu0
        %v2049 = vadd.f32 %v1936, %v2048
        %v2050 = vpop.f32.mrf.mxu0
        %v2051 = vadd.f32 %v1938, %v2050
        %2052 = vmatprep.mubr.bf16.mxu0 %v906
        %2053 = vmatmul.mubr.bf16.gmra.mxu0 %v905
        %v2054 = vpop.f32.mrf.mxu0
        %v2055 = vadd.f32 %v1942, %v2054
        %v2056 = vpop.f32.mrf.mxu0
        %v2057 = vadd.f32 %v1944, %v2056
        %v2058 = vpop.f32.mrf.mxu0
        %v2059 = vadd.f32 %v1946, %v2058
        %v2060 = vpop.f32.mrf.mxu0
        %v2061 = vadd.f32 %v1948, %v2060
        %2062 = vdwg.mxu0
        %v2063 = vadd.f32 %v427, %v1985
        %v2064 = vadd.f32 %v428, %v1987
        %v2065 = vadd.f32 %v429, %v1989
        %v2066 = vadd.f32 %v430, %v1991
        %v2067 = vadd.f32 %v431, %v1995
        %v2068 = vadd.f32 %v432, %v1997
        %v2069 = vadd.f32 %v433, %v1999
        %v2070 = vadd.f32 %v434, %v2001
        %v2071 = vadd.f32 %v435, %v2005
        %v2072 = vadd.f32 %v436, %v2007
        %v2073 = vadd.f32 %v437, %v2009
        %v2074 = vadd.f32 %v438, %v2011
        %v2075 = vadd.f32 %v439, %v2015
        %v2076 = vadd.f32 %v440, %v2017
        %v2077 = vadd.f32 %v441, %v2019
        %v2078 = vadd.f32 %v442, %v2021
        %v2079 = vadd.f32 %v443, %v2025
        %v2080 = vadd.f32 %v444, %v2027
        %v2081 = vadd.f32 %v445, %v2029
        %v2082 = vadd.f32 %v446, %v2031
        %v2083 = vadd.f32 %v447, %v2035
        %v2084 = vadd.f32 %v448, %v2037
        %v2085 = vadd.f32 %v449, %v2039
        %v2086 = vadd.f32 %v450, %v2041
        %v2087 = vadd.f32 %v451, %v2045
        %v2088 = vadd.f32 %v452, %v2047
        %v2089 = vadd.f32 %v453, %v2049
        %v2090 = vadd.f32 %v454, %v2051
        %v2091 = vadd.f32 %v455, %v2055
        %v2092 = vadd.f32 %v456, %v2057
        %v2093 = vadd.f32 %v457, %v2059
        %v2094 = vadd.f32 %v458, %v2061
        %2095 = vst [vmem:[%s389] sm:$0xff] %v2063
        %2096 = vst [vmem:[%s389 + $0x8] sm:$0xff] %v2064
        %2097 = vst [vmem:[%s389 + $0x10] sm:$0xff] %v2065
        %2098 = vst [vmem:[%s389 + $0x18] sm:$0xff] %v2066
        %2099 = vst [vmem:[%s389 + $0x20] sm:$0xff] %v2067
        %2100 = vst [vmem:[%s389 + $0x28] sm:$0xff] %v2068
        %2101 = vst [vmem:[%s389 + $0x30] sm:$0xff] %v2069
        %2102 = vst [vmem:[%s389 + $0x38] sm:$0xff] %v2070
        %2103 = vst [vmem:[%s389 + $0x40] sm:$0xff] %v2071
        %2104 = vst [vmem:[%s389 + $0x48] sm:$0xff] %v2072
        %2105 = vst [vmem:[%s389 + $0x50] sm:$0xff] %v2073
        %2106 = vst [vmem:[%s389 + $0x58] sm:$0xff] %v2074
        %2107 = vst [vmem:[%s389 + $0x60] sm:$0xff] %v2075
        %2108 = vst [vmem:[%s389 + $0x68] sm:$0xff] %v2076
        %2109 = vst [vmem:[%s389 + $0x70] sm:$0xff] %v2077
        %2110 = vst [vmem:[%s389 + $0x78] sm:$0xff] %v2078
        %2111 = vst [vmem:[%s389 + $0x80] sm:$0xff] %v2079
        %2112 = vst [vmem:[%s389 + $0x88] sm:$0xff] %v2080
        %2113 = vst [vmem:[%s389 + $0x90] sm:$0xff] %v2081
        %2114 = vst [vmem:[%s389 + $0x98] sm:$0xff] %v2082
        %2115 = vst [vmem:[%s389 + $0xa0] sm:$0xff] %v2083
        %2116 = vst [vmem:[%s389 + $0xa8] sm:$0xff] %v2084
        %2117 = vst [vmem:[%s389 + $0xb0] sm:$0xff] %v2085
        %2118 = vst [vmem:[%s389 + $0xb8] sm:$0xff] %v2086
        %2119 = vst [vmem:[%s389 + $0xc0] sm:$0xff] %v2087
        %2120 = vst [vmem:[%s389 + $0xc8] sm:$0xff] %v2088
        %2121 = vst [vmem:[%s389 + $0xd0] sm:$0xff] %v2089
        %2122 = vst [vmem:[%s389 + $0xd8] sm:$0xff] %v2090
        %2123 = vst [vmem:[%s389 + $0xe0] sm:$0xff] %v2091
        %2124 = vst [vmem:[%s389 + $0xe8] sm:$0xff] %v2092
        %2125 = vst [vmem:[%s389 + $0xf0] sm:$0xff] %v2093
        %2126 = vst [vmem:[%s389 + $0xf8] sm:$0xff] %v2094
        %p2127 = scmp.eq.s32.totalorder %s20, 1
        // Predicated region
        $region64: #{discriminator_forward.7} parent=54 // pred_check
          %p2128 = pneg %p2127
        $region65: #{discriminator_forward.7} parent=54 // pred_check_branch
          %2130 = sbr.rel (%p2128) target = $region67
        $region66: #{discriminator_forward.7} parent=54 // pred_region
          %v2131 = vld [vmem:[%s389] sm:$0xff]
          %v2132 = vld [vmem:[%s389 + $0x8] sm:$0xff]
          %v2133 = vld [vmem:[%s389 + $0x10] sm:$0xff]
          %v2134 = vld [vmem:[%s389 + $0x18] sm:$0xff]
          %v2135 = vld [vmem:[%s389 + $0x20] sm:$0xff]
          %v2136 = vld [vmem:[%s389 + $0x28] sm:$0xff]
          %v2137 = vld [vmem:[%s389 + $0x30] sm:$0xff]
          %v2138 = vld [vmem:[%s389 + $0x38] sm:$0xff]
          %v2139 = vld [vmem:[%s389 + $0x40] sm:$0xff]
          %v2140 = vld [vmem:[%s389 + $0x48] sm:$0xff]
          %v2141 = vld [vmem:[%s389 + $0x50] sm:$0xff]
          %v2142 = vld [vmem:[%s389 + $0x58] sm:$0xff]
          %v2143 = vld [vmem:[%s389 + $0x60] sm:$0xff]
          %v2144 = vld [vmem:[%s389 + $0x68] sm:$0xff]
          %v2145 = vld [vmem:[%s389 + $0x70] sm:$0xff]
          %v2146 = vld [vmem:[%s389 + $0x78] sm:$0xff]
          %v2147 = vld [vmem:[%s389 + $0x80] sm:$0xff]
          %v2148 = vld [vmem:[%s389 + $0x88] sm:$0xff]
          %v2149 = vld [vmem:[%s389 + $0x90] sm:$0xff]
          %v2150 = vld [vmem:[%s389 + $0x98] sm:$0xff]
          %v2151 = vld [vmem:[%s389 + $0xa0] sm:$0xff]
          %v2152 = vld [vmem:[%s389 + $0xa8] sm:$0xff]
          %v2153 = vld [vmem:[%s389 + $0xb0] sm:$0xff]
          %v2154 = vld [vmem:[%s389 + $0xb8] sm:$0xff]
          %v2155 = vld [vmem:[%s389 + $0xc0] sm:$0xff]
          %v2156 = vld [vmem:[%s389 + $0xc8] sm:$0xff]
          %v2157 = vld [vmem:[%s389 + $0xd0] sm:$0xff]
          %v2158 = vld [vmem:[%s389 + $0xd8] sm:$0xff]
          %v2159 = vld [vmem:[%s389 + $0xe0] sm:$0xff]
          %v2160 = vld [vmem:[%s389 + $0xe8] sm:$0xff]
          %v2161 = vld [vmem:[%s389 + $0xf0] sm:$0xff]
          %v2162 = vld [vmem:[%s389 + $0xf8] sm:$0xff]
          %v2163 = vadd.f32 %v2131, %v2133
          %v2164 = vadd.f32 %v2163, %v2135
          %v2165 = vadd.f32 %v2164, %v2137
          %v2166 = vadd.f32 %v2165, %v2139
          %v2167 = vadd.f32 %v2166, %v2141
          %v2168 = vadd.f32 %v2167, %v2143
          %v2169 = vadd.f32 %v2168, %v2145
          %v2170 = vadd.f32 %v2169, %v2147
          %v2171 = vadd.f32 %v2170, %v2149
          %v2172 = vadd.f32 %v2171, %v2151
          %v2173 = vadd.f32 %v2172, %v2153
          %v2174 = vadd.f32 %v2173, %v2155
          %v2175 = vadd.f32 %v2174, %v2157
          %v2176 = vadd.f32 %v2175, %v2159
          %v2177 = vadd.f32 %v2176, %v2161
          %v2178 = vrot.slane %v2177, 4
          %v2179 = vadd.f32 %v2177, %v2178
          %v2180 = vrot.slane %v2179, 2
          %v2181 = vadd.f32 %v2179, %v2180
          %v2182 = vrot.slane %v2181, 1
          %v2183 = vadd.f32 %v2181, %v2182
          %v2184 = vadd.f32 %v2132, %v2134
          %v2185 = vadd.f32 %v2184, %v2136
          %v2186 = vadd.f32 %v2185, %v2138
          %v2187 = vadd.f32 %v2186, %v2140
          %v2188 = vadd.f32 %v2187, %v2142
          %v2189 = vadd.f32 %v2188, %v2144
          %v2190 = vadd.f32 %v2189, %v2146
          %v2191 = vadd.f32 %v2190, %v2148
          %v2192 = vadd.f32 %v2191, %v2150
          %v2193 = vadd.f32 %v2192, %v2152
          %v2194 = vadd.f32 %v2193, %v2154
          %v2195 = vadd.f32 %v2194, %v2156
          %v2196 = vadd.f32 %v2195, %v2158
          %v2197 = vadd.f32 %v2196, %v2160
          %v2198 = vadd.f32 %v2197, %v2162
          %v2199 = vrot.slane %v2198, 4
          %v2200 = vadd.f32 %v2198, %v2199
          %v2201 = vrot.slane %v2200, 2
          %v2202 = vadd.f32 %v2200, %v2201
          %v2203 = vrot.slane %v2202, 1
          %v2204 = vadd.f32 %v2202, %v2203
          %v2205 = vmul.f32 %v2183, 0.0078125
          %v2206 = vmul.f32 %v2204, 0.0078125
          %v2207 = vmul.f32 %v2131, %v2131
          %v2208 = vmul.f32 %v2132, %v2132
          %v2209 = vmul.f32 %v2133, %v2133
          %v2210 = vmul.f32 %v2134, %v2134
          %v2211 = vmul.f32 %v2135, %v2135
          %v2212 = vmul.f32 %v2136, %v2136
          %v2213 = vmul.f32 %v2137, %v2137
          %v2214 = vmul.f32 %v2138, %v2138
          %v2215 = vmul.f32 %v2139, %v2139
          %v2216 = vmul.f32 %v2140, %v2140
          %v2217 = vmul.f32 %v2141, %v2141
          %v2218 = vmul.f32 %v2142, %v2142
          %v2219 = vmul.f32 %v2143, %v2143
          %v2220 = vmul.f32 %v2144, %v2144
          %v2221 = vmul.f32 %v2145, %v2145
          %v2222 = vmul.f32 %v2146, %v2146
          %v2223 = vmul.f32 %v2147, %v2147
          %v2224 = vmul.f32 %v2148, %v2148
          %v2225 = vmul.f32 %v2149, %v2149
          %v2226 = vmul.f32 %v2150, %v2150
          %v2227 = vmul.f32 %v2151, %v2151
          %v2228 = vmul.f32 %v2152, %v2152
          %v2229 = vmul.f32 %v2153, %v2153
          %v2230 = vmul.f32 %v2154, %v2154
          %v2231 = vmul.f32 %v2155, %v2155
          %v2232 = vmul.f32 %v2156, %v2156
          %v2233 = vmul.f32 %v2157, %v2157
          %v2234 = vmul.f32 %v2158, %v2158
          %v2235 = vmul.f32 %v2159, %v2159
          %v2236 = vmul.f32 %v2160, %v2160
          %v2237 = vmul.f32 %v2161, %v2161
          %v2238 = vmul.f32 %v2162, %v2162
          %v2239 = vadd.f32 %v2207, %v2209
          %v2240 = vadd.f32 %v2239, %v2211
          %v2241 = vadd.f32 %v2240, %v2213
          %v2242 = vadd.f32 %v2241, %v2215
          %v2243 = vadd.f32 %v2242, %v2217
          %v2244 = vadd.f32 %v2243, %v2219
          %v2245 = vadd.f32 %v2244, %v2221
          %v2246 = vadd.f32 %v2245, %v2223
          %v2247 = vadd.f32 %v2246, %v2225
          %v2248 = vadd.f32 %v2247, %v2227
          %v2249 = vadd.f32 %v2248, %v2229
          %v2250 = vadd.f32 %v2249, %v2231
          %v2251 = vadd.f32 %v2250, %v2233
          %v2252 = vadd.f32 %v2251, %v2235
          %v2253 = vadd.f32 %v2252, %v2237
          %v2254 = vrot.slane %v2253, 4
          %v2255 = vadd.f32 %v2253, %v2254
          %v2256 = vrot.slane %v2255, 2
          %v2257 = vadd.f32 %v2255, %v2256
          %v2258 = vrot.slane %v2257, 1
          %v2259 = vadd.f32 %v2257, %v2258
          %v2260 = vadd.f32 %v2208, %v2210
          %v2261 = vadd.f32 %v2260, %v2212
          %v2262 = vadd.f32 %v2261, %v2214
          %v2263 = vadd.f32 %v2262, %v2216
          %v2264 = vadd.f32 %v2263, %v2218
          %v2265 = vadd.f32 %v2264, %v2220
          %v2266 = vadd.f32 %v2265, %v2222
          %v2267 = vadd.f32 %v2266, %v2224
          %v2268 = vadd.f32 %v2267, %v2226
          %v2269 = vadd.f32 %v2268, %v2228
          %v2270 = vadd.f32 %v2269, %v2230
          %v2271 = vadd.f32 %v2270, %v2232
          %v2272 = vadd.f32 %v2271, %v2234
          %v2273 = vadd.f32 %v2272, %v2236
          %v2274 = vadd.f32 %v2273, %v2238
          %v2275 = vrot.slane %v2274, 4
          %v2276 = vadd.f32 %v2274, %v2275
          %v2277 = vrot.slane %v2276, 2
          %v2278 = vadd.f32 %v2276, %v2277
          %v2279 = vrot.slane %v2278, 1
          %v2280 = vadd.f32 %v2278, %v2279
          %v2281 = vmul.f32 %v2259, 0.0078125
          %v2282 = vmul.f32 %v2280, 0.0078125
          %v2283 = vmul.f32 %v2205, %v2205
          %v2284 = vmul.f32 %v2206, %v2206
          %v2285 = vsub.f32 %v2281, %v2283
          %v2286 = vsub.f32 %v2282, %v2284
          %v2287 = vmax.f32 %v2285, 0.0
          %v2288 = vmax.f32 %v2286, 0.0
          %v2289 = vadd.f32 %v2287, 1e-05
          %v2290 = vadd.f32 %v2288, 1e-05
          %v2291 = vrsqrt.pop %v2289
          %v2292 = vrsqrt.pop %v2290
          %v2293 = vsub.f32 %v2131, %v2205
          %v2294 = vsub.f32 %v2132, %v2206
          %v2295 = vsub.f32 %v2133, %v2205
          %v2296 = vsub.f32 %v2134, %v2206
          %v2297 = vsub.f32 %v2135, %v2205
          %v2298 = vsub.f32 %v2136, %v2206
          %v2299 = vsub.f32 %v2137, %v2205
          %v2300 = vsub.f32 %v2138, %v2206
          %v2301 = vsub.f32 %v2139, %v2205
          %v2302 = vsub.f32 %v2140, %v2206
          %v2303 = vsub.f32 %v2141, %v2205
          %v2304 = vsub.f32 %v2142, %v2206
          %v2305 = vsub.f32 %v2143, %v2205
          %v2306 = vsub.f32 %v2144, %v2206
          %v2307 = vsub.f32 %v2145, %v2205
          %v2308 = vsub.f32 %v2146, %v2206
          %v2309 = vsub.f32 %v2147, %v2205
          %v2310 = vsub.f32 %v2148, %v2206
          %v2311 = vsub.f32 %v2149, %v2205
          %v2312 = vsub.f32 %v2150, %v2206
          %v2313 = vsub.f32 %v2151, %v2205
          %v2314 = vsub.f32 %v2152, %v2206
          %v2315 = vsub.f32 %v2153, %v2205
          %v2316 = vsub.f32 %v2154, %v2206
          %v2317 = vsub.f32 %v2155, %v2205
          %v2318 = vsub.f32 %v2156, %v2206
          %v2319 = vsub.f32 %v2157, %v2205
          %v2320 = vsub.f32 %v2158, %v2206
          %v2321 = vsub.f32 %v2159, %v2205
          %v2322 = vsub.f32 %v2160, %v2206
          %v2323 = vsub.f32 %v2161, %v2205
          %v2324 = vsub.f32 %v2162, %v2206
          %v2325 = vmul.f32 %v2293, %v2291
          %v2326 = vmul.f32 %v2294, %v2292
          %v2327 = vmul.f32 %v2295, %v2291
          %v2328 = vmul.f32 %v2296, %v2292
          %v2329 = vmul.f32 %v2297, %v2291
          %v2330 = vmul.f32 %v2298, %v2292
          %v2331 = vmul.f32 %v2299, %v2291
          %v2332 = vmul.f32 %v2300, %v2292
          %v2333 = vmul.f32 %v2301, %v2291
          %v2334 = vmul.f32 %v2302, %v2292
          %v2335 = vmul.f32 %v2303, %v2291
          %v2336 = vmul.f32 %v2304, %v2292
          %v2337 = vmul.f32 %v2305, %v2291
          %v2338 = vmul.f32 %v2306, %v2292
          %v2339 = vmul.f32 %v2307, %v2291
          %v2340 = vmul.f32 %v2308, %v2292
          %v2341 = vmul.f32 %v2309, %v2291
          %v2342 = vmul.f32 %v2310, %v2292
          %v2343 = vmul.f32 %v2311, %v2291
          %v2344 = vmul.f32 %v2312, %v2292
          %v2345 = vmul.f32 %v2313, %v2291
          %v2346 = vmul.f32 %v2314, %v2292
          %v2347 = vmul.f32 %v2315, %v2291
          %v2348 = vmul.f32 %v2316, %v2292
          %v2349 = vmul.f32 %v2317, %v2291
          %v2350 = vmul.f32 %v2318, %v2292
          %v2351 = vmul.f32 %v2319, %v2291
          %v2352 = vmul.f32 %v2320, %v2292
          %v2353 = vmul.f32 %v2321, %v2291
          %v2354 = vmul.f32 %v2322, %v2292
          %v2355 = vmul.f32 %v2323, %v2291
          %v2356 = vmul.f32 %v2324, %v2292
          %v2357 = vld [vmem:[%s2] sm:$0x3]
          %v2359 = vlaneseq
          %v2360 = vshrl.u32 %v2359, 7
          %v2361 = vsub.s32 0, %v2360
          %v2362 = vrot.slane %v2357, %v2361
          %v2363 = vlaneseq
          %v2364 = vshrl.u32 %v2363, 7
          %v2365 = vsub.s32 1, %v2364
          %v2366 = vrot.slane %v2357, %v2365
          %v2369 = vmul.f32 %v2325, %v2362
          %v2370 = vmul.f32 %v2326, %v2366
          %v2371 = vmul.f32 %v2327, %v2362
          %v2372 = vmul.f32 %v2328, %v2366
          %v2373 = vmul.f32 %v2329, %v2362
          %v2374 = vmul.f32 %v2330, %v2366
          %v2375 = vmul.f32 %v2331, %v2362
          %v2376 = vmul.f32 %v2332, %v2366
          %v2377 = vmul.f32 %v2333, %v2362
          %v2378 = vmul.f32 %v2334, %v2366
          %v2379 = vmul.f32 %v2335, %v2362
          %v2380 = vmul.f32 %v2336, %v2366
          %v2381 = vmul.f32 %v2337, %v2362
          %v2382 = vmul.f32 %v2338, %v2366
          %v2383 = vmul.f32 %v2339, %v2362
          %v2384 = vmul.f32 %v2340, %v2366
          %v2385 = vmul.f32 %v2341, %v2362
          %v2386 = vmul.f32 %v2342, %v2366
          %v2387 = vmul.f32 %v2343, %v2362
          %v2388 = vmul.f32 %v2344, %v2366
          %v2389 = vmul.f32 %v2345, %v2362
          %v2390 = vmul.f32 %v2346, %v2366
          %v2391 = vmul.f32 %v2347, %v2362
          %v2392 = vmul.f32 %v2348, %v2366
          %v2393 = vmul.f32 %v2349, %v2362
          %v2394 = vmul.f32 %v2350, %v2366
          %v2395 = vmul.f32 %v2351, %v2362
          %v2396 = vmul.f32 %v2352, %v2366
          %v2397 = vmul.f32 %v2353, %v2362
          %v2398 = vmul.f32 %v2354, %v2366
          %v2399 = vmul.f32 %v2355, %v2362
          %v2400 = vmul.f32 %v2356, %v2366
          %v2401 = vld [vmem:[%s3] sm:$0x3]
          %v2403 = vlaneseq
          %v2404 = vshrl.u32 %v2403, 7
          %v2405 = vsub.s32 0, %v2404
          %v2406 = vrot.slane %v2401, %v2405
          %v2407 = vlaneseq
          %v2408 = vshrl.u32 %v2407, 7
          %v2409 = vsub.s32 1, %v2408
          %v2410 = vrot.slane %v2401, %v2409
          %v2413 = vadd.f32 %v2369, %v2406
          %v2414 = vadd.f32 %v2370, %v2410
          %v2415 = vadd.f32 %v2371, %v2406
          %v2416 = vadd.f32 %v2372, %v2410
          %v2417 = vadd.f32 %v2373, %v2406
          %v2418 = vadd.f32 %v2374, %v2410
          %v2419 = vadd.f32 %v2375, %v2406
          %v2420 = vadd.f32 %v2376, %v2410
          %v2421 = vadd.f32 %v2377, %v2406
          %v2422 = vadd.f32 %v2378, %v2410
          %v2423 = vadd.f32 %v2379, %v2406
          %v2424 = vadd.f32 %v2380, %v2410
          %v2425 = vadd.f32 %v2381, %v2406
          %v2426 = vadd.f32 %v2382, %v2410
          %v2427 = vadd.f32 %v2383, %v2406
          %v2428 = vadd.f32 %v2384, %v2410
          %v2429 = vadd.f32 %v2385, %v2406
          %v2430 = vadd.f32 %v2386, %v2410
          %v2431 = vadd.f32 %v2387, %v2406
          %v2432 = vadd.f32 %v2388, %v2410
          %v2433 = vadd.f32 %v2389, %v2406
          %v2434 = vadd.f32 %v2390, %v2410
          %v2435 = vadd.f32 %v2391, %v2406
          %v2436 = vadd.f32 %v2392, %v2410
          %v2437 = vadd.f32 %v2393, %v2406
          %v2438 = vadd.f32 %v2394, %v2410
          %v2439 = vadd.f32 %v2395, %v2406
          %v2440 = vadd.f32 %v2396, %v2410
          %v2441 = vadd.f32 %v2397, %v2406
          %v2442 = vadd.f32 %v2398, %v2410
          %v2443 = vadd.f32 %v2399, %v2406
          %v2444 = vadd.f32 %v2400, %v2410
          %vm2445 = vcmp.gt.f32.partialorder %v2413, 0.0
          %vm2446 = vcmp.gt.f32.partialorder %v2414, 0.0
          %vm2447 = vcmp.gt.f32.partialorder %v2415, 0.0
          %vm2448 = vcmp.gt.f32.partialorder %v2416, 0.0
          %vm2449 = vcmp.gt.f32.partialorder %v2417, 0.0
          %vm2450 = vcmp.gt.f32.partialorder %v2418, 0.0
          %vm2451 = vcmp.gt.f32.partialorder %v2419, 0.0
          %vm2452 = vcmp.gt.f32.partialorder %v2420, 0.0
          %vm2453 = vcmp.gt.f32.partialorder %v2421, 0.0
          %vm2454 = vcmp.gt.f32.partialorder %v2422, 0.0
          %vm2455 = vcmp.gt.f32.partialorder %v2423, 0.0
          %vm2456 = vcmp.gt.f32.partialorder %v2424, 0.0
          %vm2457 = vcmp.gt.f32.partialorder %v2425, 0.0
          %vm2458 = vcmp.gt.f32.partialorder %v2426, 0.0
          %vm2459 = vcmp.gt.f32.partialorder %v2427, 0.0
          %vm2460 = vcmp.gt.f32.partialorder %v2428, 0.0
          %vm2461 = vcmp.gt.f32.partialorder %v2429, 0.0
          %vm2462 = vcmp.gt.f32.partialorder %v2430, 0.0
          %vm2463 = vcmp.gt.f32.partialorder %v2431, 0.0
          %vm2464 = vcmp.gt.f32.partialorder %v2432, 0.0
          %vm2465 = vcmp.gt.f32.partialorder %v2433, 0.0
          %vm2466 = vcmp.gt.f32.partialorder %v2434, 0.0
          %vm2467 = vcmp.gt.f32.partialorder %v2435, 0.0
          %vm2468 = vcmp.gt.f32.partialorder %v2436, 0.0
          %vm2469 = vcmp.gt.f32.partialorder %v2437, 0.0
          %vm2470 = vcmp.gt.f32.partialorder %v2438, 0.0
          %vm2471 = vcmp.gt.f32.partialorder %v2439, 0.0
          %vm2472 = vcmp.gt.f32.partialorder %v2440, 0.0
          %vm2473 = vcmp.gt.f32.partialorder %v2441, 0.0
          %vm2474 = vcmp.gt.f32.partialorder %v2442, 0.0
          %vm2475 = vcmp.gt.f32.partialorder %v2443, 0.0
          %vm2476 = vcmp.gt.f32.partialorder %v2444, 0.0
          %v2477 = vmul.f32 %v2413, 0.2
          %v2478 = vmul.f32 %v2414, 0.2
          %v2479 = vmul.f32 %v2415, 0.2
          %v2480 = vmul.f32 %v2416, 0.2
          %v2481 = vmul.f32 %v2417, 0.2
          %v2482 = vmul.f32 %v2418, 0.2
          %v2483 = vmul.f32 %v2419, 0.2
          %v2484 = vmul.f32 %v2420, 0.2
          %v2485 = vmul.f32 %v2421, 0.2
          %v2486 = vmul.f32 %v2422, 0.2
          %v2487 = vmul.f32 %v2423, 0.2
          %v2488 = vmul.f32 %v2424, 0.2
          %v2489 = vmul.f32 %v2425, 0.2
          %v2490 = vmul.f32 %v2426, 0.2
          %v2491 = vmul.f32 %v2427, 0.2
          %v2492 = vmul.f32 %v2428, 0.2
          %v2493 = vmul.f32 %v2429, 0.2
          %v2494 = vmul.f32 %v2430, 0.2
          %v2495 = vmul.f32 %v2431, 0.2
          %v2496 = vmul.f32 %v2432, 0.2
          %v2497 = vmul.f32 %v2433, 0.2
          %v2498 = vmul.f32 %v2434, 0.2
          %v2499 = vmul.f32 %v2435, 0.2
          %v2500 = vmul.f32 %v2436, 0.2
          %v2501 = vmul.f32 %v2437, 0.2
          %v2502 = vmul.f32 %v2438, 0.2
          %v2503 = vmul.f32 %v2439, 0.2
          %v2504 = vmul.f32 %v2440, 0.2
          %v2505 = vmul.f32 %v2441, 0.2
          %v2506 = vmul.f32 %v2442, 0.2
          %v2507 = vmul.f32 %v2443, 0.2
          %v2508 = vmul.f32 %v2444, 0.2
          %v2509 = vsel %vm2445, %v2413, %v2477
          %v2510 = vsel %vm2446, %v2414, %v2478
          %v2511 = vsel %vm2447, %v2415, %v2479
          %v2512 = vsel %vm2448, %v2416, %v2480
          %v2513 = vsel %vm2449, %v2417, %v2481
          %v2514 = vsel %vm2450, %v2418, %v2482
          %v2515 = vsel %vm2451, %v2419, %v2483
          %v2516 = vsel %vm2452, %v2420, %v2484
          %v2517 = vsel %vm2453, %v2421, %v2485
          %v2518 = vsel %vm2454, %v2422, %v2486
          %v2519 = vsel %vm2455, %v2423, %v2487
          %v2520 = vsel %vm2456, %v2424, %v2488
          %v2521 = vsel %vm2457, %v2425, %v2489
          %v2522 = vsel %vm2458, %v2426, %v2490
          %v2523 = vsel %vm2459, %v2427, %v2491
          %v2524 = vsel %vm2460, %v2428, %v2492
          %v2525 = vsel %vm2461, %v2429, %v2493
          %v2526 = vsel %vm2462, %v2430, %v2494
          %v2527 = vsel %vm2463, %v2431, %v2495
          %v2528 = vsel %vm2464, %v2432, %v2496
          %v2529 = vsel %vm2465, %v2433, %v2497
          %v2530 = vsel %vm2466, %v2434, %v2498
          %v2531 = vsel %vm2467, %v2435, %v2499
          %v2532 = vsel %vm2468, %v2436, %v2500
          %v2533 = vsel %vm2469, %v2437, %v2501
          %v2534 = vsel %vm2470, %v2438, %v2502
          %v2535 = vsel %vm2471, %v2439, %v2503
          %v2536 = vsel %vm2472, %v2440, %v2504
          %v2537 = vsel %vm2473, %v2441, %v2505
          %v2538 = vsel %vm2474, %v2442, %v2506
          %v2539 = vsel %vm2475, %v2443, %v2507
          %v2540 = vsel %vm2476, %v2444, %v2508
          %2541 = vst [vmem:[%s389] sm:$0xff] %v2509
          %2542 = vst [vmem:[%s389 + $0x8] sm:$0xff] %v2510
          %2543 = vst [vmem:[%s389 + $0x10] sm:$0xff] %v2511
          %2544 = vst [vmem:[%s389 + $0x18] sm:$0xff] %v2512
          %2545 = vst [vmem:[%s389 + $0x20] sm:$0xff] %v2513
          %2546 = vst [vmem:[%s389 + $0x28] sm:$0xff] %v2514
          %2547 = vst [vmem:[%s389 + $0x30] sm:$0xff] %v2515
          %2548 = vst [vmem:[%s389 + $0x38] sm:$0xff] %v2516
          %2549 = vst [vmem:[%s389 + $0x40] sm:$0xff] %v2517
          %2550 = vst [vmem:[%s389 + $0x48] sm:$0xff] %v2518
          %2551 = vst [vmem:[%s389 + $0x50] sm:$0xff] %v2519
          %2552 = vst [vmem:[%s389 + $0x58] sm:$0xff] %v2520
          %2553 = vst [vmem:[%s389 + $0x60] sm:$0xff] %v2521
          %2554 = vst [vmem:[%s389 + $0x68] sm:$0xff] %v2522
          %2555 = vst [vmem:[%s389 + $0x70] sm:$0xff] %v2523
          %2556 = vst [vmem:[%s389 + $0x78] sm:$0xff] %v2524
          %2557 = vst [vmem:[%s389 + $0x80] sm:$0xff] %v2525
          %2558 = vst [vmem:[%s389 + $0x88] sm:$0xff] %v2526
          %2559 = vst [vmem:[%s389 + $0x90] sm:$0xff] %v2527
          %2560 = vst [vmem:[%s389 + $0x98] sm:$0xff] %v2528
          %2561 = vst [vmem:[%s389 + $0xa0] sm:$0xff] %v2529
          %2562 = vst [vmem:[%s389 + $0xa8] sm:$0xff] %v2530
          %2563 = vst [vmem:[%s389 + $0xb0] sm:$0xff] %v2531
          %2564 = vst [vmem:[%s389 + $0xb8] sm:$0xff] %v2532
          %2565 = vst [vmem:[%s389 + $0xc0] sm:$0xff] %v2533
          %2566 = vst [vmem:[%s389 + $0xc8] sm:$0xff] %v2534
          %2567 = vst [vmem:[%s389 + $0xd0] sm:$0xff] %v2535
          %2568 = vst [vmem:[%s389 + $0xd8] sm:$0xff] %v2536
          %2569 = vst [vmem:[%s389 + $0xe0] sm:$0xff] %v2537
          %2570 = vst [vmem:[%s389 + $0xe8] sm:$0xff] %v2538
          %2571 = vst [vmem:[%s389 + $0xf0] sm:$0xff] %v2539
          %2572 = vst [vmem:[%s389 + $0xf8] sm:$0xff] %v2540
        $region67: #{discriminator_forward.7} parent=54 // pred_fallthru
          _
        %s2573 = smul.u32 16, %s19
        %p2574 = scmp.lt.s32.totalorder %s2573, 15
        %s2575 = scalar_select %p2574, %s2573, 15
        %s2576 = smul.addr %s2575, 2
        %s2577 = smul.addr %s2576, 8
        %s2578 = scalar_lea.vmem %s4, %s2577
        // Predicated region
        $region68: #{discriminator_forward.7} parent=54 // pred_check
          %p2579 = pneg %p141
        $region69: #{discriminator_forward.7} parent=54 // pred_check_branch
          %2581 = sbr.rel (%p2579) target = $region71
        $region70: #{discriminator_forward.7} parent=54 // pred_region
          %s2582 = smul.u32 16, %s19
        $region71: #{discriminator_forward.7} parent=54 // pred_fallthru
          _
        // Predicated region
        $region72: #{discriminator_forward.7} parent=54 // pred_check
          %p2583 = pneg %p141
        $region73: #{discriminator_forward.7} parent=54 // pred_check_branch
          %2585 = sbr.rel (%p2583) target = $region75
        $region74: #{discriminator_forward.7} parent=54 // pred_region
          %s2586 = smul.u32 16, %s19
          %p2587 = scmp.lt.s32.totalorder %s2586, 15
          %s2588 = scalar_select %p2587, %s2586, 15
          %s2589 = smul.addr %s2588, 2
          %s2590 = smul.addr %s2589, 8
          %s2591 = scalar_lea.vmem %s4, %s2590
        $region75: #{discriminator_forward.7} parent=54 // pred_fallthru
          _
      $region55: #{discriminator_forward.7} parent=5 // pred_fallthru
        _
      %p2592 = scmp.le.s32.totalorder 2, %s10
      // Predicated region
      $region76: #{discriminator_forward.7} parent=5 // pred_check
        %p2593 = pneg %p2592
      $region77: #{discriminator_forward.7} parent=5 // pred_check_branch
        %2595 = sbr.rel (%p2593) target = $region79
      $region78: #{discriminator_forward.7} parent=5 // pred_region
        %s2596 = ssub.s32 %s10, 2
      $region79: #{discriminator_forward.7} parent=5 // pred_fallthru
        _
    $region6: #{discriminator_forward.7} parent=1 // loop_footer
      %s14 = sadd.s32 1, %s10
    $region7: #{discriminator_forward.7} parent=1 // loop_footer_branch
      %9 = sbr.rel target = $region3
    $region8: #{discriminator_forward.7} parent=1 // loop_exit
      _

// kernel: discriminator_forward.9
$region0: #{discriminator_forward.9}
  #allocation0 [shape = 'u32[]', space=smem, size = 0x4, offset = 0x4, fixed_abs, tag = 'smem constant byte address 0x4 - core index']
  #allocation1 [shape = 'u32[144,128]{1,0:T(1,128)}', space=vmem, size = 0x12000, scoped, tag = 'internal scratch']
  %s0 = inlined_call_operand.vmem [shape: f32[2,8192], index: 0, kind: input, shape index: {}]
  %s1 = inlined_call_operand.vmem [shape: f32[1,8192], index: 1, kind: input, shape index: {}]
  %s2 = inlined_call_operand.vmem [shape: f32[2,1], index: 2, kind: output, shape index: {}]
  %s3 = sld [smem:[#allocation0]]
  $region18: #{discriminator_forward.9} parent=0
    _
  %s5 = ssub.s32 1, %s3
  %s6 = scalar_select 0, %s5, %s3
  // Predicated region
  $region2: #{discriminator_forward.9} parent=0 // pred_check
    _
  $region3: #{discriminator_forward.9} parent=0 // pred_check_branch
    %8 = sbr.rel (0) target = $region5
  $region4: #{discriminator_forward.9} parent=0 // pred_region
    _
  $region5: #{discriminator_forward.9} parent=0 // pred_fallthru
    _
  // Predicated region
  $region6: #{discriminator_forward.9} parent=0 // pred_check
    _
  $region7: #{discriminator_forward.9} parent=0 // pred_check_branch
    %10 = sbr.rel (0) target = $region9
  $region8: #{discriminator_forward.9} parent=0 // pred_region
    _
  $region9: #{discriminator_forward.9} parent=0 // pred_fallthru
    _
  %v11 = vld [vmem:[%s0] sm:$0xff]
  %v12 = vld [vmem:[%s0 + $0x8] sm:$0xff]
  %v13 = vld [vmem:[%s0 + $0x10] sm:$0xff]
  %v14 = vld [vmem:[%s0 + $0x18] sm:$0xff]
  %v15 = vld [vmem:[%s0 + $0x20] sm:$0xff]
  %v16 = vld [vmem:[%s0 + $0x28] sm:$0xff]
  %v17 = vld [vmem:[%s0 + $0x30] sm:$0xff]
  %v18 = vld [vmem:[%s0 + $0x38] sm:$0xff]
  %v19 = vld [vmem:[%s0 + $0x40] sm:$0xff]
  %v20 = vld [vmem:[%s0 + $0x48] sm:$0xff]
  %v21 = vld [vmem:[%s0 + $0x50] sm:$0xff]
  %v22 = vld [vmem:[%s0 + $0x58] sm:$0xff]
  %v23 = vld [vmem:[%s0 + $0x60] sm:$0xff]
  %v24 = vld [vmem:[%s0 + $0x68] sm:$0xff]
  %v25 = vld [vmem:[%s0 + $0x70] sm:$0xff]
  %v26 = vld [vmem:[%s0 + $0x78] sm:$0xff]
  %v27 = vld [vmem:[%s1] sm:$0xff]
  %v28 = vld [vmem:[%s1 + $0x8] sm:$0xff]
  %v29 = vld [vmem:[%s1 + $0x10] sm:$0xff]
  %v30 = vld [vmem:[%s1 + $0x18] sm:$0xff]
  %v31 = vld [vmem:[%s1 + $0x20] sm:$0xff]
  %v32 = vld [vmem:[%s1 + $0x28] sm:$0xff]
  %v33 = vld [vmem:[%s1 + $0x30] sm:$0xff]
  %v34 = vld [vmem:[%s1 + $0x38] sm:$0xff]
  %v43 = vlaneseq
  %v44 = vshrl.u32 %v43, 7
  %v45 = vsub.s32 0, %v44
  %v46 = vrot.slane %v27, %v45
  %v47 = vlaneseq
  %v48 = vshrl.u32 %v47, 7
  %v49 = vsub.s32 1, %v48
  %v50 = vrot.slane %v27, %v49
  %v51 = vlaneseq
  %v52 = vshrl.u32 %v51, 7
  %v53 = vsub.s32 2, %v52
  %v54 = vrot.slane %v27, %v53
  %v55 = vlaneseq
  %v56 = vshrl.u32 %v55, 7
  %v57 = vsub.s32 3, %v56
  %v58 = vrot.slane %v27, %v57
  %v59 = vlaneseq
  %v60 = vshrl.u32 %v59, 7
  %v61 = vsub.s32 4, %v60
  %v62 = vrot.slane %v27, %v61
  %v63 = vlaneseq
  %v64 = vshrl.u32 %v63, 7
  %v65 = vsub.s32 5, %v64
  %v66 = vrot.slane %v27, %v65
  %v67 = vlaneseq
  %v68 = vshrl.u32 %v67, 7
  %v69 = vsub.s32 6, %v68
  %v70 = vrot.slane %v27, %v69
  %v71 = vlaneseq
  %v72 = vshrl.u32 %v71, 7
  %v73 = vsub.s32 7, %v72
  %v74 = vrot.slane %v27, %v73
  %v75 = vlaneseq
  %v76 = vshrl.u32 %v75, 7
  %v77 = vsub.s32 0, %v76
  %v78 = vrot.slane %v28, %v77
  %v79 = vlaneseq
  %v80 = vshrl.u32 %v79, 7
  %v81 = vsub.s32 1, %v80
  %v82 = vrot.slane %v28, %v81
  %v83 = vlaneseq
  %v84 = vshrl.u32 %v83, 7
  %v85 = vsub.s32 2, %v84
  %v86 = vrot.slane %v28, %v85
  %v87 = vlaneseq
  %v88 = vshrl.u32 %v87, 7
  %v89 = vsub.s32 3, %v88
  %v90 = vrot.slane %v28, %v89
  %v91 = vlaneseq
  %v92 = vshrl.u32 %v91, 7
  %v93 = vsub.s32 4, %v92
  %v94 = vrot.slane %v28, %v93
  %v95 = vlaneseq
  %v96 = vshrl.u32 %v95, 7
  %v97 = vsub.s32 5, %v96
  %v98 = vrot.slane %v28, %v97
  %v99 = vlaneseq
  %v100 = vshrl.u32 %v99, 7
  %v101 = vsub.s32 6, %v100
  %v102 = vrot.slane %v28, %v101
  %v103 = vlaneseq
  %v104 = vshrl.u32 %v103, 7
  %v105 = vsub.s32 7, %v104
  %v106 = vrot.slane %v28, %v105
  %v107 = vlaneseq
  %v108 = vshrl.u32 %v107, 7
  %v109 = vsub.s32 0, %v108
  %v110 = vrot.slane %v29, %v109
  %v111 = vlaneseq
  %v112 = vshrl.u32 %v111, 7
  %v113 = vsub.s32 1, %v112
  %v114 = vrot.slane %v29, %v113
  %v115 = vlaneseq
  %v116 = vshrl.u32 %v115, 7
  %v117 = vsub.s32 2, %v116
  %v118 = vrot.slane %v29, %v117
  %v119 = vlaneseq
  %v120 = vshrl.u32 %v119, 7
  %v121 = vsub.s32 3, %v120
  %v122 = vrot.slane %v29, %v121
  %v123 = vlaneseq
  %v124 = vshrl.u32 %v123, 7
  %v125 = vsub.s32 4, %v124
  %v126 = vrot.slane %v29, %v125
  %v127 = vlaneseq
  %v128 = vshrl.u32 %v127, 7
  %v129 = vsub.s32 5, %v128
  %v130 = vrot.slane %v29, %v129
  %v131 = vlaneseq
  %v132 = vshrl.u32 %v131, 7
  %v133 = vsub.s32 6, %v132
  %v134 = vrot.slane %v29, %v133
  %v135 = vlaneseq
  %v136 = vshrl.u32 %v135, 7
  %v137 = vsub.s32 7, %v136
  %v138 = vrot.slane %v29, %v137
  %v139 = vlaneseq
  %v140 = vshrl.u32 %v139, 7
  %v141 = vsub.s32 0, %v140
  %v142 = vrot.slane %v30, %v141
  %v143 = vlaneseq
  %v144 = vshrl.u32 %v143, 7
  %v145 = vsub.s32 1, %v144
  %v146 = vrot.slane %v30, %v145
  %v147 = vlaneseq
  %v148 = vshrl.u32 %v147, 7
  %v149 = vsub.s32 2, %v148
  %v150 = vrot.slane %v30, %v149
  %v151 = vlaneseq
  %v152 = vshrl.u32 %v151, 7
  %v153 = vsub.s32 3, %v152
  %v154 = vrot.slane %v30, %v153
  %v155 = vlaneseq
  %v156 = vshrl.u32 %v155, 7
  %v157 = vsub.s32 4, %v156
  %v158 = vrot.slane %v30, %v157
  %v159 = vlaneseq
  %v160 = vshrl.u32 %v159, 7
  %v161 = vsub.s32 5, %v160
  %v162 = vrot.slane %v30, %v161
  %v163 = vlaneseq
  %v164 = vshrl.u32 %v163, 7
  %v165 = vsub.s32 6, %v164
  %v166 = vrot.slane %v30, %v165
  %v167 = vlaneseq
  %v168 = vshrl.u32 %v167, 7
  %v169 = vsub.s32 7, %v168
  %v170 = vrot.slane %v30, %v169
  %v171 = vlaneseq
  %v172 = vshrl.u32 %v171, 7
  %v173 = vsub.s32 0, %v172
  %v174 = vrot.slane %v31, %v173
  %v175 = vlaneseq
  %v176 = vshrl.u32 %v175, 7
  %v177 = vsub.s32 1, %v176
  %v178 = vrot.slane %v31, %v177
  %v179 = vlaneseq
  %v180 = vshrl.u32 %v179, 7
  %v181 = vsub.s32 2, %v180
  %v182 = vrot.slane %v31, %v181
  %v183 = vlaneseq
  %v184 = vshrl.u32 %v183, 7
  %v185 = vsub.s32 3, %v184
  %v186 = vrot.slane %v31, %v185
  %v187 = vlaneseq
  %v188 = vshrl.u32 %v187, 7
  %v189 = vsub.s32 4, %v188
  %v190 = vrot.slane %v31, %v189
  %v191 = vlaneseq
  %v192 = vshrl.u32 %v191, 7
  %v193 = vsub.s32 5, %v192
  %v194 = vrot.slane %v31, %v193
  %v195 = vlaneseq
  %v196 = vshrl.u32 %v195, 7
  %v197 = vsub.s32 6, %v196
  %v198 = vrot.slane %v31, %v197
  %v199 = vlaneseq
  %v200 = vshrl.u32 %v199, 7
  %v201 = vsub.s32 7, %v200
  %v202 = vrot.slane %v31, %v201
  %v203 = vlaneseq
  %v204 = vshrl.u32 %v203, 7
  %v205 = vsub.s32 0, %v204
  %v206 = vrot.slane %v32, %v205
  %v207 = vlaneseq
  %v208 = vshrl.u32 %v207, 7
  %v209 = vsub.s32 1, %v208
  %v210 = vrot.slane %v32, %v209
  %v211 = vlaneseq
  %v212 = vshrl.u32 %v211, 7
  %v213 = vsub.s32 2, %v212
  %v214 = vrot.slane %v32, %v213
  %v215 = vlaneseq
  %v216 = vshrl.u32 %v215, 7
  %v217 = vsub.s32 3, %v216
  %v218 = vrot.slane %v32, %v217
  %v219 = vlaneseq
  %v220 = vshrl.u32 %v219, 7
  %v221 = vsub.s32 4, %v220
  %v222 = vrot.slane %v32, %v221
  %v223 = vlaneseq
  %v224 = vshrl.u32 %v223, 7
  %v225 = vsub.s32 5, %v224
  %v226 = vrot.slane %v32, %v225
  %v227 = vlaneseq
  %v228 = vshrl.u32 %v227, 7
  %v229 = vsub.s32 6, %v228
  %v230 = vrot.slane %v32, %v229
  %v231 = vlaneseq
  %v232 = vshrl.u32 %v231, 7
  %v233 = vsub.s32 7, %v232
  %v234 = vrot.slane %v32, %v233
  %v235 = vlaneseq
  %v236 = vshrl.u32 %v235, 7
  %v237 = vsub.s32 0, %v236
  %v238 = vrot.slane %v33, %v237
  %v239 = vlaneseq
  %v240 = vshrl.u32 %v239, 7
  %v241 = vsub.s32 1, %v240
  %v242 = vrot.slane %v33, %v241
  %v243 = vlaneseq
  %v244 = vshrl.u32 %v243, 7
  %v245 = vsub.s32 2, %v244
  %v246 = vrot.slane %v33, %v245
  %v247 = vlaneseq
  %v248 = vshrl.u32 %v247, 7
  %v249 = vsub.s32 3, %v248
  %v250 = vrot.slane %v33, %v249
  %v251 = vlaneseq
  %v252 = vshrl.u32 %v251, 7
  %v253 = vsub.s32 4, %v252
  %v254 = vrot.slane %v33, %v253
  %v255 = vlaneseq
  %v256 = vshrl.u32 %v255, 7
  %v257 = vsub.s32 5, %v256
  %v258 = vrot.slane %v33, %v257
  %v259 = vlaneseq
  %v260 = vshrl.u32 %v259, 7
  %v261 = vsub.s32 6, %v260
  %v262 = vrot.slane %v33, %v261
  %v263 = vlaneseq
  %v264 = vshrl.u32 %v263, 7
  %v265 = vsub.s32 7, %v264
  %v266 = vrot.slane %v33, %v265
  %v267 = vlaneseq
  %v268 = vshrl.u32 %v267, 7
  %v269 = vsub.s32 0, %v268
  %v270 = vrot.slane %v34, %v269
  %v271 = vlaneseq
  %v272 = vshrl.u32 %v271, 7
  %v273 = vsub.s32 1, %v272
  %v274 = vrot.slane %v34, %v273
  %v275 = vlaneseq
  %v276 = vshrl.u32 %v275, 7
  %v277 = vsub.s32 2, %v276
  %v278 = vrot.slane %v34, %v277
  %v279 = vlaneseq
  %v280 = vshrl.u32 %v279, 7
  %v281 = vsub.s32 3, %v280
  %v282 = vrot.slane %v34, %v281
  %v283 = vlaneseq
  %v284 = vshrl.u32 %v283, 7
  %v285 = vsub.s32 4, %v284
  %v286 = vrot.slane %v34, %v285
  %v287 = vlaneseq
  %v288 = vshrl.u32 %v287, 7
  %v289 = vsub.s32 5, %v288
  %v290 = vrot.slane %v34, %v289
  %v291 = vlaneseq
  %v292 = vshrl.u32 %v291, 7
  %v293 = vsub.s32 6, %v292
  %v294 = vrot.slane %v34, %v293
  %v295 = vlaneseq
  %v296 = vshrl.u32 %v295, 7
  %v297 = vsub.s32 7, %v296
  %v298 = vrot.slane %v34, %v297
  %v299 = vcombine.low %v46, %v50
  %v300 = vcombine.low %v54, %v58
  %v302 = vunpack.c.l.s4 1983009808
  %v303 = vunpack.c.0.s8 %v302
  %v304 = vlaneseq
  %v305 = vshrl.u32 %v304, 7
  %v306 = vsub.s32 %v303, %v305
  %v307 = vrot.slane %v299, %v306
  %v309 = vunpack.c.l.s4 1983009808
  %v310 = vunpack.c.0.s8 %v309
  %v311 = vlaneseq
  %v312 = vshrl.u32 %v311, 7
  %v313 = vsub.s32 %v310, %v312
  %v314 = vrot.slane %v300, %v313
  %v315 = vcombine.low %v307, %v314
  %v316 = vcombine.low %v62, %v66
  %v317 = vcombine.low %v70, %v74
  %v319 = vunpack.c.l.s4 1983009808
  %v320 = vunpack.c.0.s8 %v319
  %v321 = vlaneseq
  %v322 = vshrl.u32 %v321, 7
  %v323 = vsub.s32 %v320, %v322
  %v324 = vrot.slane %v316, %v323
  %v326 = vunpack.c.l.s4 1983009808
  %v327 = vunpack.c.0.s8 %v326
  %v328 = vlaneseq
  %v329 = vshrl.u32 %v328, 7
  %v330 = vsub.s32 %v327, %v329
  %v331 = vrot.slane %v317, %v330
  %v332 = vcombine.low %v324, %v331
  %v333 = vcombine.low %v78, %v82
  %v334 = vcombine.low %v86, %v90
  %v336 = vunpack.c.l.s4 1983009808
  %v337 = vunpack.c.0.s8 %v336
  %v338 = vlaneseq
  %v339 = vshrl.u32 %v338, 7
  %v340 = vsub.s32 %v337, %v339
  %v341 = vrot.slane %v333, %v340
  %v343 = vunpack.c.l.s4 1983009808
  %v344 = vunpack.c.0.s8 %v343
  %v345 = vlaneseq
  %v346 = vshrl.u32 %v345, 7
  %v347 = vsub.s32 %v344, %v346
  %v348 = vrot.slane %v334, %v347
  %v349 = vcombine.low %v341, %v348
  %v350 = vcombine.low %v94, %v98
  %v351 = vcombine.low %v102, %v106
  %v353 = vunpack.c.l.s4 1983009808
  %v354 = vunpack.c.0.s8 %v353
  %v355 = vlaneseq
  %v356 = vshrl.u32 %v355, 7
  %v357 = vsub.s32 %v354, %v356
  %v358 = vrot.slane %v350, %v357
  %v360 = vunpack.c.l.s4 1983009808
  %v361 = vunpack.c.0.s8 %v360
  %v362 = vlaneseq
  %v363 = vshrl.u32 %v362, 7
  %v364 = vsub.s32 %v361, %v363
  %v365 = vrot.slane %v351, %v364
  %v366 = vcombine.low %v358, %v365
  %v367 = vcombine.low %v110, %v114
  %v368 = vcombine.low %v118, %v122
  %v370 = vunpack.c.l.s4 1983009808
  %v371 = vunpack.c.0.s8 %v370
  %v372 = vlaneseq
  %v373 = vshrl.u32 %v372, 7
  %v374 = vsub.s32 %v371, %v373
  %v375 = vrot.slane %v367, %v374
  %v377 = vunpack.c.l.s4 1983009808
  %v378 = vunpack.c.0.s8 %v377
  %v379 = vlaneseq
  %v380 = vshrl.u32 %v379, 7
  %v381 = vsub.s32 %v378, %v380
  %v382 = vrot.slane %v368, %v381
  %v383 = vcombine.low %v375, %v382
  %v384 = vcombine.low %v126, %v130
  %v385 = vcombine.low %v134, %v138
  %v387 = vunpack.c.l.s4 1983009808
  %v388 = vunpack.c.0.s8 %v387
  %v389 = vlaneseq
  %v390 = vshrl.u32 %v389, 7
  %v391 = vsub.s32 %v388, %v390
  %v392 = vrot.slane %v384, %v391
  %v394 = vunpack.c.l.s4 1983009808
  %v395 = vunpack.c.0.s8 %v394
  %v396 = vlaneseq
  %v397 = vshrl.u32 %v396, 7
  %v398 = vsub.s32 %v395, %v397
  %v399 = vrot.slane %v385, %v398
  %v400 = vcombine.low %v392, %v399
  %v401 = vcombine.low %v142, %v146
  %v402 = vcombine.low %v150, %v154
  %v404 = vunpack.c.l.s4 1983009808
  %v405 = vunpack.c.0.s8 %v404
  %v406 = vlaneseq
  %v407 = vshrl.u32 %v406, 7
  %v408 = vsub.s32 %v405, %v407
  %v409 = vrot.slane %v401, %v408
  %v411 = vunpack.c.l.s4 1983009808
  %v412 = vunpack.c.0.s8 %v411
  %v413 = vlaneseq
  %v414 = vshrl.u32 %v413, 7
  %v415 = vsub.s32 %v412, %v414
  %v416 = vrot.slane %v402, %v415
  %v417 = vcombine.low %v409, %v416
  %v418 = vcombine.low %v158, %v162
  %v419 = vcombine.low %v166, %v170
  %v421 = vunpack.c.l.s4 1983009808
  %v422 = vunpack.c.0.s8 %v421
  %v423 = vlaneseq
  %v424 = vshrl.u32 %v423, 7
  %v425 = vsub.s32 %v422, %v424
  %v426 = vrot.slane %v418, %v425
  %v428 = vunpack.c.l.s4 1983009808
  %v429 = vunpack.c.0.s8 %v428
  %v430 = vlaneseq
  %v431 = vshrl.u32 %v430, 7
  %v432 = vsub.s32 %v429, %v431
  %v433 = vrot.slane %v419, %v432
  %v434 = vcombine.low %v426, %v433
  %v435 = vcombine.low %v174, %v178
  %v436 = vcombine.low %v182, %v186
  %v438 = vunpack.c.l.s4 1983009808
  %v439 = vunpack.c.0.s8 %v438
  %v440 = vlaneseq
  %v441 = vshrl.u32 %v440, 7
  %v442 = vsub.s32 %v439, %v441
  %v443 = vrot.slane %v435, %v442
  %v445 = vunpack.c.l.s4 1983009808
  %v446 = vunpack.c.0.s8 %v445
  %v447 = vlaneseq
  %v448 = vshrl.u32 %v447, 7
  %v449 = vsub.s32 %v446, %v448
  %v450 = vrot.slane %v436, %v449
  %v451 = vcombine.low %v443, %v450
  %v452 = vcombine.low %v190, %v194
  %v453 = vcombine.low %v198, %v202
  %v455 = vunpack.c.l.s4 1983009808
  %v456 = vunpack.c.0.s8 %v455
  %v457 = vlaneseq
  %v458 = vshrl.u32 %v457, 7
  %v459 = vsub.s32 %v456, %v458
  %v460 = vrot.slane %v452, %v459
  %v462 = vunpack.c.l.s4 1983009808
  %v463 = vunpack.c.0.s8 %v462
  %v464 = vlaneseq
  %v465 = vshrl.u32 %v464, 7
  %v466 = vsub.s32 %v463, %v465
  %v467 = vrot.slane %v453, %v466
  %v468 = vcombine.low %v460, %v467
  %v469 = vcombine.low %v206, %v210
  %v470 = vcombine.low %v214, %v218
  %v472 = vunpack.c.l.s4 1983009808
  %v473 = vunpack.c.0.s8 %v472
  %v474 = vlaneseq
  %v475 = vshrl.u32 %v474, 7
  %v476 = vsub.s32 %v473, %v475
  %v477 = vrot.slane %v469, %v476
  %v479 = vunpack.c.l.s4 1983009808
  %v480 = vunpack.c.0.s8 %v479
  %v481 = vlaneseq
  %v482 = vshrl.u32 %v481, 7
  %v483 = vsub.s32 %v480, %v482
  %v484 = vrot.slane %v470, %v483
  %v485 = vcombine.low %v477, %v484
  %v486 = vcombine.low %v222, %v226
  %v487 = vcombine.low %v230, %v234
  %v489 = vunpack.c.l.s4 1983009808
  %v490 = vunpack.c.0.s8 %v489
  %v491 = vlaneseq
  %v492 = vshrl.u32 %v491, 7
  %v493 = vsub.s32 %v490, %v492
  %v494 = vrot.slane %v486, %v493
  %v496 = vunpack.c.l.s4 1983009808
  %v497 = vunpack.c.0.s8 %v496
  %v498 = vlaneseq
  %v499 = vshrl.u32 %v498, 7
  %v500 = vsub.s32 %v497, %v499
  %v501 = vrot.slane %v487, %v500
  %v502 = vcombine.low %v494, %v501
  %v503 = vcombine.low %v238, %v242
  %v504 = vcombine.low %v246, %v250
  %v506 = vunpack.c.l.s4 1983009808
  %v507 = vunpack.c.0.s8 %v506
  %v508 = vlaneseq
  %v509 = vshrl.u32 %v508, 7
  %v510 = vsub.s32 %v507, %v509
  %v511 = vrot.slane %v503, %v510
  %v513 = vunpack.c.l.s4 1983009808
  %v514 = vunpack.c.0.s8 %v513
  %v515 = vlaneseq
  %v516 = vshrl.u32 %v515, 7
  %v517 = vsub.s32 %v514, %v516
  %v518 = vrot.slane %v504, %v517
  %v519 = vcombine.low %v511, %v518
  %v520 = vcombine.low %v254, %v258
  %v521 = vcombine.low %v262, %v266
  %v523 = vunpack.c.l.s4 1983009808
  %v524 = vunpack.c.0.s8 %v523
  %v525 = vlaneseq
  %v526 = vshrl.u32 %v525, 7
  %v527 = vsub.s32 %v524, %v526
  %v528 = vrot.slane %v520, %v527
  %v530 = vunpack.c.l.s4 1983009808
  %v531 = vunpack.c.0.s8 %v530
  %v532 = vlaneseq
  %v533 = vshrl.u32 %v532, 7
  %v534 = vsub.s32 %v531, %v533
  %v535 = vrot.slane %v521, %v534
  %v536 = vcombine.low %v528, %v535
  %v537 = vcombine.low %v270, %v274
  %v538 = vcombine.low %v278, %v282
  %v540 = vunpack.c.l.s4 1983009808
  %v541 = vunpack.c.0.s8 %v540
  %v542 = vlaneseq
  %v543 = vshrl.u32 %v542, 7
  %v544 = vsub.s32 %v541, %v543
  %v545 = vrot.slane %v537, %v544
  %v547 = vunpack.c.l.s4 1983009808
  %v548 = vunpack.c.0.s8 %v547
  %v549 = vlaneseq
  %v550 = vshrl.u32 %v549, 7
  %v551 = vsub.s32 %v548, %v550
  %v552 = vrot.slane %v538, %v551
  %v553 = vcombine.low %v545, %v552
  %v554 = vcombine.low %v286, %v290
  %v555 = vcombine.low %v294, %v298
  %v557 = vunpack.c.l.s4 1983009808
  %v558 = vunpack.c.0.s8 %v557
  %v559 = vlaneseq
  %v560 = vshrl.u32 %v559, 7
  %v561 = vsub.s32 %v558, %v560
  %v562 = vrot.slane %v554, %v561
  %v564 = vunpack.c.l.s4 1983009808
  %v565 = vunpack.c.0.s8 %v564
  %v566 = vlaneseq
  %v567 = vshrl.u32 %v566, 7
  %v568 = vsub.s32 %v565, %v567
  %v569 = vrot.slane %v555, %v568
  %v570 = vcombine.low %v562, %v569
  %v587 = vmul.f32 %v11, %v315
  %v588 = vmul.f32 %v12, %v332
  %v589 = vmul.f32 %v13, %v349
  %v590 = vmul.f32 %v14, %v366
  %v591 = vmul.f32 %v15, %v383
  %v592 = vmul.f32 %v16, %v400
  %v593 = vmul.f32 %v17, %v417
  %v594 = vmul.f32 %v18, %v434
  %v595 = vmul.f32 %v19, %v451
  %v596 = vmul.f32 %v20, %v468
  %v597 = vmul.f32 %v21, %v485
  %v598 = vmul.f32 %v22, %v502
  %v599 = vmul.f32 %v23, %v519
  %v600 = vmul.f32 %v24, %v536
  %v601 = vmul.f32 %v25, %v553
  %v602 = vmul.f32 %v26, %v570
  %v619 = vcombine.high %v587, %v587
  %v621 = vunpack.c.l.s4 1983009808
  %v622 = vunpack.c.0.s8 %v621
  %v623 = vlaneseq
  %v624 = vshrl.u32 %v623, 7
  %v625 = vsub.s32 %v622, %v624
  %v626 = vrot.slane %v587, %v625
  %v628 = vunpack.c.l.s4 1983009808
  %v629 = vunpack.c.0.s8 %v628
  %v630 = vlaneseq
  %v631 = vshrl.u32 %v630, 7
  %v632 = vsub.s32 %v629, %v631
  %v633 = vrot.slane %v619, %v632
  %v634 = vcombine.high %v626, %v626
  %v635 = vcombine.high %v633, %v633
  %v636 = vcombine.high %v588, %v588
  %v638 = vunpack.c.l.s4 1983009808
  %v639 = vunpack.c.0.s8 %v638
  %v640 = vlaneseq
  %v641 = vshrl.u32 %v640, 7
  %v642 = vsub.s32 %v639, %v641
  %v643 = vrot.slane %v588, %v642
  %v645 = vunpack.c.l.s4 1983009808
  %v646 = vunpack.c.0.s8 %v645
  %v647 = vlaneseq
  %v648 = vshrl.u32 %v647, 7
  %v649 = vsub.s32 %v646, %v648
  %v650 = vrot.slane %v636, %v649
  %v651 = vcombine.high %v643, %v643
  %v652 = vcombine.high %v650, %v650
  %v653 = vcombine.high %v589, %v589
  %v655 = vunpack.c.l.s4 1983009808
  %v656 = vunpack.c.0.s8 %v655
  %v657 = vlaneseq
  %v658 = vshrl.u32 %v657, 7
  %v659 = vsub.s32 %v656, %v658
  %v660 = vrot.slane %v589, %v659
  %v662 = vunpack.c.l.s4 1983009808
  %v663 = vunpack.c.0.s8 %v662
  %v664 = vlaneseq
  %v665 = vshrl.u32 %v664, 7
  %v666 = vsub.s32 %v663, %v665
  %v667 = vrot.slane %v653, %v666
  %v668 = vcombine.high %v660, %v660
  %v669 = vcombine.high %v667, %v667
  %v670 = vcombine.high %v590, %v590
  %v672 = vunpack.c.l.s4 1983009808
  %v673 = vunpack.c.0.s8 %v672
  %v674 = vlaneseq
  %v675 = vshrl.u32 %v674, 7
  %v676 = vsub.s32 %v673, %v675
  %v677 = vrot.slane %v590, %v676
  %v679 = vunpack.c.l.s4 1983009808
  %v680 = vunpack.c.0.s8 %v679
  %v681 = vlaneseq
  %v682 = vshrl.u32 %v681, 7
  %v683 = vsub.s32 %v680, %v682
  %v684 = vrot.slane %v670, %v683
  %v685 = vcombine.high %v677, %v677
  %v686 = vcombine.high %v684, %v684
  %v687 = vcombine.high %v591, %v591
  %v689 = vunpack.c.l.s4 1983009808
  %v690 = vunpack.c.0.s8 %v689
  %v691 = vlaneseq
  %v692 = vshrl.u32 %v691, 7
  %v693 = vsub.s32 %v690, %v692
  %v694 = vrot.slane %v591, %v693
  %v696 = vunpack.c.l.s4 1983009808
  %v697 = vunpack.c.0.s8 %v696
  %v698 = vlaneseq
  %v699 = vshrl.u32 %v698, 7
  %v700 = vsub.s32 %v697, %v699
  %v701 = vrot.slane %v687, %v700
  %v702 = vcombine.high %v694, %v694
  %v703 = vcombine.high %v701, %v701
  %v704 = vcombine.high %v592, %v592
  %v706 = vunpack.c.l.s4 1983009808
  %v707 = vunpack.c.0.s8 %v706
  %v708 = vlaneseq
  %v709 = vshrl.u32 %v708, 7
  %v710 = vsub.s32 %v707, %v709
  %v711 = vrot.slane %v592, %v710
  %v713 = vunpack.c.l.s4 1983009808
  %v714 = vunpack.c.0.s8 %v713
  %v715 = vlaneseq
  %v716 = vshrl.u32 %v715, 7
  %v717 = vsub.s32 %v714, %v716
  %v718 = vrot.slane %v704, %v717
  %v719 = vcombine.high %v711, %v711
  %v720 = vcombine.high %v718, %v718
  %v721 = vcombine.high %v593, %v593
  %v723 = vunpack.c.l.s4 1983009808
  %v724 = vunpack.c.0.s8 %v723
  %v725 = vlaneseq
  %v726 = vshrl.u32 %v725, 7
  %v727 = vsub.s32 %v724, %v726
  %v728 = vrot.slane %v593, %v727
  %v730 = vunpack.c.l.s4 1983009808
  %v731 = vunpack.c.0.s8 %v730
  %v732 = vlaneseq
  %v733 = vshrl.u32 %v732, 7
  %v734 = vsub.s32 %v731, %v733
  %v735 = vrot.slane %v721, %v734
  %v736 = vcombine.high %v728, %v728
  %v737 = vcombine.high %v735, %v735
  %v738 = vcombine.high %v594, %v594
  %v740 = vunpack.c.l.s4 1983009808
  %v741 = vunpack.c.0.s8 %v740
  %v742 = vlaneseq
  %v743 = vshrl.u32 %v742, 7
  %v744 = vsub.s32 %v741, %v743
  %v745 = vrot.slane %v594, %v744
  %v747 = vunpack.c.l.s4 1983009808
  %v748 = vunpack.c.0.s8 %v747
  %v749 = vlaneseq
  %v750 = vshrl.u32 %v749, 7
  %v751 = vsub.s32 %v748, %v750
  %v752 = vrot.slane %v738, %v751
  %v753 = vcombine.high %v745, %v745
  %v754 = vcombine.high %v752, %v752
  %v755 = vcombine.high %v595, %v595
  %v757 = vunpack.c.l.s4 1983009808
  %v758 = vunpack.c.0.s8 %v757
  %v759 = vlaneseq
  %v760 = vshrl.u32 %v759, 7
  %v761 = vsub.s32 %v758, %v760
  %v762 = vrot.slane %v595, %v761
  %v764 = vunpack.c.l.s4 1983009808
  %v765 = vunpack.c.0.s8 %v764
  %v766 = vlaneseq
  %v767 = vshrl.u32 %v766, 7
  %v768 = vsub.s32 %v765, %v767
  %v769 = vrot.slane %v755, %v768
  %v770 = vcombine.high %v762, %v762
  %v771 = vcombine.high %v769, %v769
  %v772 = vcombine.high %v596, %v596
  %v774 = vunpack.c.l.s4 1983009808
  %v775 = vunpack.c.0.s8 %v774
  %v776 = vlaneseq
  %v777 = vshrl.u32 %v776, 7
  %v778 = vsub.s32 %v775, %v777
  %v779 = vrot.slane %v596, %v778
  %v781 = vunpack.c.l.s4 1983009808
  %v782 = vunpack.c.0.s8 %v781
  %v783 = vlaneseq
  %v784 = vshrl.u32 %v783, 7
  %v785 = vsub.s32 %v782, %v784
  %v786 = vrot.slane %v772, %v785
  %v787 = vcombine.high %v779, %v779
  %v788 = vcombine.high %v786, %v786
  %v789 = vcombine.high %v597, %v597
  %v791 = vunpack.c.l.s4 1983009808
  %v792 = vunpack.c.0.s8 %v791
  %v793 = vlaneseq
  %v794 = vshrl.u32 %v793, 7
  %v795 = vsub.s32 %v792, %v794
  %v796 = vrot.slane %v597, %v795
  %v798 = vunpack.c.l.s4 1983009808
  %v799 = vunpack.c.0.s8 %v798
  %v800 = vlaneseq
  %v801 = vshrl.u32 %v800, 7
  %v802 = vsub.s32 %v799, %v801
  %v803 = vrot.slane %v789, %v802
  %v804 = vcombine.high %v796, %v796
  %v805 = vcombine.high %v803, %v803
  %v806 = vcombine.high %v598, %v598
  %v808 = vunpack.c.l.s4 1983009808
  %v809 = vunpack.c.0.s8 %v808
  %v810 = vlaneseq
  %v811 = vshrl.u32 %v810, 7
  %v812 = vsub.s32 %v809, %v811
  %v813 = vrot.slane %v598, %v812
  %v815 = vunpack.c.l.s4 1983009808
  %v816 = vunpack.c.0.s8 %v815
  %v817 = vlaneseq
  %v818 = vshrl.u32 %v817, 7
  %v819 = vsub.s32 %v816, %v818
  %v820 = vrot.slane %v806, %v819
  %v821 = vcombine.high %v813, %v813
  %v822 = vcombine.high %v820, %v820
  %v823 = vcombine.high %v599, %v599
  %v825 = vunpack.c.l.s4 1983009808
  %v826 = vunpack.c.0.s8 %v825
  %v827 = vlaneseq
  %v828 = vshrl.u32 %v827, 7
  %v829 = vsub.s32 %v826, %v828
  %v830 = vrot.slane %v599, %v829
  %v832 = vunpack.c.l.s4 1983009808
  %v833 = vunpack.c.0.s8 %v832
  %v834 = vlaneseq
  %v835 = vshrl.u32 %v834, 7
  %v836 = vsub.s32 %v833, %v835
  %v837 = vrot.slane %v823, %v836
  %v838 = vcombine.high %v830, %v830
  %v839 = vcombine.high %v837, %v837
  %v840 = vcombine.high %v600, %v600
  %v842 = vunpack.c.l.s4 1983009808
  %v843 = vunpack.c.0.s8 %v842
  %v844 = vlaneseq
  %v845 = vshrl.u32 %v844, 7
  %v846 = vsub.s32 %v843, %v845
  %v847 = vrot.slane %v600, %v846
  %v849 = vunpack.c.l.s4 1983009808
  %v850 = vunpack.c.0.s8 %v849
  %v851 = vlaneseq
  %v852 = vshrl.u32 %v851, 7
  %v853 = vsub.s32 %v850, %v852
  %v854 = vrot.slane %v840, %v853
  %v855 = vcombine.high %v847, %v847
  %v856 = vcombine.high %v854, %v854
  %v857 = vcombine.high %v601, %v601
  %v859 = vunpack.c.l.s4 1983009808
  %v860 = vunpack.c.0.s8 %v859
  %v861 = vlaneseq
  %v862 = vshrl.u32 %v861, 7
  %v863 = vsub.s32 %v860, %v862
  %v864 = vrot.slane %v601, %v863
  %v866 = vunpack.c.l.s4 1983009808
  %v867 = vunpack.c.0.s8 %v866
  %v868 = vlaneseq
  %v869 = vshrl.u32 %v868, 7
  %v870 = vsub.s32 %v867, %v869
  %v871 = vrot.slane %v857, %v870
  %v872 = vcombine.high %v864, %v864
  %v873 = vcombine.high %v871, %v871
  %v874 = vcombine.high %v602, %v602
  %v876 = vunpack.c.l.s4 1983009808
  %v877 = vunpack.c.0.s8 %v876
  %v878 = vlaneseq
  %v879 = vshrl.u32 %v878, 7
  %v880 = vsub.s32 %v877, %v879
  %v881 = vrot.slane %v602, %v880
  %v883 = vunpack.c.l.s4 1983009808
  %v884 = vunpack.c.0.s8 %v883
  %v885 = vlaneseq
  %v886 = vshrl.u32 %v885, 7
  %v887 = vsub.s32 %v884, %v886
  %v888 = vrot.slane %v874, %v887
  %v889 = vcombine.high %v881, %v881
  %v890 = vcombine.high %v888, %v888
  %vm955 = vcmask 1041408
  %v956 = vsel %vm955, %v626, 0.0
  %v957 = vsel %vm955, %v634, 0.0
  %v958 = vadd.f32 %v956, %v957
  %v959 = vsel %vm955, %v633, 0.0
  %v960 = vadd.f32 %v958, %v959
  %v961 = vsel %vm955, %v635, 0.0
  %v962 = vadd.f32 %v960, %v961
  %v963 = vsel %vm955, %v643, 0.0
  %v964 = vadd.f32 %v962, %v963
  %v965 = vsel %vm955, %v651, 0.0
  %v966 = vadd.f32 %v964, %v965
  %v967 = vsel %vm955, %v650, 0.0
  %v968 = vadd.f32 %v966, %v967
  %v969 = vsel %vm955, %v652, 0.0
  %v970 = vadd.f32 %v968, %v969
  %v971 = vsel %vm955, %v660, 0.0
  %v972 = vadd.f32 %v970, %v971
  %v973 = vsel %vm955, %v668, 0.0
  %v974 = vadd.f32 %v972, %v973
  %v975 = vsel %vm955, %v667, 0.0
  %v976 = vadd.f32 %v974, %v975
  %v977 = vsel %vm955, %v669, 0.0
  %v978 = vadd.f32 %v976, %v977
  %v979 = vsel %vm955, %v677, 0.0
  %v980 = vadd.f32 %v978, %v979
  %v981 = vsel %vm955, %v685, 0.0
  %v982 = vadd.f32 %v980, %v981
  %v983 = vsel %vm955, %v684, 0.0
  %v984 = vadd.f32 %v982, %v983
  %v985 = vsel %vm955, %v686, 0.0
  %v986 = vadd.f32 %v984, %v985
  %v987 = vsel %vm955, %v694, 0.0
  %v988 = vadd.f32 %v986, %v987
  %v989 = vsel %vm955, %v702, 0.0
  %v990 = vadd.f32 %v988, %v989
  %v991 = vsel %vm955, %v701, 0.0
  %v992 = vadd.f32 %v990, %v991
  %v993 = vsel %vm955, %v703, 0.0
  %v994 = vadd.f32 %v992, %v993
  %v995 = vsel %vm955, %v711, 0.0
  %v996 = vadd.f32 %v994, %v995
  %v997 = vsel %vm955, %v719, 0.0
  %v998 = vadd.f32 %v996, %v997
  %v999 = vsel %vm955, %v718, 0.0
  %v1000 = vadd.f32 %v998, %v999
  %v1001 = vsel %vm955, %v720, 0.0
  %v1002 = vadd.f32 %v1000, %v1001
  %v1003 = vsel %vm955, %v728, 0.0
  %v1004 = vadd.f32 %v1002, %v1003
  %v1005 = vsel %vm955, %v736, 0.0
  %v1006 = vadd.f32 %v1004, %v1005
  %v1007 = vsel %vm955, %v735, 0.0
  %v1008 = vadd.f32 %v1006, %v1007
  %v1009 = vsel %vm955, %v737, 0.0
  %v1010 = vadd.f32 %v1008, %v1009
  %v1011 = vsel %vm955, %v745, 0.0
  %v1012 = vadd.f32 %v1010, %v1011
  %v1013 = vsel %vm955, %v753, 0.0
  %v1014 = vadd.f32 %v1012, %v1013
  %v1015 = vsel %vm955, %v752, 0.0
  %v1016 = vadd.f32 %v1014, %v1015
  %v1017 = vsel %vm955, %v754, 0.0
  %v1018 = vadd.f32 %v1016, %v1017
  %v1019 = vsel %vm955, %v762, 0.0
  %v1020 = vadd.f32 %v1018, %v1019
  %v1021 = vsel %vm955, %v770, 0.0
  %v1022 = vadd.f32 %v1020, %v1021
  %v1023 = vsel %vm955, %v769, 0.0
  %v1024 = vadd.f32 %v1022, %v1023
  %v1025 = vsel %vm955, %v771, 0.0
  %v1026 = vadd.f32 %v1024, %v1025
  %v1027 = vsel %vm955, %v779, 0.0
  %v1028 = vadd.f32 %v1026, %v1027
  %v1029 = vsel %vm955, %v787, 0.0
  %v1030 = vadd.f32 %v1028, %v1029
  %v1031 = vsel %vm955, %v786, 0.0
  %v1032 = vadd.f32 %v1030, %v1031
  %v1033 = vsel %vm955, %v788, 0.0
  %v1034 = vadd.f32 %v1032, %v1033
  %v1035 = vsel %vm955, %v796, 0.0
  %v1036 = vadd.f32 %v1034, %v1035
  %v1037 = vsel %vm955, %v804, 0.0
  %v1038 = vadd.f32 %v1036, %v1037
  %v1039 = vsel %vm955, %v803, 0.0
  %v1040 = vadd.f32 %v1038, %v1039
  %v1041 = vsel %vm955, %v805, 0.0
  %v1042 = vadd.f32 %v1040, %v1041
  %v1043 = vsel %vm955, %v813, 0.0
  %v1044 = vadd.f32 %v1042, %v1043
  %v1045 = vsel %vm955, %v821, 0.0
  %v1046 = vadd.f32 %v1044, %v1045
  %v1047 = vsel %vm955, %v820, 0.0
  %v1048 = vadd.f32 %v1046, %v1047
  %v1049 = vsel %vm955, %v822, 0.0
  %v1050 = vadd.f32 %v1048, %v1049
  %v1051 = vsel %vm955, %v830, 0.0
  %v1052 = vadd.f32 %v1050, %v1051
  %v1053 = vsel %vm955, %v838, 0.0
  %v1054 = vadd.f32 %v1052, %v1053
  %v1055 = vsel %vm955, %v837, 0.0
  %v1056 = vadd.f32 %v1054, %v1055
  %v1057 = vsel %vm955, %v839, 0.0
  %v1058 = vadd.f32 %v1056, %v1057
  %v1059 = vsel %vm955, %v847, 0.0
  %v1060 = vadd.f32 %v1058, %v1059
  %v1061 = vsel %vm955, %v855, 0.0
  %v1062 = vadd.f32 %v1060, %v1061
  %v1063 = vsel %vm955, %v854, 0.0
  %v1064 = vadd.f32 %v1062, %v1063
  %v1065 = vsel %vm955, %v856, 0.0
  %v1066 = vadd.f32 %v1064, %v1065
  %v1067 = vsel %vm955, %v864, 0.0
  %v1068 = vadd.f32 %v1066, %v1067
  %v1069 = vsel %vm955, %v872, 0.0
  %v1070 = vadd.f32 %v1068, %v1069
  %v1071 = vsel %vm955, %v871, 0.0
  %v1072 = vadd.f32 %v1070, %v1071
  %v1073 = vsel %vm955, %v873, 0.0
  %v1074 = vadd.f32 %v1072, %v1073
  %v1075 = vsel %vm955, %v881, 0.0
  %v1076 = vadd.f32 %v1074, %v1075
  %v1077 = vsel %vm955, %v889, 0.0
  %v1078 = vadd.f32 %v1076, %v1077
  %v1079 = vsel %vm955, %v888, 0.0
  %v1080 = vadd.f32 %v1078, %v1079
  %v1081 = vsel %vm955, %v890, 0.0
  %v1082 = vadd.f32 %v1080, %v1081
  %1083 = vadd.xlane.f32.xlu0 %v1082
  %v1084 = vpop.xlane.xlu0 %1083
  %v1085 = vxor.u32 %v1084, 2147483648
  %v1086 = vmul.f32 %v1085, 1.442695
  %v1087 = vpow.pop %v1086
  %v1088 = vadd.f32 %v1087, 1.0
  %v1089 = vrcp.pop %v1088
  %v1090 = vmul.f32 1.0, %v1089
  %vm1091 = vcmask 1024
  %1092 = vst.msk [vmem:[%s2] sm:$0x3] %vm1091, %v1090
  // Predicated region
  $region10: #{discriminator_forward.9} parent=0 // pred_check
    _
  $region11: #{discriminator_forward.9} parent=0 // pred_check_branch
    %1094 = sbr.rel (0) target = $region13
  $region12: #{discriminator_forward.9} parent=0 // pred_region
    _
  $region13: #{discriminator_forward.9} parent=0 // pred_fallthru
    _
  // Predicated region
  $region14: #{discriminator_forward.9} parent=0 // pred_check
    _
  $region15: #{discriminator_forward.9} parent=0 // pred_check_branch
    %1096 = sbr.rel (0) target = $region17
  $region16: #{discriminator_forward.9} parent=0 // pred_region
    _
  $region17: #{discriminator_forward.9} parent=0 // pred_fallthru
    _

// kernel: discriminator_forward.8
$region0: #{discriminator_forward.8}
  #allocation0 [shape = 'u32[]', space=smem, size = 0x4, offset = 0x4, fixed_abs, tag = 'smem constant byte address 0x4 - core index']
  #allocation1 [shape = 'u32[144,128]{1,0:T(1,128)}', space=vmem, size = 0x12000, scoped, tag = 'internal scratch']
  %s0 = inlined_call_operand.vmem [shape: bf16[32,4096], index: 0, kind: input, shape index: {}]
  %s1 = inlined_call_operand.vmem [shape: bf16[4096,512], index: 1, kind: input, shape index: {}]
  %s2 = inlined_call_operand.vmem [shape: f32[1,512], index: 2, kind: input, shape index: {}]
  %s3 = inlined_call_operand.vmem [shape: f32[1,512], index: 3, kind: input, shape index: {}]
  %s4 = inlined_call_operand.vmem [shape: f32[32,512], index: 4, kind: output, shape index: {}]
  %s5 = sld [smem:[#allocation0]]
  $region80: #{discriminator_forward.8} parent=0
    _
  %s7 = ssub.s32 1, %s5
  %s8 = scalar_select 0, %s7, %s5
  $region1: #{discriminator_forward.8} parent=0
    #allocation2 [shape = 'u8[131072]{0}', space=vmem, size = 0x20000, scoped, tag = 'input window, operand 0']
    loop: start=0, step=1, limit=6
    $region2: #{discriminator_forward.8} parent=1 // loop_pre_header
      _
    $region3: #{discriminator_forward.8} parent=1 // loop_header
      %s10 = sphi 0, %s14
      %p11 = scmp.ge.s32.totalorder %s10, 6
      %s17 = sphi 0, %s29
      %s18 = sphi 0, %s25
      %s19 = sphi 0, %s17
      %s20 = sphi 0, %s18
      %s21 = sphi 0, %s19
      %s22 = sphi 0, %s20
      %s34 = sphi 0, %s36
      %s37 = sphi 0, %s34
      %s38 = sphi 0, %s37
      %s54 = sphi 0, %s38
      %s60 = sphi 0, %s62
      %s63 = sphi 0, %s60
      %s64 = sphi 0, %s63
      %s80 = sphi 0, %s64
      %s84 = sphi 0, %s84
      %s86 = sphi 0, %s84
      %s87 = sphi 0, %s86
      %s101 = sphi 0, %s87
      %s105 = sphi 0, %s105
      %s107 = sphi 0, %s105
      %s108 = sphi 0, %s107
      %s122 = sphi 0, %s108
      %s128 = sphi 0, %s130
      %s131 = sphi 0, %s128
      %s132 = sphi 0, %s131
      %s148 = sphi 0, %s132
    $region4: #{discriminator_forward.8} parent=1 // loop_header_branch
      %13 = sbr.rel (%p11) target = $region8
    $region5: #{discriminator_forward.8} parent=1 // loop_body
      %s15 = ssub.s32 %s10, 1
      %s16 = ssub.s32 %s10, 2
      %s23 = sadd.s32 1, %s18
      %p24 = scmp.ge.s32.totalorder %s23, 4
      %s25 = scalar_select %p24, 0, %s23
      %s26 = sadd.s32 1, %s17
      %s27 = scalar_select %p24, %s26, %s17
      %p28 = scmp.ge.s32.totalorder %s27, 1
      %s29 = scalar_select %p28, 0, %s27
      %s30 = ssub.s32 %s17, %s29
      %s31 = ssub.s32 %s18, %s25
      %s32 = sor.u32 %s30, %s31
      %p33 = scmp.eq.s32.totalorder %s32, 0
      %s35 = sadd.s32 %s34, 1
      %s36 = scalar_select %p33, %s34, %s35
      %p39 = pneg %p33
      %p40 = scmp.eq.s32.totalorder %s10, 3
      %p41 = por %p39, %p40
      %p42 = scmp.ne.s32.totalorder %s34, %s37
      %p43 = scmp.eq.s32.totalorder %s10, 0
      %p44 = por %p42, %p43
      %p45 = scmp.ne.s32.totalorder %s34, %s37
      %p46 = scmp.eq.s32.totalorder %s15, 3
      %p47 = por %p45, %p46
      %p48 = scmp.ne.s32.totalorder %s37, %s38
      %p49 = scmp.eq.s32.totalorder %s15, 0
      %p50 = por %p48, %p49
      %p51 = scmp.ne.s32.totalorder %s37, %s38
      %p52 = scmp.eq.s32.totalorder %s16, 3
      %p53 = por %p51, %p52
      %p55 = scmp.ne.s32.totalorder %s38, %s54
      %p56 = scmp.eq.s32.totalorder %s16, 0
      %p57 = por %p55, %p56
      %s58 = ssub.s32 %s18, %s25
      %p59 = scmp.eq.s32.totalorder %s58, 0
      %s61 = sadd.s32 %s60, 1
      %s62 = scalar_select %p59, %s60, %s61
      %p65 = pneg %p59
      %p66 = scmp.eq.s32.totalorder %s10, 3
      %p67 = por %p65, %p66
      %p68 = scmp.ne.s32.totalorder %s60, %s63
      %p69 = scmp.eq.s32.totalorder %s10, 0
      %p70 = por %p68, %p69
      %p71 = scmp.ne.s32.totalorder %s60, %s63
      %p72 = scmp.eq.s32.totalorder %s15, 3
      %p73 = por %p71, %p72
      %p74 = scmp.ne.s32.totalorder %s63, %s64
      %p75 = scmp.eq.s32.totalorder %s15, 0
      %p76 = por %p74, %p75
      %p77 = scmp.ne.s32.totalorder %s63, %s64
      %p78 = scmp.eq.s32.totalorder %s16, 3
      %p79 = por %p77, %p78
      %p81 = scmp.ne.s32.totalorder %s64, %s80
      %p82 = scmp.eq.s32.totalorder %s16, 0
      %p83 = por %p81, %p82
      %s85 = sadd.s32 %s84, 1
      %p88 = scmp.eq.s32.totalorder %s10, 3
      %p89 = scmp.ne.s32.totalorder %s84, %s86
      %p90 = scmp.eq.s32.totalorder %s10, 0
      %p91 = por %p89, %p90
      %p92 = scmp.ne.s32.totalorder %s84, %s86
      %p93 = scmp.eq.s32.totalorder %s15, 3
      %p94 = por %p92, %p93
      %p95 = scmp.ne.s32.totalorder %s86, %s87
      %p96 = scmp.eq.s32.totalorder %s15, 0
      %p97 = por %p95, %p96
      %p98 = scmp.ne.s32.totalorder %s86, %s87
      %p99 = scmp.eq.s32.totalorder %s16, 3
      %p100 = por %p98, %p99
      %p102 = scmp.ne.s32.totalorder %s87, %s101
      %p103 = scmp.eq.s32.totalorder %s16, 0
      %p104 = por %p102, %p103
      %s106 = sadd.s32 %s105, 1
      %p109 = scmp.eq.s32.totalorder %s10, 3
      %p110 = scmp.ne.s32.totalorder %s105, %s107
      %p111 = scmp.eq.s32.totalorder %s10, 0
      %p112 = por %p110, %p111
      %p113 = scmp.ne.s32.totalorder %s105, %s107
      %p114 = scmp.eq.s32.totalorder %s15, 3
      %p115 = por %p113, %p114
      %p116 = scmp.ne.s32.totalorder %s107, %s108
      %p117 = scmp.eq.s32.totalorder %s15, 0
      %p118 = por %p116, %p117
      %p119 = scmp.ne.s32.totalorder %s107, %s108
      %p120 = scmp.eq.s32.totalorder %s16, 3
      %p121 = por %p119, %p120
      %p123 = scmp.ne.s32.totalorder %s108, %s122
      %p124 = scmp.eq.s32.totalorder %s16, 0
      %p125 = por %p123, %p124
      %s126 = ssub.s32 %s17, %s29
      %p127 = scmp.eq.s32.totalorder %s126, 0
      %s129 = sadd.s32 %s128, 1
      %s130 = scalar_select %p127, %s128, %s129
      %p133 = pneg %p127
      %p134 = scmp.eq.s32.totalorder %s10, 3
      %p135 = por %p133, %p134
      %p136 = scmp.ne.s32.totalorder %s128, %s131
      %p137 = scmp.eq.s32.totalorder %s10, 0
      %p138 = por %p136, %p137
      %p139 = scmp.ne.s32.totalorder %s128, %s131
      %p140 = scmp.eq.s32.totalorder %s15, 3
      %p141 = por %p139, %p140
      %p142 = scmp.ne.s32.totalorder %s131, %s132
      %p143 = scmp.eq.s32.totalorder %s15, 0
      %p144 = por %p142, %p143
      %p145 = scmp.ne.s32.totalorder %s131, %s132
      %p146 = scmp.eq.s32.totalorder %s16, 3
      %p147 = por %p145, %p146
      %p149 = scmp.ne.s32.totalorder %s132, %s148
      %p150 = scmp.eq.s32.totalorder %s16, 0
      %p151 = por %p149, %p150
      %p152 = scmp.le.s32.totalorder 1, %s10
      %p153 = scmp.lt.s32.totalorder %s10, 5
      %p154 = pnand %p152, %p153
      %p155 = pneg %p154
      // Predicated region
      $region9: #{discriminator_forward.8} parent=5 // pred_check
        _
      $region10: #{discriminator_forward.8} parent=5 // pred_check_branch
        %157 = sbr.rel (%p154) target = $region12
      $region11: #{discriminator_forward.8} parent=5 // pred_region
        %s158 = ssub.s32 %s10, 1
        // Predicated region
        $region13: #{discriminator_forward.8} parent=11 // pred_check
          %p159 = pneg %p97
        $region14: #{discriminator_forward.8} parent=11 // pred_check_branch
          %161 = sbr.rel (%p159) target = $region16
        $region15: #{discriminator_forward.8} parent=11 // pred_region
          _
        $region16: #{discriminator_forward.8} parent=11 // pred_fallthru
          _
        // Predicated region
        $region17: #{discriminator_forward.8} parent=11 // pred_check
          %p162 = pneg %p118
        $region18: #{discriminator_forward.8} parent=11 // pred_check_branch
          %164 = sbr.rel (%p162) target = $region20
        $region19: #{discriminator_forward.8} parent=11 // pred_region
          _
        $region20: #{discriminator_forward.8} parent=11 // pred_fallthru
          _
      $region12: #{discriminator_forward.8} parent=5 // pred_fallthru
        _
      %p165 = scmp.lt.s32.totalorder %s10, 4
      // Predicated region
      $region21: #{discriminator_forward.8} parent=5 // pred_check
        %p166 = pneg %p165
      $region22: #{discriminator_forward.8} parent=5 // pred_check_branch
        %168 = sbr.rel (%p166) target = $region24
      $region23: #{discriminator_forward.8} parent=5 // pred_region
        // Predicated region
        $region25: #{discriminator_forward.8} parent=23 // pred_check
          %p169 = pneg %p44
        $region26: #{discriminator_forward.8} parent=23 // pred_check_branch
          %171 = sbr.rel (%p169) target = $region28
        $region27: #{discriminator_forward.8} parent=23 // pred_region
          %s172 = sand.u32 %s34, 1
          %s173 = sand.u32 %s34, 1
          %s174 = smul.addr %s173, 128
          %s175 = scalar_lea.vmem [#allocation2], %s174
          %s176 = smul.u32 4, %s17
          %s177 = smul.u32 8, %s18
          %s178 = smul.addr %s176, 32
          %s179 = sadd.s32 %s177, %s178
          %s180 = smul.addr %s179, 4
          %s181 = scalar_lea.vmem %s0, %s180
          // Predicated region
          $region29: #{discriminator_forward.8} parent=27 // pred_check
            _
          $region30: #{discriminator_forward.8} parent=27 // pred_check_branch
            %183 = sbr.rel (0) target = $region32
          $region31: #{discriminator_forward.8} parent=27 // pred_region
            // Predicated region
            $region33: #{discriminator_forward.8} parent=31 // pred_check
              _
            $region34: #{discriminator_forward.8} parent=31 // pred_check_branch
              %185 = sbr.rel (0) target = $region36
            $region35: #{discriminator_forward.8} parent=31 // pred_region
              loop: start=0, step=1, limit=1
              $region37: #{discriminator_forward.8} parent=35 // loop_pre_header
                _
              $region38: #{discriminator_forward.8} parent=35 // loop_header
                %s187 = sphi 0, %s191
                %p188 = scmp.ge.s32.totalorder %s187, 1
                %s192 = sphi %s181, %s181
                %s193 = sphi %s175, %s175
              $region39: #{discriminator_forward.8} parent=35 // loop_header_branch
                %190 = sbr.rel (%p188) target = $region43
              $region40: #{discriminator_forward.8} parent=35 // loop_body
                %v194 = vld [vmem:[%s192] sm:$0xff]
                %195 = vst [vmem:[%s193] sm:$0xff] %v194
                %v196 = vld [vmem:[%s192 + $0x8] sm:$0xff]
                %197 = vst [vmem:[%s193 + $0x8] sm:$0xff] %v196
                %v198 = vld [vmem:[%s192 + $0x10] sm:$0xff]
                %199 = vst [vmem:[%s193 + $0x10] sm:$0xff] %v198
                %v200 = vld [vmem:[%s192 + $0x18] sm:$0xff]
                %201 = vst [vmem:[%s193 + $0x18] sm:$0xff] %v200
                %v202 = vld [vmem:[%s192 + $0x80] sm:$0xff]
                %203 = vst [vmem:[%s193 + $0x20] sm:$0xff] %v202
                %v204 = vld [vmem:[%s192 + $0x88] sm:$0xff]
                %205 = vst [vmem:[%s193 + $0x28] sm:$0xff] %v204
                %v206 = vld [vmem:[%s192 + $0x90] sm:$0xff]
                %207 = vst [vmem:[%s193 + $0x30] sm:$0xff] %v206
                %v208 = vld [vmem:[%s192 + $0x98] sm:$0xff]
                %209 = vst [vmem:[%s193 + $0x38] sm:$0xff] %v208
                %v210 = vld [vmem:[%s192 + $0x100] sm:$0xff]
                %211 = vst [vmem:[%s193 + $0x40] sm:$0xff] %v210
                %v212 = vld [vmem:[%s192 + $0x108] sm:$0xff]
                %213 = vst [vmem:[%s193 + $0x48] sm:$0xff] %v212
                %v214 = vld [vmem:[%s192 + $0x110] sm:$0xff]
                %215 = vst [vmem:[%s193 + $0x50] sm:$0xff] %v214
                %v216 = vld [vmem:[%s192 + $0x118] sm:$0xff]
                %217 = vst [vmem:[%s193 + $0x58] sm:$0xff] %v216
                %v218 = vld [vmem:[%s192 + $0x180] sm:$0xff]
                %219 = vst [vmem:[%s193 + $0x60] sm:$0xff] %v218
                %v220 = vld [vmem:[%s192 + $0x188] sm:$0xff]
                %221 = vst [vmem:[%s193 + $0x68] sm:$0xff] %v220
                %v222 = vld [vmem:[%s192 + $0x190] sm:$0xff]
                %223 = vst [vmem:[%s193 + $0x70] sm:$0xff] %v222
                %v224 = vld [vmem:[%s192 + $0x198] sm:$0xff]
                %225 = vst [vmem:[%s193 + $0x78] sm:$0xff] %v224
              $region41: #{discriminator_forward.8} parent=35 // loop_footer
                %s191 = sadd.s32 1, %s187
              $region42: #{discriminator_forward.8} parent=35 // loop_footer_branch
                %186 = sbr.rel target = $region38
              $region43: #{discriminator_forward.8} parent=35 // loop_exit
                _
            $region36: #{discriminator_forward.8} parent=31 // pred_fallthru
              _
            // Predicated region
            $region44: #{discriminator_forward.8} parent=31 // pred_check
              _
            $region45: #{discriminator_forward.8} parent=31 // pred_check_branch
              %227 = sbr.rel target = $region47
            $region46: #{discriminator_forward.8} parent=31 // pred_region
              _
            $region47: #{discriminator_forward.8} parent=31 // pred_fallthru
              _
          $region32: #{discriminator_forward.8} parent=27 // pred_fallthru
            _
          %228 = vnop
        $region28: #{discriminator_forward.8} parent=23 // pred_fallthru
          _
        // Predicated region
        $region48: #{discriminator_forward.8} parent=23 // pred_check
          %p229 = pneg %p70
        $region49: #{discriminator_forward.8} parent=23 // pred_check_branch
          %231 = sbr.rel (%p229) target = $region51
        $region50: #{discriminator_forward.8} parent=23 // pred_region
          %s232 = smul.u32 128, %s18
          %p233 = scmp.lt.s32.totalorder %s232, 511
          %s234 = scalar_select %p233, %s232, 511
          %s235 = smul.addr %s234, 4
          %s236 = smul.addr %s235, 4
          %s237 = scalar_lea.vmem %s1, %s236
          %s238 = smul.u32 128, %s18
        $region51: #{discriminator_forward.8} parent=23 // pred_fallthru
          _
      $region24: #{discriminator_forward.8} parent=5 // pred_fallthru
        _
      %p239 = scmp.le.s32.totalorder 1, %s10
      %p240 = scmp.lt.s32.totalorder %s10, 5
      %p241 = pnand %p239, %p240
      %p242 = pneg %p241
      // Predicated region
      $region52: #{discriminator_forward.8} parent=5 // pred_check
        _
      $region53: #{discriminator_forward.8} parent=5 // pred_check_branch
        %244 = sbr.rel (%p241) target = $region55
      $region54: #{discriminator_forward.8} parent=5 // pred_region
        %s245 = ssub.s32 %s10, 1
        %s246 = sand.u32 %s37, 1
        %s247 = sand.u32 %s37, 1
        %s248 = smul.addr %s247, 128
        %s249 = scalar_lea.vmem [#allocation2], %s248
        // Predicated region
        $region56: #{discriminator_forward.8} parent=54 // pred_check
          %p250 = pneg %p50
        $region57: #{discriminator_forward.8} parent=54 // pred_check_branch
          %252 = sbr.rel (%p250) target = $region59
        $region58: #{discriminator_forward.8} parent=54 // pred_region
          _
        $region59: #{discriminator_forward.8} parent=54 // pred_fallthru
          _
        %s253 = sand.u32 %s37, 1
        %s254 = sand.u32 %s37, 1
        %s255 = smul.addr %s254, 128
        %s256 = scalar_lea.vmem [#allocation2], %s255
        %p257 = pneg %p50
        %p258 = pneg %p47
        %s259 = smul.u32 128, %s20
        %p260 = scmp.lt.s32.totalorder %s259, 511
        %s261 = scalar_select %p260, %s259, 511
        %s262 = smul.addr %s261, 4
        %s263 = smul.addr %s262, 4
        %s264 = scalar_lea.vmem %s1, %s263
        %p265 = pneg %p76
        %p266 = pneg %p73
        %p267 = pneg %p97
        %p268 = pneg %p94
        %p269 = pneg %p118
        %p270 = pneg %p115
        %p271 = pneg %p144
        %p272 = pneg %p141
        %s273 = smul.u32 4, %s19
        %p274 = scmp.lt.s32.totalorder %s273, 3
        %s275 = scalar_select %p274, %s273, 3
        %s276 = smul.addr %s275, 4
        %s277 = smul.addr %s276, 8
        %s278 = scalar_lea.vmem %s4, %s277
        %s279 = smul.u32 4, %s19
        %s280 = smul.u32 8, %s20
        %s281 = smul.u32 128, %s20
        %p282 = scmp.lt.s32.totalorder %s281, 511
        %s283 = scalar_select %p282, %s281, 511
        %s284 = smul.addr %s283, 4
        %s285 = smul.addr %s284, 4
        %s286 = scalar_lea.vmem %s1, %s285
        %s287 = smul.u32 128, %s20
        %s288 = smul.u32 4, %s19
        %p289 = scmp.lt.s32.totalorder %s288, 3
        %s290 = scalar_select %p289, %s288, 3
        %s291 = smul.addr %s290, 4
        %s292 = smul.addr %s291, 8
        %s293 = scalar_lea.vmem %s4, %s292
        %s294 = smul.u32 4, %s19
        %p295 = scmp.eq.s32.totalorder %s20, 0
        // Predicated region
        $region60: #{discriminator_forward.8} parent=54 // pred_check
          %p296 = pneg %p295
        $region61: #{discriminator_forward.8} parent=54 // pred_check_branch
          %298 = sbr.rel (%p296) target = $region63
        $region62: #{discriminator_forward.8} parent=54 // pred_region
          %299 = vst [vmem:[%s293] sm:$0xff] 0.0
          %300 = vst [vmem:[%s293 + $0x8] sm:$0xff] 0.0
          %301 = vst [vmem:[%s293 + $0x10] sm:$0xff] 0.0
          %302 = vst [vmem:[%s293 + $0x18] sm:$0xff] 0.0
          %303 = vst [vmem:[%s293 + $0x20] sm:$0xff] 0.0
          %304 = vst [vmem:[%s293 + $0x28] sm:$0xff] 0.0
          %305 = vst [vmem:[%s293 + $0x30] sm:$0xff] 0.0
          %306 = vst [vmem:[%s293 + $0x38] sm:$0xff] 0.0
          %307 = vst [vmem:[%s293 + $0x40] sm:$0xff] 0.0
          %308 = vst [vmem:[%s293 + $0x48] sm:$0xff] 0.0
          %309 = vst [vmem:[%s293 + $0x50] sm:$0xff] 0.0
          %310 = vst [vmem:[%s293 + $0x58] sm:$0xff] 0.0
          %311 = vst [vmem:[%s293 + $0x60] sm:$0xff] 0.0
          %312 = vst [vmem:[%s293 + $0x68] sm:$0xff] 0.0
          %313 = vst [vmem:[%s293 + $0x70] sm:$0xff] 0.0
          %314 = vst [vmem:[%s293 + $0x78] sm:$0xff] 0.0
        $region63: #{discriminator_forward.8} parent=54 // pred_fallthru
          _
        %v315 = vld [vmem:[%s293] sm:$0xff]
        %v316 = vld [vmem:[%s293 + $0x8] sm:$0xff]
        %v317 = vld [vmem:[%s293 + $0x10] sm:$0xff]
        %v318 = vld [vmem:[%s293 + $0x18] sm:$0xff]
        %v319 = vld [vmem:[%s293 + $0x20] sm:$0xff]
        %v320 = vld [vmem:[%s293 + $0x28] sm:$0xff]
        %v321 = vld [vmem:[%s293 + $0x30] sm:$0xff]
        %v322 = vld [vmem:[%s293 + $0x38] sm:$0xff]
        %v323 = vld [vmem:[%s293 + $0x40] sm:$0xff]
        %v324 = vld [vmem:[%s293 + $0x48] sm:$0xff]
        %v325 = vld [vmem:[%s293 + $0x50] sm:$0xff]
        %v326 = vld [vmem:[%s293 + $0x58] sm:$0xff]
        %v327 = vld [vmem:[%s293 + $0x60] sm:$0xff]
        %v328 = vld [vmem:[%s293 + $0x68] sm:$0xff]
        %v329 = vld [vmem:[%s293 + $0x70] sm:$0xff]
        %v330 = vld [vmem:[%s293 + $0x78] sm:$0xff]
        %v331 = vld [vmem:[%s249] sm:$0xff]
        %v332 = vld [vmem:[%s249 + $0x8] sm:$0xff]
        %v333 = vld [vmem:[%s249 + $0x10] sm:$0xff]
        %v334 = vld [vmem:[%s249 + $0x18] sm:$0xff]
        %v335 = vld [vmem:[%s249 + $0x20] sm:$0xff]
        %v336 = vld [vmem:[%s249 + $0x28] sm:$0xff]
        %v337 = vld [vmem:[%s249 + $0x30] sm:$0xff]
        %v338 = vld [vmem:[%s249 + $0x38] sm:$0xff]
        %v339 = vld [vmem:[%s249 + $0x40] sm:$0xff]
        %v340 = vld [vmem:[%s249 + $0x48] sm:$0xff]
        %v341 = vld [vmem:[%s249 + $0x50] sm:$0xff]
        %v342 = vld [vmem:[%s249 + $0x58] sm:$0xff]
        %v343 = vld [vmem:[%s249 + $0x60] sm:$0xff]
        %v344 = vld [vmem:[%s249 + $0x68] sm:$0xff]
        %v345 = vld [vmem:[%s249 + $0x70] sm:$0xff]
        %v346 = vld [vmem:[%s249 + $0x78] sm:$0xff]
        %v347 = vld [vmem:[%s286] sm:$0xff]
        %v348 = vld [vmem:[%s286 + $0x8] sm:$0xff]
        %v349 = vld [vmem:[%s286 + $0x10] sm:$0xff]
        %v350 = vld [vmem:[%s286 + $0x18] sm:$0xff]
        %v351 = vld [vmem:[%s286 + $0x20] sm:$0xff]
        %v352 = vld [vmem:[%s286 + $0x28] sm:$0xff]
        %v353 = vld [vmem:[%s286 + $0x30] sm:$0xff]
        %v354 = vld [vmem:[%s286 + $0x38] sm:$0xff]
        %v355 = vld [vmem:[%s286 + $0x40] sm:$0xff]
        %v356 = vld [vmem:[%s286 + $0x48] sm:$0xff]
        %v357 = vld [vmem:[%s286 + $0x50] sm:$0xff]
        %v358 = vld [vmem:[%s286 + $0x58] sm:$0xff]
        %v359 = vld [vmem:[%s286 + $0x60] sm:$0xff]
        %v360 = vld [vmem:[%s286 + $0x68] sm:$0xff]
        %v361 = vld [vmem:[%s286 + $0x70] sm:$0xff]
        %v362 = vld [vmem:[%s286 + $0x78] sm:$0xff]
        %v363 = vld [vmem:[%s286 + $0x80] sm:$0xff]
        %v364 = vld [vmem:[%s286 + $0x88] sm:$0xff]
        %v365 = vld [vmem:[%s286 + $0x90] sm:$0xff]
        %v366 = vld [vmem:[%s286 + $0x98] sm:$0xff]
        %v367 = vld [vmem:[%s286 + $0xa0] sm:$0xff]
        %v368 = vld [vmem:[%s286 + $0xa8] sm:$0xff]
        %v369 = vld [vmem:[%s286 + $0xb0] sm:$0xff]
        %v370 = vld [vmem:[%s286 + $0xb8] sm:$0xff]
        %v371 = vld [vmem:[%s286 + $0xc0] sm:$0xff]
        %v372 = vld [vmem:[%s286 + $0xc8] sm:$0xff]
        %v373 = vld [vmem:[%s286 + $0xd0] sm:$0xff]
        %v374 = vld [vmem:[%s286 + $0xd8] sm:$0xff]
        %v375 = vld [vmem:[%s286 + $0xe0] sm:$0xff]
        %v376 = vld [vmem:[%s286 + $0xe8] sm:$0xff]
        %v377 = vld [vmem:[%s286 + $0xf0] sm:$0xff]
        %v378 = vld [vmem:[%s286 + $0xf8] sm:$0xff]
        %v379 = vld [vmem:[%s286 + $0x100] sm:$0xff]
        %v380 = vld [vmem:[%s286 + $0x108] sm:$0xff]
        %v381 = vld [vmem:[%s286 + $0x110] sm:$0xff]
        %v382 = vld [vmem:[%s286 + $0x118] sm:$0xff]
        %v383 = vld [vmem:[%s286 + $0x120] sm:$0xff]
        %v384 = vld [vmem:[%s286 + $0x128] sm:$0xff]
        %v385 = vld [vmem:[%s286 + $0x130] sm:$0xff]
        %v386 = vld [vmem:[%s286 + $0x138] sm:$0xff]
        %v387 = vld [vmem:[%s286 + $0x140] sm:$0xff]
        %v388 = vld [vmem:[%s286 + $0x148] sm:$0xff]
        %v389 = vld [vmem:[%s286 + $0x150] sm:$0xff]
        %v390 = vld [vmem:[%s286 + $0x158] sm:$0xff]
        %v391 = vld [vmem:[%s286 + $0x160] sm:$0xff]
        %v392 = vld [vmem:[%s286 + $0x168] sm:$0xff]
        %v393 = vld [vmem:[%s286 + $0x170] sm:$0xff]
        %v394 = vld [vmem:[%s286 + $0x178] sm:$0xff]
        %v395 = vld [vmem:[%s286 + $0x180] sm:$0xff]
        %v396 = vld [vmem:[%s286 + $0x188] sm:$0xff]
        %v397 = vld [vmem:[%s286 + $0x190] sm:$0xff]
        %v398 = vld [vmem:[%s286 + $0x198] sm:$0xff]
        %v399 = vld [vmem:[%s286 + $0x1a0] sm:$0xff]
        %v400 = vld [vmem:[%s286 + $0x1a8] sm:$0xff]
        %v401 = vld [vmem:[%s286 + $0x1b0] sm:$0xff]
        %v402 = vld [vmem:[%s286 + $0x1b8] sm:$0xff]
        %v403 = vld [vmem:[%s286 + $0x1c0] sm:$0xff]
        %v404 = vld [vmem:[%s286 + $0x1c8] sm:$0xff]
        %v405 = vld [vmem:[%s286 + $0x1d0] sm:$0xff]
        %v406 = vld [vmem:[%s286 + $0x1d8] sm:$0xff]
        %v407 = vld [vmem:[%s286 + $0x1e0] sm:$0xff]
        %v408 = vld [vmem:[%s286 + $0x1e8] sm:$0xff]
        %v409 = vld [vmem:[%s286 + $0x1f0] sm:$0xff]
        %v410 = vld [vmem:[%s286 + $0x1f8] sm:$0xff]
        %v411 = vld [vmem:[%s286 + $0x200] sm:$0xff]
        %v412 = vld [vmem:[%s286 + $0x208] sm:$0xff]
        %v413 = vld [vmem:[%s286 + $0x210] sm:$0xff]
        %v414 = vld [vmem:[%s286 + $0x218] sm:$0xff]
        %v415 = vld [vmem:[%s286 + $0x220] sm:$0xff]
        %v416 = vld [vmem:[%s286 + $0x228] sm:$0xff]
        %v417 = vld [vmem:[%s286 + $0x230] sm:$0xff]
        %v418 = vld [vmem:[%s286 + $0x238] sm:$0xff]
        %v419 = vld [vmem:[%s286 + $0x240] sm:$0xff]
        %v420 = vld [vmem:[%s286 + $0x248] sm:$0xff]
        %v421 = vld [vmem:[%s286 + $0x250] sm:$0xff]
        %v422 = vld [vmem:[%s286 + $0x258] sm:$0xff]
        %v423 = vld [vmem:[%s286 + $0x260] sm:$0xff]
        %v424 = vld [vmem:[%s286 + $0x268] sm:$0xff]
        %v425 = vld [vmem:[%s286 + $0x270] sm:$0xff]
        %v426 = vld [vmem:[%s286 + $0x278] sm:$0xff]
        %v427 = vld [vmem:[%s286 + $0x280] sm:$0xff]
        %v428 = vld [vmem:[%s286 + $0x288] sm:$0xff]
        %v429 = vld [vmem:[%s286 + $0x290] sm:$0xff]
        %v430 = vld [vmem:[%s286 + $0x298] sm:$0xff]
        %v431 = vld [vmem:[%s286 + $0x2a0] sm:$0xff]
        %v432 = vld [vmem:[%s286 + $0x2a8] sm:$0xff]
        %v433 = vld [vmem:[%s286 + $0x2b0] sm:$0xff]
        %v434 = vld [vmem:[%s286 + $0x2b8] sm:$0xff]
        %v435 = vld [vmem:[%s286 + $0x2c0] sm:$0xff]
        %v436 = vld [vmem:[%s286 + $0x2c8] sm:$0xff]
        %v437 = vld [vmem:[%s286 + $0x2d0] sm:$0xff]
        %v438 = vld [vmem:[%s286 + $0x2d8] sm:$0xff]
        %v439 = vld [vmem:[%s286 + $0x2e0] sm:$0xff]
        %v440 = vld [vmem:[%s286 + $0x2e8] sm:$0xff]
        %v441 = vld [vmem:[%s286 + $0x2f0] sm:$0xff]
        %v442 = vld [vmem:[%s286 + $0x2f8] sm:$0xff]
        %v443 = vld [vmem:[%s286 + $0x300] sm:$0xff]
        %v444 = vld [vmem:[%s286 + $0x308] sm:$0xff]
        %v445 = vld [vmem:[%s286 + $0x310] sm:$0xff]
        %v446 = vld [vmem:[%s286 + $0x318] sm:$0xff]
        %v447 = vld [vmem:[%s286 + $0x320] sm:$0xff]
        %v448 = vld [vmem:[%s286 + $0x328] sm:$0xff]
        %v449 = vld [vmem:[%s286 + $0x330] sm:$0xff]
        %v450 = vld [vmem:[%s286 + $0x338] sm:$0xff]
        %v451 = vld [vmem:[%s286 + $0x340] sm:$0xff]
        %v452 = vld [vmem:[%s286 + $0x348] sm:$0xff]
        %v453 = vld [vmem:[%s286 + $0x350] sm:$0xff]
        %v454 = vld [vmem:[%s286 + $0x358] sm:$0xff]
        %v455 = vld [vmem:[%s286 + $0x360] sm:$0xff]
        %v456 = vld [vmem:[%s286 + $0x368] sm:$0xff]
        %v457 = vld [vmem:[%s286 + $0x370] sm:$0xff]
        %v458 = vld [vmem:[%s286 + $0x378] sm:$0xff]
        %v459 = vld [vmem:[%s286 + $0x380] sm:$0xff]
        %v460 = vld [vmem:[%s286 + $0x388] sm:$0xff]
        %v461 = vld [vmem:[%s286 + $0x390] sm:$0xff]
        %v462 = vld [vmem:[%s286 + $0x398] sm:$0xff]
        %v463 = vld [vmem:[%s286 + $0x3a0] sm:$0xff]
        %v464 = vld [vmem:[%s286 + $0x3a8] sm:$0xff]
        %v465 = vld [vmem:[%s286 + $0x3b0] sm:$0xff]
        %v466 = vld [vmem:[%s286 + $0x3b8] sm:$0xff]
        %v467 = vld [vmem:[%s286 + $0x3c0] sm:$0xff]
        %v468 = vld [vmem:[%s286 + $0x3c8] sm:$0xff]
        %v469 = vld [vmem:[%s286 + $0x3d0] sm:$0xff]
        %v470 = vld [vmem:[%s286 + $0x3d8] sm:$0xff]
        %v471 = vld [vmem:[%s286 + $0x3e0] sm:$0xff]
        %v472 = vld [vmem:[%s286 + $0x3e8] sm:$0xff]
        %v473 = vld [vmem:[%s286 + $0x3f0] sm:$0xff]
        %v474 = vld [vmem:[%s286 + $0x3f8] sm:$0xff]
        %v475 = vld [vmem:[%s286 + $0x400] sm:$0xff]
        %v476 = vld [vmem:[%s286 + $0x408] sm:$0xff]
        %v477 = vld [vmem:[%s286 + $0x410] sm:$0xff]
        %v478 = vld [vmem:[%s286 + $0x418] sm:$0xff]
        %v479 = vld [vmem:[%s286 + $0x420] sm:$0xff]
        %v480 = vld [vmem:[%s286 + $0x428] sm:$0xff]
        %v481 = vld [vmem:[%s286 + $0x430] sm:$0xff]
        %v482 = vld [vmem:[%s286 + $0x438] sm:$0xff]
        %v483 = vld [vmem:[%s286 + $0x440] sm:$0xff]
        %v484 = vld [vmem:[%s286 + $0x448] sm:$0xff]
        %v485 = vld [vmem:[%s286 + $0x450] sm:$0xff]
        %v486 = vld [vmem:[%s286 + $0x458] sm:$0xff]
        %v487 = vld [vmem:[%s286 + $0x460] sm:$0xff]
        %v488 = vld [vmem:[%s286 + $0x468] sm:$0xff]
        %v489 = vld [vmem:[%s286 + $0x470] sm:$0xff]
        %v490 = vld [vmem:[%s286 + $0x478] sm:$0xff]
        %v491 = vld [vmem:[%s286 + $0x480] sm:$0xff]
        %v492 = vld [vmem:[%s286 + $0x488] sm:$0xff]
        %v493 = vld [vmem:[%s286 + $0x490] sm:$0xff]
        %v494 = vld [vmem:[%s286 + $0x498] sm:$0xff]
        %v495 = vld [vmem:[%s286 + $0x4a0] sm:$0xff]
        %v496 = vld [vmem:[%s286 + $0x4a8] sm:$0xff]
        %v497 = vld [vmem:[%s286 + $0x4b0] sm:$0xff]
        %v498 = vld [vmem:[%s286 + $0x4b8] sm:$0xff]
        %v499 = vld [vmem:[%s286 + $0x4c0] sm:$0xff]
        %v500 = vld [vmem:[%s286 + $0x4c8] sm:$0xff]
        %v501 = vld [vmem:[%s286 + $0x4d0] sm:$0xff]
        %v502 = vld [vmem:[%s286 + $0x4d8] sm:$0xff]
        %v503 = vld [vmem:[%s286 + $0x4e0] sm:$0xff]
        %v504 = vld [vmem:[%s286 + $0x4e8] sm:$0xff]
        %v505 = vld [vmem:[%s286 + $0x4f0] sm:$0xff]
        %v506 = vld [vmem:[%s286 + $0x4f8] sm:$0xff]
        %v507 = vld [vmem:[%s286 + $0x500] sm:$0xff]
        %v508 = vld [vmem:[%s286 + $0x508] sm:$0xff]
        %v509 = vld [vmem:[%s286 + $0x510] sm:$0xff]
        %v510 = vld [vmem:[%s286 + $0x518] sm:$0xff]
        %v511 = vld [vmem:[%s286 + $0x520] sm:$0xff]
        %v512 = vld [vmem:[%s286 + $0x528] sm:$0xff]
        %v513 = vld [vmem:[%s286 + $0x530] sm:$0xff]
        %v514 = vld [vmem:[%s286 + $0x538] sm:$0xff]
        %v515 = vld [vmem:[%s286 + $0x540] sm:$0xff]
        %v516 = vld [vmem:[%s286 + $0x548] sm:$0xff]
        %v517 = vld [vmem:[%s286 + $0x550] sm:$0xff]
        %v518 = vld [vmem:[%s286 + $0x558] sm:$0xff]
        %v519 = vld [vmem:[%s286 + $0x560] sm:$0xff]
        %v520 = vld [vmem:[%s286 + $0x568] sm:$0xff]
        %v521 = vld [vmem:[%s286 + $0x570] sm:$0xff]
        %v522 = vld [vmem:[%s286 + $0x578] sm:$0xff]
        %v523 = vld [vmem:[%s286 + $0x580] sm:$0xff]
        %v524 = vld [vmem:[%s286 + $0x588] sm:$0xff]
        %v525 = vld [vmem:[%s286 + $0x590] sm:$0xff]
        %v526 = vld [vmem:[%s286 + $0x598] sm:$0xff]
        %v527 = vld [vmem:[%s286 + $0x5a0] sm:$0xff]
        %v528 = vld [vmem:[%s286 + $0x5a8] sm:$0xff]
        %v529 = vld [vmem:[%s286 + $0x5b0] sm:$0xff]
        %v530 = vld [vmem:[%s286 + $0x5b8] sm:$0xff]
        %v531 = vld [vmem:[%s286 + $0x5c0] sm:$0xff]
        %v532 = vld [vmem:[%s286 + $0x5c8] sm:$0xff]
        %v533 = vld [vmem:[%s286 + $0x5d0] sm:$0xff]
        %v534 = vld [vmem:[%s286 + $0x5d8] sm:$0xff]
        %v535 = vld [vmem:[%s286 + $0x5e0] sm:$0xff]
        %v536 = vld [vmem:[%s286 + $0x5e8] sm:$0xff]
        %v537 = vld [vmem:[%s286 + $0x5f0] sm:$0xff]
        %v538 = vld [vmem:[%s286 + $0x5f8] sm:$0xff]
        %v539 = vld [vmem:[%s286 + $0x600] sm:$0xff]
        %v540 = vld [vmem:[%s286 + $0x608] sm:$0xff]
        %v541 = vld [vmem:[%s286 + $0x610] sm:$0xff]
        %v542 = vld [vmem:[%s286 + $0x618] sm:$0xff]
        %v543 = vld [vmem:[%s286 + $0x620] sm:$0xff]
        %v544 = vld [vmem:[%s286 + $0x628] sm:$0xff]
        %v545 = vld [vmem:[%s286 + $0x630] sm:$0xff]
        %v546 = vld [vmem:[%s286 + $0x638] sm:$0xff]
        %v547 = vld [vmem:[%s286 + $0x640] sm:$0xff]
        %v548 = vld [vmem:[%s286 + $0x648] sm:$0xff]
        %v549 = vld [vmem:[%s286 + $0x650] sm:$0xff]
        %v550 = vld [vmem:[%s286 + $0x658] sm:$0xff]
        %v551 = vld [vmem:[%s286 + $0x660] sm:$0xff]
        %v552 = vld [vmem:[%s286 + $0x668] sm:$0xff]
        %v553 = vld [vmem:[%s286 + $0x670] sm:$0xff]
        %v554 = vld [vmem:[%s286 + $0x678] sm:$0xff]
        %v555 = vld [vmem:[%s286 + $0x680] sm:$0xff]
        %v556 = vld [vmem:[%s286 + $0x688] sm:$0xff]
        %v557 = vld [vmem:[%s286 + $0x690] sm:$0xff]
        %v558 = vld [vmem:[%s286 + $0x698] sm:$0xff]
        %v559 = vld [vmem:[%s286 + $0x6a0] sm:$0xff]
        %v560 = vld [vmem:[%s286 + $0x6a8] sm:$0xff]
        %v561 = vld [vmem:[%s286 + $0x6b0] sm:$0xff]
        %v562 = vld [vmem:[%s286 + $0x6b8] sm:$0xff]
        %v563 = vld [vmem:[%s286 + $0x6c0] sm:$0xff]
        %v564 = vld [vmem:[%s286 + $0x6c8] sm:$0xff]
        %v565 = vld [vmem:[%s286 + $0x6d0] sm:$0xff]
        %v566 = vld [vmem:[%s286 + $0x6d8] sm:$0xff]
        %v567 = vld [vmem:[%s286 + $0x6e0] sm:$0xff]
        %v568 = vld [vmem:[%s286 + $0x6e8] sm:$0xff]
        %v569 = vld [vmem:[%s286 + $0x6f0] sm:$0xff]
        %v570 = vld [vmem:[%s286 + $0x6f8] sm:$0xff]
        %v571 = vld [vmem:[%s286 + $0x700] sm:$0xff]
        %v572 = vld [vmem:[%s286 + $0x708] sm:$0xff]
        %v573 = vld [vmem:[%s286 + $0x710] sm:$0xff]
        %v574 = vld [vmem:[%s286 + $0x718] sm:$0xff]
        %v575 = vld [vmem:[%s286 + $0x720] sm:$0xff]
        %v576 = vld [vmem:[%s286 + $0x728] sm:$0xff]
        %v577 = vld [vmem:[%s286 + $0x730] sm:$0xff]
        %v578 = vld [vmem:[%s286 + $0x738] sm:$0xff]
        %v579 = vld [vmem:[%s286 + $0x740] sm:$0xff]
        %v580 = vld [vmem:[%s286 + $0x748] sm:$0xff]
        %v581 = vld [vmem:[%s286 + $0x750] sm:$0xff]
        %v582 = vld [vmem:[%s286 + $0x758] sm:$0xff]
        %v583 = vld [vmem:[%s286 + $0x760] sm:$0xff]
        %v584 = vld [vmem:[%s286 + $0x768] sm:$0xff]
        %v585 = vld [vmem:[%s286 + $0x770] sm:$0xff]
        %v586 = vld [vmem:[%s286 + $0x778] sm:$0xff]
        %v587 = vld [vmem:[%s286 + $0x780] sm:$0xff]
        %v588 = vld [vmem:[%s286 + $0x788] sm:$0xff]
        %v589 = vld [vmem:[%s286 + $0x790] sm:$0xff]
        %v590 = vld [vmem:[%s286 + $0x798] sm:$0xff]
        %v591 = vld [vmem:[%s286 + $0x7a0] sm:$0xff]
        %v592 = vld [vmem:[%s286 + $0x7a8] sm:$0xff]
        %v593 = vld [vmem:[%s286 + $0x7b0] sm:$0xff]
        %v594 = vld [vmem:[%s286 + $0x7b8] sm:$0xff]
        %v595 = vld [vmem:[%s286 + $0x7c0] sm:$0xff]
        %v596 = vld [vmem:[%s286 + $0x7c8] sm:$0xff]
        %v597 = vld [vmem:[%s286 + $0x7d0] sm:$0xff]
        %v598 = vld [vmem:[%s286 + $0x7d8] sm:$0xff]
        %v599 = vld [vmem:[%s286 + $0x7e0] sm:$0xff]
        %v600 = vld [vmem:[%s286 + $0x7e8] sm:$0xff]
        %v601 = vld [vmem:[%s286 + $0x7f0] sm:$0xff]
        %v602 = vld [vmem:[%s286 + $0x7f8] sm:$0xff]
        %v619 = vunpack.c.l.b16 %v331
        %v620 = vunpack.c.h.b16 %v331
        %v621 = vunpack.c.l.b16 %v332
        %v622 = vunpack.c.h.b16 %v332
        %v623 = vunpack.c.l.b16 %v333
        %v624 = vunpack.c.h.b16 %v333
        %v625 = vunpack.c.l.b16 %v334
        %v626 = vunpack.c.h.b16 %v334
        %v627 = vunpack.c.l.b16 %v335
        %v628 = vunpack.c.h.b16 %v335
        %v629 = vunpack.c.l.b16 %v336
        %v630 = vunpack.c.h.b16 %v336
        %v631 = vunpack.c.l.b16 %v337
        %v632 = vunpack.c.h.b16 %v337
        %v633 = vunpack.c.l.b16 %v338
        %v634 = vunpack.c.h.b16 %v338
        %v635 = vunpack.c.l.b16 %v339
        %v636 = vunpack.c.h.b16 %v339
        %v637 = vunpack.c.l.b16 %v340
        %v638 = vunpack.c.h.b16 %v340
        %v639 = vunpack.c.l.b16 %v341
        %v640 = vunpack.c.h.b16 %v341
        %v641 = vunpack.c.l.b16 %v342
        %v642 = vunpack.c.h.b16 %v342
        %v643 = vunpack.c.l.b16 %v343
        %v644 = vunpack.c.h.b16 %v343
        %v645 = vunpack.c.l.b16 %v344
        %v646 = vunpack.c.h.b16 %v344
        %v647 = vunpack.c.l.b16 %v345
        %v648 = vunpack.c.h.b16 %v345
        %v649 = vunpack.c.l.b16 %v346
        %v650 = vunpack.c.h.b16 %v346
        %v651 = vpack.c.b16 %v627, %v619
        %v652 = vpack.c.b16 %v628, %v620
        %v653 = vpack.c.b16 %v629, %v621
        %v654 = vpack.c.b16 %v630, %v622
        %v655 = vpack.c.b16 %v631, %v623
        %v656 = vpack.c.b16 %v632, %v624
        %v657 = vpack.c.b16 %v633, %v625
        %v658 = vpack.c.b16 %v634, %v626
        %v659 = vpack.c.b16 %v643, %v635
        %v660 = vpack.c.b16 %v644, %v636
        %v661 = vpack.c.b16 %v645, %v637
        %v662 = vpack.c.b16 %v646, %v638
        %v663 = vpack.c.b16 %v647, %v639
        %v664 = vpack.c.b16 %v648, %v640
        %v665 = vpack.c.b16 %v649, %v641
        %v666 = vpack.c.b16 %v650, %v642
        %v939 = vunpack.c.l.b16 %v347
        %v940 = vunpack.c.h.b16 %v347
        %v941 = vunpack.c.l.b16 %v348
        %v942 = vunpack.c.h.b16 %v348
        %v943 = vunpack.c.l.b16 %v349
        %v944 = vunpack.c.h.b16 %v349
        %v945 = vunpack.c.l.b16 %v350
        %v946 = vunpack.c.h.b16 %v350
        %v947 = vunpack.c.l.b16 %v351
        %v948 = vunpack.c.h.b16 %v351
        %v949 = vunpack.c.l.b16 %v352
        %v950 = vunpack.c.h.b16 %v352
        %v951 = vunpack.c.l.b16 %v353
        %v952 = vunpack.c.h.b16 %v353
        %v953 = vunpack.c.l.b16 %v354
        %v954 = vunpack.c.h.b16 %v354
        %v955 = vunpack.c.l.b16 %v355
        %v956 = vunpack.c.h.b16 %v355
        %v957 = vunpack.c.l.b16 %v356
        %v958 = vunpack.c.h.b16 %v356
        %v959 = vunpack.c.l.b16 %v357
        %v960 = vunpack.c.h.b16 %v357
        %v961 = vunpack.c.l.b16 %v358
        %v962 = vunpack.c.h.b16 %v358
        %v963 = vunpack.c.l.b16 %v359
        %v964 = vunpack.c.h.b16 %v359
        %v965 = vunpack.c.l.b16 %v360
        %v966 = vunpack.c.h.b16 %v360
        %v967 = vunpack.c.l.b16 %v361
        %v968 = vunpack.c.h.b16 %v361
        %v969 = vunpack.c.l.b16 %v362
        %v970 = vunpack.c.h.b16 %v362
        %v971 = vunpack.c.l.b16 %v363
        %v972 = vunpack.c.h.b16 %v363
        %v973 = vunpack.c.l.b16 %v364
        %v974 = vunpack.c.h.b16 %v364
        %v975 = vunpack.c.l.b16 %v365
        %v976 = vunpack.c.h.b16 %v365
        %v977 = vunpack.c.l.b16 %v366
        %v978 = vunpack.c.h.b16 %v366
        %v979 = vunpack.c.l.b16 %v367
        %v980 = vunpack.c.h.b16 %v367
        %v981 = vunpack.c.l.b16 %v368
        %v982 = vunpack.c.h.b16 %v368
        %v983 = vunpack.c.l.b16 %v369
        %v984 = vunpack.c.h.b16 %v369
        %v985 = vunpack.c.l.b16 %v370
        %v986 = vunpack.c.h.b16 %v370
        %v987 = vunpack.c.l.b16 %v371
        %v988 = vunpack.c.h.b16 %v371
        %v989 = vunpack.c.l.b16 %v372
        %v990 = vunpack.c.h.b16 %v372
        %v991 = vunpack.c.l.b16 %v373
        %v992 = vunpack.c.h.b16 %v373
        %v993 = vunpack.c.l.b16 %v374
        %v994 = vunpack.c.h.b16 %v374
        %v995 = vunpack.c.l.b16 %v375
        %v996 = vunpack.c.h.b16 %v375
        %v997 = vunpack.c.l.b16 %v376
        %v998 = vunpack.c.h.b16 %v376
        %v999 = vunpack.c.l.b16 %v377
        %v1000 = vunpack.c.h.b16 %v377
        %v1001 = vunpack.c.l.b16 %v378
        %v1002 = vunpack.c.h.b16 %v378
        %v1003 = vunpack.c.l.b16 %v379
        %v1004 = vunpack.c.h.b16 %v379
        %v1005 = vunpack.c.l.b16 %v380
        %v1006 = vunpack.c.h.b16 %v380
        %v1007 = vunpack.c.l.b16 %v381
        %v1008 = vunpack.c.h.b16 %v381
        %v1009 = vunpack.c.l.b16 %v382
        %v1010 = vunpack.c.h.b16 %v382
        %v1011 = vunpack.c.l.b16 %v383
        %v1012 = vunpack.c.h.b16 %v383
        %v1013 = vunpack.c.l.b16 %v384
        %v1014 = vunpack.c.h.b16 %v384
        %v1015 = vunpack.c.l.b16 %v385
        %v1016 = vunpack.c.h.b16 %v385
        %v1017 = vunpack.c.l.b16 %v386
        %v1018 = vunpack.c.h.b16 %v386
        %v1019 = vunpack.c.l.b16 %v387
        %v1020 = vunpack.c.h.b16 %v387
        %v1021 = vunpack.c.l.b16 %v388
        %v1022 = vunpack.c.h.b16 %v388
        %v1023 = vunpack.c.l.b16 %v389
        %v1024 = vunpack.c.h.b16 %v389
        %v1025 = vunpack.c.l.b16 %v390
        %v1026 = vunpack.c.h.b16 %v390
        %v1027 = vunpack.c.l.b16 %v391
        %v1028 = vunpack.c.h.b16 %v391
        %v1029 = vunpack.c.l.b16 %v392
        %v1030 = vunpack.c.h.b16 %v392
        %v1031 = vunpack.c.l.b16 %v393
        %v1032 = vunpack.c.h.b16 %v393
        %v1033 = vunpack.c.l.b16 %v394
        %v1034 = vunpack.c.h.b16 %v394
        %v1035 = vunpack.c.l.b16 %v395
        %v1036 = vunpack.c.h.b16 %v395
        %v1037 = vunpack.c.l.b16 %v396
        %v1038 = vunpack.c.h.b16 %v396
        %v1039 = vunpack.c.l.b16 %v397
        %v1040 = vunpack.c.h.b16 %v397
        %v1041 = vunpack.c.l.b16 %v398
        %v1042 = vunpack.c.h.b16 %v398
        %v1043 = vunpack.c.l.b16 %v399
        %v1044 = vunpack.c.h.b16 %v399
        %v1045 = vunpack.c.l.b16 %v400
        %v1046 = vunpack.c.h.b16 %v400
        %v1047 = vunpack.c.l.b16 %v401
        %v1048 = vunpack.c.h.b16 %v401
        %v1049 = vunpack.c.l.b16 %v402
        %v1050 = vunpack.c.h.b16 %v402
        %v1051 = vunpack.c.l.b16 %v403
        %v1052 = vunpack.c.h.b16 %v403
        %v1053 = vunpack.c.l.b16 %v404
        %v1054 = vunpack.c.h.b16 %v404
        %v1055 = vunpack.c.l.b16 %v405
        %v1056 = vunpack.c.h.b16 %v405
        %v1057 = vunpack.c.l.b16 %v406
        %v1058 = vunpack.c.h.b16 %v406
        %v1059 = vunpack.c.l.b16 %v407
        %v1060 = vunpack.c.h.b16 %v407
        %v1061 = vunpack.c.l.b16 %v408
        %v1062 = vunpack.c.h.b16 %v408
        %v1063 = vunpack.c.l.b16 %v409
        %v1064 = vunpack.c.h.b16 %v409
        %v1065 = vunpack.c.l.b16 %v410
        %v1066 = vunpack.c.h.b16 %v410
        %v1067 = vunpack.c.l.b16 %v411
        %v1068 = vunpack.c.h.b16 %v411
        %v1069 = vunpack.c.l.b16 %v412
        %v1070 = vunpack.c.h.b16 %v412
        %v1071 = vunpack.c.l.b16 %v413
        %v1072 = vunpack.c.h.b16 %v413
        %v1073 = vunpack.c.l.b16 %v414
        %v1074 = vunpack.c.h.b16 %v414
        %v1075 = vunpack.c.l.b16 %v415
        %v1076 = vunpack.c.h.b16 %v415
        %v1077 = vunpack.c.l.b16 %v416
        %v1078 = vunpack.c.h.b16 %v416
        %v1079 = vunpack.c.l.b16 %v417
        %v1080 = vunpack.c.h.b16 %v417
        %v1081 = vunpack.c.l.b16 %v418
        %v1082 = vunpack.c.h.b16 %v418
        %v1083 = vunpack.c.l.b16 %v419
        %v1084 = vunpack.c.h.b16 %v419
        %v1085 = vunpack.c.l.b16 %v420
        %v1086 = vunpack.c.h.b16 %v420
        %v1087 = vunpack.c.l.b16 %v421
        %v1088 = vunpack.c.h.b16 %v421
        %v1089 = vunpack.c.l.b16 %v422
        %v1090 = vunpack.c.h.b16 %v422
        %v1091 = vunpack.c.l.b16 %v423
        %v1092 = vunpack.c.h.b16 %v423
        %v1093 = vunpack.c.l.b16 %v424
        %v1094 = vunpack.c.h.b16 %v424
        %v1095 = vunpack.c.l.b16 %v425
        %v1096 = vunpack.c.h.b16 %v425
        %v1097 = vunpack.c.l.b16 %v426
        %v1098 = vunpack.c.h.b16 %v426
        %v1099 = vunpack.c.l.b16 %v427
        %v1100 = vunpack.c.h.b16 %v427
        %v1101 = vunpack.c.l.b16 %v428
        %v1102 = vunpack.c.h.b16 %v428
        %v1103 = vunpack.c.l.b16 %v429
        %v1104 = vunpack.c.h.b16 %v429
        %v1105 = vunpack.c.l.b16 %v430
        %v1106 = vunpack.c.h.b16 %v430
        %v1107 = vunpack.c.l.b16 %v431
        %v1108 = vunpack.c.h.b16 %v431
        %v1109 = vunpack.c.l.b16 %v432
        %v1110 = vunpack.c.h.b16 %v432
        %v1111 = vunpack.c.l.b16 %v433
        %v1112 = vunpack.c.h.b16 %v433
        %v1113 = vunpack.c.l.b16 %v434
        %v1114 = vunpack.c.h.b16 %v434
        %v1115 = vunpack.c.l.b16 %v435
        %v1116 = vunpack.c.h.b16 %v435
        %v1117 = vunpack.c.l.b16 %v436
        %v1118 = vunpack.c.h.b16 %v436
        %v1119 = vunpack.c.l.b16 %v437
        %v1120 = vunpack.c.h.b16 %v437
        %v1121 = vunpack.c.l.b16 %v438
        %v1122 = vunpack.c.h.b16 %v438
        %v1123 = vunpack.c.l.b16 %v439
        %v1124 = vunpack.c.h.b16 %v439
        %v1125 = vunpack.c.l.b16 %v440
        %v1126 = vunpack.c.h.b16 %v440
        %v1127 = vunpack.c.l.b16 %v441
        %v1128 = vunpack.c.h.b16 %v441
        %v1129 = vunpack.c.l.b16 %v442
        %v1130 = vunpack.c.h.b16 %v442
        %v1131 = vunpack.c.l.b16 %v443
        %v1132 = vunpack.c.h.b16 %v443
        %v1133 = vunpack.c.l.b16 %v444
        %v1134 = vunpack.c.h.b16 %v444
        %v1135 = vunpack.c.l.b16 %v445
        %v1136 = vunpack.c.h.b16 %v445
        %v1137 = vunpack.c.l.b16 %v446
        %v1138 = vunpack.c.h.b16 %v446
        %v1139 = vunpack.c.l.b16 %v447
        %v1140 = vunpack.c.h.b16 %v447
        %v1141 = vunpack.c.l.b16 %v448
        %v1142 = vunpack.c.h.b16 %v448
        %v1143 = vunpack.c.l.b16 %v449
        %v1144 = vunpack.c.h.b16 %v449
        %v1145 = vunpack.c.l.b16 %v450
        %v1146 = vunpack.c.h.b16 %v450
        %v1147 = vunpack.c.l.b16 %v451
        %v1148 = vunpack.c.h.b16 %v451
        %v1149 = vunpack.c.l.b16 %v452
        %v1150 = vunpack.c.h.b16 %v452
        %v1151 = vunpack.c.l.b16 %v453
        %v1152 = vunpack.c.h.b16 %v453
        %v1153 = vunpack.c.l.b16 %v454
        %v1154 = vunpack.c.h.b16 %v454
        %v1155 = vunpack.c.l.b16 %v455
        %v1156 = vunpack.c.h.b16 %v455
        %v1157 = vunpack.c.l.b16 %v456
        %v1158 = vunpack.c.h.b16 %v456
        %v1159 = vunpack.c.l.b16 %v457
        %v1160 = vunpack.c.h.b16 %v457
        %v1161 = vunpack.c.l.b16 %v458
        %v1162 = vunpack.c.h.b16 %v458
        %v1163 = vunpack.c.l.b16 %v459
        %v1164 = vunpack.c.h.b16 %v459
        %v1165 = vunpack.c.l.b16 %v460
        %v1166 = vunpack.c.h.b16 %v460
        %v1167 = vunpack.c.l.b16 %v461
        %v1168 = vunpack.c.h.b16 %v461
        %v1169 = vunpack.c.l.b16 %v462
        %v1170 = vunpack.c.h.b16 %v462
        %v1171 = vunpack.c.l.b16 %v463
        %v1172 = vunpack.c.h.b16 %v463
        %v1173 = vunpack.c.l.b16 %v464
        %v1174 = vunpack.c.h.b16 %v464
        %v1175 = vunpack.c.l.b16 %v465
        %v1176 = vunpack.c.h.b16 %v465
        %v1177 = vunpack.c.l.b16 %v466
        %v1178 = vunpack.c.h.b16 %v466
        %v1179 = vunpack.c.l.b16 %v467
        %v1180 = vunpack.c.h.b16 %v467
        %v1181 = vunpack.c.l.b16 %v468
        %v1182 = vunpack.c.h.b16 %v468
        %v1183 = vunpack.c.l.b16 %v469
        %v1184 = vunpack.c.h.b16 %v469
        %v1185 = vunpack.c.l.b16 %v470
        %v1186 = vunpack.c.h.b16 %v470
        %v1187 = vunpack.c.l.b16 %v471
        %v1188 = vunpack.c.h.b16 %v471
        %v1189 = vunpack.c.l.b16 %v472
        %v1190 = vunpack.c.h.b16 %v472
        %v1191 = vunpack.c.l.b16 %v473
        %v1192 = vunpack.c.h.b16 %v473
        %v1193 = vunpack.c.l.b16 %v474
        %v1194 = vunpack.c.h.b16 %v474
        %v1195 = vunpack.c.l.b16 %v475
        %v1196 = vunpack.c.h.b16 %v475
        %v1197 = vunpack.c.l.b16 %v476
        %v1198 = vunpack.c.h.b16 %v476
        %v1199 = vunpack.c.l.b16 %v477
        %v1200 = vunpack.c.h.b16 %v477
        %v1201 = vunpack.c.l.b16 %v478
        %v1202 = vunpack.c.h.b16 %v478
        %v1203 = vunpack.c.l.b16 %v479
        %v1204 = vunpack.c.h.b16 %v479
        %v1205 = vunpack.c.l.b16 %v480
        %v1206 = vunpack.c.h.b16 %v480
        %v1207 = vunpack.c.l.b16 %v481
        %v1208 = vunpack.c.h.b16 %v481
        %v1209 = vunpack.c.l.b16 %v482
        %v1210 = vunpack.c.h.b16 %v482
        %v1211 = vunpack.c.l.b16 %v483
        %v1212 = vunpack.c.h.b16 %v483
        %v1213 = vunpack.c.l.b16 %v484
        %v1214 = vunpack.c.h.b16 %v484
        %v1215 = vunpack.c.l.b16 %v485
        %v1216 = vunpack.c.h.b16 %v485
        %v1217 = vunpack.c.l.b16 %v486
        %v1218 = vunpack.c.h.b16 %v486
        %v1219 = vunpack.c.l.b16 %v487
        %v1220 = vunpack.c.h.b16 %v487
        %v1221 = vunpack.c.l.b16 %v488
        %v1222 = vunpack.c.h.b16 %v488
        %v1223 = vunpack.c.l.b16 %v489
        %v1224 = vunpack.c.h.b16 %v489
        %v1225 = vunpack.c.l.b16 %v490
        %v1226 = vunpack.c.h.b16 %v490
        %v1227 = vunpack.c.l.b16 %v491
        %v1228 = vunpack.c.h.b16 %v491
        %v1229 = vunpack.c.l.b16 %v492
        %v1230 = vunpack.c.h.b16 %v492
        %v1231 = vunpack.c.l.b16 %v493
        %v1232 = vunpack.c.h.b16 %v493
        %v1233 = vunpack.c.l.b16 %v494
        %v1234 = vunpack.c.h.b16 %v494
        %v1235 = vunpack.c.l.b16 %v495
        %v1236 = vunpack.c.h.b16 %v495
        %v1237 = vunpack.c.l.b16 %v496
        %v1238 = vunpack.c.h.b16 %v496
        %v1239 = vunpack.c.l.b16 %v497
        %v1240 = vunpack.c.h.b16 %v497
        %v1241 = vunpack.c.l.b16 %v498
        %v1242 = vunpack.c.h.b16 %v498
        %v1243 = vunpack.c.l.b16 %v499
        %v1244 = vunpack.c.h.b16 %v499
        %v1245 = vunpack.c.l.b16 %v500
        %v1246 = vunpack.c.h.b16 %v500
        %v1247 = vunpack.c.l.b16 %v501
        %v1248 = vunpack.c.h.b16 %v501
        %v1249 = vunpack.c.l.b16 %v502
        %v1250 = vunpack.c.h.b16 %v502
        %v1251 = vunpack.c.l.b16 %v503
        %v1252 = vunpack.c.h.b16 %v503
        %v1253 = vunpack.c.l.b16 %v504
        %v1254 = vunpack.c.h.b16 %v504
        %v1255 = vunpack.c.l.b16 %v505
        %v1256 = vunpack.c.h.b16 %v505
        %v1257 = vunpack.c.l.b16 %v506
        %v1258 = vunpack.c.h.b16 %v506
        %v1259 = vunpack.c.l.b16 %v507
        %v1260 = vunpack.c.h.b16 %v507
        %v1261 = vunpack.c.l.b16 %v508
        %v1262 = vunpack.c.h.b16 %v508
        %v1263 = vunpack.c.l.b16 %v509
        %v1264 = vunpack.c.h.b16 %v509
        %v1265 = vunpack.c.l.b16 %v510
        %v1266 = vunpack.c.h.b16 %v510
        %v1267 = vunpack.c.l.b16 %v511
        %v1268 = vunpack.c.h.b16 %v511
        %v1269 = vunpack.c.l.b16 %v512
        %v1270 = vunpack.c.h.b16 %v512
        %v1271 = vunpack.c.l.b16 %v513
        %v1272 = vunpack.c.h.b16 %v513
        %v1273 = vunpack.c.l.b16 %v514
        %v1274 = vunpack.c.h.b16 %v514
        %v1275 = vunpack.c.l.b16 %v515
        %v1276 = vunpack.c.h.b16 %v515
        %v1277 = vunpack.c.l.b16 %v516
        %v1278 = vunpack.c.h.b16 %v516
        %v1279 = vunpack.c.l.b16 %v517
        %v1280 = vunpack.c.h.b16 %v517
        %v1281 = vunpack.c.l.b16 %v518
        %v1282 = vunpack.c.h.b16 %v518
        %v1283 = vunpack.c.l.b16 %v519
        %v1284 = vunpack.c.h.b16 %v519
        %v1285 = vunpack.c.l.b16 %v520
        %v1286 = vunpack.c.h.b16 %v520
        %v1287 = vunpack.c.l.b16 %v521
        %v1288 = vunpack.c.h.b16 %v521
        %v1289 = vunpack.c.l.b16 %v522
        %v1290 = vunpack.c.h.b16 %v522
        %v1291 = vunpack.c.l.b16 %v523
        %v1292 = vunpack.c.h.b16 %v523
        %v1293 = vunpack.c.l.b16 %v524
        %v1294 = vunpack.c.h.b16 %v524
        %v1295 = vunpack.c.l.b16 %v525
        %v1296 = vunpack.c.h.b16 %v525
        %v1297 = vunpack.c.l.b16 %v526
        %v1298 = vunpack.c.h.b16 %v526
        %v1299 = vunpack.c.l.b16 %v527
        %v1300 = vunpack.c.h.b16 %v527
        %v1301 = vunpack.c.l.b16 %v528
        %v1302 = vunpack.c.h.b16 %v528
        %v1303 = vunpack.c.l.b16 %v529
        %v1304 = vunpack.c.h.b16 %v529
        %v1305 = vunpack.c.l.b16 %v530
        %v1306 = vunpack.c.h.b16 %v530
        %v1307 = vunpack.c.l.b16 %v531
        %v1308 = vunpack.c.h.b16 %v531
        %v1309 = vunpack.c.l.b16 %v532
        %v1310 = vunpack.c.h.b16 %v532
        %v1311 = vunpack.c.l.b16 %v533
        %v1312 = vunpack.c.h.b16 %v533
        %v1313 = vunpack.c.l.b16 %v534
        %v1314 = vunpack.c.h.b16 %v534
        %v1315 = vunpack.c.l.b16 %v535
        %v1316 = vunpack.c.h.b16 %v535
        %v1317 = vunpack.c.l.b16 %v536
        %v1318 = vunpack.c.h.b16 %v536
        %v1319 = vunpack.c.l.b16 %v537
        %v1320 = vunpack.c.h.b16 %v537
        %v1321 = vunpack.c.l.b16 %v538
        %v1322 = vunpack.c.h.b16 %v538
        %v1323 = vunpack.c.l.b16 %v539
        %v1324 = vunpack.c.h.b16 %v539
        %v1325 = vunpack.c.l.b16 %v540
        %v1326 = vunpack.c.h.b16 %v540
        %v1327 = vunpack.c.l.b16 %v541
        %v1328 = vunpack.c.h.b16 %v541
        %v1329 = vunpack.c.l.b16 %v542
        %v1330 = vunpack.c.h.b16 %v542
        %v1331 = vunpack.c.l.b16 %v543
        %v1332 = vunpack.c.h.b16 %v543
        %v1333 = vunpack.c.l.b16 %v544
        %v1334 = vunpack.c.h.b16 %v544
        %v1335 = vunpack.c.l.b16 %v545
        %v1336 = vunpack.c.h.b16 %v545
        %v1337 = vunpack.c.l.b16 %v546
        %v1338 = vunpack.c.h.b16 %v546
        %v1339 = vunpack.c.l.b16 %v547
        %v1340 = vunpack.c.h.b16 %v547
        %v1341 = vunpack.c.l.b16 %v548
        %v1342 = vunpack.c.h.b16 %v548
        %v1343 = vunpack.c.l.b16 %v549
        %v1344 = vunpack.c.h.b16 %v549
        %v1345 = vunpack.c.l.b16 %v550
        %v1346 = vunpack.c.h.b16 %v550
        %v1347 = vunpack.c.l.b16 %v551
        %v1348 = vunpack.c.h.b16 %v551
        %v1349 = vunpack.c.l.b16 %v552
        %v1350 = vunpack.c.h.b16 %v552
        %v1351 = vunpack.c.l.b16 %v553
        %v1352 = vunpack.c.h.b16 %v553
        %v1353 = vunpack.c.l.b16 %v554
        %v1354 = vunpack.c.h.b16 %v554
        %v1355 = vunpack.c.l.b16 %v555
        %v1356 = vunpack.c.h.b16 %v555
        %v1357 = vunpack.c.l.b16 %v556
        %v1358 = vunpack.c.h.b16 %v556
        %v1359 = vunpack.c.l.b16 %v557
        %v1360 = vunpack.c.h.b16 %v557
        %v1361 = vunpack.c.l.b16 %v558
        %v1362 = vunpack.c.h.b16 %v558
        %v1363 = vunpack.c.l.b16 %v559
        %v1364 = vunpack.c.h.b16 %v559
        %v1365 = vunpack.c.l.b16 %v560
        %v1366 = vunpack.c.h.b16 %v560
        %v1367 = vunpack.c.l.b16 %v561
        %v1368 = vunpack.c.h.b16 %v561
        %v1369 = vunpack.c.l.b16 %v562
        %v1370 = vunpack.c.h.b16 %v562
        %v1371 = vunpack.c.l.b16 %v563
        %v1372 = vunpack.c.h.b16 %v563
        %v1373 = vunpack.c.l.b16 %v564
        %v1374 = vunpack.c.h.b16 %v564
        %v1375 = vunpack.c.l.b16 %v565
        %v1376 = vunpack.c.h.b16 %v565
        %v1377 = vunpack.c.l.b16 %v566
        %v1378 = vunpack.c.h.b16 %v566
        %v1379 = vunpack.c.l.b16 %v567
        %v1380 = vunpack.c.h.b16 %v567
        %v1381 = vunpack.c.l.b16 %v568
        %v1382 = vunpack.c.h.b16 %v568
        %v1383 = vunpack.c.l.b16 %v569
        %v1384 = vunpack.c.h.b16 %v569
        %v1385 = vunpack.c.l.b16 %v570
        %v1386 = vunpack.c.h.b16 %v570
        %v1387 = vunpack.c.l.b16 %v571
        %v1388 = vunpack.c.h.b16 %v571
        %v1389 = vunpack.c.l.b16 %v572
        %v1390 = vunpack.c.h.b16 %v572
        %v1391 = vunpack.c.l.b16 %v573
        %v1392 = vunpack.c.h.b16 %v573
        %v1393 = vunpack.c.l.b16 %v574
        %v1394 = vunpack.c.h.b16 %v574
        %v1395 = vunpack.c.l.b16 %v575
        %v1396 = vunpack.c.h.b16 %v575
        %v1397 = vunpack.c.l.b16 %v576
        %v1398 = vunpack.c.h.b16 %v576
        %v1399 = vunpack.c.l.b16 %v577
        %v1400 = vunpack.c.h.b16 %v577
        %v1401 = vunpack.c.l.b16 %v578
        %v1402 = vunpack.c.h.b16 %v578
        %v1403 = vunpack.c.l.b16 %v579
        %v1404 = vunpack.c.h.b16 %v579
        %v1405 = vunpack.c.l.b16 %v580
        %v1406 = vunpack.c.h.b16 %v580
        %v1407 = vunpack.c.l.b16 %v581
        %v1408 = vunpack.c.h.b16 %v581
        %v1409 = vunpack.c.l.b16 %v582
        %v1410 = vunpack.c.h.b16 %v582
        %v1411 = vunpack.c.l.b16 %v583
        %v1412 = vunpack.c.h.b16 %v583
        %v1413 = vunpack.c.l.b16 %v584
        %v1414 = vunpack.c.h.b16 %v584
        %v1415 = vunpack.c.l.b16 %v585
        %v1416 = vunpack.c.h.b16 %v585
        %v1417 = vunpack.c.l.b16 %v586
        %v1418 = vunpack.c.h.b16 %v586
        %v1419 = vunpack.c.l.b16 %v587
        %v1420 = vunpack.c.h.b16 %v587
        %v1421 = vunpack.c.l.b16 %v588
        %v1422 = vunpack.c.h.b16 %v588
        %v1423 = vunpack.c.l.b16 %v589
        %v1424 = vunpack.c.h.b16 %v589
        %v1425 = vunpack.c.l.b16 %v590
        %v1426 = vunpack.c.h.b16 %v590
        %v1427 = vunpack.c.l.b16 %v591
        %v1428 = vunpack.c.h.b16 %v591
        %v1429 = vunpack.c.l.b16 %v592
        %v1430 = vunpack.c.h.b16 %v592
        %v1431 = vunpack.c.l.b16 %v593
        %v1432 = vunpack.c.h.b16 %v593
        %v1433 = vunpack.c.l.b16 %v594
        %v1434 = vunpack.c.h.b16 %v594
        %v1435 = vunpack.c.l.b16 %v595
        %v1436 = vunpack.c.h.b16 %v595
        %v1437 = vunpack.c.l.b16 %v596
        %v1438 = vunpack.c.h.b16 %v596
        %v1439 = vunpack.c.l.b16 %v597
        %v1440 = vunpack.c.h.b16 %v597
        %v1441 = vunpack.c.l.b16 %v598
        %v1442 = vunpack.c.h.b16 %v598
        %v1443 = vunpack.c.l.b16 %v599
        %v1444 = vunpack.c.h.b16 %v599
        %v1445 = vunpack.c.l.b16 %v600
        %v1446 = vunpack.c.h.b16 %v600
        %v1447 = vunpack.c.l.b16 %v601
        %v1448 = vunpack.c.h.b16 %v601
        %v1449 = vunpack.c.l.b16 %v602
        %v1450 = vunpack.c.h.b16 %v602
        %v1451 = vpack.c.b16 %v943, %v939
        %v1452 = vpack.c.b16 %v944, %v940
        %v1453 = vpack.c.b16 %v945, %v941
        %v1454 = vpack.c.b16 %v946, %v942
        %v1455 = vpack.c.b16 %v951, %v947
        %v1456 = vpack.c.b16 %v952, %v948
        %v1457 = vpack.c.b16 %v953, %v949
        %v1458 = vpack.c.b16 %v954, %v950
        %v1459 = vpack.c.b16 %v959, %v955
        %v1460 = vpack.c.b16 %v960, %v956
        %v1461 = vpack.c.b16 %v961, %v957
        %v1462 = vpack.c.b16 %v962, %v958
        %v1463 = vpack.c.b16 %v967, %v963
        %v1464 = vpack.c.b16 %v968, %v964
        %v1465 = vpack.c.b16 %v969, %v965
        %v1466 = vpack.c.b16 %v970, %v966
        %v1467 = vpack.c.b16 %v975, %v971
        %v1468 = vpack.c.b16 %v976, %v972
        %v1469 = vpack.c.b16 %v977, %v973
        %v1470 = vpack.c.b16 %v978, %v974
        %v1471 = vpack.c.b16 %v983, %v979
        %v1472 = vpack.c.b16 %v984, %v980
        %v1473 = vpack.c.b16 %v985, %v981
        %v1474 = vpack.c.b16 %v986, %v982
        %v1475 = vpack.c.b16 %v991, %v987
        %v1476 = vpack.c.b16 %v992, %v988
        %v1477 = vpack.c.b16 %v993, %v989
        %v1478 = vpack.c.b16 %v994, %v990
        %v1479 = vpack.c.b16 %v999, %v995
        %v1480 = vpack.c.b16 %v1000, %v996
        %v1481 = vpack.c.b16 %v1001, %v997
        %v1482 = vpack.c.b16 %v1002, %v998
        %v1483 = vpack.c.b16 %v1007, %v1003
        %v1484 = vpack.c.b16 %v1008, %v1004
        %v1485 = vpack.c.b16 %v1009, %v1005
        %v1486 = vpack.c.b16 %v1010, %v1006
        %v1487 = vpack.c.b16 %v1015, %v1011
        %v1488 = vpack.c.b16 %v1016, %v1012
        %v1489 = vpack.c.b16 %v1017, %v1013
        %v1490 = vpack.c.b16 %v1018, %v1014
        %v1491 = vpack.c.b16 %v1023, %v1019
        %v1492 = vpack.c.b16 %v1024, %v1020
        %v1493 = vpack.c.b16 %v1025, %v1021
        %v1494 = vpack.c.b16 %v1026, %v1022
        %v1495 = vpack.c.b16 %v1031, %v1027
        %v1496 = vpack.c.b16 %v1032, %v1028
        %v1497 = vpack.c.b16 %v1033, %v1029
        %v1498 = vpack.c.b16 %v1034, %v1030
        %v1499 = vpack.c.b16 %v1039, %v1035
        %v1500 = vpack.c.b16 %v1040, %v1036
        %v1501 = vpack.c.b16 %v1041, %v1037
        %v1502 = vpack.c.b16 %v1042, %v1038
        %v1503 = vpack.c.b16 %v1047, %v1043
        %v1504 = vpack.c.b16 %v1048, %v1044
        %v1505 = vpack.c.b16 %v1049, %v1045
        %v1506 = vpack.c.b16 %v1050, %v1046
        %v1507 = vpack.c.b16 %v1055, %v1051
        %v1508 = vpack.c.b16 %v1056, %v1052
        %v1509 = vpack.c.b16 %v1057, %v1053
        %v1510 = vpack.c.b16 %v1058, %v1054
        %v1511 = vpack.c.b16 %v1063, %v1059
        %v1512 = vpack.c.b16 %v1064, %v1060
        %v1513 = vpack.c.b16 %v1065, %v1061
        %v1514 = vpack.c.b16 %v1066, %v1062
        %v1515 = vpack.c.b16 %v1071, %v1067
        %v1516 = vpack.c.b16 %v1072, %v1068
        %v1517 = vpack.c.b16 %v1073, %v1069
        %v1518 = vpack.c.b16 %v1074, %v1070
        %v1519 = vpack.c.b16 %v1079, %v1075
        %v1520 = vpack.c.b16 %v1080, %v1076
        %v1521 = vpack.c.b16 %v1081, %v1077
        %v1522 = vpack.c.b16 %v1082, %v1078
        %v1523 = vpack.c.b16 %v1087, %v1083
        %v1524 = vpack.c.b16 %v1088, %v1084
        %v1525 = vpack.c.b16 %v1089, %v1085
        %v1526 = vpack.c.b16 %v1090, %v1086
        %v1527 = vpack.c.b16 %v1095, %v1091
        %v1528 = vpack.c.b16 %v1096, %v1092
        %v1529 = vpack.c.b16 %v1097, %v1093
        %v1530 = vpack.c.b16 %v1098, %v1094
        %v1531 = vpack.c.b16 %v1103, %v1099
        %v1532 = vpack.c.b16 %v1104, %v1100
        %v1533 = vpack.c.b16 %v1105, %v1101
        %v1534 = vpack.c.b16 %v1106, %v1102
        %v1535 = vpack.c.b16 %v1111, %v1107
        %v1536 = vpack.c.b16 %v1112, %v1108
        %v1537 = vpack.c.b16 %v1113, %v1109
        %v1538 = vpack.c.b16 %v1114, %v1110
        %v1539 = vpack.c.b16 %v1119, %v1115
        %v1540 = vpack.c.b16 %v1120, %v1116
        %v1541 = vpack.c.b16 %v1121, %v1117
        %v1542 = vpack.c.b16 %v1122, %v1118
        %v1543 = vpack.c.b16 %v1127, %v1123
        %v1544 = vpack.c.b16 %v1128, %v1124
        %v1545 = vpack.c.b16 %v1129, %v1125
        %v1546 = vpack.c.b16 %v1130, %v1126
        %v1547 = vpack.c.b16 %v1135, %v1131
        %v1548 = vpack.c.b16 %v1136, %v1132
        %v1549 = vpack.c.b16 %v1137, %v1133
        %v1550 = vpack.c.b16 %v1138, %v1134
        %v1551 = vpack.c.b16 %v1143, %v1139
        %v1552 = vpack.c.b16 %v1144, %v1140
        %v1553 = vpack.c.b16 %v1145, %v1141
        %v1554 = vpack.c.b16 %v1146, %v1142
        %v1555 = vpack.c.b16 %v1151, %v1147
        %v1556 = vpack.c.b16 %v1152, %v1148
        %v1557 = vpack.c.b16 %v1153, %v1149
        %v1558 = vpack.c.b16 %v1154, %v1150
        %v1559 = vpack.c.b16 %v1159, %v1155
        %v1560 = vpack.c.b16 %v1160, %v1156
        %v1561 = vpack.c.b16 %v1161, %v1157
        %v1562 = vpack.c.b16 %v1162, %v1158
        %v1563 = vpack.c.b16 %v1167, %v1163
        %v1564 = vpack.c.b16 %v1168, %v1164
        %v1565 = vpack.c.b16 %v1169, %v1165
        %v1566 = vpack.c.b16 %v1170, %v1166
        %v1567 = vpack.c.b16 %v1175, %v1171
        %v1568 = vpack.c.b16 %v1176, %v1172
        %v1569 = vpack.c.b16 %v1177, %v1173
        %v1570 = vpack.c.b16 %v1178, %v1174
        %v1571 = vpack.c.b16 %v1183, %v1179
        %v1572 = vpack.c.b16 %v1184, %v1180
        %v1573 = vpack.c.b16 %v1185, %v1181
        %v1574 = vpack.c.b16 %v1186, %v1182
        %v1575 = vpack.c.b16 %v1191, %v1187
        %v1576 = vpack.c.b16 %v1192, %v1188
        %v1577 = vpack.c.b16 %v1193, %v1189
        %v1578 = vpack.c.b16 %v1194, %v1190
        %v1579 = vpack.c.b16 %v1199, %v1195
        %v1580 = vpack.c.b16 %v1200, %v1196
        %v1581 = vpack.c.b16 %v1201, %v1197
        %v1582 = vpack.c.b16 %v1202, %v1198
        %v1583 = vpack.c.b16 %v1207, %v1203
        %v1584 = vpack.c.b16 %v1208, %v1204
        %v1585 = vpack.c.b16 %v1209, %v1205
        %v1586 = vpack.c.b16 %v1210, %v1206
        %v1587 = vpack.c.b16 %v1215, %v1211
        %v1588 = vpack.c.b16 %v1216, %v1212
        %v1589 = vpack.c.b16 %v1217, %v1213
        %v1590 = vpack.c.b16 %v1218, %v1214
        %v1591 = vpack.c.b16 %v1223, %v1219
        %v1592 = vpack.c.b16 %v1224, %v1220
        %v1593 = vpack.c.b16 %v1225, %v1221
        %v1594 = vpack.c.b16 %v1226, %v1222
        %v1595 = vpack.c.b16 %v1231, %v1227
        %v1596 = vpack.c.b16 %v1232, %v1228
        %v1597 = vpack.c.b16 %v1233, %v1229
        %v1598 = vpack.c.b16 %v1234, %v1230
        %v1599 = vpack.c.b16 %v1239, %v1235
        %v1600 = vpack.c.b16 %v1240, %v1236
        %v1601 = vpack.c.b16 %v1241, %v1237
        %v1602 = vpack.c.b16 %v1242, %v1238
        %v1603 = vpack.c.b16 %v1247, %v1243
        %v1604 = vpack.c.b16 %v1248, %v1244
        %v1605 = vpack.c.b16 %v1249, %v1245
        %v1606 = vpack.c.b16 %v1250, %v1246
        %v1607 = vpack.c.b16 %v1255, %v1251
        %v1608 = vpack.c.b16 %v1256, %v1252
        %v1609 = vpack.c.b16 %v1257, %v1253
        %v1610 = vpack.c.b16 %v1258, %v1254
        %v1611 = vpack.c.b16 %v1263, %v1259
        %v1612 = vpack.c.b16 %v1264, %v1260
        %v1613 = vpack.c.b16 %v1265, %v1261
        %v1614 = vpack.c.b16 %v1266, %v1262
        %v1615 = vpack.c.b16 %v1271, %v1267
        %v1616 = vpack.c.b16 %v1272, %v1268
        %v1617 = vpack.c.b16 %v1273, %v1269
        %v1618 = vpack.c.b16 %v1274, %v1270
        %v1619 = vpack.c.b16 %v1279, %v1275
        %v1620 = vpack.c.b16 %v1280, %v1276
        %v1621 = vpack.c.b16 %v1281, %v1277
        %v1622 = vpack.c.b16 %v1282, %v1278
        %v1623 = vpack.c.b16 %v1287, %v1283
        %v1624 = vpack.c.b16 %v1288, %v1284
        %v1625 = vpack.c.b16 %v1289, %v1285
        %v1626 = vpack.c.b16 %v1290, %v1286
        %v1627 = vpack.c.b16 %v1295, %v1291
        %v1628 = vpack.c.b16 %v1296, %v1292
        %v1629 = vpack.c.b16 %v1297, %v1293
        %v1630 = vpack.c.b16 %v1298, %v1294
        %v1631 = vpack.c.b16 %v1303, %v1299
        %v1632 = vpack.c.b16 %v1304, %v1300
        %v1633 = vpack.c.b16 %v1305, %v1301
        %v1634 = vpack.c.b16 %v1306, %v1302
        %v1635 = vpack.c.b16 %v1311, %v1307
        %v1636 = vpack.c.b16 %v1312, %v1308
        %v1637 = vpack.c.b16 %v1313, %v1309
        %v1638 = vpack.c.b16 %v1314, %v1310
        %v1639 = vpack.c.b16 %v1319, %v1315
        %v1640 = vpack.c.b16 %v1320, %v1316
        %v1641 = vpack.c.b16 %v1321, %v1317
        %v1642 = vpack.c.b16 %v1322, %v1318
        %v1643 = vpack.c.b16 %v1327, %v1323
        %v1644 = vpack.c.b16 %v1328, %v1324
        %v1645 = vpack.c.b16 %v1329, %v1325
        %v1646 = vpack.c.b16 %v1330, %v1326
        %v1647 = vpack.c.b16 %v1335, %v1331
        %v1648 = vpack.c.b16 %v1336, %v1332
        %v1649 = vpack.c.b16 %v1337, %v1333
        %v1650 = vpack.c.b16 %v1338, %v1334
        %v1651 = vpack.c.b16 %v1343, %v1339
        %v1652 = vpack.c.b16 %v1344, %v1340
        %v1653 = vpack.c.b16 %v1345, %v1341
        %v1654 = vpack.c.b16 %v1346, %v1342
        %v1655 = vpack.c.b16 %v1351, %v1347
        %v1656 = vpack.c.b16 %v1352, %v1348
        %v1657 = vpack.c.b16 %v1353, %v1349
        %v1658 = vpack.c.b16 %v1354, %v1350
        %v1659 = vpack.c.b16 %v1359, %v1355
        %v1660 = vpack.c.b16 %v1360, %v1356
        %v1661 = vpack.c.b16 %v1361, %v1357
        %v1662 = vpack.c.b16 %v1362, %v1358
        %v1663 = vpack.c.b16 %v1367, %v1363
        %v1664 = vpack.c.b16 %v1368, %v1364
        %v1665 = vpack.c.b16 %v1369, %v1365
        %v1666 = vpack.c.b16 %v1370, %v1366
        %v1667 = vpack.c.b16 %v1375, %v1371
        %v1668 = vpack.c.b16 %v1376, %v1372
        %v1669 = vpack.c.b16 %v1377, %v1373
        %v1670 = vpack.c.b16 %v1378, %v1374
        %v1671 = vpack.c.b16 %v1383, %v1379
        %v1672 = vpack.c.b16 %v1384, %v1380
        %v1673 = vpack.c.b16 %v1385, %v1381
        %v1674 = vpack.c.b16 %v1386, %v1382
        %v1675 = vpack.c.b16 %v1391, %v1387
        %v1676 = vpack.c.b16 %v1392, %v1388
        %v1677 = vpack.c.b16 %v1393, %v1389
        %v1678 = vpack.c.b16 %v1394, %v1390
        %v1679 = vpack.c.b16 %v1399, %v1395
        %v1680 = vpack.c.b16 %v1400, %v1396
        %v1681 = vpack.c.b16 %v1401, %v1397
        %v1682 = vpack.c.b16 %v1402, %v1398
        %v1683 = vpack.c.b16 %v1407, %v1403
        %v1684 = vpack.c.b16 %v1408, %v1404
        %v1685 = vpack.c.b16 %v1409, %v1405
        %v1686 = vpack.c.b16 %v1410, %v1406
        %v1687 = vpack.c.b16 %v1415, %v1411
        %v1688 = vpack.c.b16 %v1416, %v1412
        %v1689 = vpack.c.b16 %v1417, %v1413
        %v1690 = vpack.c.b16 %v1418, %v1414
        %v1691 = vpack.c.b16 %v1423, %v1419
        %v1692 = vpack.c.b16 %v1424, %v1420
        %v1693 = vpack.c.b16 %v1425, %v1421
        %v1694 = vpack.c.b16 %v1426, %v1422
        %v1695 = vpack.c.b16 %v1431, %v1427
        %v1696 = vpack.c.b16 %v1432, %v1428
        %v1697 = vpack.c.b16 %v1433, %v1429
        %v1698 = vpack.c.b16 %v1434, %v1430
        %v1699 = vpack.c.b16 %v1439, %v1435
        %v1700 = vpack.c.b16 %v1440, %v1436
        %v1701 = vpack.c.b16 %v1441, %v1437
        %v1702 = vpack.c.b16 %v1442, %v1438
        %v1703 = vpack.c.b16 %v1447, %v1443
        %v1704 = vpack.c.b16 %v1448, %v1444
        %v1705 = vpack.c.b16 %v1449, %v1445
        %v1706 = vpack.c.b16 %v1450, %v1446
        %1963 = vmatprep.subr.bf16.mxu0 %v1480
        %1964 = vmatpush1.bf16.msra.mxu0 %v1479
        %1965 = vmatprep.subr.bf16.mxu0 %v1476
        %1966 = vmatpush1.bf16.msra.mxu0 %v1475
        %1967 = vmatprep.subr.bf16.mxu0 %v1472
        %1968 = vmatpush1.bf16.msra.mxu0 %v1471
        %1969 = vmatprep.subr.bf16.mxu0 %v1468
        %1970 = vmatpush1.bf16.msra.mxu0 %v1467
        %1971 = vmatprep.subr.bf16.mxu0 %v1464
        %1972 = vmatpush1.bf16.msra.mxu0 %v1463
        %1973 = vmatprep.subr.bf16.mxu0 %v1460
        %1974 = vmatpush1.bf16.msra.mxu0 %v1459
        %1975 = vmatprep.subr.bf16.mxu0 %v1456
        %1976 = vmatpush1.bf16.msra.mxu0 %v1455
        %1977 = vmatprep.subr.bf16.mxu0 %v1452
        %1978 = vmatpush1.bf16.msra.mxu0 %v1451
        %1979 = vmatprep.subr.bf16.mxu0 %v1512
        %1980 = vmatpush2.bf16.msra.mxu0 %v1511
        %1981 = vmatprep.subr.bf16.mxu0 %v1508
        %1982 = vmatpush2.bf16.msra.mxu0 %v1507
        %1983 = vmatprep.subr.bf16.mxu0 %v1504
        %1984 = vmatpush2.bf16.msra.mxu0 %v1503
        %1985 = vmatprep.subr.bf16.mxu0 %v1500
        %1986 = vmatpush2.bf16.msra.mxu0 %v1499
        %1987 = vmatprep.subr.bf16.mxu0 %v1496
        %1988 = vmatpush2.bf16.msra.mxu0 %v1495
        %1989 = vmatprep.subr.bf16.mxu0 %v1492
        %1990 = vmatpush2.bf16.msra.mxu0 %v1491
        %1991 = vmatprep.subr.bf16.mxu0 %v1488
        %1992 = vmatpush2.bf16.msra.mxu0 %v1487
        %1993 = vmatprep.subr.bf16.mxu0 %v1484
        %1994 = vmatpush2.bf16.msra.mxu0 %v1483
        %1995 = vmatprep.mubr.bf16.mxu0 %v652
        %1996 = vmatmul.mubr.bf16.gmra.mxu0 %v651
        %v1997 = vpop.f32.mrf.mxu0
        %v1998 = vadd.f32 0.0, %v1997
        %v1999 = vpop.f32.mrf.mxu0
        %v2000 = vadd.f32 0.0, %v1999
        %v2001 = vpop.f32.mrf.mxu0
        %v2002 = vadd.f32 0.0, %v2001
        %v2003 = vpop.f32.mrf.mxu0
        %v2004 = vadd.f32 0.0, %v2003
        %2005 = vmatprep.mubr.bf16.mxu0 %v660
        %2006 = vmatmul.mubr.bf16.gmra.mxu0 %v659
        %v2007 = vpop.f32.mrf.mxu0
        %v2008 = vadd.f32 0.0, %v2007
        %v2009 = vpop.f32.mrf.mxu0
        %v2010 = vadd.f32 0.0, %v2009
        %v2011 = vpop.f32.mrf.mxu0
        %v2012 = vadd.f32 0.0, %v2011
        %v2013 = vpop.f32.mrf.mxu0
        %v2014 = vadd.f32 0.0, %v2013
        %2015 = vdwg.mxu0
        %2016 = vmatprep.subr.bf16.mxu0 %v1544
        %2017 = vmatpush1.bf16.msra.mxu0 %v1543
        %2018 = vmatprep.subr.bf16.mxu0 %v1540
        %2019 = vmatpush1.bf16.msra.mxu0 %v1539
        %2020 = vmatprep.subr.bf16.mxu0 %v1536
        %2021 = vmatpush1.bf16.msra.mxu0 %v1535
        %2022 = vmatprep.subr.bf16.mxu0 %v1532
        %2023 = vmatpush1.bf16.msra.mxu0 %v1531
        %2024 = vmatprep.subr.bf16.mxu0 %v1528
        %2025 = vmatpush1.bf16.msra.mxu0 %v1527
        %2026 = vmatprep.subr.bf16.mxu0 %v1524
        %2027 = vmatpush1.bf16.msra.mxu0 %v1523
        %2028 = vmatprep.subr.bf16.mxu0 %v1520
        %2029 = vmatpush1.bf16.msra.mxu0 %v1519
        %2030 = vmatprep.subr.bf16.mxu0 %v1516
        %2031 = vmatpush1.bf16.msra.mxu0 %v1515
        %2032 = vmatprep.subr.bf16.mxu0 %v1576
        %2033 = vmatpush2.bf16.msra.mxu0 %v1575
        %2034 = vmatprep.subr.bf16.mxu0 %v1572
        %2035 = vmatpush2.bf16.msra.mxu0 %v1571
        %2036 = vmatprep.subr.bf16.mxu0 %v1568
        %2037 = vmatpush2.bf16.msra.mxu0 %v1567
        %2038 = vmatprep.subr.bf16.mxu0 %v1564
        %2039 = vmatpush2.bf16.msra.mxu0 %v1563
        %2040 = vmatprep.subr.bf16.mxu0 %v1560
        %2041 = vmatpush2.bf16.msra.mxu0 %v1559
        %2042 = vmatprep.subr.bf16.mxu0 %v1556
        %2043 = vmatpush2.bf16.msra.mxu0 %v1555
        %2044 = vmatprep.subr.bf16.mxu0 %v1552
        %2045 = vmatpush2.bf16.msra.mxu0 %v1551
        %2046 = vmatprep.subr.bf16.mxu0 %v1548
        %2047 = vmatpush2.bf16.msra.mxu0 %v1547
        %2048 = vmatprep.mubr.bf16.mxu0 %v654
        %2049 = vmatmul.mubr.bf16.gmra.mxu0 %v653
        %v2050 = vpop.f32.mrf.mxu0
        %v2051 = vadd.f32 %v1998, %v2050
        %v2052 = vpop.f32.mrf.mxu0
        %v2053 = vadd.f32 %v2000, %v2052
        %v2054 = vpop.f32.mrf.mxu0
        %v2055 = vadd.f32 %v2002, %v2054
        %v2056 = vpop.f32.mrf.mxu0
        %v2057 = vadd.f32 %v2004, %v2056
        %2058 = vmatprep.mubr.bf16.mxu0 %v662
        %2059 = vmatmul.mubr.bf16.gmra.mxu0 %v661
        %v2060 = vpop.f32.mrf.mxu0
        %v2061 = vadd.f32 %v2008, %v2060
        %v2062 = vpop.f32.mrf.mxu0
        %v2063 = vadd.f32 %v2010, %v2062
        %v2064 = vpop.f32.mrf.mxu0
        %v2065 = vadd.f32 %v2012, %v2064
        %v2066 = vpop.f32.mrf.mxu0
        %v2067 = vadd.f32 %v2014, %v2066
        %2068 = vdwg.mxu0
        %2069 = vmatprep.subr.bf16.mxu0 %v1608
        %2070 = vmatpush1.bf16.msra.mxu0 %v1607
        %2071 = vmatprep.subr.bf16.mxu0 %v1604
        %2072 = vmatpush1.bf16.msra.mxu0 %v1603
        %2073 = vmatprep.subr.bf16.mxu0 %v1600
        %2074 = vmatpush1.bf16.msra.mxu0 %v1599
        %2075 = vmatprep.subr.bf16.mxu0 %v1596
        %2076 = vmatpush1.bf16.msra.mxu0 %v1595
        %2077 = vmatprep.subr.bf16.mxu0 %v1592
        %2078 = vmatpush1.bf16.msra.mxu0 %v1591
        %2079 = vmatprep.subr.bf16.mxu0 %v1588
        %2080 = vmatpush1.bf16.msra.mxu0 %v1587
        %2081 = vmatprep.subr.bf16.mxu0 %v1584
        %2082 = vmatpush1.bf16.msra.mxu0 %v1583
        %2083 = vmatprep.subr.bf16.mxu0 %v1580
        %2084 = vmatpush1.bf16.msra.mxu0 %v1579
        %2085 = vmatprep.subr.bf16.mxu0 %v1640
        %2086 = vmatpush2.bf16.msra.mxu0 %v1639
        %2087 = vmatprep.subr.bf16.mxu0 %v1636
        %2088 = vmatpush2.bf16.msra.mxu0 %v1635
        %2089 = vmatprep.subr.bf16.mxu0 %v1632
        %2090 = vmatpush2.bf16.msra.mxu0 %v1631
        %2091 = vmatprep.subr.bf16.mxu0 %v1628
        %2092 = vmatpush2.bf16.msra.mxu0 %v1627
        %2093 = vmatprep.subr.bf16.mxu0 %v1624
        %2094 = vmatpush2.bf16.msra.mxu0 %v1623
        %2095 = vmatprep.subr.bf16.mxu0 %v1620
        %2096 = vmatpush2.bf16.msra.mxu0 %v1619
        %2097 = vmatprep.subr.bf16.mxu0 %v1616
        %2098 = vmatpush2.bf16.msra.mxu0 %v1615
        %2099 = vmatprep.subr.bf16.mxu0 %v1612
        %2100 = vmatpush2.bf16.msra.mxu0 %v1611
        %2101 = vmatprep.mubr.bf16.mxu0 %v656
        %2102 = vmatmul.mubr.bf16.gmra.mxu0 %v655
        %v2103 = vpop.f32.mrf.mxu0
        %v2104 = vadd.f32 %v2051, %v2103
        %v2105 = vpop.f32.mrf.mxu0
        %v2106 = vadd.f32 %v2053, %v2105
        %v2107 = vpop.f32.mrf.mxu0
        %v2108 = vadd.f32 %v2055, %v2107
        %v2109 = vpop.f32.mrf.mxu0
        %v2110 = vadd.f32 %v2057, %v2109
        %2111 = vmatprep.mubr.bf16.mxu0 %v664
        %2112 = vmatmul.mubr.bf16.gmra.mxu0 %v663
        %v2113 = vpop.f32.mrf.mxu0
        %v2114 = vadd.f32 %v2061, %v2113
        %v2115 = vpop.f32.mrf.mxu0
        %v2116 = vadd.f32 %v2063, %v2115
        %v2117 = vpop.f32.mrf.mxu0
        %v2118 = vadd.f32 %v2065, %v2117
        %v2119 = vpop.f32.mrf.mxu0
        %v2120 = vadd.f32 %v2067, %v2119
        %2121 = vdwg.mxu0
        %2122 = vmatprep.subr.bf16.mxu0 %v1672
        %2123 = vmatpush1.bf16.msra.mxu0 %v1671
        %2124 = vmatprep.subr.bf16.mxu0 %v1668
        %2125 = vmatpush1.bf16.msra.mxu0 %v1667
        %2126 = vmatprep.subr.bf16.mxu0 %v1664
        %2127 = vmatpush1.bf16.msra.mxu0 %v1663
        %2128 = vmatprep.subr.bf16.mxu0 %v1660
        %2129 = vmatpush1.bf16.msra.mxu0 %v1659
        %2130 = vmatprep.subr.bf16.mxu0 %v1656
        %2131 = vmatpush1.bf16.msra.mxu0 %v1655
        %2132 = vmatprep.subr.bf16.mxu0 %v1652
        %2133 = vmatpush1.bf16.msra.mxu0 %v1651
        %2134 = vmatprep.subr.bf16.mxu0 %v1648
        %2135 = vmatpush1.bf16.msra.mxu0 %v1647
        %2136 = vmatprep.subr.bf16.mxu0 %v1644
        %2137 = vmatpush1.bf16.msra.mxu0 %v1643
        %2138 = vmatprep.subr.bf16.mxu0 %v1704
        %2139 = vmatpush2.bf16.msra.mxu0 %v1703
        %2140 = vmatprep.subr.bf16.mxu0 %v1700
        %2141 = vmatpush2.bf16.msra.mxu0 %v1699
        %2142 = vmatprep.subr.bf16.mxu0 %v1696
        %2143 = vmatpush2.bf16.msra.mxu0 %v1695
        %2144 = vmatprep.subr.bf16.mxu0 %v1692
        %2145 = vmatpush2.bf16.msra.mxu0 %v1691
        %2146 = vmatprep.subr.bf16.mxu0 %v1688
        %2147 = vmatpush2.bf16.msra.mxu0 %v1687
        %2148 = vmatprep.subr.bf16.mxu0 %v1684
        %2149 = vmatpush2.bf16.msra.mxu0 %v1683
        %2150 = vmatprep.subr.bf16.mxu0 %v1680
        %2151 = vmatpush2.bf16.msra.mxu0 %v1679
        %2152 = vmatprep.subr.bf16.mxu0 %v1676
        %2153 = vmatpush2.bf16.msra.mxu0 %v1675
        %2154 = vmatprep.mubr.bf16.mxu0 %v658
        %2155 = vmatmul.mubr.bf16.gmra.mxu0 %v657
        %v2156 = vpop.f32.mrf.mxu0
        %v2157 = vadd.f32 %v2104, %v2156
        %v2158 = vpop.f32.mrf.mxu0
        %v2159 = vadd.f32 %v2106, %v2158
        %v2160 = vpop.f32.mrf.mxu0
        %v2161 = vadd.f32 %v2108, %v2160
        %v2162 = vpop.f32.mrf.mxu0
        %v2163 = vadd.f32 %v2110, %v2162
        %2164 = vmatprep.mubr.bf16.mxu0 %v666
        %2165 = vmatmul.mubr.bf16.gmra.mxu0 %v665
        %v2166 = vpop.f32.mrf.mxu0
        %v2167 = vadd.f32 %v2114, %v2166
        %v2168 = vpop.f32.mrf.mxu0
        %v2169 = vadd.f32 %v2116, %v2168
        %v2170 = vpop.f32.mrf.mxu0
        %v2171 = vadd.f32 %v2118, %v2170
        %v2172 = vpop.f32.mrf.mxu0
        %v2173 = vadd.f32 %v2120, %v2172
        %2174 = vdwg.mxu0
        %2175 = vmatprep.subr.bf16.mxu0 %v1482
        %2176 = vmatpush1.bf16.msra.mxu0 %v1481
        %2177 = vmatprep.subr.bf16.mxu0 %v1478
        %2178 = vmatpush1.bf16.msra.mxu0 %v1477
        %2179 = vmatprep.subr.bf16.mxu0 %v1474
        %2180 = vmatpush1.bf16.msra.mxu0 %v1473
        %2181 = vmatprep.subr.bf16.mxu0 %v1470
        %2182 = vmatpush1.bf16.msra.mxu0 %v1469
        %2183 = vmatprep.subr.bf16.mxu0 %v1466
        %2184 = vmatpush1.bf16.msra.mxu0 %v1465
        %2185 = vmatprep.subr.bf16.mxu0 %v1462
        %2186 = vmatpush1.bf16.msra.mxu0 %v1461
        %2187 = vmatprep.subr.bf16.mxu0 %v1458
        %2188 = vmatpush1.bf16.msra.mxu0 %v1457
        %2189 = vmatprep.subr.bf16.mxu0 %v1454
        %2190 = vmatpush1.bf16.msra.mxu0 %v1453
        %2191 = vmatprep.subr.bf16.mxu0 %v1514
        %2192 = vmatpush2.bf16.msra.mxu0 %v1513
        %2193 = vmatprep.subr.bf16.mxu0 %v1510
        %2194 = vmatpush2.bf16.msra.mxu0 %v1509
        %2195 = vmatprep.subr.bf16.mxu0 %v1506
        %2196 = vmatpush2.bf16.msra.mxu0 %v1505
        %2197 = vmatprep.subr.bf16.mxu0 %v1502
        %2198 = vmatpush2.bf16.msra.mxu0 %v1501
        %2199 = vmatprep.subr.bf16.mxu0 %v1498
        %2200 = vmatpush2.bf16.msra.mxu0 %v1497
        %2201 = vmatprep.subr.bf16.mxu0 %v1494
        %2202 = vmatpush2.bf16.msra.mxu0 %v1493
        %2203 = vmatprep.subr.bf16.mxu0 %v1490
        %2204 = vmatpush2.bf16.msra.mxu0 %v1489
        %2205 = vmatprep.subr.bf16.mxu0 %v1486
        %2206 = vmatpush2.bf16.msra.mxu0 %v1485
        %2207 = vmatprep.mubr.bf16.mxu0 %v652
        %2208 = vmatmul.mubr.bf16.gmra.mxu0 %v651
        %v2209 = vpop.f32.mrf.mxu0
        %v2210 = vadd.f32 0.0, %v2209
        %v2211 = vpop.f32.mrf.mxu0
        %v2212 = vadd.f32 0.0, %v2211
        %v2213 = vpop.f32.mrf.mxu0
        %v2214 = vadd.f32 0.0, %v2213
        %v2215 = vpop.f32.mrf.mxu0
        %v2216 = vadd.f32 0.0, %v2215
        %2217 = vmatprep.mubr.bf16.mxu0 %v660
        %2218 = vmatmul.mubr.bf16.gmra.mxu0 %v659
        %v2219 = vpop.f32.mrf.mxu0
        %v2220 = vadd.f32 0.0, %v2219
        %v2221 = vpop.f32.mrf.mxu0
        %v2222 = vadd.f32 0.0, %v2221
        %v2223 = vpop.f32.mrf.mxu0
        %v2224 = vadd.f32 0.0, %v2223
        %v2225 = vpop.f32.mrf.mxu0
        %v2226 = vadd.f32 0.0, %v2225
        %2227 = vdwg.mxu0
        %2228 = vmatprep.subr.bf16.mxu0 %v1546
        %2229 = vmatpush1.bf16.msra.mxu0 %v1545
        %2230 = vmatprep.subr.bf16.mxu0 %v1542
        %2231 = vmatpush1.bf16.msra.mxu0 %v1541
        %2232 = vmatprep.subr.bf16.mxu0 %v1538
        %2233 = vmatpush1.bf16.msra.mxu0 %v1537
        %2234 = vmatprep.subr.bf16.mxu0 %v1534
        %2235 = vmatpush1.bf16.msra.mxu0 %v1533
        %2236 = vmatprep.subr.bf16.mxu0 %v1530
        %2237 = vmatpush1.bf16.msra.mxu0 %v1529
        %2238 = vmatprep.subr.bf16.mxu0 %v1526
        %2239 = vmatpush1.bf16.msra.mxu0 %v1525
        %2240 = vmatprep.subr.bf16.mxu0 %v1522
        %2241 = vmatpush1.bf16.msra.mxu0 %v1521
        %2242 = vmatprep.subr.bf16.mxu0 %v1518
        %2243 = vmatpush1.bf16.msra.mxu0 %v1517
        %2244 = vmatprep.subr.bf16.mxu0 %v1578
        %2245 = vmatpush2.bf16.msra.mxu0 %v1577
        %2246 = vmatprep.subr.bf16.mxu0 %v1574
        %2247 = vmatpush2.bf16.msra.mxu0 %v1573
        %2248 = vmatprep.subr.bf16.mxu0 %v1570
        %2249 = vmatpush2.bf16.msra.mxu0 %v1569
        %2250 = vmatprep.subr.bf16.mxu0 %v1566
        %2251 = vmatpush2.bf16.msra.mxu0 %v1565
        %2252 = vmatprep.subr.bf16.mxu0 %v1562
        %2253 = vmatpush2.bf16.msra.mxu0 %v1561
        %2254 = vmatprep.subr.bf16.mxu0 %v1558
        %2255 = vmatpush2.bf16.msra.mxu0 %v1557
        %2256 = vmatprep.subr.bf16.mxu0 %v1554
        %2257 = vmatpush2.bf16.msra.mxu0 %v1553
        %2258 = vmatprep.subr.bf16.mxu0 %v1550
        %2259 = vmatpush2.bf16.msra.mxu0 %v1549
        %2260 = vmatprep.mubr.bf16.mxu0 %v654
        %2261 = vmatmul.mubr.bf16.gmra.mxu0 %v653
        %v2262 = vpop.f32.mrf.mxu0
        %v2263 = vadd.f32 %v2210, %v2262
        %v2264 = vpop.f32.mrf.mxu0
        %v2265 = vadd.f32 %v2212, %v2264
        %v2266 = vpop.f32.mrf.mxu0
        %v2267 = vadd.f32 %v2214, %v2266
        %v2268 = vpop.f32.mrf.mxu0
        %v2269 = vadd.f32 %v2216, %v2268
        %2270 = vmatprep.mubr.bf16.mxu0 %v662
        %2271 = vmatmul.mubr.bf16.gmra.mxu0 %v661
        %v2272 = vpop.f32.mrf.mxu0
        %v2273 = vadd.f32 %v2220, %v2272
        %v2274 = vpop.f32.mrf.mxu0
        %v2275 = vadd.f32 %v2222, %v2274
        %v2276 = vpop.f32.mrf.mxu0
        %v2277 = vadd.f32 %v2224, %v2276
        %v2278 = vpop.f32.mrf.mxu0
        %v2279 = vadd.f32 %v2226, %v2278
        %2280 = vdwg.mxu0
        %2281 = vmatprep.subr.bf16.mxu0 %v1610
        %2282 = vmatpush1.bf16.msra.mxu0 %v1609
        %2283 = vmatprep.subr.bf16.mxu0 %v1606
        %2284 = vmatpush1.bf16.msra.mxu0 %v1605
        %2285 = vmatprep.subr.bf16.mxu0 %v1602
        %2286 = vmatpush1.bf16.msra.mxu0 %v1601
        %2287 = vmatprep.subr.bf16.mxu0 %v1598
        %2288 = vmatpush1.bf16.msra.mxu0 %v1597
        %2289 = vmatprep.subr.bf16.mxu0 %v1594
        %2290 = vmatpush1.bf16.msra.mxu0 %v1593
        %2291 = vmatprep.subr.bf16.mxu0 %v1590
        %2292 = vmatpush1.bf16.msra.mxu0 %v1589
        %2293 = vmatprep.subr.bf16.mxu0 %v1586
        %2294 = vmatpush1.bf16.msra.mxu0 %v1585
        %2295 = vmatprep.subr.bf16.mxu0 %v1582
        %2296 = vmatpush1.bf16.msra.mxu0 %v1581
        %2297 = vmatprep.subr.bf16.mxu0 %v1642
        %2298 = vmatpush2.bf16.msra.mxu0 %v1641
        %2299 = vmatprep.subr.bf16.mxu0 %v1638
        %2300 = vmatpush2.bf16.msra.mxu0 %v1637
        %2301 = vmatprep.subr.bf16.mxu0 %v1634
        %2302 = vmatpush2.bf16.msra.mxu0 %v1633
        %2303 = vmatprep.subr.bf16.mxu0 %v1630
        %2304 = vmatpush2.bf16.msra.mxu0 %v1629
        %2305 = vmatprep.subr.bf16.mxu0 %v1626
        %2306 = vmatpush2.bf16.msra.mxu0 %v1625
        %2307 = vmatprep.subr.bf16.mxu0 %v1622
        %2308 = vmatpush2.bf16.msra.mxu0 %v1621
        %2309 = vmatprep.subr.bf16.mxu0 %v1618
        %2310 = vmatpush2.bf16.msra.mxu0 %v1617
        %2311 = vmatprep.subr.bf16.mxu0 %v1614
        %2312 = vmatpush2.bf16.msra.mxu0 %v1613
        %2313 = vmatprep.mubr.bf16.mxu0 %v656
        %2314 = vmatmul.mubr.bf16.gmra.mxu0 %v655
        %v2315 = vpop.f32.mrf.mxu0
        %v2316 = vadd.f32 %v2263, %v2315
        %v2317 = vpop.f32.mrf.mxu0
        %v2318 = vadd.f32 %v2265, %v2317
        %v2319 = vpop.f32.mrf.mxu0
        %v2320 = vadd.f32 %v2267, %v2319
        %v2321 = vpop.f32.mrf.mxu0
        %v2322 = vadd.f32 %v2269, %v2321
        %2323 = vmatprep.mubr.bf16.mxu0 %v664
        %2324 = vmatmul.mubr.bf16.gmra.mxu0 %v663
        %v2325 = vpop.f32.mrf.mxu0
        %v2326 = vadd.f32 %v2273, %v2325
        %v2327 = vpop.f32.mrf.mxu0
        %v2328 = vadd.f32 %v2275, %v2327
        %v2329 = vpop.f32.mrf.mxu0
        %v2330 = vadd.f32 %v2277, %v2329
        %v2331 = vpop.f32.mrf.mxu0
        %v2332 = vadd.f32 %v2279, %v2331
        %2333 = vdwg.mxu0
        %2334 = vmatprep.subr.bf16.mxu0 %v1674
        %2335 = vmatpush1.bf16.msra.mxu0 %v1673
        %2336 = vmatprep.subr.bf16.mxu0 %v1670
        %2337 = vmatpush1.bf16.msra.mxu0 %v1669
        %2338 = vmatprep.subr.bf16.mxu0 %v1666
        %2339 = vmatpush1.bf16.msra.mxu0 %v1665
        %2340 = vmatprep.subr.bf16.mxu0 %v1662
        %2341 = vmatpush1.bf16.msra.mxu0 %v1661
        %2342 = vmatprep.subr.bf16.mxu0 %v1658
        %2343 = vmatpush1.bf16.msra.mxu0 %v1657
        %2344 = vmatprep.subr.bf16.mxu0 %v1654
        %2345 = vmatpush1.bf16.msra.mxu0 %v1653
        %2346 = vmatprep.subr.bf16.mxu0 %v1650
        %2347 = vmatpush1.bf16.msra.mxu0 %v1649
        %2348 = vmatprep.subr.bf16.mxu0 %v1646
        %2349 = vmatpush1.bf16.msra.mxu0 %v1645
        %2350 = vmatprep.subr.bf16.mxu0 %v1706
        %2351 = vmatpush2.bf16.msra.mxu0 %v1705
        %2352 = vmatprep.subr.bf16.mxu0 %v1702
        %2353 = vmatpush2.bf16.msra.mxu0 %v1701
        %2354 = vmatprep.subr.bf16.mxu0 %v1698
        %2355 = vmatpush2.bf16.msra.mxu0 %v1697
        %2356 = vmatprep.subr.bf16.mxu0 %v1694
        %2357 = vmatpush2.bf16.msra.mxu0 %v1693
        %2358 = vmatprep.subr.bf16.mxu0 %v1690
        %2359 = vmatpush2.bf16.msra.mxu0 %v1689
        %2360 = vmatprep.subr.bf16.mxu0 %v1686
        %2361 = vmatpush2.bf16.msra.mxu0 %v1685
        %2362 = vmatprep.subr.bf16.mxu0 %v1682
        %2363 = vmatpush2.bf16.msra.mxu0 %v1681
        %2364 = vmatprep.subr.bf16.mxu0 %v1678
        %2365 = vmatpush2.bf16.msra.mxu0 %v1677
        %2366 = vmatprep.mubr.bf16.mxu0 %v658
        %2367 = vmatmul.mubr.bf16.gmra.mxu0 %v657
        %v2368 = vpop.f32.mrf.mxu0
        %v2369 = vadd.f32 %v2316, %v2368
        %v2370 = vpop.f32.mrf.mxu0
        %v2371 = vadd.f32 %v2318, %v2370
        %v2372 = vpop.f32.mrf.mxu0
        %v2373 = vadd.f32 %v2320, %v2372
        %v2374 = vpop.f32.mrf.mxu0
        %v2375 = vadd.f32 %v2322, %v2374
        %2376 = vmatprep.mubr.bf16.mxu0 %v666
        %2377 = vmatmul.mubr.bf16.gmra.mxu0 %v665
        %v2378 = vpop.f32.mrf.mxu0
        %v2379 = vadd.f32 %v2326, %v2378
        %v2380 = vpop.f32.mrf.mxu0
        %v2381 = vadd.f32 %v2328, %v2380
        %v2382 = vpop.f32.mrf.mxu0
        %v2383 = vadd.f32 %v2330, %v2382
        %v2384 = vpop.f32.mrf.mxu0
        %v2385 = vadd.f32 %v2332, %v2384
        %2386 = vdwg.mxu0
        %v2387 = vadd.f32 %v315, %v2157
        %v2388 = vadd.f32 %v316, %v2159
        %v2389 = vadd.f32 %v317, %v2369
        %v2390 = vadd.f32 %v318, %v2371
        %v2391 = vadd.f32 %v319, %v2161
        %v2392 = vadd.f32 %v320, %v2163
        %v2393 = vadd.f32 %v321, %v2373
        %v2394 = vadd.f32 %v322, %v2375
        %v2395 = vadd.f32 %v323, %v2167
        %v2396 = vadd.f32 %v324, %v2169
        %v2397 = vadd.f32 %v325, %v2379
        %v2398 = vadd.f32 %v326, %v2381
        %v2399 = vadd.f32 %v327, %v2171
        %v2400 = vadd.f32 %v328, %v2173
        %v2401 = vadd.f32 %v329, %v2383
        %v2402 = vadd.f32 %v330, %v2385
        %2403 = vst [vmem:[%s293] sm:$0xff] %v2387
        %2404 = vst [vmem:[%s293 + $0x8] sm:$0xff] %v2388
        %2405 = vst [vmem:[%s293 + $0x10] sm:$0xff] %v2389
        %2406 = vst [vmem:[%s293 + $0x18] sm:$0xff] %v2390
        %2407 = vst [vmem:[%s293 + $0x20] sm:$0xff] %v2391
        %2408 = vst [vmem:[%s293 + $0x28] sm:$0xff] %v2392
        %2409 = vst [vmem:[%s293 + $0x30] sm:$0xff] %v2393
        %2410 = vst [vmem:[%s293 + $0x38] sm:$0xff] %v2394
        %2411 = vst [vmem:[%s293 + $0x40] sm:$0xff] %v2395
        %2412 = vst [vmem:[%s293 + $0x48] sm:$0xff] %v2396
        %2413 = vst [vmem:[%s293 + $0x50] sm:$0xff] %v2397
        %2414 = vst [vmem:[%s293 + $0x58] sm:$0xff] %v2398
        %2415 = vst [vmem:[%s293 + $0x60] sm:$0xff] %v2399
        %2416 = vst [vmem:[%s293 + $0x68] sm:$0xff] %v2400
        %2417 = vst [vmem:[%s293 + $0x70] sm:$0xff] %v2401
        %2418 = vst [vmem:[%s293 + $0x78] sm:$0xff] %v2402
        %p2419 = scmp.eq.s32.totalorder %s20, 3
        // Predicated region
        $region64: #{discriminator_forward.8} parent=54 // pred_check
          %p2420 = pneg %p2419
        $region65: #{discriminator_forward.8} parent=54 // pred_check_branch
          %2422 = sbr.rel (%p2420) target = $region67
        $region66: #{discriminator_forward.8} parent=54 // pred_region
          %v2423 = vld [vmem:[%s293] sm:$0xff]
          %v2424 = vld [vmem:[%s293 + $0x8] sm:$0xff]
          %v2425 = vld [vmem:[%s293 + $0x10] sm:$0xff]
          %v2426 = vld [vmem:[%s293 + $0x18] sm:$0xff]
          %v2427 = vld [vmem:[%s293 + $0x20] sm:$0xff]
          %v2428 = vld [vmem:[%s293 + $0x28] sm:$0xff]
          %v2429 = vld [vmem:[%s293 + $0x30] sm:$0xff]
          %v2430 = vld [vmem:[%s293 + $0x38] sm:$0xff]
          %v2431 = vld [vmem:[%s293 + $0x40] sm:$0xff]
          %v2432 = vld [vmem:[%s293 + $0x48] sm:$0xff]
          %v2433 = vld [vmem:[%s293 + $0x50] sm:$0xff]
          %v2434 = vld [vmem:[%s293 + $0x58] sm:$0xff]
          %v2435 = vld [vmem:[%s293 + $0x60] sm:$0xff]
          %v2436 = vld [vmem:[%s293 + $0x68] sm:$0xff]
          %v2437 = vld [vmem:[%s293 + $0x70] sm:$0xff]
          %v2438 = vld [vmem:[%s293 + $0x78] sm:$0xff]
          %v2439 = vadd.f32 %v2423, %v2427
          %v2440 = vadd.f32 %v2439, %v2431
          %v2441 = vadd.f32 %v2440, %v2435
          %v2442 = vrot.slane %v2441, 4
          %v2443 = vadd.f32 %v2441, %v2442
          %v2444 = vrot.slane %v2443, 2
          %v2445 = vadd.f32 %v2443, %v2444
          %v2446 = vrot.slane %v2445, 1
          %v2447 = vadd.f32 %v2445, %v2446
          %v2448 = vadd.f32 %v2424, %v2428
          %v2449 = vadd.f32 %v2448, %v2432
          %v2450 = vadd.f32 %v2449, %v2436
          %v2451 = vrot.slane %v2450, 4
          %v2452 = vadd.f32 %v2450, %v2451
          %v2453 = vrot.slane %v2452, 2
          %v2454 = vadd.f32 %v2452, %v2453
          %v2455 = vrot.slane %v2454, 1
          %v2456 = vadd.f32 %v2454, %v2455
          %v2457 = vadd.f32 %v2425, %v2429
          %v2458 = vadd.f32 %v2457, %v2433
          %v2459 = vadd.f32 %v2458, %v2437
          %v2460 = vrot.slane %v2459, 4
          %v2461 = vadd.f32 %v2459, %v2460
          %v2462 = vrot.slane %v2461, 2
          %v2463 = vadd.f32 %v2461, %v2462
          %v2464 = vrot.slane %v2463, 1
          %v2465 = vadd.f32 %v2463, %v2464
          %v2466 = vadd.f32 %v2426, %v2430
          %v2467 = vadd.f32 %v2466, %v2434
          %v2468 = vadd.f32 %v2467, %v2438
          %v2469 = vrot.slane %v2468, 4
          %v2470 = vadd.f32 %v2468, %v2469
          %v2471 = vrot.slane %v2470, 2
          %v2472 = vadd.f32 %v2470, %v2471
          %v2473 = vrot.slane %v2472, 1
          %v2474 = vadd.f32 %v2472, %v2473
          %v2475 = vmul.f32 %v2447, 0.03125
          %v2476 = vmul.f32 %v2456, 0.03125
          %v2477 = vmul.f32 %v2465, 0.03125
          %v2478 = vmul.f32 %v2474, 0.03125
          %v2479 = vmul.f32 %v2423, %v2423
          %v2480 = vmul.f32 %v2424, %v2424
          %v2481 = vmul.f32 %v2425, %v2425
          %v2482 = vmul.f32 %v2426, %v2426
          %v2483 = vmul.f32 %v2427, %v2427
          %v2484 = vmul.f32 %v2428, %v2428
          %v2485 = vmul.f32 %v2429, %v2429
          %v2486 = vmul.f32 %v2430, %v2430
          %v2487 = vmul.f32 %v2431, %v2431
          %v2488 = vmul.f32 %v2432, %v2432
          %v2489 = vmul.f32 %v2433, %v2433
          %v2490 = vmul.f32 %v2434, %v2434
          %v2491 = vmul.f32 %v2435, %v2435
          %v2492 = vmul.f32 %v2436, %v2436
          %v2493 = vmul.f32 %v2437, %v2437
          %v2494 = vmul.f32 %v2438, %v2438
          %v2495 = vadd.f32 %v2479, %v2483
          %v2496 = vadd.f32 %v2495, %v2487
          %v2497 = vadd.f32 %v2496, %v2491
          %v2498 = vrot.slane %v2497, 4
          %v2499 = vadd.f32 %v2497, %v2498
          %v2500 = vrot.slane %v2499, 2
          %v2501 = vadd.f32 %v2499, %v2500
          %v2502 = vrot.slane %v2501, 1
          %v2503 = vadd.f32 %v2501, %v2502
          %v2504 = vadd.f32 %v2480, %v2484
          %v2505 = vadd.f32 %v2504, %v2488
          %v2506 = vadd.f32 %v2505, %v2492
          %v2507 = vrot.slane %v2506, 4
          %v2508 = vadd.f32 %v2506, %v2507
          %v2509 = vrot.slane %v2508, 2
          %v2510 = vadd.f32 %v2508, %v2509
          %v2511 = vrot.slane %v2510, 1
          %v2512 = vadd.f32 %v2510, %v2511
          %v2513 = vadd.f32 %v2481, %v2485
          %v2514 = vadd.f32 %v2513, %v2489
          %v2515 = vadd.f32 %v2514, %v2493
          %v2516 = vrot.slane %v2515, 4
          %v2517 = vadd.f32 %v2515, %v2516
          %v2518 = vrot.slane %v2517, 2
          %v2519 = vadd.f32 %v2517, %v2518
          %v2520 = vrot.slane %v2519, 1
          %v2521 = vadd.f32 %v2519, %v2520
          %v2522 = vadd.f32 %v2482, %v2486
          %v2523 = vadd.f32 %v2522, %v2490
          %v2524 = vadd.f32 %v2523, %v2494
          %v2525 = vrot.slane %v2524, 4
          %v2526 = vadd.f32 %v2524, %v2525
          %v2527 = vrot.slane %v2526, 2
          %v2528 = vadd.f32 %v2526, %v2527
          %v2529 = vrot.slane %v2528, 1
          %v2530 = vadd.f32 %v2528, %v2529
          %v2531 = vmul.f32 %v2503, 0.03125
          %v2532 = vmul.f32 %v2512, 0.03125
          %v2533 = vmul.f32 %v2521, 0.03125
          %v2534 = vmul.f32 %v2530, 0.03125
          %v2535 = vmul.f32 %v2475, %v2475
          %v2536 = vmul.f32 %v2476, %v2476
          %v2537 = vmul.f32 %v2477, %v2477
          %v2538 = vmul.f32 %v2478, %v2478
          %v2539 = vsub.f32 %v2531, %v2535
          %v2540 = vsub.f32 %v2532, %v2536
          %v2541 = vsub.f32 %v2533, %v2537
          %v2542 = vsub.f32 %v2534, %v2538
          %v2543 = vmax.f32 %v2539, 0.0
          %v2544 = vmax.f32 %v2540, 0.0
          %v2545 = vmax.f32 %v2541, 0.0
          %v2546 = vmax.f32 %v2542, 0.0
          %v2547 = vadd.f32 %v2543, 1e-05
          %v2548 = vadd.f32 %v2544, 1e-05
          %v2549 = vadd.f32 %v2545, 1e-05
          %v2550 = vadd.f32 %v2546, 1e-05
          %v2551 = vrsqrt.pop %v2547
          %v2552 = vrsqrt.pop %v2548
          %v2553 = vrsqrt.pop %v2549
          %v2554 = vrsqrt.pop %v2550
          %v2555 = vsub.f32 %v2423, %v2475
          %v2556 = vsub.f32 %v2424, %v2476
          %v2557 = vsub.f32 %v2425, %v2477
          %v2558 = vsub.f32 %v2426, %v2478
          %v2559 = vsub.f32 %v2427, %v2475
          %v2560 = vsub.f32 %v2428, %v2476
          %v2561 = vsub.f32 %v2429, %v2477
          %v2562 = vsub.f32 %v2430, %v2478
          %v2563 = vsub.f32 %v2431, %v2475
          %v2564 = vsub.f32 %v2432, %v2476
          %v2565 = vsub.f32 %v2433, %v2477
          %v2566 = vsub.f32 %v2434, %v2478
          %v2567 = vsub.f32 %v2435, %v2475
          %v2568 = vsub.f32 %v2436, %v2476
          %v2569 = vsub.f32 %v2437, %v2477
          %v2570 = vsub.f32 %v2438, %v2478
          %v2571 = vmul.f32 %v2555, %v2551
          %v2572 = vmul.f32 %v2556, %v2552
          %v2573 = vmul.f32 %v2557, %v2553
          %v2574 = vmul.f32 %v2558, %v2554
          %v2575 = vmul.f32 %v2559, %v2551
          %v2576 = vmul.f32 %v2560, %v2552
          %v2577 = vmul.f32 %v2561, %v2553
          %v2578 = vmul.f32 %v2562, %v2554
          %v2579 = vmul.f32 %v2563, %v2551
          %v2580 = vmul.f32 %v2564, %v2552
          %v2581 = vmul.f32 %v2565, %v2553
          %v2582 = vmul.f32 %v2566, %v2554
          %v2583 = vmul.f32 %v2567, %v2551
          %v2584 = vmul.f32 %v2568, %v2552
          %v2585 = vmul.f32 %v2569, %v2553
          %v2586 = vmul.f32 %v2570, %v2554
          %v2587 = vld [vmem:[%s2] sm:$0xf]
          %v2589 = vlaneseq
          %v2590 = vshrl.u32 %v2589, 7
          %v2591 = vsub.s32 0, %v2590
          %v2592 = vrot.slane %v2587, %v2591
          %v2593 = vlaneseq
          %v2594 = vshrl.u32 %v2593, 7
          %v2595 = vsub.s32 1, %v2594
          %v2596 = vrot.slane %v2587, %v2595
          %v2597 = vlaneseq
          %v2598 = vshrl.u32 %v2597, 7
          %v2599 = vsub.s32 2, %v2598
          %v2600 = vrot.slane %v2587, %v2599
          %v2601 = vlaneseq
          %v2602 = vshrl.u32 %v2601, 7
          %v2603 = vsub.s32 3, %v2602
          %v2604 = vrot.slane %v2587, %v2603
          %v2609 = vmul.f32 %v2571, %v2592
          %v2610 = vmul.f32 %v2572, %v2596
          %v2611 = vmul.f32 %v2573, %v2600
          %v2612 = vmul.f32 %v2574, %v2604
          %v2613 = vmul.f32 %v2575, %v2592
          %v2614 = vmul.f32 %v2576, %v2596
          %v2615 = vmul.f32 %v2577, %v2600
          %v2616 = vmul.f32 %v2578, %v2604
          %v2617 = vmul.f32 %v2579, %v2592
          %v2618 = vmul.f32 %v2580, %v2596
          %v2619 = vmul.f32 %v2581, %v2600
          %v2620 = vmul.f32 %v2582, %v2604
          %v2621 = vmul.f32 %v2583, %v2592
          %v2622 = vmul.f32 %v2584, %v2596
          %v2623 = vmul.f32 %v2585, %v2600
          %v2624 = vmul.f32 %v2586, %v2604
          %v2625 = vld [vmem:[%s3] sm:$0xf]
          %v2627 = vlaneseq
          %v2628 = vshrl.u32 %v2627, 7
          %v2629 = vsub.s32 0, %v2628
          %v2630 = vrot.slane %v2625, %v2629
          %v2631 = vlaneseq
          %v2632 = vshrl.u32 %v2631, 7
          %v2633 = vsub.s32 1, %v2632
          %v2634 = vrot.slane %v2625, %v2633
          %v2635 = vlaneseq
          %v2636 = vshrl.u32 %v2635, 7
          %v2637 = vsub.s32 2, %v2636
          %v2638 = vrot.slane %v2625, %v2637
          %v2639 = vlaneseq
          %v2640 = vshrl.u32 %v2639, 7
          %v2641 = vsub.s32 3, %v2640
          %v2642 = vrot.slane %v2625, %v2641
          %v2647 = vadd.f32 %v2609, %v2630
          %v2648 = vadd.f32 %v2610, %v2634
          %v2649 = vadd.f32 %v2611, %v2638
          %v2650 = vadd.f32 %v2612, %v2642
          %v2651 = vadd.f32 %v2613, %v2630
          %v2652 = vadd.f32 %v2614, %v2634
          %v2653 = vadd.f32 %v2615, %v2638
          %v2654 = vadd.f32 %v2616, %v2642
          %v2655 = vadd.f32 %v2617, %v2630
          %v2656 = vadd.f32 %v2618, %v2634
          %v2657 = vadd.f32 %v2619, %v2638
          %v2658 = vadd.f32 %v2620, %v2642
          %v2659 = vadd.f32 %v2621, %v2630
          %v2660 = vadd.f32 %v2622, %v2634
          %v2661 = vadd.f32 %v2623, %v2638
          %v2662 = vadd.f32 %v2624, %v2642
          %vm2663 = vcmp.gt.f32.partialorder %v2647, 0.0
          %vm2664 = vcmp.gt.f32.partialorder %v2648, 0.0
          %vm2665 = vcmp.gt.f32.partialorder %v2649, 0.0
          %vm2666 = vcmp.gt.f32.partialorder %v2650, 0.0
          %vm2667 = vcmp.gt.f32.partialorder %v2651, 0.0
          %vm2668 = vcmp.gt.f32.partialorder %v2652, 0.0
          %vm2669 = vcmp.gt.f32.partialorder %v2653, 0.0
          %vm2670 = vcmp.gt.f32.partialorder %v2654, 0.0
          %vm2671 = vcmp.gt.f32.partialorder %v2655, 0.0
          %vm2672 = vcmp.gt.f32.partialorder %v2656, 0.0
          %vm2673 = vcmp.gt.f32.partialorder %v2657, 0.0
          %vm2674 = vcmp.gt.f32.partialorder %v2658, 0.0
          %vm2675 = vcmp.gt.f32.partialorder %v2659, 0.0
          %vm2676 = vcmp.gt.f32.partialorder %v2660, 0.0
          %vm2677 = vcmp.gt.f32.partialorder %v2661, 0.0
          %vm2678 = vcmp.gt.f32.partialorder %v2662, 0.0
          %v2679 = vmul.f32 %v2647, 0.2
          %v2680 = vmul.f32 %v2648, 0.2
          %v2681 = vmul.f32 %v2649, 0.2
          %v2682 = vmul.f32 %v2650, 0.2
          %v2683 = vmul.f32 %v2651, 0.2
          %v2684 = vmul.f32 %v2652, 0.2
          %v2685 = vmul.f32 %v2653, 0.2
          %v2686 = vmul.f32 %v2654, 0.2
          %v2687 = vmul.f32 %v2655, 0.2
          %v2688 = vmul.f32 %v2656, 0.2
          %v2689 = vmul.f32 %v2657, 0.2
          %v2690 = vmul.f32 %v2658, 0.2
          %v2691 = vmul.f32 %v2659, 0.2
          %v2692 = vmul.f32 %v2660, 0.2
          %v2693 = vmul.f32 %v2661, 0.2
          %v2694 = vmul.f32 %v2662, 0.2
          %v2695 = vsel %vm2663, %v2647, %v2679
          %v2696 = vsel %vm2664, %v2648, %v2680
          %v2697 = vsel %vm2665, %v2649, %v2681
          %v2698 = vsel %vm2666, %v2650, %v2682
          %v2699 = vsel %vm2667, %v2651, %v2683
          %v2700 = vsel %vm2668, %v2652, %v2684
          %v2701 = vsel %vm2669, %v2653, %v2685
          %v2702 = vsel %vm2670, %v2654, %v2686
          %v2703 = vsel %vm2671, %v2655, %v2687
          %v2704 = vsel %vm2672, %v2656, %v2688
          %v2705 = vsel %vm2673, %v2657, %v2689
          %v2706 = vsel %vm2674, %v2658, %v2690
          %v2707 = vsel %vm2675, %v2659, %v2691
          %v2708 = vsel %vm2676, %v2660, %v2692
          %v2709 = vsel %vm2677, %v2661, %v2693
          %v2710 = vsel %vm2678, %v2662, %v2694
          %2711 = vst [vmem:[%s293] sm:$0xff] %v2695
          %2712 = vst [vmem:[%s293 + $0x8] sm:$0xff] %v2696
          %2713 = vst [vmem:[%s293 + $0x10] sm:$0xff] %v2697
          %2714 = vst [vmem:[%s293 + $0x18] sm:$0xff] %v2698
          %2715 = vst [vmem:[%s293 + $0x20] sm:$0xff] %v2699
          %2716 = vst [vmem:[%s293 + $0x28] sm:$0xff] %v2700
          %2717 = vst [vmem:[%s293 + $0x30] sm:$0xff] %v2701
          %2718 = vst [vmem:[%s293 + $0x38] sm:$0xff] %v2702
          %2719 = vst [vmem:[%s293 + $0x40] sm:$0xff] %v2703
          %2720 = vst [vmem:[%s293 + $0x48] sm:$0xff] %v2704
          %2721 = vst [vmem:[%s293 + $0x50] sm:$0xff] %v2705
          %2722 = vst [vmem:[%s293 + $0x58] sm:$0xff] %v2706
          %2723 = vst [vmem:[%s293 + $0x60] sm:$0xff] %v2707
          %2724 = vst [vmem:[%s293 + $0x68] sm:$0xff] %v2708
          %2725 = vst [vmem:[%s293 + $0x70] sm:$0xff] %v2709
          %2726 = vst [vmem:[%s293 + $0x78] sm:$0xff] %v2710
        $region67: #{discriminator_forward.8} parent=54 // pred_fallthru
          _
        %s2727 = smul.u32 4, %s19
        %p2728 = scmp.lt.s32.totalorder %s2727, 3
        %s2729 = scalar_select %p2728, %s2727, 3
        %s2730 = smul.addr %s2729, 4
        %s2731 = smul.addr %s2730, 8
        %s2732 = scalar_lea.vmem %s4, %s2731
        // Predicated region
        $region68: #{discriminator_forward.8} parent=54 // pred_check
          %p2733 = pneg %p141
        $region69: #{discriminator_forward.8} parent=54 // pred_check_branch
          %2735 = sbr.rel (%p2733) target = $region71
        $region70: #{discriminator_forward.8} parent=54 // pred_region
          %s2736 = smul.u32 4, %s19
        $region71: #{discriminator_forward.8} parent=54 // pred_fallthru
          _
        // Predicated region
        $region72: #{discriminator_forward.8} parent=54 // pred_check
          %p2737 = pneg %p141
        $region73: #{discriminator_forward.8} parent=54 // pred_check_branch
          %2739 = sbr.rel (%p2737) target = $region75
        $region74: #{discriminator_forward.8} parent=54 // pred_region
          %s2740 = smul.u32 4, %s19
          %p2741 = scmp.lt.s32.totalorder %s2740, 3
          %s2742 = scalar_select %p2741, %s2740, 3
          %s2743 = smul.addr %s2742, 4
          %s2744 = smul.addr %s2743, 8
          %s2745 = scalar_lea.vmem %s4, %s2744
        $region75: #{discriminator_forward.8} parent=54 // pred_fallthru
          _
      $region55: #{discriminator_forward.8} parent=5 // pred_fallthru
        _
      %p2746 = scmp.le.s32.totalorder 2, %s10
      // Predicated region
      $region76: #{discriminator_forward.8} parent=5 // pred_check
        %p2747 = pneg %p2746
      $region77: #{discriminator_forward.8} parent=5 // pred_check_branch
        %2749 = sbr.rel (%p2747) target = $region79
      $region78: #{discriminator_forward.8} parent=5 // pred_region
        %s2750 = ssub.s32 %s10, 2
      $region79: #{discriminator_forward.8} parent=5 // pred_fallthru
        _
    $region6: #{discriminator_forward.8} parent=1 // loop_footer
      %s14 = sadd.s32 1, %s10
    $region7: #{discriminator_forward.8} parent=1 // loop_footer_branch
      %9 = sbr.rel target = $region3
    $region8: #{discriminator_forward.8} parent=1 // loop_exit
      _

</llo_original>
